<compile_context>
chip_gen: v6e
topology: v6e:2x2x1
jax: 0.10.0
libtpu: 0.0.40
codegen_flags: <defaults>
</compile_context>

<pallas_src>
import math

import jax
import jax.numpy as jnp
from jax import lax
from jax.experimental import pallas as pl
from jax.experimental.pallas import tpu as pltpu

# --- model configuration (small, consistent with the module __init__) -------
NTOKEN = 50       # ntoken
D = 32            # ninp (d_model)
H = 8             # attention_heads
HD = D // H       # head dim
DFF = 2048        # PyTorch TransformerEncoderLayer default dim_feedforward
NLAYERS = 2       # nlayers_encoder (constructor arg; small for the demo)
S = 8             # sequence length
B = 2             # batch
G = H * B         # merged attention batch (g = h*B + b)
N = B * S         # flattened token rows (row = b*S + s)
EPS = 1e-5        # LayerNorm eps (PyTorch default)


# ---------------------------------------------------------------------------
# Pallas kernel: the full TransformerEncoder stack.
# grid = (NLAYERS,); per-layer weights are stacked along the leading axis and
# selected by the BlockSpec index_map.  The output ref (constant block index)
# stays VMEM-resident across layers and carries the activations.
# ---------------------------------------------------------------------------
def encoder_stack_kernel(x_ref, wqkv_ref, bqkv_ref, wo_ref, bo_ref,
                         ln1w_ref, ln1b_ref, ln2w_ref, ln2b_ref,
                         w1_ref, b1_ref, w2_ref, b2_ref, y_ref):
    layer = pl.program_id(0)

    @pl.when(layer == 0)
    def _():
        y_ref[...] = x_ref[...]

    x = y_ref[...]                                            # (N, D)

    # ---- multi-head self attention, batched over g = h*B + b ------------
    # tile-aligned reshapes only (split sublane 16 -> (2,8), merge leading)
    xg = jnp.broadcast_to(x.reshape(B, S, D), (H, B, S, D)).reshape(G, S, D)

    qkv = jnp.einsum('gsd,gdk->gsk', xg, wqkv_ref[0],
                     preferred_element_type=jnp.float32) + bqkv_ref[0]
    q = qkv[..., :HD]                                         # (G, S, HD)
    k = qkv[..., HD:2 * HD]
    v = qkv[..., 2 * HD:]

    sc = jnp.einsum('gqd,gkd->gqk', q, k,
                    preferred_element_type=jnp.float32) * (1.0 / math.sqrt(HD))
    sc = sc - jnp.max(sc, axis=-1, keepdims=True)
    prob = jnp.exp(sc)
    prob = prob / jnp.sum(prob, axis=-1, keepdims=True)

    o = jnp.einsum('gqk,gkd->gqd', prob, v,
                   preferred_element_type=jnp.float32)        # (G, S, HD)
    attn = jnp.einsum('gsk,gkd->gsd', o, wo_ref[0],
                      preferred_element_type=jnp.float32)     # (G, S, D)
    attn = jnp.sum(attn.reshape(H, B, S, D), axis=0).reshape(N, D) + bo_ref[0]

    # residual + LayerNorm1 (post-norm, PyTorch default norm_first=False)
    x = x + attn
    mu = jnp.mean(x, axis=-1, keepdims=True)
    var = jnp.mean((x - mu) ** 2, axis=-1, keepdims=True)
    x = (x - mu) * lax.rsqrt(var + EPS) * ln1w_ref[0] + ln1b_ref[0]

    # ---- feed forward (relu) ---------------------------------------------
    h1 = jnp.dot(x, w1_ref[0], preferred_element_type=jnp.float32) + b1_ref[0]
    h1 = jnp.maximum(h1, 0.0)
    # w2 stored lane-dense as (D, DFF); contract both last dims (trans_b)
    ff = lax.dot_general(h1, w2_ref[0], (((1,), (1,)), ((), ())),
                         preferred_element_type=jnp.float32) + b2_ref[0]

    # residual + LayerNorm2
    x = x + ff
    mu = jnp.mean(x, axis=-1, keepdims=True)
    var = jnp.mean((x - mu) ** 2, axis=-1, keepdims=True)
    x = (x - mu) * lax.rsqrt(var + EPS) * ln2w_ref[0] + ln2b_ref[0]

    y_ref[...] = x                                            # layer carry


def run_encoder_stack(x2d, p):
    n = x2d.shape[0]

    def wspec(shape):
        zeros = (0,) * len(shape)
        return pl.BlockSpec((1,) + shape, lambda l, zeros=zeros: (l,) + zeros)

    return pl.pallas_call(
        encoder_stack_kernel,
        out_shape=jax.ShapeDtypeStruct((n, D), jnp.float32),
        grid_spec=pltpu.PrefetchScalarGridSpec(
            num_scalar_prefetch=0,
            grid=(NLAYERS,),
            in_specs=[
                pl.BlockSpec((n, D), lambda l: (0, 0)),   # layer-0 activations
                wspec((G, D, 3 * HD)),                    # per-(h,b) qkv proj
                wspec((G, 1, 3 * HD)),                    # per-(h,b) qkv bias
                wspec((G, HD, D)),                        # per-(h,b) out proj
                wspec((1, D)),                            # out-proj bias
                wspec((1, D)), wspec((1, D)),             # layernorm1
                wspec((1, D)), wspec((1, D)),             # layernorm2
                wspec((D, DFF)), wspec((1, DFF)),         # ffn linear1 (lane-dense)
                wspec((D, DFF)), wspec((1, D)),           # ffn linear2 (lane-dense, trans_b)
            ],
            out_specs=pl.BlockSpec((n, D), lambda l: (0, 0)),
        ),
        compiler_params=pltpu.CompilerParams(dimension_semantics=("arbitrary",)),
    )(x2d, p["wqkv_g"], p["bqkv_g"], p["wo_g"], p["bo"],
      p["ln1w"], p["ln1b"], p["ln2w"], p["ln2b"],
      p["w1_t"], p["b1"], p["w2"], p["b2"])


# ---------------------------------------------------------------------------
# Forward pass (mirrors DiscriminatorModel.forward)
# ---------------------------------------------------------------------------
def make_pe(max_len, d):
    pos = jnp.arange(max_len, dtype=jnp.float32)[:, None]
    div = jnp.exp(jnp.arange(0, d, 2, dtype=jnp.float32)
                  * (-math.log(10000.0) / d))
    pe = jnp.zeros((max_len, d), jnp.float32)
    pe = pe.at[:, 0::2].set(jnp.sin(pos * div))
    pe = pe.at[:, 1::2].set(jnp.cos(pos * div))
    return pe


def discriminator_forward(tokens, p):
    # tokens: (S, B) int32 — PyTorch seq-first convention
    emb = p["emb"][tokens] * math.sqrt(D)                    # (S, B, D)
    x = emb + p["pe"][:S][:, None, :]                        # positional encoding
    x2d = jnp.transpose(x, (1, 0, 2)).reshape(N, D).astype(jnp.float32)

    enc2d = run_encoder_stack(x2d, p)                        # (B*S, D)
    enc_sbd = jnp.transpose(enc2d.reshape(B, S, D), (1, 0, 2))   # (S, B, D)

    last_state = enc_sbd[S - 1]                              # (B, D)
    # reproduce PyTorch's memory-reinterpreting .view(B, D, S) + AdaptiveAvgPool1d(1)
    disc_avg = jnp.mean(jnp.reshape(enc_sbd, (B, D, S)), axis=-1)  # (B, D)

    rep = jnp.concatenate([disc_avg, last_state], axis=1)    # (B, 2D)
    # final Linear(2D, 1) in plain JAX — cheaper than a pallas_call launch.
    return rep @ p["fc_w"].T + p["fc_b"]                     # (B, 1)


# ---------------------------------------------------------------------------
# Deterministic parameter init (shapes as in the module __init__)
# ---------------------------------------------------------------------------
def init_params(key):
    keys = jax.random.split(key, 4)
    emb = jax.random.uniform(keys[0], (NTOKEN, D), jnp.float32, -0.1, 0.1)

    lk = jax.random.split(keys[1], NLAYERS * 8)
    w_in, w_o, w_1, w_2, b_in, b_o, b_1, b_2 = [], [], [], [], [], [], [], []
    for l in range(NLAYERS):
        w_in.append(jax.random.normal(lk[8 * l + 0], (3 * D, D)) / math.sqrt(D))
        w_o.append(jax.random.normal(lk[8 * l + 1], (D, D)) / math.sqrt(D))
        w_1.append(jax.random.normal(lk[8 * l + 2], (DFF, D)) / math.sqrt(D))
        w_2.append(jax.random.normal(lk[8 * l + 3], (D, DFF)) / math.sqrt(DFF))
        b_in.append(0.01 * jax.random.normal(lk[8 * l + 4], (3 * D,)))
        b_o.append(0.01 * jax.random.normal(lk[8 * l + 5], (D,)))
        b_1.append(0.01 * jax.random.normal(lk[8 * l + 6], (DFF,)))
        b_2.append(0.01 * jax.random.normal(lk[8 * l + 7], (D,)))

    # ---- per-(head, batch) weight layouts for the kernel (g = h*B + b) ----
    def per_head_qkv(w):                                   # w: (3D, D)
        wt = w.T                                           # (D, 3D) = [q | k | v]
        heads = [jnp.concatenate(
            [wt[:, 0 * D + h * HD:0 * D + (h + 1) * HD],
             wt[:, 1 * D + h * HD:1 * D + (h + 1) * HD],
             wt[:, 2 * D + h * HD:2 * D + (h + 1) * HD]], axis=1)
            for h in range(H)]
        return jnp.stack(heads)                            # (H, D, 3*HD)

    def per_head_bqkv(b):                                  # b: (3D,)
        heads = [jnp.concatenate(
            [b[0 * D + h * HD:0 * D + (h + 1) * HD],
             b[1 * D + h * HD:1 * D + (h + 1) * HD],
             b[2 * D + h * HD:2 * D + (h + 1) * HD]])
            for h in range(H)]
        return jnp.stack(heads)[:, None, :]                # (H, 1, 3*HD)

    def per_head_wo(w):                                    # w: (D, D)
        wt = w.T                                           # (concat-in, out)
        return jnp.stack([wt[h * HD:(h + 1) * HD, :] for h in range(H)])  # (H, HD, D)

    wqkv_g = jnp.stack([jnp.repeat(per_head_qkv(w), B, axis=0) for w in w_in])   # (L, G, D, 3HD)
    bqkv_g = jnp.stack([jnp.repeat(per_head_bqkv(b), B, axis=0) for b in b_in])  # (L, G, 1, 3HD)
    wo_g = jnp.stack([jnp.repeat(per_head_wo(w), B, axis=0) for w in w_o])       # (L, G, HD, D)

    fc_w = jax.random.normal(keys[2], (1, 2 * D)) * math.sqrt(2.0 / (2 * D + 1))

    return {
        "emb": emb,
        "pe": make_pe(5000, D)[:S],
        # kernel (per-g) attention layouts
        "wqkv_g": wqkv_g, "bqkv_g": bqkv_g, "wo_g": wo_g,
        "bo": jnp.stack(b_o).reshape(NLAYERS, 1, D),
        # dense layouts (used by the pure-JAX reference)
        "wqkv_t": jnp.stack([w.T for w in w_in]),          # (L, D, 3D)
        "bqkv": jnp.stack(b_in).reshape(NLAYERS, 1, 3 * D),
        "wo_t": jnp.stack([w.T for w in w_o]),             # (L, D, D)
        # layernorms
        "ln1w": jnp.ones((NLAYERS, 1, D), jnp.float32),
        "ln1b": jnp.zeros((NLAYERS, 1, D), jnp.float32),
        "ln2w": jnp.ones((NLAYERS, 1, D), jnp.float32),
        "ln2b": jnp.zeros((NLAYERS, 1, D), jnp.float32),
        # FFN (both lane-dense: last dim = DFF = 2048)
        "w1_t": jnp.stack([w.T for w in w_1]),             # (L, D, DFF)
        "b1": jnp.stack(b_1).reshape(NLAYERS, 1, DFF),
        "w2": jnp.stack(w_2),                              # (L, D, DFF)
        "b2": jnp.stack(b_2).reshape(NLAYERS, 1, D),
        # classifier
        "fc_w": fc_w.astype(jnp.float32),                  # (1, 2D)
        "fc_b": jnp.full((1, 1), 0.01, jnp.float32),
    }


# ---------------------------------------------------------------------------
# Pure-JAX reference (independent per-head formulation) for correctness
# ---------------------------------------------------------------------------
def ref_forward(tokens, p):
    emb = p["emb"][tokens] * math.sqrt(D)
    x = emb + p["pe"][:S][:, None, :]
    h = jnp.transpose(x, (1, 0, 2)).reshape(N, D).astype(jnp.float32)
    for l in range(NLAYERS):
        qkv = h @ p["wqkv_t"][l] + p["bqkv"][l]
        q, k, v = qkv[:, :D], qkv[:, D:2 * D], qkv[:, 2 * D:]
        rows = []
        for b in range(B):
            r = slice(b * S, (b + 1) * S)
            heads = []
            for hh in range(H):
                c = slice(hh * HD, (hh + 1) * HD)
                sc = (q[r, c] @ k[r, c].T) / math.sqrt(HD)
                heads.append(jax.nn.softmax(sc, axis=-1) @ v[r, c])
            rows.append(jnp.concatenate(heads, axis=1))
        attn = jnp.concatenate(rows, axis=0) @ p["wo_t"][l] + p["bo"][l]
        h = h + attn
        mu = h.mean(-1, keepdims=True)
        var = ((h - mu) ** 2).mean(-1, keepdims=True)
        h = (h - mu) / jnp.sqrt(var + EPS) * p["ln1w"][l] + p["ln1b"][l]
        ff = (jnp.maximum(h @ p["w1_t"][l] + p["b1"][l], 0.0) @ p["w2"][l].T
              + p["b2"][l])
        h = h + ff
        mu = h.mean(-1, keepdims=True)
        var = ((h - mu) ** 2).mean(-1, keepdims=True)
        h = (h - mu) / jnp.sqrt(var + EPS) * p["ln2w"][l] + p["ln2b"][l]
    enc_sbd = jnp.transpose(h.reshape(B, S, D), (1, 0, 2))
    last = enc_sbd[S - 1]
    avg = jnp.reshape(enc_sbd, (B, D, S)).mean(-1)
    rep = jnp.concatenate([avg, last], axis=1)
    return jnp.sum(rep * p["fc_w"], axis=-1, keepdims=True) + p["fc_b"]


if __name__ == "__main__":
    key = jax.random.PRNGKey(0)
    pkey, tkey = jax.random.split(key)
    params = init_params(pkey)
    tokens = jax.random.randint(tkey, (S, B), 0, NTOKEN, dtype=jnp.int32)

    out = jax.block_until_ready(discriminator_forward(tokens, params))
    ref = jax.block_until_ready(ref_forward(tokens, params))

    assert out.shape == (B, 1), out.shape
    assert jnp.allclose(out, ref, atol=1e-3, rtol=1e-3), (out, ref)
    print("KERNEL_OK")
</pallas_src>

<mosaic_0001>
module attributes {stable_mosaic.version = 11 : i64} {
  func.func @encoder_stack_kernel(%arg0: i32, %arg1: memref<16x32xf32, #tpu.memory_space<vmem>>, %arg2: memref<1x16x32x12xf32, #tpu.memory_space<vmem>>, %arg3: memref<1x16x1x12xf32, #tpu.memory_space<vmem>>, %arg4: memref<1x16x4x32xf32, #tpu.memory_space<vmem>>, %arg5: memref<1x1x32xf32, #tpu.memory_space<vmem>>, %arg6: memref<1x1x32xf32, #tpu.memory_space<vmem>>, %arg7: memref<1x1x32xf32, #tpu.memory_space<vmem>>, %arg8: memref<1x1x32xf32, #tpu.memory_space<vmem>>, %arg9: memref<1x1x32xf32, #tpu.memory_space<vmem>>, %arg10: memref<1x32x2048xf32, #tpu.memory_space<vmem>>, %arg11: memref<1x1x2048xf32, #tpu.memory_space<vmem>>, %arg12: memref<1x32x2048xf32, #tpu.memory_space<vmem>>, %arg13: memref<1x1x32xf32, #tpu.memory_space<vmem>>, %arg14: memref<16x32xf32, #tpu.memory_space<vmem>>) attributes {dimension_semantics = [#tpu.dimension_semantics<arbitrary>], iteration_bounds = array<i64: 2>, scalar_prefetch = 0 : i64, scratch_operands = 0 : i64, tpu.core_type = #tpu.core_type<tc>, window_params = [{pipeline_mode = #tpu.pipeline_mode<synchronous>, transform_indices = @transform_0, window_bounds = array<i64: 16, 32>}, {transform_indices = @transform_1, window_bounds = array<i64: 1, 16, 32, 12>}, {transform_indices = @transform_2, window_bounds = array<i64: 1, 16, 1, 12>}, {transform_indices = @transform_3, window_bounds = array<i64: 1, 16, 4, 32>}, {transform_indices = @transform_4, window_bounds = array<i64: 1, 1, 32>}, {transform_indices = @transform_5, window_bounds = array<i64: 1, 1, 32>}, {transform_indices = @transform_6, window_bounds = array<i64: 1, 1, 32>}, {transform_indices = @transform_7, window_bounds = array<i64: 1, 1, 32>}, {transform_indices = @transform_8, window_bounds = array<i64: 1, 1, 32>}, {transform_indices = @transform_9, window_bounds = array<i64: 1, 32, 2048>}, {transform_indices = @transform_10, window_bounds = array<i64: 1, 1, 2048>}, {transform_indices = @transform_11, window_bounds = array<i64: 1, 32, 2048>}, {transform_indices = @transform_12, window_bounds = array<i64: 1, 1, 32>}, {pipeline_mode = #tpu.pipeline_mode<synchronous>, transform_indices = @transform_13, window_bounds = array<i64: 16, 32>}]} {
    %c0_i32 = arith.constant 0 : i32
    %0 = arith.cmpi eq, %arg0, %c0_i32 : i32
    %1 = arith.extui %0 : i1 to i32
    %c0_i32_0 = arith.constant 0 : i32
    %2 = arith.cmpi ne, %1, %c0_i32_0 : i32
    scf.if %2 {
      %c0_63 = arith.constant 0 : index
      %c0_64 = arith.constant 0 : index
      %112 = vector.load %arg1[%c0_63, %c0_64] : memref<16x32xf32, #tpu.memory_space<vmem>>, vector<16x32xf32>
      %c0_65 = arith.constant 0 : index
      %c0_66 = arith.constant 0 : index
      %113 = vector.load %arg14[%c0_65, %c0_66] : memref<16x32xf32, #tpu.memory_space<vmem>>, vector<16x32xf32>
      tpu.vector_store %arg14[%c0_65, %c0_66], %112 {strides = array<i32>} : memref<16x32xf32, #tpu.memory_space<vmem>>, vector<16x32xf32>,
    } else {
    }
    %c0 = arith.constant 0 : index
    %c0_1 = arith.constant 0 : index
    %3 = vector.load %arg14[%c0, %c0_1] : memref<16x32xf32, #tpu.memory_space<vmem>>, vector<16x32xf32>
    %4 = vector.shape_cast %3 : vector<16x32xf32> to vector<2x8x32xf32>
    %5 = vector.shape_cast %4 : vector<2x8x32xf32> to vector<1x2x8x32xf32>
    %6 = vector.broadcast %5 : vector<1x2x8x32xf32> to vector<8x2x8x32xf32>
    %7 = vector.shape_cast %6 : vector<8x2x8x32xf32> to vector<16x8x32xf32>
    %c0_2 = arith.constant 0 : index
    %c0_3 = arith.constant 0 : index
    %c0_4 = arith.constant 0 : index
    %c0_5 = arith.constant 0 : index
    %8 = vector.load %arg2[%c0_2, %c0_3, %c0_4, %c0_5] : memref<1x16x32x12xf32, #tpu.memory_space<vmem>>, vector<1x16x32x12xf32>
    %9 = vector.shape_cast %8 : vector<1x16x32x12xf32> to vector<16x32x12xf32>
    "tpu.trace_start"() <{level = 10 : i32, message = "gsd,gdk->gsk"}> : () -> ()
    %cst = arith.constant dense<0.000000e+00> : vector<16x8x12xf32>
    %10 = tpu.matmul %7, %9, %cst {dimension_numbers = #tpu.dot_dimension_numbers<[2], [1], [1], [2], [0, 0, 0, 1, 1, 2], [0], [0]>} : vector<16x8x32xf32>, vector<16x32x12xf32>, vector<16x8x12xf32> -> vector<16x8x12xf32>
    "tpu.trace_stop"() : () -> ()
    %c0_6 = arith.constant 0 : index
    %c0_7 = arith.constant 0 : index
    %c0_8 = arith.constant 0 : index
    %c0_9 = arith.constant 0 : index
    %11 = vector.load %arg3[%c0_6, %c0_7, %c0_8, %c0_9] : memref<1x16x1x12xf32, #tpu.memory_space<vmem>>, vector<1x16x1x12xf32>
    %12 = vector.shape_cast %11 : vector<1x16x1x12xf32> to vector<16x1x12xf32>
    %13 = vector.broadcast %12 : vector<16x1x12xf32> to vector<16x8x12xf32>
    %14 = arith.addf %10, %13 : vector<16x8x12xf32>
    %15 = vector.extract_strided_slice %14 {offsets = [0, 0, 0], sizes = [16, 8, 4], strides = [1, 1, 1]} : vector<16x8x12xf32> to vector<16x8x4xf32>
    %16 = vector.extract_strided_slice %14 {offsets = [0, 0, 4], sizes = [16, 8, 4], strides = [1, 1, 1]} : vector<16x8x12xf32> to vector<16x8x4xf32>
    %17 = vector.extract_strided_slice %14 {offsets = [0, 0, 8], sizes = [16, 8, 4], strides = [1, 1, 1]} : vector<16x8x12xf32> to vector<16x8x4xf32>
    "tpu.trace_start"() <{level = 10 : i32, message = "gqd,gkd->gqk"}> : () -> ()
    %cst_10 = arith.constant dense<0.000000e+00> : vector<16x8x8xf32>
    %18 = tpu.matmul %15, %16, %cst_10 {dimension_numbers = #tpu.dot_dimension_numbers<[2], [2], [1], [1], [0, 0, 0, 1, 1, 1], [0], [0]>} : vector<16x8x4xf32>, vector<16x8x4xf32>, vector<16x8x8xf32> -> vector<16x8x8xf32>
    "tpu.trace_stop"() : () -> ()
    %cst_11 = arith.constant 5.000000e-01 : f32
    %19 = vector.broadcast %cst_11 : f32 to vector<16x8x8xf32>
    %20 = arith.mulf %18, %19 : vector<16x8x8xf32>
    %cst_12 = arith.constant dense<0xFF800000> : vector<16x8xf32>
    %21 = vector.multi_reduction <maximumf>, %20, %cst_12 [2] : vector<16x8x8xf32> to vector<16x8xf32>
    %22 = vector.shape_cast %21 : vector<16x8xf32> to vector<16x8x1xf32>
    %23 = vector.broadcast %22 : vector<16x8x1xf32> to vector<16x8x8xf32>
    %24 = arith.subf %20, %23 : vector<16x8x8xf32>
    %25 = math.exp %24 : vector<16x8x8xf32>
    %cst_13 = arith.constant dense<0.000000e+00> : vector<16x8xf32>
    %26 = vector.multi_reduction <add>, %25, %cst_13 [2] : vector<16x8x8xf32> to vector<16x8xf32>
    %27 = vector.shape_cast %26 : vector<16x8xf32> to vector<16x8x1xf32>
    %28 = vector.broadcast %27 : vector<16x8x1xf32> to vector<16x8x8xf32>
    %29 = arith.divf %25, %28 : vector<16x8x8xf32>
    "tpu.trace_start"() <{level = 10 : i32, message = "gqk,gkd->gqd"}> : () -> ()
    %cst_14 = arith.constant dense<0.000000e+00> : vector<16x8x4xf32>
    %30 = tpu.matmul %29, %17, %cst_14 {dimension_numbers = #tpu.dot_dimension_numbers<[2], [1], [1], [2], [0, 0, 0, 1, 1, 2], [0], [0]>} : vector<16x8x8xf32>, vector<16x8x4xf32>, vector<16x8x4xf32> -> vector<16x8x4xf32>
    "tpu.trace_stop"() : () -> ()
    %c0_15 = arith.constant 0 : index
    %c0_16 = arith.constant 0 : index
    %c0_17 = arith.constant 0 : index
    %c0_18 = arith.constant 0 : index
    %31 = vector.load %arg4[%c0_15, %c0_16, %c0_17, %c0_18] : memref<1x16x4x32xf32, #tpu.memory_space<vmem>>, vector<1x16x4x32xf32>
    %32 = vector.shape_cast %31 : vector<1x16x4x32xf32> to vector<16x4x32xf32>
    "tpu.trace_start"() <{level = 10 : i32, message = "gsk,gkd->gsd"}> : () -> ()
    %cst_19 = arith.constant dense<0.000000e+00> : vector<16x8x32xf32>
    %33 = tpu.matmul %30, %32, %cst_19 {dimension_numbers = #tpu.dot_dimension_numbers<[2], [1], [1], [2], [0, 0, 0, 1, 1, 2], [0], [0]>} : vector<16x8x4xf32>, vector<16x4x32xf32>, vector<16x8x32xf32> -> vector<16x8x32xf32>
    "tpu.trace_stop"() : () -> ()
    %34 = vector.shape_cast %33 : vector<16x8x32xf32> to vector<8x2x8x32xf32>
    %cst_20 = arith.constant dense<0.000000e+00> : vector<2x8x32xf32>
    %35 = vector.multi_reduction <add>, %34, %cst_20 [0] : vector<8x2x8x32xf32> to vector<2x8x32xf32>
    %36 = vector.shape_cast %35 : vector<2x8x32xf32> to vector<16x32xf32>
    %c0_21 = arith.constant 0 : index
    %c0_22 = arith.constant 0 : index
    %c0_23 = arith.constant 0 : index
    %37 = vector.load %arg5[%c0_21, %c0_22, %c0_23] : memref<1x1x32xf32, #tpu.memory_space<vmem>>, vector<1x1x32xf32>
    %38 = vector.shape_cast %37 : vector<1x1x32xf32> to vector<1x32xf32>
    %39 = vector.broadcast %38 : vector<1x32xf32> to vector<16x32xf32>
    %40 = arith.addf %36, %39 : vector<16x32xf32>
    %41 = arith.addf %3, %40 : vector<16x32xf32>
    %cst_24 = arith.constant dense<0.000000e+00> : vector<16xf32>
    %42 = vector.multi_reduction <add>, %41, %cst_24 [1] : vector<16x32xf32> to vector<16xf32>
    %43 = vector.shape_cast %42 : vector<16xf32> to vector<16x1xf32>
    %cst_25 = arith.constant 3.200000e+01 : f32
    %44 = vector.broadcast %cst_25 : f32 to vector<16x1xf32>
    %45 = arith.divf %43, %44 : vector<16x1xf32>
    %46 = vector.broadcast %45 : vector<16x1xf32> to vector<16x32xf32>
    %47 = arith.subf %41, %46 : vector<16x32xf32>
    %48 = arith.mulf %47, %47 : vector<16x32xf32>
    %cst_26 = arith.constant dense<0.000000e+00> : vector<16xf32>
    %49 = vector.multi_reduction <add>, %48, %cst_26 [1] : vector<16x32xf32> to vector<16xf32>
    %50 = vector.shape_cast %49 : vector<16xf32> to vector<16x1xf32>
    %cst_27 = arith.constant 3.200000e+01 : f32
    %51 = vector.broadcast %cst_27 : f32 to vector<16x1xf32>
    %52 = arith.divf %50, %51 : vector<16x1xf32>
    %53 = vector.broadcast %45 : vector<16x1xf32> to vector<16x32xf32>
    %54 = arith.subf %41, %53 : vector<16x32xf32>
    %cst_28 = arith.constant 9.99999974E-6 : f32
    %55 = vector.broadcast %cst_28 : f32 to vector<16x1xf32>
    %56 = arith.addf %52, %55 : vector<16x1xf32>
    %57 = math.rsqrt %56 : vector<16x1xf32>
    %58 = vector.broadcast %57 : vector<16x1xf32> to vector<16x32xf32>
    %59 = arith.mulf %54, %58 : vector<16x32xf32>
    %c0_29 = arith.constant 0 : index
    %c0_30 = arith.constant 0 : index
    %c0_31 = arith.constant 0 : index
    %60 = vector.load %arg6[%c0_29, %c0_30, %c0_31] : memref<1x1x32xf32, #tpu.memory_space<vmem>>, vector<1x1x32xf32>
    %61 = vector.shape_cast %60 : vector<1x1x32xf32> to vector<1x32xf32>
    %62 = vector.broadcast %61 : vector<1x32xf32> to vector<16x32xf32>
    %63 = arith.mulf %59, %62 : vector<16x32xf32>
    %c0_32 = arith.constant 0 : index
    %c0_33 = arith.constant 0 : index
    %c0_34 = arith.constant 0 : index
    %64 = vector.load %arg7[%c0_32, %c0_33, %c0_34] : memref<1x1x32xf32, #tpu.memory_space<vmem>>, vector<1x1x32xf32>
    %65 = vector.shape_cast %64 : vector<1x1x32xf32> to vector<1x32xf32>
    %66 = vector.broadcast %65 : vector<1x32xf32> to vector<16x32xf32>
    %67 = arith.addf %63, %66 : vector<16x32xf32>
    %c0_35 = arith.constant 0 : index
    %c0_36 = arith.constant 0 : index
    %c0_37 = arith.constant 0 : index
    %68 = vector.load %arg10[%c0_35, %c0_36, %c0_37] : memref<1x32x2048xf32, #tpu.memory_space<vmem>>, vector<1x32x2048xf32>
    %69 = vector.shape_cast %68 : vector<1x32x2048xf32> to vector<32x2048xf32>
    %cst_38 = arith.constant dense<0.000000e+00> : vector<16x2048xf32>
    %70 = tpu.matmul %67, %69, %cst_38 {dimension_numbers = #tpu.dot_dimension_numbers<[1], [0], [0], [1], [0, 0, 1, 1], [], []>} : vector<16x32xf32>, vector<32x2048xf32>, vector<16x2048xf32> -> vector<16x2048xf32>
    %c0_39 = arith.constant 0 : index
    %c0_40 = arith.constant 0 : index
    %c0_41 = arith.constant 0 : index
    %71 = vector.load %arg11[%c0_39, %c0_40, %c0_41] : memref<1x1x2048xf32, #tpu.memory_space<vmem>>, vector<1x1x2048xf32>
    %72 = vector.shape_cast %71 : vector<1x1x2048xf32> to vector<1x2048xf32>
    %73 = vector.broadcast %72 : vector<1x2048xf32> to vector<16x2048xf32>
    %74 = arith.addf %70, %73 : vector<16x2048xf32>
    %cst_42 = arith.constant 0.000000e+00 : f32
    %75 = vector.broadcast %cst_42 : f32 to vector<16x2048xf32>
    %76 = arith.maximumf %74, %75 : vector<16x2048xf32>
    %c0_43 = arith.constant 0 : index
    %c0_44 = arith.constant 0 : index
    %c0_45 = arith.constant 0 : index
    %77 = vector.load %arg12[%c0_43, %c0_44, %c0_45] : memref<1x32x2048xf32, #tpu.memory_space<vmem>>, vector<1x32x2048xf32>
    %78 = vector.shape_cast %77 : vector<1x32x2048xf32> to vector<32x2048xf32>
    %cst_46 = arith.constant dense<0.000000e+00> : vector<16x32xf32>
    %79 = tpu.matmul %76, %78, %cst_46 {dimension_numbers = #tpu.dot_dimension_numbers<[1], [1], [0], [0], [0, 0, 1, 0], [], []>} : vector<16x2048xf32>, vector<32x2048xf32>, vector<16x32xf32> -> vector<16x32xf32>
    %c0_47 = arith.constant 0 : index
    %c0_48 = arith.constant 0 : index
    %c0_49 = arith.constant 0 : index
    %80 = vector.load %arg13[%c0_47, %c0_48, %c0_49] : memref<1x1x32xf32, #tpu.memory_space<vmem>>, vector<1x1x32xf32>
    %81 = vector.shape_cast %80 : vector<1x1x32xf32> to vector<1x32xf32>
    %82 = vector.broadcast %81 : vector<1x32xf32> to vector<16x32xf32>
    %83 = arith.addf %79, %82 : vector<16x32xf32>
    %84 = arith.addf %67, %83 : vector<16x32xf32>
    %cst_50 = arith.constant dense<0.000000e+00> : vector<16xf32>
    %85 = vector.multi_reduction <add>, %84, %cst_50 [1] : vector<16x32xf32> to vector<16xf32>
    %86 = vector.shape_cast %85 : vector<16xf32> to vector<16x1xf32>
    %cst_51 = arith.constant 3.200000e+01 : f32
    %87 = vector.broadcast %cst_51 : f32 to vector<16x1xf32>
    %88 = arith.divf %86, %87 : vector<16x1xf32>
    %89 = vector.broadcast %88 : vector<16x1xf32> to vector<16x32xf32>
    %90 = arith.subf %84, %89 : vector<16x32xf32>
    %91 = arith.mulf %90, %90 : vector<16x32xf32>
    %cst_52 = arith.constant dense<0.000000e+00> : vector<16xf32>
    %92 = vector.multi_reduction <add>, %91, %cst_52 [1] : vector<16x32xf32> to vector<16xf32>
    %93 = vector.shape_cast %92 : vector<16xf32> to vector<16x1xf32>
    %cst_53 = arith.constant 3.200000e+01 : f32
    %94 = vector.broadcast %cst_53 : f32 to vector<16x1xf32>
    %95 = arith.divf %93, %94 : vector<16x1xf32>
    %96 = vector.broadcast %88 : vector<16x1xf32> to vector<16x32xf32>
    %97 = arith.subf %84, %96 : vector<16x32xf32>
    %cst_54 = arith.constant 9.99999974E-6 : f32
    %98 = vector.broadcast %cst_54 : f32 to vector<16x1xf32>
    %99 = arith.addf %95, %98 : vector<16x1xf32>
    %100 = math.rsqrt %99 : vector<16x1xf32>
    %101 = vector.broadcast %100 : vector<16x1xf32> to vector<16x32xf32>
    %102 = arith.mulf %97, %101 : vector<16x32xf32>
    %c0_55 = arith.constant 0 : index
    %c0_56 = arith.constant 0 : index
    %c0_57 = arith.constant 0 : index
    %103 = vector.load %arg8[%c0_55, %c0_56, %c0_57] : memref<1x1x32xf32, #tpu.memory_space<vmem>>, vector<1x1x32xf32>
    %104 = vector.shape_cast %103 : vector<1x1x32xf32> to vector<1x32xf32>
    %105 = vector.broadcast %104 : vector<1x32xf32> to vector<16x32xf32>
    %106 = arith.mulf %102, %105 : vector<16x32xf32>
    %c0_58 = arith.constant 0 : index
    %c0_59 = arith.constant 0 : index
    %c0_60 = arith.constant 0 : index
    %107 = vector.load %arg9[%c0_58, %c0_59, %c0_60] : memref<1x1x32xf32, #tpu.memory_space<vmem>>, vector<1x1x32xf32>
    %108 = vector.shape_cast %107 : vector<1x1x32xf32> to vector<1x32xf32>
    %109 = vector.broadcast %108 : vector<1x32xf32> to vector<16x32xf32>
    %110 = arith.addf %106, %109 : vector<16x32xf32>
    %c0_61 = arith.constant 0 : index
    %c0_62 = arith.constant 0 : index
    %111 = vector.load %arg14[%c0_61, %c0_62] : memref<16x32xf32, #tpu.memory_space<vmem>>, vector<16x32xf32>
    tpu.vector_store %arg14[%c0_61, %c0_62], %110 {strides = array<i32>} : memref<16x32xf32, #tpu.memory_space<vmem>>, vector<16x32xf32>,
    return
  }
  func.func @transform_0(%arg0: i32) -> (i32, i32) {
    %c0_i32 = arith.constant 0 : i32
    %c0_i32_0 = arith.constant 0 : i32
    %c0_i32_1 = arith.constant 0 : i32
    return %c0_i32, %c0_i32_0 : i32, i32
  }
  func.func @transform_1(%arg0: i32) -> (i32, i32, i32, i32) {
    %c0_i32 = arith.constant 0 : i32
    %c0_i32_0 = arith.constant 0 : i32
    %c0_i32_1 = arith.constant 0 : i32
    %c0_i32_2 = arith.constant 0 : i32
    return %arg0, %c0_i32, %c0_i32_0, %c0_i32_1 : i32, i32, i32, i32
  }
  func.func @transform_2(%arg0: i32) -> (i32, i32, i32, i32) {
    %c0_i32 = arith.constant 0 : i32
    %c0_i32_0 = arith.constant 0 : i32
    %c0_i32_1 = arith.constant 0 : i32
    %c0_i32_2 = arith.constant 0 : i32
    return %arg0, %c0_i32, %c0_i32_0, %c0_i32_1 : i32, i32, i32, i32
  }
  func.func @transform_3(%arg0: i32) -> (i32, i32, i32, i32) {
    %c0_i32 = arith.constant 0 : i32
    %c0_i32_0 = arith.constant 0 : i32
    %c0_i32_1 = arith.constant 0 : i32
    %c0_i32_2 = arith.constant 0 : i32
    return %arg0, %c0_i32, %c0_i32_0, %c0_i32_1 : i32, i32, i32, i32
  }
  func.func @transform_4(%arg0: i32) -> (i32, i32, i32) {
    %c0_i32 = arith.constant 0 : i32
    %c0_i32_0 = arith.constant 0 : i32
    %c0_i32_1 = arith.constant 0 : i32
    return %arg0, %c0_i32, %c0_i32_0 : i32, i32, i32
  }
  func.func @transform_5(%arg0: i32) -> (i32, i32, i32) {
    %c0_i32 = arith.constant 0 : i32
    %c0_i32_0 = arith.constant 0 : i32
    %c0_i32_1 = arith.constant 0 : i32
    return %arg0, %c0_i32, %c0_i32_0 : i32, i32, i32
  }
  func.func @transform_6(%arg0: i32) -> (i32, i32, i32) {
    %c0_i32 = arith.constant 0 : i32
    %c0_i32_0 = arith.constant 0 : i32
    %c0_i32_1 = arith.constant 0 : i32
    return %arg0, %c0_i32, %c0_i32_0 : i32, i32, i32
  }
  func.func @transform_7(%arg0: i32) -> (i32, i32, i32) {
    %c0_i32 = arith.constant 0 : i32
    %c0_i32_0 = arith.constant 0 : i32
    %c0_i32_1 = arith.constant 0 : i32
    return %arg0, %c0_i32, %c0_i32_0 : i32, i32, i32
  }
  func.func @transform_8(%arg0: i32) -> (i32, i32, i32) {
    %c0_i32 = arith.constant 0 : i32
    %c0_i32_0 = arith.constant 0 : i32
    %c0_i32_1 = arith.constant 0 : i32
    return %arg0, %c0_i32, %c0_i32_0 : i32, i32, i32
  }
  func.func @transform_9(%arg0: i32) -> (i32, i32, i32) {
    %c0_i32 = arith.constant 0 : i32
    %c0_i32_0 = arith.constant 0 : i32
    %c0_i32_1 = arith.constant 0 : i32
    return %arg0, %c0_i32, %c0_i32_0 : i32, i32, i32
  }
  func.func @transform_10(%arg0: i32) -> (i32, i32, i32) {
    %c0_i32 = arith.constant 0 : i32
    %c0_i32_0 = arith.constant 0 : i32
    %c0_i32_1 = arith.constant 0 : i32
    return %arg0, %c0_i32, %c0_i32_0 : i32, i32, i32
  }
  func.func @transform_11(%arg0: i32) -> (i32, i32, i32) {
    %c0_i32 = arith.constant 0 : i32
    %c0_i32_0 = arith.constant 0 : i32
    %c0_i32_1 = arith.constant 0 : i32
    return %arg0, %c0_i32, %c0_i32_0 : i32, i32, i32
  }
  func.func @transform_12(%arg0: i32) -> (i32, i32, i32) {
    %c0_i32 = arith.constant 0 : i32
    %c0_i32_0 = arith.constant 0 : i32
    %c0_i32_1 = arith.constant 0 : i32
    return %arg0, %c0_i32, %c0_i32_0 : i32, i32, i32
  }
  func.func @transform_13(%arg0: i32) -> (i32, i32) {
    %c0_i32 = arith.constant 0 : i32
    %c0_i32_0 = arith.constant 0 : i32
    %c0_i32_1 = arith.constant 0 : i32
    return %c0_i32, %c0_i32_0 : i32, i32
  }
}

</mosaic_0001>

<llo_original>
// kernel: tpu_custom_call.1
$region0: #{tpu_custom_call.1}
  #allocation0 [shape = 'u32[]', space=smem, size = 0x4, offset = 0x4, fixed_abs, tag = 'smem constant byte address 0x4 - core index']
  #allocation1 [shape = 'u32[144,128]{1,0:T(1,128)}', space=vmem, size = 0x12000, scoped, tag = 'internal scratch']
  %s0 = inlined_call_operand.vmem [shape: f32[16,32], index: 0, kind: input, shape index: {}]
  %s1 = inlined_call_operand.vmem [shape: f32[2,16,32,12], index: 1, kind: input, shape index: {}]
  %s2 = inlined_call_operand.vmem [shape: f32[2,16,1,12], index: 2, kind: input, shape index: {}]
  %s3 = inlined_call_operand.vmem [shape: f32[2,16,4,32], index: 3, kind: input, shape index: {}]
  %s4 = inlined_call_operand.vmem [shape: f32[2,1,32], index: 4, kind: input, shape index: {}]
  %s5 = inlined_call_operand.vmem [shape: f32[2,1,32], index: 5, kind: input, shape index: {}]
  %s6 = inlined_call_operand.vmem [shape: f32[2,1,32], index: 6, kind: input, shape index: {}]
  %s7 = inlined_call_operand.vmem [shape: f32[2,1,32], index: 7, kind: input, shape index: {}]
  %s8 = inlined_call_operand.vmem [shape: f32[2,1,32], index: 8, kind: input, shape index: {}]
  %s9 = inlined_call_operand.vmem [shape: f32[2,32,2048], index: 9, kind: input, shape index: {}]
  %s10 = inlined_call_operand.vmem [shape: f32[2,1,2048], index: 10, kind: input, shape index: {}]
  %s11 = inlined_call_operand.hbm [shape: f32[2,32,2048], index: 11, kind: input, shape index: {}]
  %s12 = inlined_call_operand.vmem [shape: f32[2,1,32], index: 12, kind: input, shape index: {}]
  %s13 = inlined_call_operand.hbm [shape: f32[16,32], index: 13, kind: output, shape index: {}]
  %s14 = sld [smem:[#allocation0]]
  $region93: #{tpu_custom_call.1} parent=0
    _
  %s16 = ssub.s32 1, %s14
  %s17 = scalar_select 0, %s16, %s14
  $region1: #{tpu_custom_call.1} parent=0
    #allocation2 [shape = 'u8[524288]{0}', space=vmem, size = 0x80000, scoped, tag = 'input window, operand 11']
    #allocation3 [shape = 's32[2]{0}', space=sflag, size = 0x8, scoped, tag = 'scoped memory for tpu_custom_call.1']
    #allocation4 [shape = 's32[2]{0}', space=sflag, size = 0x8, scoped, tag = 'scoped memory for tpu_custom_call.1']
    #allocation5 [shape = 'u8[8192]{0}', space=vmem, size = 0x2000, scoped, tag = 'output window, operand 0, single buffered']
    %18 = vsyncpa [#allocation3], 0
    %s19 = scalar_lea.sflag [#allocation3], 1
    %20 = vsyncpa %s19, 0
    %21 = vsyncpa [#allocation4], 0
    loop: start=0, step=1, limit=4
    $region2: #{tpu_custom_call.1} parent=1 // loop_pre_header
      _
    $region3: #{tpu_custom_call.1} parent=1 // loop_header
      %s23 = sphi 0, %s27
      %p24 = scmp.ge.s32.totalorder %s23, 4
      %s31 = sphi 0, %s31
      %s33 = sphi 0, %s31
      %s34 = sphi 0, %s33
      %s48 = sphi 0, %s34
      %s54 = sphi 0, %s56
      %s57 = sphi 0, %s54
      %s58 = sphi 0, %s57
      %s74 = sphi 0, %s58
      %s80 = sphi 0, %s82
      %s83 = sphi 0, %s80
      %s84 = sphi 0, %s83
      %s100 = sphi 0, %s84
      %s106 = sphi 0, %s108
      %s109 = sphi 0, %s106
      %s110 = sphi 0, %s109
      %s126 = sphi 0, %s110
      %s132 = sphi 0, %s134
      %s135 = sphi 0, %s132
      %s136 = sphi 0, %s135
      %s152 = sphi 0, %s136
      %s158 = sphi 0, %s160
      %s161 = sphi 0, %s158
      %s162 = sphi 0, %s161
      %s178 = sphi 0, %s162
      %s184 = sphi 0, %s186
      %s187 = sphi 0, %s184
      %s188 = sphi 0, %s187
      %s204 = sphi 0, %s188
      %s210 = sphi 0, %s212
      %s213 = sphi 0, %s210
      %s214 = sphi 0, %s213
      %s230 = sphi 0, %s214
      %s236 = sphi 0, %s238
      %s239 = sphi 0, %s236
      %s240 = sphi 0, %s239
      %s256 = sphi 0, %s240
      %s262 = sphi 0, %s264
      %s265 = sphi 0, %s262
      %s266 = sphi 0, %s265
      %s282 = sphi 0, %s266
      %s288 = sphi 0, %s290
      %s291 = sphi 0, %s288
      %s292 = sphi 0, %s291
      %s308 = sphi 0, %s292
      %s314 = sphi 0, %s316
      %s317 = sphi 0, %s314
      %s318 = sphi 0, %s317
      %s334 = sphi 0, %s318
      %s340 = sphi 0, %s342
      %s343 = sphi 0, %s340
      %s344 = sphi 0, %s343
      %s360 = sphi 0, %s344
      %s364 = sphi 0, %s364
      %s366 = sphi 0, %s364
      %s367 = sphi 0, %s366
      %s381 = sphi 0, %s367
    $region4: #{tpu_custom_call.1} parent=1 // loop_header_branch
      %26 = sbr.rel (%p24) target = $region8
    $region5: #{tpu_custom_call.1} parent=1 // loop_body
      %s28 = ssub.s32 %s23, 1
      %s29 = ssub.s32 %s23, 2
      %s30 = sadd.s32 %s23, 1
      %s32 = sadd.s32 %s31, 1
      %p35 = scmp.eq.s32.totalorder %s23, 1
      %p36 = scmp.ne.s32.totalorder %s31, %s33
      %p37 = scmp.eq.s32.totalorder %s23, 0
      %p38 = por %p36, %p37
      %p39 = scmp.ne.s32.totalorder %s31, %s33
      %p40 = scmp.eq.s32.totalorder %s28, 1
      %p41 = por %p39, %p40
      %p42 = scmp.ne.s32.totalorder %s33, %s34
      %p43 = scmp.eq.s32.totalorder %s28, 0
      %p44 = por %p42, %p43
      %p45 = scmp.ne.s32.totalorder %s33, %s34
      %p46 = scmp.eq.s32.totalorder %s29, 1
      %p47 = por %p45, %p46
      %p49 = scmp.ne.s32.totalorder %s34, %s48
      %p50 = scmp.eq.s32.totalorder %s29, 0
      %p51 = por %p49, %p50
      %s52 = ssub.s32 %s23, %s30
      %p53 = scmp.eq.s32.totalorder %s52, 0
      %s55 = sadd.s32 %s54, 1
      %s56 = scalar_select %p53, %s54, %s55
      %p59 = pneg %p53
      %p60 = scmp.eq.s32.totalorder %s23, 1
      %p61 = por %p59, %p60
      %p62 = scmp.ne.s32.totalorder %s54, %s57
      %p63 = scmp.eq.s32.totalorder %s23, 0
      %p64 = por %p62, %p63
      %p65 = scmp.ne.s32.totalorder %s54, %s57
      %p66 = scmp.eq.s32.totalorder %s28, 1
      %p67 = por %p65, %p66
      %p68 = scmp.ne.s32.totalorder %s57, %s58
      %p69 = scmp.eq.s32.totalorder %s28, 0
      %p70 = por %p68, %p69
      %p71 = scmp.ne.s32.totalorder %s57, %s58
      %p72 = scmp.eq.s32.totalorder %s29, 1
      %p73 = por %p71, %p72
      %p75 = scmp.ne.s32.totalorder %s58, %s74
      %p76 = scmp.eq.s32.totalorder %s29, 0
      %p77 = por %p75, %p76
      %s78 = ssub.s32 %s23, %s30
      %p79 = scmp.eq.s32.totalorder %s78, 0
      %s81 = sadd.s32 %s80, 1
      %s82 = scalar_select %p79, %s80, %s81
      %p85 = pneg %p79
      %p86 = scmp.eq.s32.totalorder %s23, 1
      %p87 = por %p85, %p86
      %p88 = scmp.ne.s32.totalorder %s80, %s83
      %p89 = scmp.eq.s32.totalorder %s23, 0
      %p90 = por %p88, %p89
      %p91 = scmp.ne.s32.totalorder %s80, %s83
      %p92 = scmp.eq.s32.totalorder %s28, 1
      %p93 = por %p91, %p92
      %p94 = scmp.ne.s32.totalorder %s83, %s84
      %p95 = scmp.eq.s32.totalorder %s28, 0
      %p96 = por %p94, %p95
      %p97 = scmp.ne.s32.totalorder %s83, %s84
      %p98 = scmp.eq.s32.totalorder %s29, 1
      %p99 = por %p97, %p98
      %p101 = scmp.ne.s32.totalorder %s84, %s100
      %p102 = scmp.eq.s32.totalorder %s29, 0
      %p103 = por %p101, %p102
      %s104 = ssub.s32 %s23, %s30
      %p105 = scmp.eq.s32.totalorder %s104, 0
      %s107 = sadd.s32 %s106, 1
      %s108 = scalar_select %p105, %s106, %s107
      %p111 = pneg %p105
      %p112 = scmp.eq.s32.totalorder %s23, 1
      %p113 = por %p111, %p112
      %p114 = scmp.ne.s32.totalorder %s106, %s109
      %p115 = scmp.eq.s32.totalorder %s23, 0
      %p116 = por %p114, %p115
      %p117 = scmp.ne.s32.totalorder %s106, %s109
      %p118 = scmp.eq.s32.totalorder %s28, 1
      %p119 = por %p117, %p118
      %p120 = scmp.ne.s32.totalorder %s109, %s110
      %p121 = scmp.eq.s32.totalorder %s28, 0
      %p122 = por %p120, %p121
      %p123 = scmp.ne.s32.totalorder %s109, %s110
      %p124 = scmp.eq.s32.totalorder %s29, 1
      %p125 = por %p123, %p124
      %p127 = scmp.ne.s32.totalorder %s110, %s126
      %p128 = scmp.eq.s32.totalorder %s29, 0
      %p129 = por %p127, %p128
      %s130 = ssub.s32 %s23, %s30
      %p131 = scmp.eq.s32.totalorder %s130, 0
      %s133 = sadd.s32 %s132, 1
      %s134 = scalar_select %p131, %s132, %s133
      %p137 = pneg %p131
      %p138 = scmp.eq.s32.totalorder %s23, 1
      %p139 = por %p137, %p138
      %p140 = scmp.ne.s32.totalorder %s132, %s135
      %p141 = scmp.eq.s32.totalorder %s23, 0
      %p142 = por %p140, %p141
      %p143 = scmp.ne.s32.totalorder %s132, %s135
      %p144 = scmp.eq.s32.totalorder %s28, 1
      %p145 = por %p143, %p144
      %p146 = scmp.ne.s32.totalorder %s135, %s136
      %p147 = scmp.eq.s32.totalorder %s28, 0
      %p148 = por %p146, %p147
      %p149 = scmp.ne.s32.totalorder %s135, %s136
      %p150 = scmp.eq.s32.totalorder %s29, 1
      %p151 = por %p149, %p150
      %p153 = scmp.ne.s32.totalorder %s136, %s152
      %p154 = scmp.eq.s32.totalorder %s29, 0
      %p155 = por %p153, %p154
      %s156 = ssub.s32 %s23, %s30
      %p157 = scmp.eq.s32.totalorder %s156, 0
      %s159 = sadd.s32 %s158, 1
      %s160 = scalar_select %p157, %s158, %s159
      %p163 = pneg %p157
      %p164 = scmp.eq.s32.totalorder %s23, 1
      %p165 = por %p163, %p164
      %p166 = scmp.ne.s32.totalorder %s158, %s161
      %p167 = scmp.eq.s32.totalorder %s23, 0
      %p168 = por %p166, %p167
      %p169 = scmp.ne.s32.totalorder %s158, %s161
      %p170 = scmp.eq.s32.totalorder %s28, 1
      %p171 = por %p169, %p170
      %p172 = scmp.ne.s32.totalorder %s161, %s162
      %p173 = scmp.eq.s32.totalorder %s28, 0
      %p174 = por %p172, %p173
      %p175 = scmp.ne.s32.totalorder %s161, %s162
      %p176 = scmp.eq.s32.totalorder %s29, 1
      %p177 = por %p175, %p176
      %p179 = scmp.ne.s32.totalorder %s162, %s178
      %p180 = scmp.eq.s32.totalorder %s29, 0
      %p181 = por %p179, %p180
      %s182 = ssub.s32 %s23, %s30
      %p183 = scmp.eq.s32.totalorder %s182, 0
      %s185 = sadd.s32 %s184, 1
      %s186 = scalar_select %p183, %s184, %s185
      %p189 = pneg %p183
      %p190 = scmp.eq.s32.totalorder %s23, 1
      %p191 = por %p189, %p190
      %p192 = scmp.ne.s32.totalorder %s184, %s187
      %p193 = scmp.eq.s32.totalorder %s23, 0
      %p194 = por %p192, %p193
      %p195 = scmp.ne.s32.totalorder %s184, %s187
      %p196 = scmp.eq.s32.totalorder %s28, 1
      %p197 = por %p195, %p196
      %p198 = scmp.ne.s32.totalorder %s187, %s188
      %p199 = scmp.eq.s32.totalorder %s28, 0
      %p200 = por %p198, %p199
      %p201 = scmp.ne.s32.totalorder %s187, %s188
      %p202 = scmp.eq.s32.totalorder %s29, 1
      %p203 = por %p201, %p202
      %p205 = scmp.ne.s32.totalorder %s188, %s204
      %p206 = scmp.eq.s32.totalorder %s29, 0
      %p207 = por %p205, %p206
      %s208 = ssub.s32 %s23, %s30
      %p209 = scmp.eq.s32.totalorder %s208, 0
      %s211 = sadd.s32 %s210, 1
      %s212 = scalar_select %p209, %s210, %s211
      %p215 = pneg %p209
      %p216 = scmp.eq.s32.totalorder %s23, 1
      %p217 = por %p215, %p216
      %p218 = scmp.ne.s32.totalorder %s210, %s213
      %p219 = scmp.eq.s32.totalorder %s23, 0
      %p220 = por %p218, %p219
      %p221 = scmp.ne.s32.totalorder %s210, %s213
      %p222 = scmp.eq.s32.totalorder %s28, 1
      %p223 = por %p221, %p222
      %p224 = scmp.ne.s32.totalorder %s213, %s214
      %p225 = scmp.eq.s32.totalorder %s28, 0
      %p226 = por %p224, %p225
      %p227 = scmp.ne.s32.totalorder %s213, %s214
      %p228 = scmp.eq.s32.totalorder %s29, 1
      %p229 = por %p227, %p228
      %p231 = scmp.ne.s32.totalorder %s214, %s230
      %p232 = scmp.eq.s32.totalorder %s29, 0
      %p233 = por %p231, %p232
      %s234 = ssub.s32 %s23, %s30
      %p235 = scmp.eq.s32.totalorder %s234, 0
      %s237 = sadd.s32 %s236, 1
      %s238 = scalar_select %p235, %s236, %s237
      %p241 = pneg %p235
      %p242 = scmp.eq.s32.totalorder %s23, 1
      %p243 = por %p241, %p242
      %p244 = scmp.ne.s32.totalorder %s236, %s239
      %p245 = scmp.eq.s32.totalorder %s23, 0
      %p246 = por %p244, %p245
      %p247 = scmp.ne.s32.totalorder %s236, %s239
      %p248 = scmp.eq.s32.totalorder %s28, 1
      %p249 = por %p247, %p248
      %p250 = scmp.ne.s32.totalorder %s239, %s240
      %p251 = scmp.eq.s32.totalorder %s28, 0
      %p252 = por %p250, %p251
      %p253 = scmp.ne.s32.totalorder %s239, %s240
      %p254 = scmp.eq.s32.totalorder %s29, 1
      %p255 = por %p253, %p254
      %p257 = scmp.ne.s32.totalorder %s240, %s256
      %p258 = scmp.eq.s32.totalorder %s29, 0
      %p259 = por %p257, %p258
      %s260 = ssub.s32 %s23, %s30
      %p261 = scmp.eq.s32.totalorder %s260, 0
      %s263 = sadd.s32 %s262, 1
      %s264 = scalar_select %p261, %s262, %s263
      %p267 = pneg %p261
      %p268 = scmp.eq.s32.totalorder %s23, 1
      %p269 = por %p267, %p268
      %p270 = scmp.ne.s32.totalorder %s262, %s265
      %p271 = scmp.eq.s32.totalorder %s23, 0
      %p272 = por %p270, %p271
      %p273 = scmp.ne.s32.totalorder %s262, %s265
      %p274 = scmp.eq.s32.totalorder %s28, 1
      %p275 = por %p273, %p274
      %p276 = scmp.ne.s32.totalorder %s265, %s266
      %p277 = scmp.eq.s32.totalorder %s28, 0
      %p278 = por %p276, %p277
      %p279 = scmp.ne.s32.totalorder %s265, %s266
      %p280 = scmp.eq.s32.totalorder %s29, 1
      %p281 = por %p279, %p280
      %p283 = scmp.ne.s32.totalorder %s266, %s282
      %p284 = scmp.eq.s32.totalorder %s29, 0
      %p285 = por %p283, %p284
      %s286 = ssub.s32 %s23, %s30
      %p287 = scmp.eq.s32.totalorder %s286, 0
      %s289 = sadd.s32 %s288, 1
      %s290 = scalar_select %p287, %s288, %s289
      %p293 = pneg %p287
      %p294 = scmp.eq.s32.totalorder %s23, 1
      %p295 = por %p293, %p294
      %p296 = scmp.ne.s32.totalorder %s288, %s291
      %p297 = scmp.eq.s32.totalorder %s23, 0
      %p298 = por %p296, %p297
      %p299 = scmp.ne.s32.totalorder %s288, %s291
      %p300 = scmp.eq.s32.totalorder %s28, 1
      %p301 = por %p299, %p300
      %p302 = scmp.ne.s32.totalorder %s291, %s292
      %p303 = scmp.eq.s32.totalorder %s28, 0
      %p304 = por %p302, %p303
      %p305 = scmp.ne.s32.totalorder %s291, %s292
      %p306 = scmp.eq.s32.totalorder %s29, 1
      %p307 = por %p305, %p306
      %p309 = scmp.ne.s32.totalorder %s292, %s308
      %p310 = scmp.eq.s32.totalorder %s29, 0
      %p311 = por %p309, %p310
      %s312 = ssub.s32 %s23, %s30
      %p313 = scmp.eq.s32.totalorder %s312, 0
      %s315 = sadd.s32 %s314, 1
      %s316 = scalar_select %p313, %s314, %s315
      %p319 = pneg %p313
      %p320 = scmp.eq.s32.totalorder %s23, 1
      %p321 = por %p319, %p320
      %p322 = scmp.ne.s32.totalorder %s314, %s317
      %p323 = scmp.eq.s32.totalorder %s23, 0
      %p324 = por %p322, %p323
      %p325 = scmp.ne.s32.totalorder %s314, %s317
      %p326 = scmp.eq.s32.totalorder %s28, 1
      %p327 = por %p325, %p326
      %p328 = scmp.ne.s32.totalorder %s317, %s318
      %p329 = scmp.eq.s32.totalorder %s28, 0
      %p330 = por %p328, %p329
      %p331 = scmp.ne.s32.totalorder %s317, %s318
      %p332 = scmp.eq.s32.totalorder %s29, 1
      %p333 = por %p331, %p332
      %p335 = scmp.ne.s32.totalorder %s318, %s334
      %p336 = scmp.eq.s32.totalorder %s29, 0
      %p337 = por %p335, %p336
      %s338 = ssub.s32 %s23, %s30
      %p339 = scmp.eq.s32.totalorder %s338, 0
      %s341 = sadd.s32 %s340, 1
      %s342 = scalar_select %p339, %s340, %s341
      %p345 = pneg %p339
      %p346 = scmp.eq.s32.totalorder %s23, 1
      %p347 = por %p345, %p346
      %p348 = scmp.ne.s32.totalorder %s340, %s343
      %p349 = scmp.eq.s32.totalorder %s23, 0
      %p350 = por %p348, %p349
      %p351 = scmp.ne.s32.totalorder %s340, %s343
      %p352 = scmp.eq.s32.totalorder %s28, 1
      %p353 = por %p351, %p352
      %p354 = scmp.ne.s32.totalorder %s343, %s344
      %p355 = scmp.eq.s32.totalorder %s28, 0
      %p356 = por %p354, %p355
      %p357 = scmp.ne.s32.totalorder %s343, %s344
      %p358 = scmp.eq.s32.totalorder %s29, 1
      %p359 = por %p357, %p358
      %p361 = scmp.ne.s32.totalorder %s344, %s360
      %p362 = scmp.eq.s32.totalorder %s29, 0
      %p363 = por %p361, %p362
      %s365 = sadd.s32 %s364, 1
      %p368 = scmp.eq.s32.totalorder %s23, 1
      %p369 = scmp.ne.s32.totalorder %s364, %s366
      %p370 = scmp.eq.s32.totalorder %s23, 0
      %p371 = por %p369, %p370
      %p372 = scmp.ne.s32.totalorder %s364, %s366
      %p373 = scmp.eq.s32.totalorder %s28, 1
      %p374 = por %p372, %p373
      %p375 = scmp.ne.s32.totalorder %s366, %s367
      %p376 = scmp.eq.s32.totalorder %s28, 0
      %p377 = por %p375, %p376
      %p378 = scmp.ne.s32.totalorder %s366, %s367
      %p379 = scmp.eq.s32.totalorder %s29, 1
      %p380 = por %p378, %p379
      %p382 = scmp.ne.s32.totalorder %s367, %s381
      %p383 = scmp.eq.s32.totalorder %s29, 0
      %p384 = por %p382, %p383
      %p385 = scmp.le.s32.totalorder 1, %s23
      %p386 = scmp.lt.s32.totalorder %s23, 3
      %p387 = pnand %p385, %p386
      %p388 = pneg %p387
      // Predicated region
      $region9: #{tpu_custom_call.1} parent=5 // pred_check
        _
      $region10: #{tpu_custom_call.1} parent=5 // pred_check_branch
        %390 = sbr.rel (%p387) target = $region12
      $region11: #{tpu_custom_call.1} parent=5 // pred_region
        %s391 = ssub.s32 %s23, 1
        // Predicated region
        $region13: #{tpu_custom_call.1} parent=11 // pred_check
          %p392 = pneg %p44
        $region14: #{tpu_custom_call.1} parent=11 // pred_check_branch
          %394 = sbr.rel (%p392) target = $region16
        $region15: #{tpu_custom_call.1} parent=11 // pred_region
          _
        $region16: #{tpu_custom_call.1} parent=11 // pred_fallthru
          _
      $region12: #{tpu_custom_call.1} parent=5 // pred_fallthru
        _
      %p395 = scmp.lt.s32.totalorder %s23, 2
      // Predicated region
      $region17: #{tpu_custom_call.1} parent=5 // pred_check
        %p396 = pneg %p395
      $region18: #{tpu_custom_call.1} parent=5 // pred_check_branch
        %398 = sbr.rel (%p396) target = $region20
      $region19: #{tpu_custom_call.1} parent=5 // pred_region
        // Predicated region
        $region21: #{tpu_custom_call.1} parent=19 // pred_check
          %p399 = pneg %p64
        $region22: #{tpu_custom_call.1} parent=19 // pred_check_branch
          %401 = sbr.rel (%p399) target = $region24
        $region23: #{tpu_custom_call.1} parent=19 // pred_region
          %p402 = scmp.lt.s32.totalorder %s23, 1
          %s403 = scalar_select %p402, %s23, 1
          %s404 = smul.addr %s403, 64
          %s405 = smul.addr %s404, 8
          %s406 = scalar_lea.vmem %s1, %s405
        $region24: #{tpu_custom_call.1} parent=19 // pred_fallthru
          _
        // Predicated region
        $region25: #{tpu_custom_call.1} parent=19 // pred_check
          %p407 = pneg %p90
        $region26: #{tpu_custom_call.1} parent=19 // pred_check_branch
          %409 = sbr.rel (%p407) target = $region28
        $region27: #{tpu_custom_call.1} parent=19 // pred_region
          %p410 = scmp.lt.s32.totalorder %s23, 1
          %s411 = scalar_select %p410, %s23, 1
          %s412 = smul.addr %s411, 16
          %s413 = scalar_lea.vmem %s2, %s412
        $region28: #{tpu_custom_call.1} parent=19 // pred_fallthru
          _
        // Predicated region
        $region29: #{tpu_custom_call.1} parent=19 // pred_check
          %p414 = pneg %p116
        $region30: #{tpu_custom_call.1} parent=19 // pred_check_branch
          %416 = sbr.rel (%p414) target = $region32
        $region31: #{tpu_custom_call.1} parent=19 // pred_region
          %p417 = scmp.lt.s32.totalorder %s23, 1
          %s418 = scalar_select %p417, %s23, 1
          %s419 = smul.addr %s418, 16
          %s420 = smul.addr %s419, 4
          %s421 = scalar_lea.vmem %s3, %s420
        $region32: #{tpu_custom_call.1} parent=19 // pred_fallthru
          _
        // Predicated region
        $region33: #{tpu_custom_call.1} parent=19 // pred_check
          %p422 = pneg %p142
        $region34: #{tpu_custom_call.1} parent=19 // pred_check_branch
          %424 = sbr.rel (%p422) target = $region36
        $region35: #{tpu_custom_call.1} parent=19 // pred_region
          %p425 = scmp.lt.s32.totalorder %s23, 1
          %s426 = scalar_select %p425, %s23, 1
          %s427 = scalar_lea.vmem %s4, %s426
        $region36: #{tpu_custom_call.1} parent=19 // pred_fallthru
          _
        // Predicated region
        $region37: #{tpu_custom_call.1} parent=19 // pred_check
          %p428 = pneg %p168
        $region38: #{tpu_custom_call.1} parent=19 // pred_check_branch
          %430 = sbr.rel (%p428) target = $region40
        $region39: #{tpu_custom_call.1} parent=19 // pred_region
          %p431 = scmp.lt.s32.totalorder %s23, 1
          %s432 = scalar_select %p431, %s23, 1
          %s433 = scalar_lea.vmem %s5, %s432
        $region40: #{tpu_custom_call.1} parent=19 // pred_fallthru
          _
        // Predicated region
        $region41: #{tpu_custom_call.1} parent=19 // pred_check
          %p434 = pneg %p194
        $region42: #{tpu_custom_call.1} parent=19 // pred_check_branch
          %436 = sbr.rel (%p434) target = $region44
        $region43: #{tpu_custom_call.1} parent=19 // pred_region
          %p437 = scmp.lt.s32.totalorder %s23, 1
          %s438 = scalar_select %p437, %s23, 1
          %s439 = scalar_lea.vmem %s6, %s438
        $region44: #{tpu_custom_call.1} parent=19 // pred_fallthru
          _
        // Predicated region
        $region45: #{tpu_custom_call.1} parent=19 // pred_check
          %p440 = pneg %p220
        $region46: #{tpu_custom_call.1} parent=19 // pred_check_branch
          %442 = sbr.rel (%p440) target = $region48
        $region47: #{tpu_custom_call.1} parent=19 // pred_region
          %p443 = scmp.lt.s32.totalorder %s23, 1
          %s444 = scalar_select %p443, %s23, 1
          %s445 = scalar_lea.vmem %s7, %s444
        $region48: #{tpu_custom_call.1} parent=19 // pred_fallthru
          _
        // Predicated region
        $region49: #{tpu_custom_call.1} parent=19 // pred_check
          %p446 = pneg %p246
        $region50: #{tpu_custom_call.1} parent=19 // pred_check_branch
          %448 = sbr.rel (%p446) target = $region52
        $region51: #{tpu_custom_call.1} parent=19 // pred_region
          %p449 = scmp.lt.s32.totalorder %s23, 1
          %s450 = scalar_select %p449, %s23, 1
          %s451 = scalar_lea.vmem %s8, %s450
        $region52: #{tpu_custom_call.1} parent=19 // pred_fallthru
          _
        // Predicated region
        $region53: #{tpu_custom_call.1} parent=19 // pred_check
          %p452 = pneg %p272
        $region54: #{tpu_custom_call.1} parent=19 // pred_check_branch
          %454 = sbr.rel (%p452) target = $region56
        $region55: #{tpu_custom_call.1} parent=19 // pred_region
          %p455 = scmp.lt.s32.totalorder %s23, 1
          %s456 = scalar_select %p455, %s23, 1
          %s457 = smul.addr %s456, 64
          %s458 = smul.addr %s457, 8
          %s459 = scalar_lea.vmem %s9, %s458
        $region56: #{tpu_custom_call.1} parent=19 // pred_fallthru
          _
        // Predicated region
        $region57: #{tpu_custom_call.1} parent=19 // pred_check
          %p460 = pneg %p298
        $region58: #{tpu_custom_call.1} parent=19 // pred_check_branch
          %462 = sbr.rel (%p460) target = $region60
        $region59: #{tpu_custom_call.1} parent=19 // pred_region
          %p463 = scmp.lt.s32.totalorder %s23, 1
          %s464 = scalar_select %p463, %s23, 1
          %s465 = smul.addr %s464, 16
          %s466 = scalar_lea.vmem %s10, %s465
        $region60: #{tpu_custom_call.1} parent=19 // pred_fallthru
          _
        // Predicated region
        $region61: #{tpu_custom_call.1} parent=19 // pred_check
          %p467 = pneg %p324
        $region62: #{tpu_custom_call.1} parent=19 // pred_check_branch
          %469 = sbr.rel (%p467) target = $region64
        $region63: #{tpu_custom_call.1} parent=19 // pred_region
          %s470 = sand.u32 %s314, 1
          %s471 = scalar_lea.sflag [#allocation3], %s470
          %s472 = sand.u32 %s314, 1
          %s473 = smul.addr %s472, 512
          %s474 = scalar_lea.vmem [#allocation2], %s473
          %s476 = ssub.s32 8192, 8192
          %477 = vsyncadd %s471, %s476
          %s478 = smul.addr %s23, 64
          %s479 = smul.addr %s478, 128
          %s480 = scalar_lea.hbm %s11, %s479
          %s481 = sshll.u32 %s474, 4
          %s482 = int_to_ptr.vmem [resolvable:$true] %s481
          %487 = dma.hbm_to_vmem [thread:$0]  %s480, 8192, %s482, %s471, 2048, 2048, 128
        $region64: #{tpu_custom_call.1} parent=19 // pred_fallthru
          _
        // Predicated region
        $region65: #{tpu_custom_call.1} parent=19 // pred_check
          %p488 = pneg %p350
        $region66: #{tpu_custom_call.1} parent=19 // pred_check_branch
          %490 = sbr.rel (%p488) target = $region68
        $region67: #{tpu_custom_call.1} parent=19 // pred_region
          %p491 = scmp.lt.s32.totalorder %s23, 1
          %s492 = scalar_select %p491, %s23, 1
          %s493 = scalar_lea.vmem %s12, %s492
        $region68: #{tpu_custom_call.1} parent=19 // pred_fallthru
          _
      $region20: #{tpu_custom_call.1} parent=5 // pred_fallthru
        _
      %p494 = scmp.le.s32.totalorder 1, %s23
      %p495 = scmp.lt.s32.totalorder %s23, 3
      %p496 = pnand %p494, %p495
      %p497 = pneg %p496
      // Predicated region
      $region69: #{tpu_custom_call.1} parent=5 // pred_check
        _
      $region70: #{tpu_custom_call.1} parent=5 // pred_check_branch
        %499 = sbr.rel (%p496) target = $region72
      $region71: #{tpu_custom_call.1} parent=5 // pred_region
        %s500 = ssub.s32 %s23, 1
        %s501 = sand.u32 %s317, 1
        %s502 = scalar_lea.sflag [#allocation3], %s501
        %s503 = sand.u32 %s317, 1
        %s504 = smul.addr %s503, 512
        %s505 = scalar_lea.vmem [#allocation2], %s504
        // Predicated region
        $region73: #{tpu_custom_call.1} parent=71 // pred_check
          %p506 = pneg %p330
        $region74: #{tpu_custom_call.1} parent=71 // pred_check_branch
          %508 = sbr.rel (%p506) target = $region76
        $region75: #{tpu_custom_call.1} parent=71 // pred_region
          %509 = dma.done %s502, 8192
        $region76: #{tpu_custom_call.1} parent=71 // pred_fallthru
          _
        %p510 = pneg %p44
        %p511 = pneg %p41
        %p512 = scmp.lt.s32.totalorder %s28, 1
        %s513 = scalar_select %p512, %s28, 1
        %s514 = smul.addr %s513, 64
        %s515 = smul.addr %s514, 8
        %s516 = scalar_lea.vmem %s1, %s515
        %p517 = pneg %p70
        %p518 = pneg %p67
        %p519 = scmp.lt.s32.totalorder %s28, 1
        %s520 = scalar_select %p519, %s28, 1
        %s521 = smul.addr %s520, 16
        %s522 = scalar_lea.vmem %s2, %s521
        %p523 = pneg %p96
        %p524 = pneg %p93
        %p525 = scmp.lt.s32.totalorder %s28, 1
        %s526 = scalar_select %p525, %s28, 1
        %s527 = smul.addr %s526, 16
        %s528 = smul.addr %s527, 4
        %s529 = scalar_lea.vmem %s3, %s528
        %p530 = pneg %p122
        %p531 = pneg %p119
        %p532 = scmp.lt.s32.totalorder %s28, 1
        %s533 = scalar_select %p532, %s28, 1
        %s534 = scalar_lea.vmem %s4, %s533
        %p535 = pneg %p148
        %p536 = pneg %p145
        %p537 = scmp.lt.s32.totalorder %s28, 1
        %s538 = scalar_select %p537, %s28, 1
        %s539 = scalar_lea.vmem %s5, %s538
        %p540 = pneg %p174
        %p541 = pneg %p171
        %p542 = scmp.lt.s32.totalorder %s28, 1
        %s543 = scalar_select %p542, %s28, 1
        %s544 = scalar_lea.vmem %s6, %s543
        %p545 = pneg %p200
        %p546 = pneg %p197
        %p547 = scmp.lt.s32.totalorder %s28, 1
        %s548 = scalar_select %p547, %s28, 1
        %s549 = scalar_lea.vmem %s7, %s548
        %p550 = pneg %p226
        %p551 = pneg %p223
        %p552 = scmp.lt.s32.totalorder %s28, 1
        %s553 = scalar_select %p552, %s28, 1
        %s554 = scalar_lea.vmem %s8, %s553
        %p555 = pneg %p252
        %p556 = pneg %p249
        %p557 = scmp.lt.s32.totalorder %s28, 1
        %s558 = scalar_select %p557, %s28, 1
        %s559 = smul.addr %s558, 64
        %s560 = smul.addr %s559, 8
        %s561 = scalar_lea.vmem %s9, %s560
        %p562 = pneg %p278
        %p563 = pneg %p275
        %p564 = scmp.lt.s32.totalorder %s28, 1
        %s565 = scalar_select %p564, %s28, 1
        %s566 = smul.addr %s565, 16
        %s567 = scalar_lea.vmem %s10, %s566
        %p568 = pneg %p304
        %p569 = pneg %p301
        %s570 = sand.u32 %s317, 1
        %s571 = scalar_lea.sflag [#allocation3], %s570
        %s572 = sand.u32 %s317, 1
        %s573 = smul.addr %s572, 512
        %s574 = scalar_lea.vmem [#allocation2], %s573
        %p575 = pneg %p330
        %p576 = pneg %p327
        %p577 = scmp.lt.s32.totalorder %s28, 1
        %s578 = scalar_select %p577, %s28, 1
        %s579 = scalar_lea.vmem %s12, %s578
        %p580 = pneg %p356
        %p581 = pneg %p353
        %p582 = pneg %p377
        %p583 = pneg %p374
        %p584 = scmp.lt.s32.totalorder %s28, 1
        %s585 = scalar_select %p584, %s28, 1
        %s586 = smul.addr %s585, 64
        %s587 = smul.addr %s586, 8
        %s588 = scalar_lea.vmem %s1, %s587
        %p589 = scmp.lt.s32.totalorder %s28, 1
        %s590 = scalar_select %p589, %s28, 1
        %s591 = smul.addr %s590, 16
        %s592 = scalar_lea.vmem %s2, %s591
        %p593 = scmp.lt.s32.totalorder %s28, 1
        %s594 = scalar_select %p593, %s28, 1
        %s595 = smul.addr %s594, 16
        %s596 = smul.addr %s595, 4
        %s597 = scalar_lea.vmem %s3, %s596
        %p598 = scmp.lt.s32.totalorder %s28, 1
        %s599 = scalar_select %p598, %s28, 1
        %s600 = scalar_lea.vmem %s4, %s599
        %p601 = scmp.lt.s32.totalorder %s28, 1
        %s602 = scalar_select %p601, %s28, 1
        %s603 = scalar_lea.vmem %s5, %s602
        %p604 = scmp.lt.s32.totalorder %s28, 1
        %s605 = scalar_select %p604, %s28, 1
        %s606 = scalar_lea.vmem %s6, %s605
        %p607 = scmp.lt.s32.totalorder %s28, 1
        %s608 = scalar_select %p607, %s28, 1
        %s609 = scalar_lea.vmem %s7, %s608
        %p610 = scmp.lt.s32.totalorder %s28, 1
        %s611 = scalar_select %p610, %s28, 1
        %s612 = scalar_lea.vmem %s8, %s611
        %p613 = scmp.lt.s32.totalorder %s28, 1
        %s614 = scalar_select %p613, %s28, 1
        %s615 = smul.addr %s614, 64
        %s616 = smul.addr %s615, 8
        %s617 = scalar_lea.vmem %s9, %s616
        %p618 = scmp.lt.s32.totalorder %s28, 1
        %s619 = scalar_select %p618, %s28, 1
        %s620 = smul.addr %s619, 16
        %s621 = scalar_lea.vmem %s10, %s620
        %p622 = scmp.lt.s32.totalorder %s28, 1
        %s623 = scalar_select %p622, %s28, 1
        %s624 = scalar_lea.vmem %s12, %s623
        %p625 = scmp.eq.s32.totalorder %s28, 0
        // Predicated region
        $region77: #{tpu_custom_call.1} parent=71 // pred_check
          %p626 = pneg %p625
        $region78: #{tpu_custom_call.1} parent=71 // pred_check_branch
          %628 = sbr.rel (%p626) target = $region80
        $region79: #{tpu_custom_call.1} parent=71 // pred_region
          %v629 = vld [vmem:[%s0] sm:$0xff]
          %v630 = vld [vmem:[%s0 + $0x8] sm:$0xff]
          %vm631 = vcmask 261120
          %632 = vst.msk [vmem:[#allocation5] sm:$0xff] %vm631, %v629
          %633 = vst.msk [vmem:[#allocation5 + $0x8] sm:$0xff] %vm631, %v630
        $region80: #{tpu_custom_call.1} parent=71 // pred_fallthru
          _
        %v634 = vld [vmem:[#allocation5] sm:$0xff]
        %v635 = vld [vmem:[#allocation5 + $0x8] sm:$0xff]
        %v636 = vld [vmem:[%s588] sm:$0xff]
        %v637 = vld [vmem:[%s588 + $0x8] sm:$0xff]
        %v638 = vld [vmem:[%s588 + $0x10] sm:$0xff]
        %v639 = vld [vmem:[%s588 + $0x18] sm:$0xff]
        %v640 = vld [vmem:[%s588 + $0x20] sm:$0xff]
        %v641 = vld [vmem:[%s588 + $0x28] sm:$0xff]
        %v642 = vld [vmem:[%s588 + $0x30] sm:$0xff]
        %v643 = vld [vmem:[%s588 + $0x38] sm:$0xff]
        %v644 = vld [vmem:[%s588 + $0x40] sm:$0xff]
        %v645 = vld [vmem:[%s588 + $0x48] sm:$0xff]
        %v646 = vld [vmem:[%s588 + $0x50] sm:$0xff]
        %v647 = vld [vmem:[%s588 + $0x58] sm:$0xff]
        %v648 = vld [vmem:[%s588 + $0x60] sm:$0xff]
        %v649 = vld [vmem:[%s588 + $0x68] sm:$0xff]
        %v650 = vld [vmem:[%s588 + $0x70] sm:$0xff]
        %v651 = vld [vmem:[%s588 + $0x78] sm:$0xff]
        %v652 = vld [vmem:[%s588 + $0x80] sm:$0xff]
        %v653 = vld [vmem:[%s588 + $0x88] sm:$0xff]
        %v654 = vld [vmem:[%s588 + $0x90] sm:$0xff]
        %v655 = vld [vmem:[%s588 + $0x98] sm:$0xff]
        %v656 = vld [vmem:[%s588 + $0xa0] sm:$0xff]
        %v657 = vld [vmem:[%s588 + $0xa8] sm:$0xff]
        %v658 = vld [vmem:[%s588 + $0xb0] sm:$0xff]
        %v659 = vld [vmem:[%s588 + $0xb8] sm:$0xff]
        %v660 = vld [vmem:[%s588 + $0xc0] sm:$0xff]
        %v661 = vld [vmem:[%s588 + $0xc8] sm:$0xff]
        %v662 = vld [vmem:[%s588 + $0xd0] sm:$0xff]
        %v663 = vld [vmem:[%s588 + $0xd8] sm:$0xff]
        %v664 = vld [vmem:[%s588 + $0xe0] sm:$0xff]
        %v665 = vld [vmem:[%s588 + $0xe8] sm:$0xff]
        %v666 = vld [vmem:[%s588 + $0xf0] sm:$0xff]
        %v667 = vld [vmem:[%s588 + $0xf8] sm:$0xff]
        %v668 = vld [vmem:[%s588 + $0x100] sm:$0xff]
        %v669 = vld [vmem:[%s588 + $0x108] sm:$0xff]
        %v670 = vld [vmem:[%s588 + $0x110] sm:$0xff]
        %v671 = vld [vmem:[%s588 + $0x118] sm:$0xff]
        %v672 = vld [vmem:[%s588 + $0x120] sm:$0xff]
        %v673 = vld [vmem:[%s588 + $0x128] sm:$0xff]
        %v674 = vld [vmem:[%s588 + $0x130] sm:$0xff]
        %v675 = vld [vmem:[%s588 + $0x138] sm:$0xff]
        %v676 = vld [vmem:[%s588 + $0x140] sm:$0xff]
        %v677 = vld [vmem:[%s588 + $0x148] sm:$0xff]
        %v678 = vld [vmem:[%s588 + $0x150] sm:$0xff]
        %v679 = vld [vmem:[%s588 + $0x158] sm:$0xff]
        %v680 = vld [vmem:[%s588 + $0x160] sm:$0xff]
        %v681 = vld [vmem:[%s588 + $0x168] sm:$0xff]
        %v682 = vld [vmem:[%s588 + $0x170] sm:$0xff]
        %v683 = vld [vmem:[%s588 + $0x178] sm:$0xff]
        %v684 = vld [vmem:[%s588 + $0x180] sm:$0xff]
        %v685 = vld [vmem:[%s588 + $0x188] sm:$0xff]
        %v686 = vld [vmem:[%s588 + $0x190] sm:$0xff]
        %v687 = vld [vmem:[%s588 + $0x198] sm:$0xff]
        %v688 = vld [vmem:[%s588 + $0x1a0] sm:$0xff]
        %v689 = vld [vmem:[%s588 + $0x1a8] sm:$0xff]
        %v690 = vld [vmem:[%s588 + $0x1b0] sm:$0xff]
        %v691 = vld [vmem:[%s588 + $0x1b8] sm:$0xff]
        %v692 = vld [vmem:[%s588 + $0x1c0] sm:$0xff]
        %v693 = vld [vmem:[%s588 + $0x1c8] sm:$0xff]
        %v694 = vld [vmem:[%s588 + $0x1d0] sm:$0xff]
        %v695 = vld [vmem:[%s588 + $0x1d8] sm:$0xff]
        %v696 = vld [vmem:[%s588 + $0x1e0] sm:$0xff]
        %v697 = vld [vmem:[%s588 + $0x1e8] sm:$0xff]
        %v698 = vld [vmem:[%s588 + $0x1f0] sm:$0xff]
        %v699 = vld [vmem:[%s588 + $0x1f8] sm:$0xff]
        %v700 = vld [vmem:[%s592] sm:$0x1]
        %v701 = vld [vmem:[%s592 + $0x1] sm:$0x1]
        %v702 = vld [vmem:[%s592 + $0x2] sm:$0x1]
        %v703 = vld [vmem:[%s592 + $0x3] sm:$0x1]
        %v704 = vld [vmem:[%s592 + $0x4] sm:$0x1]
        %v705 = vld [vmem:[%s592 + $0x5] sm:$0x1]
        %v706 = vld [vmem:[%s592 + $0x6] sm:$0x1]
        %v707 = vld [vmem:[%s592 + $0x7] sm:$0x1]
        %v708 = vld [vmem:[%s592 + $0x8] sm:$0x1]
        %v709 = vld [vmem:[%s592 + $0x9] sm:$0x1]
        %v710 = vld [vmem:[%s592 + $0xa] sm:$0x1]
        %v711 = vld [vmem:[%s592 + $0xb] sm:$0x1]
        %v712 = vld [vmem:[%s592 + $0xc] sm:$0x1]
        %v713 = vld [vmem:[%s592 + $0xd] sm:$0x1]
        %v714 = vld [vmem:[%s592 + $0xe] sm:$0x1]
        %v715 = vld [vmem:[%s592 + $0xf] sm:$0x1]
        %v732 = vlaneseq
        %v733 = vshrl.u32 %v732, 7
        %v734 = vsub.s32 0, %v733
        %v735 = vrot.slane %v700, %v734
        %v736 = vlaneseq
        %v737 = vshrl.u32 %v736, 7
        %v738 = vsub.s32 0, %v737
        %v739 = vrot.slane %v701, %v738
        %v740 = vlaneseq
        %v741 = vshrl.u32 %v740, 7
        %v742 = vsub.s32 0, %v741
        %v743 = vrot.slane %v702, %v742
        %v744 = vlaneseq
        %v745 = vshrl.u32 %v744, 7
        %v746 = vsub.s32 0, %v745
        %v747 = vrot.slane %v703, %v746
        %v748 = vlaneseq
        %v749 = vshrl.u32 %v748, 7
        %v750 = vsub.s32 0, %v749
        %v751 = vrot.slane %v704, %v750
        %v752 = vlaneseq
        %v753 = vshrl.u32 %v752, 7
        %v754 = vsub.s32 0, %v753
        %v755 = vrot.slane %v705, %v754
        %v756 = vlaneseq
        %v757 = vshrl.u32 %v756, 7
        %v758 = vsub.s32 0, %v757
        %v759 = vrot.slane %v706, %v758
        %v760 = vlaneseq
        %v761 = vshrl.u32 %v760, 7
        %v762 = vsub.s32 0, %v761
        %v763 = vrot.slane %v707, %v762
        %v764 = vlaneseq
        %v765 = vshrl.u32 %v764, 7
        %v766 = vsub.s32 0, %v765
        %v767 = vrot.slane %v708, %v766
        %v768 = vlaneseq
        %v769 = vshrl.u32 %v768, 7
        %v770 = vsub.s32 0, %v769
        %v771 = vrot.slane %v709, %v770
        %v772 = vlaneseq
        %v773 = vshrl.u32 %v772, 7
        %v774 = vsub.s32 0, %v773
        %v775 = vrot.slane %v710, %v774
        %v776 = vlaneseq
        %v777 = vshrl.u32 %v776, 7
        %v778 = vsub.s32 0, %v777
        %v779 = vrot.slane %v711, %v778
        %v780 = vlaneseq
        %v781 = vshrl.u32 %v780, 7
        %v782 = vsub.s32 0, %v781
        %v783 = vrot.slane %v712, %v782
        %v784 = vlaneseq
        %v785 = vshrl.u32 %v784, 7
        %v786 = vsub.s32 0, %v785
        %v787 = vrot.slane %v713, %v786
        %v788 = vlaneseq
        %v789 = vshrl.u32 %v788, 7
        %v790 = vsub.s32 0, %v789
        %v791 = vrot.slane %v714, %v790
        %v792 = vlaneseq
        %v793 = vshrl.u32 %v792, 7
        %v794 = vsub.s32 0, %v793
        %v795 = vrot.slane %v715, %v794
        %vm812 = vcmask 261120
        %v814 = vsel %vm812, %v634, 0
        %816 = vmatprep.subr.mxu0 0.0
        %817 = vmatpush1.msra.mxu0 0.0
        %818 = vmatprep.subr.mxu0 0.0
        %819 = vmatpush1.msra.mxu0 0.0
        %820 = vmatprep.subr.mxu0 0.0
        %821 = vmatpush1.msra.mxu0 0.0
        %822 = vmatprep.subr.mxu0 0.0
        %823 = vmatpush1.msra.mxu0 0.0
        %824 = vmatprep.subr.mxu0 0.0
        %825 = vmatpush1.msra.mxu0 0.0
        %826 = vmatprep.subr.mxu0 0.0
        %827 = vmatpush1.msra.mxu0 0.0
        %828 = vmatprep.subr.mxu0 0.0
        %829 = vmatpush1.msra.mxu0 0.0
        %830 = vmatprep.subr.mxu0 0.0
        %831 = vmatpush1.msra.mxu0 0.0
        %832 = vmatprep.subr.mxu0 0.0
        %833 = vmatpush1.msra.mxu0 0.0
        %834 = vmatprep.subr.mxu0 0.0
        %835 = vmatpush1.msra.mxu0 0.0
        %836 = vmatprep.subr.mxu0 0.0
        %837 = vmatpush1.msra.mxu0 0.0
        %838 = vmatprep.subr.mxu0 0.0
        %839 = vmatpush1.msra.mxu0 0.0
        %840 = vmatprep.subr.mxu0 0.0
        %841 = vmatpush1.msra.mxu0 %v639
        %842 = vmatprep.subr.mxu0 0.0
        %843 = vmatpush1.msra.mxu0 %v638
        %844 = vmatprep.subr.mxu0 0.0
        %845 = vmatpush1.msra.mxu0 %v637
        %846 = vmatprep.subr.mxu0 0.0
        %847 = vmatpush1.msra.mxu0 %v636
        %848 = vmatprep.subr.mxu0 0.0
        %849 = vmatpush2.msra.mxu0 0.0
        %850 = vmatprep.subr.mxu0 0.0
        %851 = vmatpush2.msra.mxu0 0.0
        %852 = vmatprep.subr.mxu0 0.0
        %853 = vmatpush2.msra.mxu0 0.0
        %854 = vmatprep.subr.mxu0 0.0
        %855 = vmatpush2.msra.mxu0 0.0
        %856 = vmatprep.subr.mxu0 0.0
        %857 = vmatpush2.msra.mxu0 0.0
        %858 = vmatprep.subr.mxu0 0.0
        %859 = vmatpush2.msra.mxu0 0.0
        %860 = vmatprep.subr.mxu0 0.0
        %861 = vmatpush2.msra.mxu0 0.0
        %862 = vmatprep.subr.mxu0 0.0
        %863 = vmatpush2.msra.mxu0 0.0
        %864 = vmatprep.subr.mxu0 0.0
        %865 = vmatpush2.msra.mxu0 0.0
        %866 = vmatprep.subr.mxu0 0.0
        %867 = vmatpush2.msra.mxu0 0.0
        %868 = vmatprep.subr.mxu0 0.0
        %869 = vmatpush2.msra.mxu0 0.0
        %870 = vmatprep.subr.mxu0 0.0
        %871 = vmatpush2.msra.mxu0 0.0
        %872 = vmatprep.subr.mxu0 0.0
        %873 = vmatpush2.msra.mxu0 0.0
        %874 = vmatprep.subr.mxu0 0.0
        %875 = vmatpush2.msra.mxu0 0.0
        %876 = vmatprep.subr.mxu0 0.0
        %877 = vmatpush2.msra.mxu0 0.0
        %878 = vmatprep.subr.mxu0 0.0
        %879 = vmatpush2.msra.mxu0 0.0
        %880 = vmatprep.mubr.f32.mxu0 0.0
        %881 = vmatmul.mubr.f32.gmra.mxu0 %v814
        %v882 = vpop.f32.mrf.mxu0
        %v883 = vadd.f32 %v735, %v882
        %v884 = vpop.f32.mrf.mxu0
        %885 = vdwg.mxu0
        %v887 = vsel %vm812, %v635, 0
        %889 = vmatprep.subr.mxu0 0.0
        %890 = vmatpush1.msra.mxu0 0.0
        %891 = vmatprep.subr.mxu0 0.0
        %892 = vmatpush1.msra.mxu0 0.0
        %893 = vmatprep.subr.mxu0 0.0
        %894 = vmatpush1.msra.mxu0 0.0
        %895 = vmatprep.subr.mxu0 0.0
        %896 = vmatpush1.msra.mxu0 0.0
        %897 = vmatprep.subr.mxu0 0.0
        %898 = vmatpush1.msra.mxu0 0.0
        %899 = vmatprep.subr.mxu0 0.0
        %900 = vmatpush1.msra.mxu0 0.0
        %901 = vmatprep.subr.mxu0 0.0
        %902 = vmatpush1.msra.mxu0 0.0
        %903 = vmatprep.subr.mxu0 0.0
        %904 = vmatpush1.msra.mxu0 0.0
        %905 = vmatprep.subr.mxu0 0.0
        %906 = vmatpush1.msra.mxu0 0.0
        %907 = vmatprep.subr.mxu0 0.0
        %908 = vmatpush1.msra.mxu0 0.0
        %909 = vmatprep.subr.mxu0 0.0
        %910 = vmatpush1.msra.mxu0 0.0
        %911 = vmatprep.subr.mxu0 0.0
        %912 = vmatpush1.msra.mxu0 0.0
        %913 = vmatprep.subr.mxu0 0.0
        %914 = vmatpush1.msra.mxu0 %v643
        %915 = vmatprep.subr.mxu0 0.0
        %916 = vmatpush1.msra.mxu0 %v642
        %917 = vmatprep.subr.mxu0 0.0
        %918 = vmatpush1.msra.mxu0 %v641
        %919 = vmatprep.subr.mxu0 0.0
        %920 = vmatpush1.msra.mxu0 %v640
        %921 = vmatprep.subr.mxu0 0.0
        %922 = vmatpush2.msra.mxu0 0.0
        %923 = vmatprep.subr.mxu0 0.0
        %924 = vmatpush2.msra.mxu0 0.0
        %925 = vmatprep.subr.mxu0 0.0
        %926 = vmatpush2.msra.mxu0 0.0
        %927 = vmatprep.subr.mxu0 0.0
        %928 = vmatpush2.msra.mxu0 0.0
        %929 = vmatprep.subr.mxu0 0.0
        %930 = vmatpush2.msra.mxu0 0.0
        %931 = vmatprep.subr.mxu0 0.0
        %932 = vmatpush2.msra.mxu0 0.0
        %933 = vmatprep.subr.mxu0 0.0
        %934 = vmatpush2.msra.mxu0 0.0
        %935 = vmatprep.subr.mxu0 0.0
        %936 = vmatpush2.msra.mxu0 0.0
        %937 = vmatprep.subr.mxu0 0.0
        %938 = vmatpush2.msra.mxu0 0.0
        %939 = vmatprep.subr.mxu0 0.0
        %940 = vmatpush2.msra.mxu0 0.0
        %941 = vmatprep.subr.mxu0 0.0
        %942 = vmatpush2.msra.mxu0 0.0
        %943 = vmatprep.subr.mxu0 0.0
        %944 = vmatpush2.msra.mxu0 0.0
        %945 = vmatprep.subr.mxu0 0.0
        %946 = vmatpush2.msra.mxu0 0.0
        %947 = vmatprep.subr.mxu0 0.0
        %948 = vmatpush2.msra.mxu0 0.0
        %949 = vmatprep.subr.mxu0 0.0
        %950 = vmatpush2.msra.mxu0 0.0
        %951 = vmatprep.subr.mxu0 0.0
        %952 = vmatpush2.msra.mxu0 0.0
        %953 = vmatprep.mubr.f32.mxu0 0.0
        %954 = vmatmul.mubr.f32.gmra.mxu0 %v887
        %v955 = vpop.f32.mrf.mxu0
        %v956 = vadd.f32 %v739, %v955
        %v957 = vpop.f32.mrf.mxu0
        %958 = vdwg.mxu0
        %959 = vmatprep.subr.mxu0 0.0
        %960 = vmatpush1.msra.mxu0 0.0
        %961 = vmatprep.subr.mxu0 0.0
        %962 = vmatpush1.msra.mxu0 0.0
        %963 = vmatprep.subr.mxu0 0.0
        %964 = vmatpush1.msra.mxu0 0.0
        %965 = vmatprep.subr.mxu0 0.0
        %966 = vmatpush1.msra.mxu0 0.0
        %967 = vmatprep.subr.mxu0 0.0
        %968 = vmatpush1.msra.mxu0 0.0
        %969 = vmatprep.subr.mxu0 0.0
        %970 = vmatpush1.msra.mxu0 0.0
        %971 = vmatprep.subr.mxu0 0.0
        %972 = vmatpush1.msra.mxu0 0.0
        %973 = vmatprep.subr.mxu0 0.0
        %974 = vmatpush1.msra.mxu0 0.0
        %975 = vmatprep.subr.mxu0 0.0
        %976 = vmatpush1.msra.mxu0 0.0
        %977 = vmatprep.subr.mxu0 0.0
        %978 = vmatpush1.msra.mxu0 0.0
        %979 = vmatprep.subr.mxu0 0.0
        %980 = vmatpush1.msra.mxu0 0.0
        %981 = vmatprep.subr.mxu0 0.0
        %982 = vmatpush1.msra.mxu0 0.0
        %983 = vmatprep.subr.mxu0 0.0
        %984 = vmatpush1.msra.mxu0 %v647
        %985 = vmatprep.subr.mxu0 0.0
        %986 = vmatpush1.msra.mxu0 %v646
        %987 = vmatprep.subr.mxu0 0.0
        %988 = vmatpush1.msra.mxu0 %v645
        %989 = vmatprep.subr.mxu0 0.0
        %990 = vmatpush1.msra.mxu0 %v644
        %991 = vmatprep.subr.mxu0 0.0
        %992 = vmatpush2.msra.mxu0 0.0
        %993 = vmatprep.subr.mxu0 0.0
        %994 = vmatpush2.msra.mxu0 0.0
        %995 = vmatprep.subr.mxu0 0.0
        %996 = vmatpush2.msra.mxu0 0.0
        %997 = vmatprep.subr.mxu0 0.0
        %998 = vmatpush2.msra.mxu0 0.0
        %999 = vmatprep.subr.mxu0 0.0
        %1000 = vmatpush2.msra.mxu0 0.0
        %1001 = vmatprep.subr.mxu0 0.0
        %1002 = vmatpush2.msra.mxu0 0.0
        %1003 = vmatprep.subr.mxu0 0.0
        %1004 = vmatpush2.msra.mxu0 0.0
        %1005 = vmatprep.subr.mxu0 0.0
        %1006 = vmatpush2.msra.mxu0 0.0
        %1007 = vmatprep.subr.mxu0 0.0
        %1008 = vmatpush2.msra.mxu0 0.0
        %1009 = vmatprep.subr.mxu0 0.0
        %1010 = vmatpush2.msra.mxu0 0.0
        %1011 = vmatprep.subr.mxu0 0.0
        %1012 = vmatpush2.msra.mxu0 0.0
        %1013 = vmatprep.subr.mxu0 0.0
        %1014 = vmatpush2.msra.mxu0 0.0
        %1015 = vmatprep.subr.mxu0 0.0
        %1016 = vmatpush2.msra.mxu0 0.0
        %1017 = vmatprep.subr.mxu0 0.0
        %1018 = vmatpush2.msra.mxu0 0.0
        %1019 = vmatprep.subr.mxu0 0.0
        %1020 = vmatpush2.msra.mxu0 0.0
        %1021 = vmatprep.subr.mxu0 0.0
        %1022 = vmatpush2.msra.mxu0 0.0
        %1023 = vmatprep.mubr.f32.mxu0 0.0
        %1024 = vmatmul.mubr.f32.gmra.mxu0 %v814
        %v1025 = vpop.f32.mrf.mxu0
        %v1026 = vadd.f32 %v743, %v1025
        %v1027 = vpop.f32.mrf.mxu0
        %1028 = vdwg.mxu0
        %1029 = vmatprep.subr.mxu0 0.0
        %1030 = vmatpush1.msra.mxu0 0.0
        %1031 = vmatprep.subr.mxu0 0.0
        %1032 = vmatpush1.msra.mxu0 0.0
        %1033 = vmatprep.subr.mxu0 0.0
        %1034 = vmatpush1.msra.mxu0 0.0
        %1035 = vmatprep.subr.mxu0 0.0
        %1036 = vmatpush1.msra.mxu0 0.0
        %1037 = vmatprep.subr.mxu0 0.0
        %1038 = vmatpush1.msra.mxu0 0.0
        %1039 = vmatprep.subr.mxu0 0.0
        %1040 = vmatpush1.msra.mxu0 0.0
        %1041 = vmatprep.subr.mxu0 0.0
        %1042 = vmatpush1.msra.mxu0 0.0
        %1043 = vmatprep.subr.mxu0 0.0
        %1044 = vmatpush1.msra.mxu0 0.0
        %1045 = vmatprep.subr.mxu0 0.0
        %1046 = vmatpush1.msra.mxu0 0.0
        %1047 = vmatprep.subr.mxu0 0.0
        %1048 = vmatpush1.msra.mxu0 0.0
        %1049 = vmatprep.subr.mxu0 0.0
        %1050 = vmatpush1.msra.mxu0 0.0
        %1051 = vmatprep.subr.mxu0 0.0
        %1052 = vmatpush1.msra.mxu0 0.0
        %1053 = vmatprep.subr.mxu0 0.0
        %1054 = vmatpush1.msra.mxu0 %v651
        %1055 = vmatprep.subr.mxu0 0.0
        %1056 = vmatpush1.msra.mxu0 %v650
        %1057 = vmatprep.subr.mxu0 0.0
        %1058 = vmatpush1.msra.mxu0 %v649
        %1059 = vmatprep.subr.mxu0 0.0
        %1060 = vmatpush1.msra.mxu0 %v648
        %1061 = vmatprep.subr.mxu0 0.0
        %1062 = vmatpush2.msra.mxu0 0.0
        %1063 = vmatprep.subr.mxu0 0.0
        %1064 = vmatpush2.msra.mxu0 0.0
        %1065 = vmatprep.subr.mxu0 0.0
        %1066 = vmatpush2.msra.mxu0 0.0
        %1067 = vmatprep.subr.mxu0 0.0
        %1068 = vmatpush2.msra.mxu0 0.0
        %1069 = vmatprep.subr.mxu0 0.0
        %1070 = vmatpush2.msra.mxu0 0.0
        %1071 = vmatprep.subr.mxu0 0.0
        %1072 = vmatpush2.msra.mxu0 0.0
        %1073 = vmatprep.subr.mxu0 0.0
        %1074 = vmatpush2.msra.mxu0 0.0
        %1075 = vmatprep.subr.mxu0 0.0
        %1076 = vmatpush2.msra.mxu0 0.0
        %1077 = vmatprep.subr.mxu0 0.0
        %1078 = vmatpush2.msra.mxu0 0.0
        %1079 = vmatprep.subr.mxu0 0.0
        %1080 = vmatpush2.msra.mxu0 0.0
        %1081 = vmatprep.subr.mxu0 0.0
        %1082 = vmatpush2.msra.mxu0 0.0
        %1083 = vmatprep.subr.mxu0 0.0
        %1084 = vmatpush2.msra.mxu0 0.0
        %1085 = vmatprep.subr.mxu0 0.0
        %1086 = vmatpush2.msra.mxu0 0.0
        %1087 = vmatprep.subr.mxu0 0.0
        %1088 = vmatpush2.msra.mxu0 0.0
        %1089 = vmatprep.subr.mxu0 0.0
        %1090 = vmatpush2.msra.mxu0 0.0
        %1091 = vmatprep.subr.mxu0 0.0
        %1092 = vmatpush2.msra.mxu0 0.0
        %1093 = vmatprep.mubr.f32.mxu0 0.0
        %1094 = vmatmul.mubr.f32.gmra.mxu0 %v887
        %v1095 = vpop.f32.mrf.mxu0
        %v1096 = vadd.f32 %v747, %v1095
        %v1097 = vpop.f32.mrf.mxu0
        %1098 = vdwg.mxu0
        %1099 = vmatprep.subr.mxu0 0.0
        %1100 = vmatpush1.msra.mxu0 0.0
        %1101 = vmatprep.subr.mxu0 0.0
        %1102 = vmatpush1.msra.mxu0 0.0
        %1103 = vmatprep.subr.mxu0 0.0
        %1104 = vmatpush1.msra.mxu0 0.0
        %1105 = vmatprep.subr.mxu0 0.0
        %1106 = vmatpush1.msra.mxu0 0.0
        %1107 = vmatprep.subr.mxu0 0.0
        %1108 = vmatpush1.msra.mxu0 0.0
        %1109 = vmatprep.subr.mxu0 0.0
        %1110 = vmatpush1.msra.mxu0 0.0
        %1111 = vmatprep.subr.mxu0 0.0
        %1112 = vmatpush1.msra.mxu0 0.0
        %1113 = vmatprep.subr.mxu0 0.0
        %1114 = vmatpush1.msra.mxu0 0.0
        %1115 = vmatprep.subr.mxu0 0.0
        %1116 = vmatpush1.msra.mxu0 0.0
        %1117 = vmatprep.subr.mxu0 0.0
        %1118 = vmatpush1.msra.mxu0 0.0
        %1119 = vmatprep.subr.mxu0 0.0
        %1120 = vmatpush1.msra.mxu0 0.0
        %1121 = vmatprep.subr.mxu0 0.0
        %1122 = vmatpush1.msra.mxu0 0.0
        %1123 = vmatprep.subr.mxu0 0.0
        %1124 = vmatpush1.msra.mxu0 %v655
        %1125 = vmatprep.subr.mxu0 0.0
        %1126 = vmatpush1.msra.mxu0 %v654
        %1127 = vmatprep.subr.mxu0 0.0
        %1128 = vmatpush1.msra.mxu0 %v653
        %1129 = vmatprep.subr.mxu0 0.0
        %1130 = vmatpush1.msra.mxu0 %v652
        %1131 = vmatprep.subr.mxu0 0.0
        %1132 = vmatpush2.msra.mxu0 0.0
        %1133 = vmatprep.subr.mxu0 0.0
        %1134 = vmatpush2.msra.mxu0 0.0
        %1135 = vmatprep.subr.mxu0 0.0
        %1136 = vmatpush2.msra.mxu0 0.0
        %1137 = vmatprep.subr.mxu0 0.0
        %1138 = vmatpush2.msra.mxu0 0.0
        %1139 = vmatprep.subr.mxu0 0.0
        %1140 = vmatpush2.msra.mxu0 0.0
        %1141 = vmatprep.subr.mxu0 0.0
        %1142 = vmatpush2.msra.mxu0 0.0
        %1143 = vmatprep.subr.mxu0 0.0
        %1144 = vmatpush2.msra.mxu0 0.0
        %1145 = vmatprep.subr.mxu0 0.0
        %1146 = vmatpush2.msra.mxu0 0.0
        %1147 = vmatprep.subr.mxu0 0.0
        %1148 = vmatpush2.msra.mxu0 0.0
        %1149 = vmatprep.subr.mxu0 0.0
        %1150 = vmatpush2.msra.mxu0 0.0
        %1151 = vmatprep.subr.mxu0 0.0
        %1152 = vmatpush2.msra.mxu0 0.0
        %1153 = vmatprep.subr.mxu0 0.0
        %1154 = vmatpush2.msra.mxu0 0.0
        %1155 = vmatprep.subr.mxu0 0.0
        %1156 = vmatpush2.msra.mxu0 0.0
        %1157 = vmatprep.subr.mxu0 0.0
        %1158 = vmatpush2.msra.mxu0 0.0
        %1159 = vmatprep.subr.mxu0 0.0
        %1160 = vmatpush2.msra.mxu0 0.0
        %1161 = vmatprep.subr.mxu0 0.0
        %1162 = vmatpush2.msra.mxu0 0.0
        %1163 = vmatprep.mubr.f32.mxu0 0.0
        %1164 = vmatmul.mubr.f32.gmra.mxu0 %v814
        %v1165 = vpop.f32.mrf.mxu0
        %v1166 = vadd.f32 %v751, %v1165
        %v1167 = vpop.f32.mrf.mxu0
        %1168 = vdwg.mxu0
        %1169 = vmatprep.subr.mxu0 0.0
        %1170 = vmatpush1.msra.mxu0 0.0
        %1171 = vmatprep.subr.mxu0 0.0
        %1172 = vmatpush1.msra.mxu0 0.0
        %1173 = vmatprep.subr.mxu0 0.0
        %1174 = vmatpush1.msra.mxu0 0.0
        %1175 = vmatprep.subr.mxu0 0.0
        %1176 = vmatpush1.msra.mxu0 0.0
        %1177 = vmatprep.subr.mxu0 0.0
        %1178 = vmatpush1.msra.mxu0 0.0
        %1179 = vmatprep.subr.mxu0 0.0
        %1180 = vmatpush1.msra.mxu0 0.0
        %1181 = vmatprep.subr.mxu0 0.0
        %1182 = vmatpush1.msra.mxu0 0.0
        %1183 = vmatprep.subr.mxu0 0.0
        %1184 = vmatpush1.msra.mxu0 0.0
        %1185 = vmatprep.subr.mxu0 0.0
        %1186 = vmatpush1.msra.mxu0 0.0
        %1187 = vmatprep.subr.mxu0 0.0
        %1188 = vmatpush1.msra.mxu0 0.0
        %1189 = vmatprep.subr.mxu0 0.0
        %1190 = vmatpush1.msra.mxu0 0.0
        %1191 = vmatprep.subr.mxu0 0.0
        %1192 = vmatpush1.msra.mxu0 0.0
        %1193 = vmatprep.subr.mxu0 0.0
        %1194 = vmatpush1.msra.mxu0 %v659
        %1195 = vmatprep.subr.mxu0 0.0
        %1196 = vmatpush1.msra.mxu0 %v658
        %1197 = vmatprep.subr.mxu0 0.0
        %1198 = vmatpush1.msra.mxu0 %v657
        %1199 = vmatprep.subr.mxu0 0.0
        %1200 = vmatpush1.msra.mxu0 %v656
        %1201 = vmatprep.subr.mxu0 0.0
        %1202 = vmatpush2.msra.mxu0 0.0
        %1203 = vmatprep.subr.mxu0 0.0
        %1204 = vmatpush2.msra.mxu0 0.0
        %1205 = vmatprep.subr.mxu0 0.0
        %1206 = vmatpush2.msra.mxu0 0.0
        %1207 = vmatprep.subr.mxu0 0.0
        %1208 = vmatpush2.msra.mxu0 0.0
        %1209 = vmatprep.subr.mxu0 0.0
        %1210 = vmatpush2.msra.mxu0 0.0
        %1211 = vmatprep.subr.mxu0 0.0
        %1212 = vmatpush2.msra.mxu0 0.0
        %1213 = vmatprep.subr.mxu0 0.0
        %1214 = vmatpush2.msra.mxu0 0.0
        %1215 = vmatprep.subr.mxu0 0.0
        %1216 = vmatpush2.msra.mxu0 0.0
        %1217 = vmatprep.subr.mxu0 0.0
        %1218 = vmatpush2.msra.mxu0 0.0
        %1219 = vmatprep.subr.mxu0 0.0
        %1220 = vmatpush2.msra.mxu0 0.0
        %1221 = vmatprep.subr.mxu0 0.0
        %1222 = vmatpush2.msra.mxu0 0.0
        %1223 = vmatprep.subr.mxu0 0.0
        %1224 = vmatpush2.msra.mxu0 0.0
        %1225 = vmatprep.subr.mxu0 0.0
        %1226 = vmatpush2.msra.mxu0 0.0
        %1227 = vmatprep.subr.mxu0 0.0
        %1228 = vmatpush2.msra.mxu0 0.0
        %1229 = vmatprep.subr.mxu0 0.0
        %1230 = vmatpush2.msra.mxu0 0.0
        %1231 = vmatprep.subr.mxu0 0.0
        %1232 = vmatpush2.msra.mxu0 0.0
        %1233 = vmatprep.mubr.f32.mxu0 0.0
        %1234 = vmatmul.mubr.f32.gmra.mxu0 %v887
        %v1235 = vpop.f32.mrf.mxu0
        %v1236 = vadd.f32 %v755, %v1235
        %v1237 = vpop.f32.mrf.mxu0
        %1238 = vdwg.mxu0
        %1239 = vmatprep.subr.mxu0 0.0
        %1240 = vmatpush1.msra.mxu0 0.0
        %1241 = vmatprep.subr.mxu0 0.0
        %1242 = vmatpush1.msra.mxu0 0.0
        %1243 = vmatprep.subr.mxu0 0.0
        %1244 = vmatpush1.msra.mxu0 0.0
        %1245 = vmatprep.subr.mxu0 0.0
        %1246 = vmatpush1.msra.mxu0 0.0
        %1247 = vmatprep.subr.mxu0 0.0
        %1248 = vmatpush1.msra.mxu0 0.0
        %1249 = vmatprep.subr.mxu0 0.0
        %1250 = vmatpush1.msra.mxu0 0.0
        %1251 = vmatprep.subr.mxu0 0.0
        %1252 = vmatpush1.msra.mxu0 0.0
        %1253 = vmatprep.subr.mxu0 0.0
        %1254 = vmatpush1.msra.mxu0 0.0
        %1255 = vmatprep.subr.mxu0 0.0
        %1256 = vmatpush1.msra.mxu0 0.0
        %1257 = vmatprep.subr.mxu0 0.0
        %1258 = vmatpush1.msra.mxu0 0.0
        %1259 = vmatprep.subr.mxu0 0.0
        %1260 = vmatpush1.msra.mxu0 0.0
        %1261 = vmatprep.subr.mxu0 0.0
        %1262 = vmatpush1.msra.mxu0 0.0
        %1263 = vmatprep.subr.mxu0 0.0
        %1264 = vmatpush1.msra.mxu0 %v663
        %1265 = vmatprep.subr.mxu0 0.0
        %1266 = vmatpush1.msra.mxu0 %v662
        %1267 = vmatprep.subr.mxu0 0.0
        %1268 = vmatpush1.msra.mxu0 %v661
        %1269 = vmatprep.subr.mxu0 0.0
        %1270 = vmatpush1.msra.mxu0 %v660
        %1271 = vmatprep.subr.mxu0 0.0
        %1272 = vmatpush2.msra.mxu0 0.0
        %1273 = vmatprep.subr.mxu0 0.0
        %1274 = vmatpush2.msra.mxu0 0.0
        %1275 = vmatprep.subr.mxu0 0.0
        %1276 = vmatpush2.msra.mxu0 0.0
        %1277 = vmatprep.subr.mxu0 0.0
        %1278 = vmatpush2.msra.mxu0 0.0
        %1279 = vmatprep.subr.mxu0 0.0
        %1280 = vmatpush2.msra.mxu0 0.0
        %1281 = vmatprep.subr.mxu0 0.0
        %1282 = vmatpush2.msra.mxu0 0.0
        %1283 = vmatprep.subr.mxu0 0.0
        %1284 = vmatpush2.msra.mxu0 0.0
        %1285 = vmatprep.subr.mxu0 0.0
        %1286 = vmatpush2.msra.mxu0 0.0
        %1287 = vmatprep.subr.mxu0 0.0
        %1288 = vmatpush2.msra.mxu0 0.0
        %1289 = vmatprep.subr.mxu0 0.0
        %1290 = vmatpush2.msra.mxu0 0.0
        %1291 = vmatprep.subr.mxu0 0.0
        %1292 = vmatpush2.msra.mxu0 0.0
        %1293 = vmatprep.subr.mxu0 0.0
        %1294 = vmatpush2.msra.mxu0 0.0
        %1295 = vmatprep.subr.mxu0 0.0
        %1296 = vmatpush2.msra.mxu0 0.0
        %1297 = vmatprep.subr.mxu0 0.0
        %1298 = vmatpush2.msra.mxu0 0.0
        %1299 = vmatprep.subr.mxu0 0.0
        %1300 = vmatpush2.msra.mxu0 0.0
        %1301 = vmatprep.subr.mxu0 0.0
        %1302 = vmatpush2.msra.mxu0 0.0
        %1303 = vmatprep.mubr.f32.mxu0 0.0
        %1304 = vmatmul.mubr.f32.gmra.mxu0 %v814
        %v1305 = vpop.f32.mrf.mxu0
        %v1306 = vadd.f32 %v759, %v1305
        %v1307 = vpop.f32.mrf.mxu0
        %1308 = vdwg.mxu0
        %1309 = vmatprep.subr.mxu0 0.0
        %1310 = vmatpush1.msra.mxu0 0.0
        %1311 = vmatprep.subr.mxu0 0.0
        %1312 = vmatpush1.msra.mxu0 0.0
        %1313 = vmatprep.subr.mxu0 0.0
        %1314 = vmatpush1.msra.mxu0 0.0
        %1315 = vmatprep.subr.mxu0 0.0
        %1316 = vmatpush1.msra.mxu0 0.0
        %1317 = vmatprep.subr.mxu0 0.0
        %1318 = vmatpush1.msra.mxu0 0.0
        %1319 = vmatprep.subr.mxu0 0.0
        %1320 = vmatpush1.msra.mxu0 0.0
        %1321 = vmatprep.subr.mxu0 0.0
        %1322 = vmatpush1.msra.mxu0 0.0
        %1323 = vmatprep.subr.mxu0 0.0
        %1324 = vmatpush1.msra.mxu0 0.0
        %1325 = vmatprep.subr.mxu0 0.0
        %1326 = vmatpush1.msra.mxu0 0.0
        %1327 = vmatprep.subr.mxu0 0.0
        %1328 = vmatpush1.msra.mxu0 0.0
        %1329 = vmatprep.subr.mxu0 0.0
        %1330 = vmatpush1.msra.mxu0 0.0
        %1331 = vmatprep.subr.mxu0 0.0
        %1332 = vmatpush1.msra.mxu0 0.0
        %1333 = vmatprep.subr.mxu0 0.0
        %1334 = vmatpush1.msra.mxu0 %v667
        %1335 = vmatprep.subr.mxu0 0.0
        %1336 = vmatpush1.msra.mxu0 %v666
        %1337 = vmatprep.subr.mxu0 0.0
        %1338 = vmatpush1.msra.mxu0 %v665
        %1339 = vmatprep.subr.mxu0 0.0
        %1340 = vmatpush1.msra.mxu0 %v664
        %1341 = vmatprep.subr.mxu0 0.0
        %1342 = vmatpush2.msra.mxu0 0.0
        %1343 = vmatprep.subr.mxu0 0.0
        %1344 = vmatpush2.msra.mxu0 0.0
        %1345 = vmatprep.subr.mxu0 0.0
        %1346 = vmatpush2.msra.mxu0 0.0
        %1347 = vmatprep.subr.mxu0 0.0
        %1348 = vmatpush2.msra.mxu0 0.0
        %1349 = vmatprep.subr.mxu0 0.0
        %1350 = vmatpush2.msra.mxu0 0.0
        %1351 = vmatprep.subr.mxu0 0.0
        %1352 = vmatpush2.msra.mxu0 0.0
        %1353 = vmatprep.subr.mxu0 0.0
        %1354 = vmatpush2.msra.mxu0 0.0
        %1355 = vmatprep.subr.mxu0 0.0
        %1356 = vmatpush2.msra.mxu0 0.0
        %1357 = vmatprep.subr.mxu0 0.0
        %1358 = vmatpush2.msra.mxu0 0.0
        %1359 = vmatprep.subr.mxu0 0.0
        %1360 = vmatpush2.msra.mxu0 0.0
        %1361 = vmatprep.subr.mxu0 0.0
        %1362 = vmatpush2.msra.mxu0 0.0
        %1363 = vmatprep.subr.mxu0 0.0
        %1364 = vmatpush2.msra.mxu0 0.0
        %1365 = vmatprep.subr.mxu0 0.0
        %1366 = vmatpush2.msra.mxu0 0.0
        %1367 = vmatprep.subr.mxu0 0.0
        %1368 = vmatpush2.msra.mxu0 0.0
        %1369 = vmatprep.subr.mxu0 0.0
        %1370 = vmatpush2.msra.mxu0 0.0
        %1371 = vmatprep.subr.mxu0 0.0
        %1372 = vmatpush2.msra.mxu0 0.0
        %1373 = vmatprep.mubr.f32.mxu0 0.0
        %1374 = vmatmul.mubr.f32.gmra.mxu0 %v887
        %v1375 = vpop.f32.mrf.mxu0
        %v1376 = vadd.f32 %v763, %v1375
        %v1377 = vpop.f32.mrf.mxu0
        %1378 = vdwg.mxu0
        %1379 = vmatprep.subr.mxu0 0.0
        %1380 = vmatpush1.msra.mxu0 0.0
        %1381 = vmatprep.subr.mxu0 0.0
        %1382 = vmatpush1.msra.mxu0 0.0
        %1383 = vmatprep.subr.mxu0 0.0
        %1384 = vmatpush1.msra.mxu0 0.0
        %1385 = vmatprep.subr.mxu0 0.0
        %1386 = vmatpush1.msra.mxu0 0.0
        %1387 = vmatprep.subr.mxu0 0.0
        %1388 = vmatpush1.msra.mxu0 0.0
        %1389 = vmatprep.subr.mxu0 0.0
        %1390 = vmatpush1.msra.mxu0 0.0
        %1391 = vmatprep.subr.mxu0 0.0
        %1392 = vmatpush1.msra.mxu0 0.0
        %1393 = vmatprep.subr.mxu0 0.0
        %1394 = vmatpush1.msra.mxu0 0.0
        %1395 = vmatprep.subr.mxu0 0.0
        %1396 = vmatpush1.msra.mxu0 0.0
        %1397 = vmatprep.subr.mxu0 0.0
        %1398 = vmatpush1.msra.mxu0 0.0
        %1399 = vmatprep.subr.mxu0 0.0
        %1400 = vmatpush1.msra.mxu0 0.0
        %1401 = vmatprep.subr.mxu0 0.0
        %1402 = vmatpush1.msra.mxu0 0.0
        %1403 = vmatprep.subr.mxu0 0.0
        %1404 = vmatpush1.msra.mxu0 %v671
        %1405 = vmatprep.subr.mxu0 0.0
        %1406 = vmatpush1.msra.mxu0 %v670
        %1407 = vmatprep.subr.mxu0 0.0
        %1408 = vmatpush1.msra.mxu0 %v669
        %1409 = vmatprep.subr.mxu0 0.0
        %1410 = vmatpush1.msra.mxu0 %v668
        %1411 = vmatprep.subr.mxu0 0.0
        %1412 = vmatpush2.msra.mxu0 0.0
        %1413 = vmatprep.subr.mxu0 0.0
        %1414 = vmatpush2.msra.mxu0 0.0
        %1415 = vmatprep.subr.mxu0 0.0
        %1416 = vmatpush2.msra.mxu0 0.0
        %1417 = vmatprep.subr.mxu0 0.0
        %1418 = vmatpush2.msra.mxu0 0.0
        %1419 = vmatprep.subr.mxu0 0.0
        %1420 = vmatpush2.msra.mxu0 0.0
        %1421 = vmatprep.subr.mxu0 0.0
        %1422 = vmatpush2.msra.mxu0 0.0
        %1423 = vmatprep.subr.mxu0 0.0
        %1424 = vmatpush2.msra.mxu0 0.0
        %1425 = vmatprep.subr.mxu0 0.0
        %1426 = vmatpush2.msra.mxu0 0.0
        %1427 = vmatprep.subr.mxu0 0.0
        %1428 = vmatpush2.msra.mxu0 0.0
        %1429 = vmatprep.subr.mxu0 0.0
        %1430 = vmatpush2.msra.mxu0 0.0
        %1431 = vmatprep.subr.mxu0 0.0
        %1432 = vmatpush2.msra.mxu0 0.0
        %1433 = vmatprep.subr.mxu0 0.0
        %1434 = vmatpush2.msra.mxu0 0.0
        %1435 = vmatprep.subr.mxu0 0.0
        %1436 = vmatpush2.msra.mxu0 0.0
        %1437 = vmatprep.subr.mxu0 0.0
        %1438 = vmatpush2.msra.mxu0 0.0
        %1439 = vmatprep.subr.mxu0 0.0
        %1440 = vmatpush2.msra.mxu0 0.0
        %1441 = vmatprep.subr.mxu0 0.0
        %1442 = vmatpush2.msra.mxu0 0.0
        %1443 = vmatprep.mubr.f32.mxu0 0.0
        %1444 = vmatmul.mubr.f32.gmra.mxu0 %v814
        %v1445 = vpop.f32.mrf.mxu0
        %v1446 = vadd.f32 %v767, %v1445
        %v1447 = vpop.f32.mrf.mxu0
        %1448 = vdwg.mxu0
        %1449 = vmatprep.subr.mxu0 0.0
        %1450 = vmatpush1.msra.mxu0 0.0
        %1451 = vmatprep.subr.mxu0 0.0
        %1452 = vmatpush1.msra.mxu0 0.0
        %1453 = vmatprep.subr.mxu0 0.0
        %1454 = vmatpush1.msra.mxu0 0.0
        %1455 = vmatprep.subr.mxu0 0.0
        %1456 = vmatpush1.msra.mxu0 0.0
        %1457 = vmatprep.subr.mxu0 0.0
        %1458 = vmatpush1.msra.mxu0 0.0
        %1459 = vmatprep.subr.mxu0 0.0
        %1460 = vmatpush1.msra.mxu0 0.0
        %1461 = vmatprep.subr.mxu0 0.0
        %1462 = vmatpush1.msra.mxu0 0.0
        %1463 = vmatprep.subr.mxu0 0.0
        %1464 = vmatpush1.msra.mxu0 0.0
        %1465 = vmatprep.subr.mxu0 0.0
        %1466 = vmatpush1.msra.mxu0 0.0
        %1467 = vmatprep.subr.mxu0 0.0
        %1468 = vmatpush1.msra.mxu0 0.0
        %1469 = vmatprep.subr.mxu0 0.0
        %1470 = vmatpush1.msra.mxu0 0.0
        %1471 = vmatprep.subr.mxu0 0.0
        %1472 = vmatpush1.msra.mxu0 0.0
        %1473 = vmatprep.subr.mxu0 0.0
        %1474 = vmatpush1.msra.mxu0 %v675
        %1475 = vmatprep.subr.mxu0 0.0
        %1476 = vmatpush1.msra.mxu0 %v674
        %1477 = vmatprep.subr.mxu0 0.0
        %1478 = vmatpush1.msra.mxu0 %v673
        %1479 = vmatprep.subr.mxu0 0.0
        %1480 = vmatpush1.msra.mxu0 %v672
        %1481 = vmatprep.subr.mxu0 0.0
        %1482 = vmatpush2.msra.mxu0 0.0
        %1483 = vmatprep.subr.mxu0 0.0
        %1484 = vmatpush2.msra.mxu0 0.0
        %1485 = vmatprep.subr.mxu0 0.0
        %1486 = vmatpush2.msra.mxu0 0.0
        %1487 = vmatprep.subr.mxu0 0.0
        %1488 = vmatpush2.msra.mxu0 0.0
        %1489 = vmatprep.subr.mxu0 0.0
        %1490 = vmatpush2.msra.mxu0 0.0
        %1491 = vmatprep.subr.mxu0 0.0
        %1492 = vmatpush2.msra.mxu0 0.0
        %1493 = vmatprep.subr.mxu0 0.0
        %1494 = vmatpush2.msra.mxu0 0.0
        %1495 = vmatprep.subr.mxu0 0.0
        %1496 = vmatpush2.msra.mxu0 0.0
        %1497 = vmatprep.subr.mxu0 0.0
        %1498 = vmatpush2.msra.mxu0 0.0
        %1499 = vmatprep.subr.mxu0 0.0
        %1500 = vmatpush2.msra.mxu0 0.0
        %1501 = vmatprep.subr.mxu0 0.0
        %1502 = vmatpush2.msra.mxu0 0.0
        %1503 = vmatprep.subr.mxu0 0.0
        %1504 = vmatpush2.msra.mxu0 0.0
        %1505 = vmatprep.subr.mxu0 0.0
        %1506 = vmatpush2.msra.mxu0 0.0
        %1507 = vmatprep.subr.mxu0 0.0
        %1508 = vmatpush2.msra.mxu0 0.0
        %1509 = vmatprep.subr.mxu0 0.0
        %1510 = vmatpush2.msra.mxu0 0.0
        %1511 = vmatprep.subr.mxu0 0.0
        %1512 = vmatpush2.msra.mxu0 0.0
        %1513 = vmatprep.mubr.f32.mxu0 0.0
        %1514 = vmatmul.mubr.f32.gmra.mxu0 %v887
        %v1515 = vpop.f32.mrf.mxu0
        %v1516 = vadd.f32 %v771, %v1515
        %v1517 = vpop.f32.mrf.mxu0
        %1518 = vdwg.mxu0
        %1519 = vmatprep.subr.mxu0 0.0
        %1520 = vmatpush1.msra.mxu0 0.0
        %1521 = vmatprep.subr.mxu0 0.0
        %1522 = vmatpush1.msra.mxu0 0.0
        %1523 = vmatprep.subr.mxu0 0.0
        %1524 = vmatpush1.msra.mxu0 0.0
        %1525 = vmatprep.subr.mxu0 0.0
        %1526 = vmatpush1.msra.mxu0 0.0
        %1527 = vmatprep.subr.mxu0 0.0
        %1528 = vmatpush1.msra.mxu0 0.0
        %1529 = vmatprep.subr.mxu0 0.0
        %1530 = vmatpush1.msra.mxu0 0.0
        %1531 = vmatprep.subr.mxu0 0.0
        %1532 = vmatpush1.msra.mxu0 0.0
        %1533 = vmatprep.subr.mxu0 0.0
        %1534 = vmatpush1.msra.mxu0 0.0
        %1535 = vmatprep.subr.mxu0 0.0
        %1536 = vmatpush1.msra.mxu0 0.0
        %1537 = vmatprep.subr.mxu0 0.0
        %1538 = vmatpush1.msra.mxu0 0.0
        %1539 = vmatprep.subr.mxu0 0.0
        %1540 = vmatpush1.msra.mxu0 0.0
        %1541 = vmatprep.subr.mxu0 0.0
        %1542 = vmatpush1.msra.mxu0 0.0
        %1543 = vmatprep.subr.mxu0 0.0
        %1544 = vmatpush1.msra.mxu0 %v679
        %1545 = vmatprep.subr.mxu0 0.0
        %1546 = vmatpush1.msra.mxu0 %v678
        %1547 = vmatprep.subr.mxu0 0.0
        %1548 = vmatpush1.msra.mxu0 %v677
        %1549 = vmatprep.subr.mxu0 0.0
        %1550 = vmatpush1.msra.mxu0 %v676
        %1551 = vmatprep.subr.mxu0 0.0
        %1552 = vmatpush2.msra.mxu0 0.0
        %1553 = vmatprep.subr.mxu0 0.0
        %1554 = vmatpush2.msra.mxu0 0.0
        %1555 = vmatprep.subr.mxu0 0.0
        %1556 = vmatpush2.msra.mxu0 0.0
        %1557 = vmatprep.subr.mxu0 0.0
        %1558 = vmatpush2.msra.mxu0 0.0
        %1559 = vmatprep.subr.mxu0 0.0
        %1560 = vmatpush2.msra.mxu0 0.0
        %1561 = vmatprep.subr.mxu0 0.0
        %1562 = vmatpush2.msra.mxu0 0.0
        %1563 = vmatprep.subr.mxu0 0.0
        %1564 = vmatpush2.msra.mxu0 0.0
        %1565 = vmatprep.subr.mxu0 0.0
        %1566 = vmatpush2.msra.mxu0 0.0
        %1567 = vmatprep.subr.mxu0 0.0
        %1568 = vmatpush2.msra.mxu0 0.0
        %1569 = vmatprep.subr.mxu0 0.0
        %1570 = vmatpush2.msra.mxu0 0.0
        %1571 = vmatprep.subr.mxu0 0.0
        %1572 = vmatpush2.msra.mxu0 0.0
        %1573 = vmatprep.subr.mxu0 0.0
        %1574 = vmatpush2.msra.mxu0 0.0
        %1575 = vmatprep.subr.mxu0 0.0
        %1576 = vmatpush2.msra.mxu0 0.0
        %1577 = vmatprep.subr.mxu0 0.0
        %1578 = vmatpush2.msra.mxu0 0.0
        %1579 = vmatprep.subr.mxu0 0.0
        %1580 = vmatpush2.msra.mxu0 0.0
        %1581 = vmatprep.subr.mxu0 0.0
        %1582 = vmatpush2.msra.mxu0 0.0
        %1583 = vmatprep.mubr.f32.mxu0 0.0
        %1584 = vmatmul.mubr.f32.gmra.mxu0 %v814
        %v1585 = vpop.f32.mrf.mxu0
        %v1586 = vadd.f32 %v775, %v1585
        %v1587 = vpop.f32.mrf.mxu0
        %1588 = vdwg.mxu0
        %1589 = vmatprep.subr.mxu0 0.0
        %1590 = vmatpush1.msra.mxu0 0.0
        %1591 = vmatprep.subr.mxu0 0.0
        %1592 = vmatpush1.msra.mxu0 0.0
        %1593 = vmatprep.subr.mxu0 0.0
        %1594 = vmatpush1.msra.mxu0 0.0
        %1595 = vmatprep.subr.mxu0 0.0
        %1596 = vmatpush1.msra.mxu0 0.0
        %1597 = vmatprep.subr.mxu0 0.0
        %1598 = vmatpush1.msra.mxu0 0.0
        %1599 = vmatprep.subr.mxu0 0.0
        %1600 = vmatpush1.msra.mxu0 0.0
        %1601 = vmatprep.subr.mxu0 0.0
        %1602 = vmatpush1.msra.mxu0 0.0
        %1603 = vmatprep.subr.mxu0 0.0
        %1604 = vmatpush1.msra.mxu0 0.0
        %1605 = vmatprep.subr.mxu0 0.0
        %1606 = vmatpush1.msra.mxu0 0.0
        %1607 = vmatprep.subr.mxu0 0.0
        %1608 = vmatpush1.msra.mxu0 0.0
        %1609 = vmatprep.subr.mxu0 0.0
        %1610 = vmatpush1.msra.mxu0 0.0
        %1611 = vmatprep.subr.mxu0 0.0
        %1612 = vmatpush1.msra.mxu0 0.0
        %1613 = vmatprep.subr.mxu0 0.0
        %1614 = vmatpush1.msra.mxu0 %v683
        %1615 = vmatprep.subr.mxu0 0.0
        %1616 = vmatpush1.msra.mxu0 %v682
        %1617 = vmatprep.subr.mxu0 0.0
        %1618 = vmatpush1.msra.mxu0 %v681
        %1619 = vmatprep.subr.mxu0 0.0
        %1620 = vmatpush1.msra.mxu0 %v680
        %1621 = vmatprep.subr.mxu0 0.0
        %1622 = vmatpush2.msra.mxu0 0.0
        %1623 = vmatprep.subr.mxu0 0.0
        %1624 = vmatpush2.msra.mxu0 0.0
        %1625 = vmatprep.subr.mxu0 0.0
        %1626 = vmatpush2.msra.mxu0 0.0
        %1627 = vmatprep.subr.mxu0 0.0
        %1628 = vmatpush2.msra.mxu0 0.0
        %1629 = vmatprep.subr.mxu0 0.0
        %1630 = vmatpush2.msra.mxu0 0.0
        %1631 = vmatprep.subr.mxu0 0.0
        %1632 = vmatpush2.msra.mxu0 0.0
        %1633 = vmatprep.subr.mxu0 0.0
        %1634 = vmatpush2.msra.mxu0 0.0
        %1635 = vmatprep.subr.mxu0 0.0
        %1636 = vmatpush2.msra.mxu0 0.0
        %1637 = vmatprep.subr.mxu0 0.0
        %1638 = vmatpush2.msra.mxu0 0.0
        %1639 = vmatprep.subr.mxu0 0.0
        %1640 = vmatpush2.msra.mxu0 0.0
        %1641 = vmatprep.subr.mxu0 0.0
        %1642 = vmatpush2.msra.mxu0 0.0
        %1643 = vmatprep.subr.mxu0 0.0
        %1644 = vmatpush2.msra.mxu0 0.0
        %1645 = vmatprep.subr.mxu0 0.0
        %1646 = vmatpush2.msra.mxu0 0.0
        %1647 = vmatprep.subr.mxu0 0.0
        %1648 = vmatpush2.msra.mxu0 0.0
        %1649 = vmatprep.subr.mxu0 0.0
        %1650 = vmatpush2.msra.mxu0 0.0
        %1651 = vmatprep.subr.mxu0 0.0
        %1652 = vmatpush2.msra.mxu0 0.0
        %1653 = vmatprep.mubr.f32.mxu0 0.0
        %1654 = vmatmul.mubr.f32.gmra.mxu0 %v887
        %v1655 = vpop.f32.mrf.mxu0
        %v1656 = vadd.f32 %v779, %v1655
        %v1657 = vpop.f32.mrf.mxu0
        %1658 = vdwg.mxu0
        %1659 = vmatprep.subr.mxu0 0.0
        %1660 = vmatpush1.msra.mxu0 0.0
        %1661 = vmatprep.subr.mxu0 0.0
        %1662 = vmatpush1.msra.mxu0 0.0
        %1663 = vmatprep.subr.mxu0 0.0
        %1664 = vmatpush1.msra.mxu0 0.0
        %1665 = vmatprep.subr.mxu0 0.0
        %1666 = vmatpush1.msra.mxu0 0.0
        %1667 = vmatprep.subr.mxu0 0.0
        %1668 = vmatpush1.msra.mxu0 0.0
        %1669 = vmatprep.subr.mxu0 0.0
        %1670 = vmatpush1.msra.mxu0 0.0
        %1671 = vmatprep.subr.mxu0 0.0
        %1672 = vmatpush1.msra.mxu0 0.0
        %1673 = vmatprep.subr.mxu0 0.0
        %1674 = vmatpush1.msra.mxu0 0.0
        %1675 = vmatprep.subr.mxu0 0.0
        %1676 = vmatpush1.msra.mxu0 0.0
        %1677 = vmatprep.subr.mxu0 0.0
        %1678 = vmatpush1.msra.mxu0 0.0
        %1679 = vmatprep.subr.mxu0 0.0
        %1680 = vmatpush1.msra.mxu0 0.0
        %1681 = vmatprep.subr.mxu0 0.0
        %1682 = vmatpush1.msra.mxu0 0.0
        %1683 = vmatprep.subr.mxu0 0.0
        %1684 = vmatpush1.msra.mxu0 %v687
        %1685 = vmatprep.subr.mxu0 0.0
        %1686 = vmatpush1.msra.mxu0 %v686
        %1687 = vmatprep.subr.mxu0 0.0
        %1688 = vmatpush1.msra.mxu0 %v685
        %1689 = vmatprep.subr.mxu0 0.0
        %1690 = vmatpush1.msra.mxu0 %v684
        %1691 = vmatprep.subr.mxu0 0.0
        %1692 = vmatpush2.msra.mxu0 0.0
        %1693 = vmatprep.subr.mxu0 0.0
        %1694 = vmatpush2.msra.mxu0 0.0
        %1695 = vmatprep.subr.mxu0 0.0
        %1696 = vmatpush2.msra.mxu0 0.0
        %1697 = vmatprep.subr.mxu0 0.0
        %1698 = vmatpush2.msra.mxu0 0.0
        %1699 = vmatprep.subr.mxu0 0.0
        %1700 = vmatpush2.msra.mxu0 0.0
        %1701 = vmatprep.subr.mxu0 0.0
        %1702 = vmatpush2.msra.mxu0 0.0
        %1703 = vmatprep.subr.mxu0 0.0
        %1704 = vmatpush2.msra.mxu0 0.0
        %1705 = vmatprep.subr.mxu0 0.0
        %1706 = vmatpush2.msra.mxu0 0.0
        %1707 = vmatprep.subr.mxu0 0.0
        %1708 = vmatpush2.msra.mxu0 0.0
        %1709 = vmatprep.subr.mxu0 0.0
        %1710 = vmatpush2.msra.mxu0 0.0
        %1711 = vmatprep.subr.mxu0 0.0
        %1712 = vmatpush2.msra.mxu0 0.0
        %1713 = vmatprep.subr.mxu0 0.0
        %1714 = vmatpush2.msra.mxu0 0.0
        %1715 = vmatprep.subr.mxu0 0.0
        %1716 = vmatpush2.msra.mxu0 0.0
        %1717 = vmatprep.subr.mxu0 0.0
        %1718 = vmatpush2.msra.mxu0 0.0
        %1719 = vmatprep.subr.mxu0 0.0
        %1720 = vmatpush2.msra.mxu0 0.0
        %1721 = vmatprep.subr.mxu0 0.0
        %1722 = vmatpush2.msra.mxu0 0.0
        %1723 = vmatprep.mubr.f32.mxu0 0.0
        %1724 = vmatmul.mubr.f32.gmra.mxu0 %v814
        %v1725 = vpop.f32.mrf.mxu0
        %v1726 = vadd.f32 %v783, %v1725
        %v1727 = vpop.f32.mrf.mxu0
        %1728 = vdwg.mxu0
        %1729 = vmatprep.subr.mxu0 0.0
        %1730 = vmatpush1.msra.mxu0 0.0
        %1731 = vmatprep.subr.mxu0 0.0
        %1732 = vmatpush1.msra.mxu0 0.0
        %1733 = vmatprep.subr.mxu0 0.0
        %1734 = vmatpush1.msra.mxu0 0.0
        %1735 = vmatprep.subr.mxu0 0.0
        %1736 = vmatpush1.msra.mxu0 0.0
        %1737 = vmatprep.subr.mxu0 0.0
        %1738 = vmatpush1.msra.mxu0 0.0
        %1739 = vmatprep.subr.mxu0 0.0
        %1740 = vmatpush1.msra.mxu0 0.0
        %1741 = vmatprep.subr.mxu0 0.0
        %1742 = vmatpush1.msra.mxu0 0.0
        %1743 = vmatprep.subr.mxu0 0.0
        %1744 = vmatpush1.msra.mxu0 0.0
        %1745 = vmatprep.subr.mxu0 0.0
        %1746 = vmatpush1.msra.mxu0 0.0
        %1747 = vmatprep.subr.mxu0 0.0
        %1748 = vmatpush1.msra.mxu0 0.0
        %1749 = vmatprep.subr.mxu0 0.0
        %1750 = vmatpush1.msra.mxu0 0.0
        %1751 = vmatprep.subr.mxu0 0.0
        %1752 = vmatpush1.msra.mxu0 0.0
        %1753 = vmatprep.subr.mxu0 0.0
        %1754 = vmatpush1.msra.mxu0 %v691
        %1755 = vmatprep.subr.mxu0 0.0
        %1756 = vmatpush1.msra.mxu0 %v690
        %1757 = vmatprep.subr.mxu0 0.0
        %1758 = vmatpush1.msra.mxu0 %v689
        %1759 = vmatprep.subr.mxu0 0.0
        %1760 = vmatpush1.msra.mxu0 %v688
        %1761 = vmatprep.subr.mxu0 0.0
        %1762 = vmatpush2.msra.mxu0 0.0
        %1763 = vmatprep.subr.mxu0 0.0
        %1764 = vmatpush2.msra.mxu0 0.0
        %1765 = vmatprep.subr.mxu0 0.0
        %1766 = vmatpush2.msra.mxu0 0.0
        %1767 = vmatprep.subr.mxu0 0.0
        %1768 = vmatpush2.msra.mxu0 0.0
        %1769 = vmatprep.subr.mxu0 0.0
        %1770 = vmatpush2.msra.mxu0 0.0
        %1771 = vmatprep.subr.mxu0 0.0
        %1772 = vmatpush2.msra.mxu0 0.0
        %1773 = vmatprep.subr.mxu0 0.0
        %1774 = vmatpush2.msra.mxu0 0.0
        %1775 = vmatprep.subr.mxu0 0.0
        %1776 = vmatpush2.msra.mxu0 0.0
        %1777 = vmatprep.subr.mxu0 0.0
        %1778 = vmatpush2.msra.mxu0 0.0
        %1779 = vmatprep.subr.mxu0 0.0
        %1780 = vmatpush2.msra.mxu0 0.0
        %1781 = vmatprep.subr.mxu0 0.0
        %1782 = vmatpush2.msra.mxu0 0.0
        %1783 = vmatprep.subr.mxu0 0.0
        %1784 = vmatpush2.msra.mxu0 0.0
        %1785 = vmatprep.subr.mxu0 0.0
        %1786 = vmatpush2.msra.mxu0 0.0
        %1787 = vmatprep.subr.mxu0 0.0
        %1788 = vmatpush2.msra.mxu0 0.0
        %1789 = vmatprep.subr.mxu0 0.0
        %1790 = vmatpush2.msra.mxu0 0.0
        %1791 = vmatprep.subr.mxu0 0.0
        %1792 = vmatpush2.msra.mxu0 0.0
        %1793 = vmatprep.mubr.f32.mxu0 0.0
        %1794 = vmatmul.mubr.f32.gmra.mxu0 %v887
        %v1795 = vpop.f32.mrf.mxu0
        %v1796 = vadd.f32 %v787, %v1795
        %v1797 = vpop.f32.mrf.mxu0
        %1798 = vdwg.mxu0
        %1799 = vmatprep.subr.mxu0 0.0
        %1800 = vmatpush1.msra.mxu0 0.0
        %1801 = vmatprep.subr.mxu0 0.0
        %1802 = vmatpush1.msra.mxu0 0.0
        %1803 = vmatprep.subr.mxu0 0.0
        %1804 = vmatpush1.msra.mxu0 0.0
        %1805 = vmatprep.subr.mxu0 0.0
        %1806 = vmatpush1.msra.mxu0 0.0
        %1807 = vmatprep.subr.mxu0 0.0
        %1808 = vmatpush1.msra.mxu0 0.0
        %1809 = vmatprep.subr.mxu0 0.0
        %1810 = vmatpush1.msra.mxu0 0.0
        %1811 = vmatprep.subr.mxu0 0.0
        %1812 = vmatpush1.msra.mxu0 0.0
        %1813 = vmatprep.subr.mxu0 0.0
        %1814 = vmatpush1.msra.mxu0 0.0
        %1815 = vmatprep.subr.mxu0 0.0
        %1816 = vmatpush1.msra.mxu0 0.0
        %1817 = vmatprep.subr.mxu0 0.0
        %1818 = vmatpush1.msra.mxu0 0.0
        %1819 = vmatprep.subr.mxu0 0.0
        %1820 = vmatpush1.msra.mxu0 0.0
        %1821 = vmatprep.subr.mxu0 0.0
        %1822 = vmatpush1.msra.mxu0 0.0
        %1823 = vmatprep.subr.mxu0 0.0
        %1824 = vmatpush1.msra.mxu0 %v695
        %1825 = vmatprep.subr.mxu0 0.0
        %1826 = vmatpush1.msra.mxu0 %v694
        %1827 = vmatprep.subr.mxu0 0.0
        %1828 = vmatpush1.msra.mxu0 %v693
        %1829 = vmatprep.subr.mxu0 0.0
        %1830 = vmatpush1.msra.mxu0 %v692
        %1831 = vmatprep.subr.mxu0 0.0
        %1832 = vmatpush2.msra.mxu0 0.0
        %1833 = vmatprep.subr.mxu0 0.0
        %1834 = vmatpush2.msra.mxu0 0.0
        %1835 = vmatprep.subr.mxu0 0.0
        %1836 = vmatpush2.msra.mxu0 0.0
        %1837 = vmatprep.subr.mxu0 0.0
        %1838 = vmatpush2.msra.mxu0 0.0
        %1839 = vmatprep.subr.mxu0 0.0
        %1840 = vmatpush2.msra.mxu0 0.0
        %1841 = vmatprep.subr.mxu0 0.0
        %1842 = vmatpush2.msra.mxu0 0.0
        %1843 = vmatprep.subr.mxu0 0.0
        %1844 = vmatpush2.msra.mxu0 0.0
        %1845 = vmatprep.subr.mxu0 0.0
        %1846 = vmatpush2.msra.mxu0 0.0
        %1847 = vmatprep.subr.mxu0 0.0
        %1848 = vmatpush2.msra.mxu0 0.0
        %1849 = vmatprep.subr.mxu0 0.0
        %1850 = vmatpush2.msra.mxu0 0.0
        %1851 = vmatprep.subr.mxu0 0.0
        %1852 = vmatpush2.msra.mxu0 0.0
        %1853 = vmatprep.subr.mxu0 0.0
        %1854 = vmatpush2.msra.mxu0 0.0
        %1855 = vmatprep.subr.mxu0 0.0
        %1856 = vmatpush2.msra.mxu0 0.0
        %1857 = vmatprep.subr.mxu0 0.0
        %1858 = vmatpush2.msra.mxu0 0.0
        %1859 = vmatprep.subr.mxu0 0.0
        %1860 = vmatpush2.msra.mxu0 0.0
        %1861 = vmatprep.subr.mxu0 0.0
        %1862 = vmatpush2.msra.mxu0 0.0
        %1863 = vmatprep.mubr.f32.mxu0 0.0
        %1864 = vmatmul.mubr.f32.gmra.mxu0 %v814
        %v1865 = vpop.f32.mrf.mxu0
        %v1866 = vadd.f32 %v791, %v1865
        %v1867 = vpop.f32.mrf.mxu0
        %1868 = vdwg.mxu0
        %1869 = vmatprep.subr.mxu0 0.0
        %1870 = vmatpush1.msra.mxu0 0.0
        %1871 = vmatprep.subr.mxu0 0.0
        %1872 = vmatpush1.msra.mxu0 0.0
        %1873 = vmatprep.subr.mxu0 0.0
        %1874 = vmatpush1.msra.mxu0 0.0
        %1875 = vmatprep.subr.mxu0 0.0
        %1876 = vmatpush1.msra.mxu0 0.0
        %1877 = vmatprep.subr.mxu0 0.0
        %1878 = vmatpush1.msra.mxu0 0.0
        %1879 = vmatprep.subr.mxu0 0.0
        %1880 = vmatpush1.msra.mxu0 0.0
        %1881 = vmatprep.subr.mxu0 0.0
        %1882 = vmatpush1.msra.mxu0 0.0
        %1883 = vmatprep.subr.mxu0 0.0
        %1884 = vmatpush1.msra.mxu0 0.0
        %1885 = vmatprep.subr.mxu0 0.0
        %1886 = vmatpush1.msra.mxu0 0.0
        %1887 = vmatprep.subr.mxu0 0.0
        %1888 = vmatpush1.msra.mxu0 0.0
        %1889 = vmatprep.subr.mxu0 0.0
        %1890 = vmatpush1.msra.mxu0 0.0
        %1891 = vmatprep.subr.mxu0 0.0
        %1892 = vmatpush1.msra.mxu0 0.0
        %1893 = vmatprep.subr.mxu0 0.0
        %1894 = vmatpush1.msra.mxu0 %v699
        %1895 = vmatprep.subr.mxu0 0.0
        %1896 = vmatpush1.msra.mxu0 %v698
        %1897 = vmatprep.subr.mxu0 0.0
        %1898 = vmatpush1.msra.mxu0 %v697
        %1899 = vmatprep.subr.mxu0 0.0
        %1900 = vmatpush1.msra.mxu0 %v696
        %1901 = vmatprep.subr.mxu0 0.0
        %1902 = vmatpush2.msra.mxu0 0.0
        %1903 = vmatprep.subr.mxu0 0.0
        %1904 = vmatpush2.msra.mxu0 0.0
        %1905 = vmatprep.subr.mxu0 0.0
        %1906 = vmatpush2.msra.mxu0 0.0
        %1907 = vmatprep.subr.mxu0 0.0
        %1908 = vmatpush2.msra.mxu0 0.0
        %1909 = vmatprep.subr.mxu0 0.0
        %1910 = vmatpush2.msra.mxu0 0.0
        %1911 = vmatprep.subr.mxu0 0.0
        %1912 = vmatpush2.msra.mxu0 0.0
        %1913 = vmatprep.subr.mxu0 0.0
        %1914 = vmatpush2.msra.mxu0 0.0
        %1915 = vmatprep.subr.mxu0 0.0
        %1916 = vmatpush2.msra.mxu0 0.0
        %1917 = vmatprep.subr.mxu0 0.0
        %1918 = vmatpush2.msra.mxu0 0.0
        %1919 = vmatprep.subr.mxu0 0.0
        %1920 = vmatpush2.msra.mxu0 0.0
        %1921 = vmatprep.subr.mxu0 0.0
        %1922 = vmatpush2.msra.mxu0 0.0
        %1923 = vmatprep.subr.mxu0 0.0
        %1924 = vmatpush2.msra.mxu0 0.0
        %1925 = vmatprep.subr.mxu0 0.0
        %1926 = vmatpush2.msra.mxu0 0.0
        %1927 = vmatprep.subr.mxu0 0.0
        %1928 = vmatpush2.msra.mxu0 0.0
        %1929 = vmatprep.subr.mxu0 0.0
        %1930 = vmatpush2.msra.mxu0 0.0
        %1931 = vmatprep.subr.mxu0 0.0
        %1932 = vmatpush2.msra.mxu0 0.0
        %1933 = vmatprep.mubr.f32.mxu0 0.0
        %1934 = vmatmul.mubr.f32.gmra.mxu0 %v887
        %v1935 = vpop.f32.mrf.mxu0
        %v1936 = vadd.f32 %v795, %v1935
        %v1937 = vpop.f32.mrf.mxu0
        %1938 = vdwg.mxu0
        %1940 = vrot.lane.b32.xlu0 %v883, 124
        %v1941 = vpop.permute.xlu0 %1940
        %vm1942 = vcmask 31744
        %v1943 = vsel %vm1942, %v883, 0
        %v1945 = vsel %vm1942, %v1941, 0
        %1947 = vmatprep.subr.mxu0 0.0
        %1948 = vmatpush1.xpose.msra.mxu0 0.0
        %1949 = vmatprep.subr.mxu0 0.0
        %1950 = vmatpush1.xpose.msra.mxu0 0.0
        %1951 = vmatprep.subr.mxu0 0.0
        %1952 = vmatpush1.xpose.msra.mxu0 0.0
        %1953 = vmatprep.subr.mxu0 0.0
        %1954 = vmatpush1.xpose.msra.mxu0 0.0
        %1955 = vmatprep.subr.mxu0 0.0
        %1956 = vmatpush1.xpose.msra.mxu0 0.0
        %1957 = vmatprep.subr.mxu0 0.0
        %1958 = vmatpush1.xpose.msra.mxu0 0.0
        %1959 = vmatprep.subr.mxu0 0.0
        %1960 = vmatpush1.xpose.msra.mxu0 0.0
        %1961 = vmatprep.subr.mxu0 0.0
        %1962 = vmatpush1.xpose.msra.mxu0 0.0
        %1963 = vmatprep.subr.mxu0 0.0
        %1964 = vmatpush1.xpose.msra.mxu0 0.0
        %1965 = vmatprep.subr.mxu0 0.0
        %1966 = vmatpush1.xpose.msra.mxu0 0.0
        %1967 = vmatprep.subr.mxu0 0.0
        %1968 = vmatpush1.xpose.msra.mxu0 0.0
        %1969 = vmatprep.subr.mxu0 0.0
        %1970 = vmatpush1.xpose.msra.mxu0 0.0
        %1971 = vmatprep.subr.mxu0 0.0
        %1972 = vmatpush1.xpose.msra.mxu0 0.0
        %1973 = vmatprep.subr.mxu0 0.0
        %1974 = vmatpush1.xpose.msra.mxu0 0.0
        %1975 = vmatprep.subr.mxu0 0.0
        %1976 = vmatpush1.xpose.msra.mxu0 0.0
        %1977 = vmatprep.subr.mxu0 0.0
        %1978 = vmatpush1.xpose.msra.mxu0 %v1945
        %1979 = vmatprep.subr.mxu0 0.0
        %1980 = vmatpush2.xpose.msra.mxu0 0.0
        %1981 = vmatprep.subr.mxu0 0.0
        %1982 = vmatpush2.xpose.msra.mxu0 0.0
        %1983 = vmatprep.subr.mxu0 0.0
        %1984 = vmatpush2.xpose.msra.mxu0 0.0
        %1985 = vmatprep.subr.mxu0 0.0
        %1986 = vmatpush2.xpose.msra.mxu0 0.0
        %1987 = vmatprep.subr.mxu0 0.0
        %1988 = vmatpush2.xpose.msra.mxu0 0.0
        %1989 = vmatprep.subr.mxu0 0.0
        %1990 = vmatpush2.xpose.msra.mxu0 0.0
        %1991 = vmatprep.subr.mxu0 0.0
        %1992 = vmatpush2.xpose.msra.mxu0 0.0
        %1993 = vmatprep.subr.mxu0 0.0
        %1994 = vmatpush2.xpose.msra.mxu0 0.0
        %1995 = vmatprep.subr.mxu0 0.0
        %1996 = vmatpush2.xpose.msra.mxu0 0.0
        %1997 = vmatprep.subr.mxu0 0.0
        %1998 = vmatpush2.xpose.msra.mxu0 0.0
        %1999 = vmatprep.subr.mxu0 0.0
        %2000 = vmatpush2.xpose.msra.mxu0 0.0
        %2001 = vmatprep.subr.mxu0 0.0
        %2002 = vmatpush2.xpose.msra.mxu0 0.0
        %2003 = vmatprep.subr.mxu0 0.0
        %2004 = vmatpush2.xpose.msra.mxu0 0.0
        %2005 = vmatprep.subr.mxu0 0.0
        %2006 = vmatpush2.xpose.msra.mxu0 0.0
        %2007 = vmatprep.subr.mxu0 0.0
        %2008 = vmatpush2.xpose.msra.mxu0 0.0
        %2009 = vmatprep.subr.mxu0 0.0
        %2010 = vmatpush2.xpose.msra.mxu0 0.0
        %2011 = vmatprep.mubr.f32.mxu0 0.0
        %2012 = vmatmul.mubr.f32.gmra.mxu0 %v1943
        %v2013 = vpop.f32.mrf.mxu0
        %v2014 = vadd.f32 0.0, %v2013
        %v2015 = vpop.f32.mrf.mxu0
        %2016 = vdwg.mxu0
        %2018 = vrot.lane.b32.xlu0 %v956, 124
        %v2019 = vpop.permute.xlu0 %2018
        %v2020 = vsel %vm1942, %v956, 0
        %v2022 = vsel %vm1942, %v2019, 0
        %2024 = vmatprep.subr.mxu0 0.0
        %2025 = vmatpush1.xpose.msra.mxu0 0.0
        %2026 = vmatprep.subr.mxu0 0.0
        %2027 = vmatpush1.xpose.msra.mxu0 0.0
        %2028 = vmatprep.subr.mxu0 0.0
        %2029 = vmatpush1.xpose.msra.mxu0 0.0
        %2030 = vmatprep.subr.mxu0 0.0
        %2031 = vmatpush1.xpose.msra.mxu0 0.0
        %2032 = vmatprep.subr.mxu0 0.0
        %2033 = vmatpush1.xpose.msra.mxu0 0.0
        %2034 = vmatprep.subr.mxu0 0.0
        %2035 = vmatpush1.xpose.msra.mxu0 0.0
        %2036 = vmatprep.subr.mxu0 0.0
        %2037 = vmatpush1.xpose.msra.mxu0 0.0
        %2038 = vmatprep.subr.mxu0 0.0
        %2039 = vmatpush1.xpose.msra.mxu0 0.0
        %2040 = vmatprep.subr.mxu0 0.0
        %2041 = vmatpush1.xpose.msra.mxu0 0.0
        %2042 = vmatprep.subr.mxu0 0.0
        %2043 = vmatpush1.xpose.msra.mxu0 0.0
        %2044 = vmatprep.subr.mxu0 0.0
        %2045 = vmatpush1.xpose.msra.mxu0 0.0
        %2046 = vmatprep.subr.mxu0 0.0
        %2047 = vmatpush1.xpose.msra.mxu0 0.0
        %2048 = vmatprep.subr.mxu0 0.0
        %2049 = vmatpush1.xpose.msra.mxu0 0.0
        %2050 = vmatprep.subr.mxu0 0.0
        %2051 = vmatpush1.xpose.msra.mxu0 0.0
        %2052 = vmatprep.subr.mxu0 0.0
        %2053 = vmatpush1.xpose.msra.mxu0 0.0
        %2054 = vmatprep.subr.mxu0 0.0
        %2055 = vmatpush1.xpose.msra.mxu0 %v2022
        %2056 = vmatprep.subr.mxu0 0.0
        %2057 = vmatpush2.xpose.msra.mxu0 0.0
        %2058 = vmatprep.subr.mxu0 0.0
        %2059 = vmatpush2.xpose.msra.mxu0 0.0
        %2060 = vmatprep.subr.mxu0 0.0
        %2061 = vmatpush2.xpose.msra.mxu0 0.0
        %2062 = vmatprep.subr.mxu0 0.0
        %2063 = vmatpush2.xpose.msra.mxu0 0.0
        %2064 = vmatprep.subr.mxu0 0.0
        %2065 = vmatpush2.xpose.msra.mxu0 0.0
        %2066 = vmatprep.subr.mxu0 0.0
        %2067 = vmatpush2.xpose.msra.mxu0 0.0
        %2068 = vmatprep.subr.mxu0 0.0
        %2069 = vmatpush2.xpose.msra.mxu0 0.0
        %2070 = vmatprep.subr.mxu0 0.0
        %2071 = vmatpush2.xpose.msra.mxu0 0.0
        %2072 = vmatprep.subr.mxu0 0.0
        %2073 = vmatpush2.xpose.msra.mxu0 0.0
        %2074 = vmatprep.subr.mxu0 0.0
        %2075 = vmatpush2.xpose.msra.mxu0 0.0
        %2076 = vmatprep.subr.mxu0 0.0
        %2077 = vmatpush2.xpose.msra.mxu0 0.0
        %2078 = vmatprep.subr.mxu0 0.0
        %2079 = vmatpush2.xpose.msra.mxu0 0.0
        %2080 = vmatprep.subr.mxu0 0.0
        %2081 = vmatpush2.xpose.msra.mxu0 0.0
        %2082 = vmatprep.subr.mxu0 0.0
        %2083 = vmatpush2.xpose.msra.mxu0 0.0
        %2084 = vmatprep.subr.mxu0 0.0
        %2085 = vmatpush2.xpose.msra.mxu0 0.0
        %2086 = vmatprep.subr.mxu0 0.0
        %2087 = vmatpush2.xpose.msra.mxu0 0.0
        %2088 = vmatprep.mubr.f32.mxu0 0.0
        %2089 = vmatmul.mubr.f32.gmra.mxu0 %v2020
        %v2090 = vpop.f32.mrf.mxu0
        %v2091 = vadd.f32 0.0, %v2090
        %v2092 = vpop.f32.mrf.mxu0
        %2093 = vdwg.mxu0
        %2095 = vrot.lane.b32.xlu0 %v1026, 124
        %v2096 = vpop.permute.xlu0 %2095
        %v2097 = vsel %vm1942, %v1026, 0
        %v2099 = vsel %vm1942, %v2096, 0
        %2101 = vmatprep.subr.mxu0 0.0
        %2102 = vmatpush1.xpose.msra.mxu0 0.0
        %2103 = vmatprep.subr.mxu0 0.0
        %2104 = vmatpush1.xpose.msra.mxu0 0.0
        %2105 = vmatprep.subr.mxu0 0.0
        %2106 = vmatpush1.xpose.msra.mxu0 0.0
        %2107 = vmatprep.subr.mxu0 0.0
        %2108 = vmatpush1.xpose.msra.mxu0 0.0
        %2109 = vmatprep.subr.mxu0 0.0
        %2110 = vmatpush1.xpose.msra.mxu0 0.0
        %2111 = vmatprep.subr.mxu0 0.0
        %2112 = vmatpush1.xpose.msra.mxu0 0.0
        %2113 = vmatprep.subr.mxu0 0.0
        %2114 = vmatpush1.xpose.msra.mxu0 0.0
        %2115 = vmatprep.subr.mxu0 0.0
        %2116 = vmatpush1.xpose.msra.mxu0 0.0
        %2117 = vmatprep.subr.mxu0 0.0
        %2118 = vmatpush1.xpose.msra.mxu0 0.0
        %2119 = vmatprep.subr.mxu0 0.0
        %2120 = vmatpush1.xpose.msra.mxu0 0.0
        %2121 = vmatprep.subr.mxu0 0.0
        %2122 = vmatpush1.xpose.msra.mxu0 0.0
        %2123 = vmatprep.subr.mxu0 0.0
        %2124 = vmatpush1.xpose.msra.mxu0 0.0
        %2125 = vmatprep.subr.mxu0 0.0
        %2126 = vmatpush1.xpose.msra.mxu0 0.0
        %2127 = vmatprep.subr.mxu0 0.0
        %2128 = vmatpush1.xpose.msra.mxu0 0.0
        %2129 = vmatprep.subr.mxu0 0.0
        %2130 = vmatpush1.xpose.msra.mxu0 0.0
        %2131 = vmatprep.subr.mxu0 0.0
        %2132 = vmatpush1.xpose.msra.mxu0 %v2099
        %2133 = vmatprep.subr.mxu0 0.0
        %2134 = vmatpush2.xpose.msra.mxu0 0.0
        %2135 = vmatprep.subr.mxu0 0.0
        %2136 = vmatpush2.xpose.msra.mxu0 0.0
        %2137 = vmatprep.subr.mxu0 0.0
        %2138 = vmatpush2.xpose.msra.mxu0 0.0
        %2139 = vmatprep.subr.mxu0 0.0
        %2140 = vmatpush2.xpose.msra.mxu0 0.0
        %2141 = vmatprep.subr.mxu0 0.0
        %2142 = vmatpush2.xpose.msra.mxu0 0.0
        %2143 = vmatprep.subr.mxu0 0.0
        %2144 = vmatpush2.xpose.msra.mxu0 0.0
        %2145 = vmatprep.subr.mxu0 0.0
        %2146 = vmatpush2.xpose.msra.mxu0 0.0
        %2147 = vmatprep.subr.mxu0 0.0
        %2148 = vmatpush2.xpose.msra.mxu0 0.0
        %2149 = vmatprep.subr.mxu0 0.0
        %2150 = vmatpush2.xpose.msra.mxu0 0.0
        %2151 = vmatprep.subr.mxu0 0.0
        %2152 = vmatpush2.xpose.msra.mxu0 0.0
        %2153 = vmatprep.subr.mxu0 0.0
        %2154 = vmatpush2.xpose.msra.mxu0 0.0
        %2155 = vmatprep.subr.mxu0 0.0
        %2156 = vmatpush2.xpose.msra.mxu0 0.0
        %2157 = vmatprep.subr.mxu0 0.0
        %2158 = vmatpush2.xpose.msra.mxu0 0.0
        %2159 = vmatprep.subr.mxu0 0.0
        %2160 = vmatpush2.xpose.msra.mxu0 0.0
        %2161 = vmatprep.subr.mxu0 0.0
        %2162 = vmatpush2.xpose.msra.mxu0 0.0
        %2163 = vmatprep.subr.mxu0 0.0
        %2164 = vmatpush2.xpose.msra.mxu0 0.0
        %2165 = vmatprep.mubr.f32.mxu0 0.0
        %2166 = vmatmul.mubr.f32.gmra.mxu0 %v2097
        %v2167 = vpop.f32.mrf.mxu0
        %v2168 = vadd.f32 0.0, %v2167
        %v2169 = vpop.f32.mrf.mxu0
        %2170 = vdwg.mxu0
        %2172 = vrot.lane.b32.xlu0 %v1096, 124
        %v2173 = vpop.permute.xlu0 %2172
        %v2174 = vsel %vm1942, %v1096, 0
        %v2176 = vsel %vm1942, %v2173, 0
        %2178 = vmatprep.subr.mxu0 0.0
        %2179 = vmatpush1.xpose.msra.mxu0 0.0
        %2180 = vmatprep.subr.mxu0 0.0
        %2181 = vmatpush1.xpose.msra.mxu0 0.0
        %2182 = vmatprep.subr.mxu0 0.0
        %2183 = vmatpush1.xpose.msra.mxu0 0.0
        %2184 = vmatprep.subr.mxu0 0.0
        %2185 = vmatpush1.xpose.msra.mxu0 0.0
        %2186 = vmatprep.subr.mxu0 0.0
        %2187 = vmatpush1.xpose.msra.mxu0 0.0
        %2188 = vmatprep.subr.mxu0 0.0
        %2189 = vmatpush1.xpose.msra.mxu0 0.0
        %2190 = vmatprep.subr.mxu0 0.0
        %2191 = vmatpush1.xpose.msra.mxu0 0.0
        %2192 = vmatprep.subr.mxu0 0.0
        %2193 = vmatpush1.xpose.msra.mxu0 0.0
        %2194 = vmatprep.subr.mxu0 0.0
        %2195 = vmatpush1.xpose.msra.mxu0 0.0
        %2196 = vmatprep.subr.mxu0 0.0
        %2197 = vmatpush1.xpose.msra.mxu0 0.0
        %2198 = vmatprep.subr.mxu0 0.0
        %2199 = vmatpush1.xpose.msra.mxu0 0.0
        %2200 = vmatprep.subr.mxu0 0.0
        %2201 = vmatpush1.xpose.msra.mxu0 0.0
        %2202 = vmatprep.subr.mxu0 0.0
        %2203 = vmatpush1.xpose.msra.mxu0 0.0
        %2204 = vmatprep.subr.mxu0 0.0
        %2205 = vmatpush1.xpose.msra.mxu0 0.0
        %2206 = vmatprep.subr.mxu0 0.0
        %2207 = vmatpush1.xpose.msra.mxu0 0.0
        %2208 = vmatprep.subr.mxu0 0.0
        %2209 = vmatpush1.xpose.msra.mxu0 %v2176
        %2210 = vmatprep.subr.mxu0 0.0
        %2211 = vmatpush2.xpose.msra.mxu0 0.0
        %2212 = vmatprep.subr.mxu0 0.0
        %2213 = vmatpush2.xpose.msra.mxu0 0.0
        %2214 = vmatprep.subr.mxu0 0.0
        %2215 = vmatpush2.xpose.msra.mxu0 0.0
        %2216 = vmatprep.subr.mxu0 0.0
        %2217 = vmatpush2.xpose.msra.mxu0 0.0
        %2218 = vmatprep.subr.mxu0 0.0
        %2219 = vmatpush2.xpose.msra.mxu0 0.0
        %2220 = vmatprep.subr.mxu0 0.0
        %2221 = vmatpush2.xpose.msra.mxu0 0.0
        %2222 = vmatprep.subr.mxu0 0.0
        %2223 = vmatpush2.xpose.msra.mxu0 0.0
        %2224 = vmatprep.subr.mxu0 0.0
        %2225 = vmatpush2.xpose.msra.mxu0 0.0
        %2226 = vmatprep.subr.mxu0 0.0
        %2227 = vmatpush2.xpose.msra.mxu0 0.0
        %2228 = vmatprep.subr.mxu0 0.0
        %2229 = vmatpush2.xpose.msra.mxu0 0.0
        %2230 = vmatprep.subr.mxu0 0.0
        %2231 = vmatpush2.xpose.msra.mxu0 0.0
        %2232 = vmatprep.subr.mxu0 0.0
        %2233 = vmatpush2.xpose.msra.mxu0 0.0
        %2234 = vmatprep.subr.mxu0 0.0
        %2235 = vmatpush2.xpose.msra.mxu0 0.0
        %2236 = vmatprep.subr.mxu0 0.0
        %2237 = vmatpush2.xpose.msra.mxu0 0.0
        %2238 = vmatprep.subr.mxu0 0.0
        %2239 = vmatpush2.xpose.msra.mxu0 0.0
        %2240 = vmatprep.subr.mxu0 0.0
        %2241 = vmatpush2.xpose.msra.mxu0 0.0
        %2242 = vmatprep.mubr.f32.mxu0 0.0
        %2243 = vmatmul.mubr.f32.gmra.mxu0 %v2174
        %v2244 = vpop.f32.mrf.mxu0
        %v2245 = vadd.f32 0.0, %v2244
        %v2246 = vpop.f32.mrf.mxu0
        %2247 = vdwg.mxu0
        %2249 = vrot.lane.b32.xlu0 %v1166, 124
        %v2250 = vpop.permute.xlu0 %2249
        %v2251 = vsel %vm1942, %v1166, 0
        %v2253 = vsel %vm1942, %v2250, 0
        %2255 = vmatprep.subr.mxu0 0.0
        %2256 = vmatpush1.xpose.msra.mxu0 0.0
        %2257 = vmatprep.subr.mxu0 0.0
        %2258 = vmatpush1.xpose.msra.mxu0 0.0
        %2259 = vmatprep.subr.mxu0 0.0
        %2260 = vmatpush1.xpose.msra.mxu0 0.0
        %2261 = vmatprep.subr.mxu0 0.0
        %2262 = vmatpush1.xpose.msra.mxu0 0.0
        %2263 = vmatprep.subr.mxu0 0.0
        %2264 = vmatpush1.xpose.msra.mxu0 0.0
        %2265 = vmatprep.subr.mxu0 0.0
        %2266 = vmatpush1.xpose.msra.mxu0 0.0
        %2267 = vmatprep.subr.mxu0 0.0
        %2268 = vmatpush1.xpose.msra.mxu0 0.0
        %2269 = vmatprep.subr.mxu0 0.0
        %2270 = vmatpush1.xpose.msra.mxu0 0.0
        %2271 = vmatprep.subr.mxu0 0.0
        %2272 = vmatpush1.xpose.msra.mxu0 0.0
        %2273 = vmatprep.subr.mxu0 0.0
        %2274 = vmatpush1.xpose.msra.mxu0 0.0
        %2275 = vmatprep.subr.mxu0 0.0
        %2276 = vmatpush1.xpose.msra.mxu0 0.0
        %2277 = vmatprep.subr.mxu0 0.0
        %2278 = vmatpush1.xpose.msra.mxu0 0.0
        %2279 = vmatprep.subr.mxu0 0.0
        %2280 = vmatpush1.xpose.msra.mxu0 0.0
        %2281 = vmatprep.subr.mxu0 0.0
        %2282 = vmatpush1.xpose.msra.mxu0 0.0
        %2283 = vmatprep.subr.mxu0 0.0
        %2284 = vmatpush1.xpose.msra.mxu0 0.0
        %2285 = vmatprep.subr.mxu0 0.0
        %2286 = vmatpush1.xpose.msra.mxu0 %v2253
        %2287 = vmatprep.subr.mxu0 0.0
        %2288 = vmatpush2.xpose.msra.mxu0 0.0
        %2289 = vmatprep.subr.mxu0 0.0
        %2290 = vmatpush2.xpose.msra.mxu0 0.0
        %2291 = vmatprep.subr.mxu0 0.0
        %2292 = vmatpush2.xpose.msra.mxu0 0.0
        %2293 = vmatprep.subr.mxu0 0.0
        %2294 = vmatpush2.xpose.msra.mxu0 0.0
        %2295 = vmatprep.subr.mxu0 0.0
        %2296 = vmatpush2.xpose.msra.mxu0 0.0
        %2297 = vmatprep.subr.mxu0 0.0
        %2298 = vmatpush2.xpose.msra.mxu0 0.0
        %2299 = vmatprep.subr.mxu0 0.0
        %2300 = vmatpush2.xpose.msra.mxu0 0.0
        %2301 = vmatprep.subr.mxu0 0.0
        %2302 = vmatpush2.xpose.msra.mxu0 0.0
        %2303 = vmatprep.subr.mxu0 0.0
        %2304 = vmatpush2.xpose.msra.mxu0 0.0
        %2305 = vmatprep.subr.mxu0 0.0
        %2306 = vmatpush2.xpose.msra.mxu0 0.0
        %2307 = vmatprep.subr.mxu0 0.0
        %2308 = vmatpush2.xpose.msra.mxu0 0.0
        %2309 = vmatprep.subr.mxu0 0.0
        %2310 = vmatpush2.xpose.msra.mxu0 0.0
        %2311 = vmatprep.subr.mxu0 0.0
        %2312 = vmatpush2.xpose.msra.mxu0 0.0
        %2313 = vmatprep.subr.mxu0 0.0
        %2314 = vmatpush2.xpose.msra.mxu0 0.0
        %2315 = vmatprep.subr.mxu0 0.0
        %2316 = vmatpush2.xpose.msra.mxu0 0.0
        %2317 = vmatprep.subr.mxu0 0.0
        %2318 = vmatpush2.xpose.msra.mxu0 0.0
        %2319 = vmatprep.mubr.f32.mxu0 0.0
        %2320 = vmatmul.mubr.f32.gmra.mxu0 %v2251
        %v2321 = vpop.f32.mrf.mxu0
        %v2322 = vadd.f32 0.0, %v2321
        %v2323 = vpop.f32.mrf.mxu0
        %2324 = vdwg.mxu0
        %2326 = vrot.lane.b32.xlu0 %v1236, 124
        %v2327 = vpop.permute.xlu0 %2326
        %v2328 = vsel %vm1942, %v1236, 0
        %v2330 = vsel %vm1942, %v2327, 0
        %2332 = vmatprep.subr.mxu0 0.0
        %2333 = vmatpush1.xpose.msra.mxu0 0.0
        %2334 = vmatprep.subr.mxu0 0.0
        %2335 = vmatpush1.xpose.msra.mxu0 0.0
        %2336 = vmatprep.subr.mxu0 0.0
        %2337 = vmatpush1.xpose.msra.mxu0 0.0
        %2338 = vmatprep.subr.mxu0 0.0
        %2339 = vmatpush1.xpose.msra.mxu0 0.0
        %2340 = vmatprep.subr.mxu0 0.0
        %2341 = vmatpush1.xpose.msra.mxu0 0.0
        %2342 = vmatprep.subr.mxu0 0.0
        %2343 = vmatpush1.xpose.msra.mxu0 0.0
        %2344 = vmatprep.subr.mxu0 0.0
        %2345 = vmatpush1.xpose.msra.mxu0 0.0
        %2346 = vmatprep.subr.mxu0 0.0
        %2347 = vmatpush1.xpose.msra.mxu0 0.0
        %2348 = vmatprep.subr.mxu0 0.0
        %2349 = vmatpush1.xpose.msra.mxu0 0.0
        %2350 = vmatprep.subr.mxu0 0.0
        %2351 = vmatpush1.xpose.msra.mxu0 0.0
        %2352 = vmatprep.subr.mxu0 0.0
        %2353 = vmatpush1.xpose.msra.mxu0 0.0
        %2354 = vmatprep.subr.mxu0 0.0
        %2355 = vmatpush1.xpose.msra.mxu0 0.0
        %2356 = vmatprep.subr.mxu0 0.0
        %2357 = vmatpush1.xpose.msra.mxu0 0.0
        %2358 = vmatprep.subr.mxu0 0.0
        %2359 = vmatpush1.xpose.msra.mxu0 0.0
        %2360 = vmatprep.subr.mxu0 0.0
        %2361 = vmatpush1.xpose.msra.mxu0 0.0
        %2362 = vmatprep.subr.mxu0 0.0
        %2363 = vmatpush1.xpose.msra.mxu0 %v2330
        %2364 = vmatprep.subr.mxu0 0.0
        %2365 = vmatpush2.xpose.msra.mxu0 0.0
        %2366 = vmatprep.subr.mxu0 0.0
        %2367 = vmatpush2.xpose.msra.mxu0 0.0
        %2368 = vmatprep.subr.mxu0 0.0
        %2369 = vmatpush2.xpose.msra.mxu0 0.0
        %2370 = vmatprep.subr.mxu0 0.0
        %2371 = vmatpush2.xpose.msra.mxu0 0.0
        %2372 = vmatprep.subr.mxu0 0.0
        %2373 = vmatpush2.xpose.msra.mxu0 0.0
        %2374 = vmatprep.subr.mxu0 0.0
        %2375 = vmatpush2.xpose.msra.mxu0 0.0
        %2376 = vmatprep.subr.mxu0 0.0
        %2377 = vmatpush2.xpose.msra.mxu0 0.0
        %2378 = vmatprep.subr.mxu0 0.0
        %2379 = vmatpush2.xpose.msra.mxu0 0.0
        %2380 = vmatprep.subr.mxu0 0.0
        %2381 = vmatpush2.xpose.msra.mxu0 0.0
        %2382 = vmatprep.subr.mxu0 0.0
        %2383 = vmatpush2.xpose.msra.mxu0 0.0
        %2384 = vmatprep.subr.mxu0 0.0
        %2385 = vmatpush2.xpose.msra.mxu0 0.0
        %2386 = vmatprep.subr.mxu0 0.0
        %2387 = vmatpush2.xpose.msra.mxu0 0.0
        %2388 = vmatprep.subr.mxu0 0.0
        %2389 = vmatpush2.xpose.msra.mxu0 0.0
        %2390 = vmatprep.subr.mxu0 0.0
        %2391 = vmatpush2.xpose.msra.mxu0 0.0
        %2392 = vmatprep.subr.mxu0 0.0
        %2393 = vmatpush2.xpose.msra.mxu0 0.0
        %2394 = vmatprep.subr.mxu0 0.0
        %2395 = vmatpush2.xpose.msra.mxu0 0.0
        %2396 = vmatprep.mubr.f32.mxu0 0.0
        %2397 = vmatmul.mubr.f32.gmra.mxu0 %v2328
        %v2398 = vpop.f32.mrf.mxu0
        %v2399 = vadd.f32 0.0, %v2398
        %v2400 = vpop.f32.mrf.mxu0
        %2401 = vdwg.mxu0
        %2403 = vrot.lane.b32.xlu0 %v1306, 124
        %v2404 = vpop.permute.xlu0 %2403
        %v2405 = vsel %vm1942, %v1306, 0
        %v2407 = vsel %vm1942, %v2404, 0
        %2409 = vmatprep.subr.mxu0 0.0
        %2410 = vmatpush1.xpose.msra.mxu0 0.0
        %2411 = vmatprep.subr.mxu0 0.0
        %2412 = vmatpush1.xpose.msra.mxu0 0.0
        %2413 = vmatprep.subr.mxu0 0.0
        %2414 = vmatpush1.xpose.msra.mxu0 0.0
        %2415 = vmatprep.subr.mxu0 0.0
        %2416 = vmatpush1.xpose.msra.mxu0 0.0
        %2417 = vmatprep.subr.mxu0 0.0
        %2418 = vmatpush1.xpose.msra.mxu0 0.0
        %2419 = vmatprep.subr.mxu0 0.0
        %2420 = vmatpush1.xpose.msra.mxu0 0.0
        %2421 = vmatprep.subr.mxu0 0.0
        %2422 = vmatpush1.xpose.msra.mxu0 0.0
        %2423 = vmatprep.subr.mxu0 0.0
        %2424 = vmatpush1.xpose.msra.mxu0 0.0
        %2425 = vmatprep.subr.mxu0 0.0
        %2426 = vmatpush1.xpose.msra.mxu0 0.0
        %2427 = vmatprep.subr.mxu0 0.0
        %2428 = vmatpush1.xpose.msra.mxu0 0.0
        %2429 = vmatprep.subr.mxu0 0.0
        %2430 = vmatpush1.xpose.msra.mxu0 0.0
        %2431 = vmatprep.subr.mxu0 0.0
        %2432 = vmatpush1.xpose.msra.mxu0 0.0
        %2433 = vmatprep.subr.mxu0 0.0
        %2434 = vmatpush1.xpose.msra.mxu0 0.0
        %2435 = vmatprep.subr.mxu0 0.0
        %2436 = vmatpush1.xpose.msra.mxu0 0.0
        %2437 = vmatprep.subr.mxu0 0.0
        %2438 = vmatpush1.xpose.msra.mxu0 0.0
        %2439 = vmatprep.subr.mxu0 0.0
        %2440 = vmatpush1.xpose.msra.mxu0 %v2407
        %2441 = vmatprep.subr.mxu0 0.0
        %2442 = vmatpush2.xpose.msra.mxu0 0.0
        %2443 = vmatprep.subr.mxu0 0.0
        %2444 = vmatpush2.xpose.msra.mxu0 0.0
        %2445 = vmatprep.subr.mxu0 0.0
        %2446 = vmatpush2.xpose.msra.mxu0 0.0
        %2447 = vmatprep.subr.mxu0 0.0
        %2448 = vmatpush2.xpose.msra.mxu0 0.0
        %2449 = vmatprep.subr.mxu0 0.0
        %2450 = vmatpush2.xpose.msra.mxu0 0.0
        %2451 = vmatprep.subr.mxu0 0.0
        %2452 = vmatpush2.xpose.msra.mxu0 0.0
        %2453 = vmatprep.subr.mxu0 0.0
        %2454 = vmatpush2.xpose.msra.mxu0 0.0
        %2455 = vmatprep.subr.mxu0 0.0
        %2456 = vmatpush2.xpose.msra.mxu0 0.0
        %2457 = vmatprep.subr.mxu0 0.0
        %2458 = vmatpush2.xpose.msra.mxu0 0.0
        %2459 = vmatprep.subr.mxu0 0.0
        %2460 = vmatpush2.xpose.msra.mxu0 0.0
        %2461 = vmatprep.subr.mxu0 0.0
        %2462 = vmatpush2.xpose.msra.mxu0 0.0
        %2463 = vmatprep.subr.mxu0 0.0
        %2464 = vmatpush2.xpose.msra.mxu0 0.0
        %2465 = vmatprep.subr.mxu0 0.0
        %2466 = vmatpush2.xpose.msra.mxu0 0.0
        %2467 = vmatprep.subr.mxu0 0.0
        %2468 = vmatpush2.xpose.msra.mxu0 0.0
        %2469 = vmatprep.subr.mxu0 0.0
        %2470 = vmatpush2.xpose.msra.mxu0 0.0
        %2471 = vmatprep.subr.mxu0 0.0
        %2472 = vmatpush2.xpose.msra.mxu0 0.0
        %2473 = vmatprep.mubr.f32.mxu0 0.0
        %2474 = vmatmul.mubr.f32.gmra.mxu0 %v2405
        %v2475 = vpop.f32.mrf.mxu0
        %v2476 = vadd.f32 0.0, %v2475
        %v2477 = vpop.f32.mrf.mxu0
        %2478 = vdwg.mxu0
        %2480 = vrot.lane.b32.xlu0 %v1376, 124
        %v2481 = vpop.permute.xlu0 %2480
        %v2482 = vsel %vm1942, %v1376, 0
        %v2484 = vsel %vm1942, %v2481, 0
        %2486 = vmatprep.subr.mxu0 0.0
        %2487 = vmatpush1.xpose.msra.mxu0 0.0
        %2488 = vmatprep.subr.mxu0 0.0
        %2489 = vmatpush1.xpose.msra.mxu0 0.0
        %2490 = vmatprep.subr.mxu0 0.0
        %2491 = vmatpush1.xpose.msra.mxu0 0.0
        %2492 = vmatprep.subr.mxu0 0.0
        %2493 = vmatpush1.xpose.msra.mxu0 0.0
        %2494 = vmatprep.subr.mxu0 0.0
        %2495 = vmatpush1.xpose.msra.mxu0 0.0
        %2496 = vmatprep.subr.mxu0 0.0
        %2497 = vmatpush1.xpose.msra.mxu0 0.0
        %2498 = vmatprep.subr.mxu0 0.0
        %2499 = vmatpush1.xpose.msra.mxu0 0.0
        %2500 = vmatprep.subr.mxu0 0.0
        %2501 = vmatpush1.xpose.msra.mxu0 0.0
        %2502 = vmatprep.subr.mxu0 0.0
        %2503 = vmatpush1.xpose.msra.mxu0 0.0
        %2504 = vmatprep.subr.mxu0 0.0
        %2505 = vmatpush1.xpose.msra.mxu0 0.0
        %2506 = vmatprep.subr.mxu0 0.0
        %2507 = vmatpush1.xpose.msra.mxu0 0.0
        %2508 = vmatprep.subr.mxu0 0.0
        %2509 = vmatpush1.xpose.msra.mxu0 0.0
        %2510 = vmatprep.subr.mxu0 0.0
        %2511 = vmatpush1.xpose.msra.mxu0 0.0
        %2512 = vmatprep.subr.mxu0 0.0
        %2513 = vmatpush1.xpose.msra.mxu0 0.0
        %2514 = vmatprep.subr.mxu0 0.0
        %2515 = vmatpush1.xpose.msra.mxu0 0.0
        %2516 = vmatprep.subr.mxu0 0.0
        %2517 = vmatpush1.xpose.msra.mxu0 %v2484
        %2518 = vmatprep.subr.mxu0 0.0
        %2519 = vmatpush2.xpose.msra.mxu0 0.0
        %2520 = vmatprep.subr.mxu0 0.0
        %2521 = vmatpush2.xpose.msra.mxu0 0.0
        %2522 = vmatprep.subr.mxu0 0.0
        %2523 = vmatpush2.xpose.msra.mxu0 0.0
        %2524 = vmatprep.subr.mxu0 0.0
        %2525 = vmatpush2.xpose.msra.mxu0 0.0
        %2526 = vmatprep.subr.mxu0 0.0
        %2527 = vmatpush2.xpose.msra.mxu0 0.0
        %2528 = vmatprep.subr.mxu0 0.0
        %2529 = vmatpush2.xpose.msra.mxu0 0.0
        %2530 = vmatprep.subr.mxu0 0.0
        %2531 = vmatpush2.xpose.msra.mxu0 0.0
        %2532 = vmatprep.subr.mxu0 0.0
        %2533 = vmatpush2.xpose.msra.mxu0 0.0
        %2534 = vmatprep.subr.mxu0 0.0
        %2535 = vmatpush2.xpose.msra.mxu0 0.0
        %2536 = vmatprep.subr.mxu0 0.0
        %2537 = vmatpush2.xpose.msra.mxu0 0.0
        %2538 = vmatprep.subr.mxu0 0.0
        %2539 = vmatpush2.xpose.msra.mxu0 0.0
        %2540 = vmatprep.subr.mxu0 0.0
        %2541 = vmatpush2.xpose.msra.mxu0 0.0
        %2542 = vmatprep.subr.mxu0 0.0
        %2543 = vmatpush2.xpose.msra.mxu0 0.0
        %2544 = vmatprep.subr.mxu0 0.0
        %2545 = vmatpush2.xpose.msra.mxu0 0.0
        %2546 = vmatprep.subr.mxu0 0.0
        %2547 = vmatpush2.xpose.msra.mxu0 0.0
        %2548 = vmatprep.subr.mxu0 0.0
        %2549 = vmatpush2.xpose.msra.mxu0 0.0
        %2550 = vmatprep.mubr.f32.mxu0 0.0
        %2551 = vmatmul.mubr.f32.gmra.mxu0 %v2482
        %v2552 = vpop.f32.mrf.mxu0
        %v2553 = vadd.f32 0.0, %v2552
        %v2554 = vpop.f32.mrf.mxu0
        %2555 = vdwg.mxu0
        %2557 = vrot.lane.b32.xlu0 %v1446, 124
        %v2558 = vpop.permute.xlu0 %2557
        %v2559 = vsel %vm1942, %v1446, 0
        %v2561 = vsel %vm1942, %v2558, 0
        %2563 = vmatprep.subr.mxu0 0.0
        %2564 = vmatpush1.xpose.msra.mxu0 0.0
        %2565 = vmatprep.subr.mxu0 0.0
        %2566 = vmatpush1.xpose.msra.mxu0 0.0
        %2567 = vmatprep.subr.mxu0 0.0
        %2568 = vmatpush1.xpose.msra.mxu0 0.0
        %2569 = vmatprep.subr.mxu0 0.0
        %2570 = vmatpush1.xpose.msra.mxu0 0.0
        %2571 = vmatprep.subr.mxu0 0.0
        %2572 = vmatpush1.xpose.msra.mxu0 0.0
        %2573 = vmatprep.subr.mxu0 0.0
        %2574 = vmatpush1.xpose.msra.mxu0 0.0
        %2575 = vmatprep.subr.mxu0 0.0
        %2576 = vmatpush1.xpose.msra.mxu0 0.0
        %2577 = vmatprep.subr.mxu0 0.0
        %2578 = vmatpush1.xpose.msra.mxu0 0.0
        %2579 = vmatprep.subr.mxu0 0.0
        %2580 = vmatpush1.xpose.msra.mxu0 0.0
        %2581 = vmatprep.subr.mxu0 0.0
        %2582 = vmatpush1.xpose.msra.mxu0 0.0
        %2583 = vmatprep.subr.mxu0 0.0
        %2584 = vmatpush1.xpose.msra.mxu0 0.0
        %2585 = vmatprep.subr.mxu0 0.0
        %2586 = vmatpush1.xpose.msra.mxu0 0.0
        %2587 = vmatprep.subr.mxu0 0.0
        %2588 = vmatpush1.xpose.msra.mxu0 0.0
        %2589 = vmatprep.subr.mxu0 0.0
        %2590 = vmatpush1.xpose.msra.mxu0 0.0
        %2591 = vmatprep.subr.mxu0 0.0
        %2592 = vmatpush1.xpose.msra.mxu0 0.0
        %2593 = vmatprep.subr.mxu0 0.0
        %2594 = vmatpush1.xpose.msra.mxu0 %v2561
        %2595 = vmatprep.subr.mxu0 0.0
        %2596 = vmatpush2.xpose.msra.mxu0 0.0
        %2597 = vmatprep.subr.mxu0 0.0
        %2598 = vmatpush2.xpose.msra.mxu0 0.0
        %2599 = vmatprep.subr.mxu0 0.0
        %2600 = vmatpush2.xpose.msra.mxu0 0.0
        %2601 = vmatprep.subr.mxu0 0.0
        %2602 = vmatpush2.xpose.msra.mxu0 0.0
        %2603 = vmatprep.subr.mxu0 0.0
        %2604 = vmatpush2.xpose.msra.mxu0 0.0
        %2605 = vmatprep.subr.mxu0 0.0
        %2606 = vmatpush2.xpose.msra.mxu0 0.0
        %2607 = vmatprep.subr.mxu0 0.0
        %2608 = vmatpush2.xpose.msra.mxu0 0.0
        %2609 = vmatprep.subr.mxu0 0.0
        %2610 = vmatpush2.xpose.msra.mxu0 0.0
        %2611 = vmatprep.subr.mxu0 0.0
        %2612 = vmatpush2.xpose.msra.mxu0 0.0
        %2613 = vmatprep.subr.mxu0 0.0
        %2614 = vmatpush2.xpose.msra.mxu0 0.0
        %2615 = vmatprep.subr.mxu0 0.0
        %2616 = vmatpush2.xpose.msra.mxu0 0.0
        %2617 = vmatprep.subr.mxu0 0.0
        %2618 = vmatpush2.xpose.msra.mxu0 0.0
        %2619 = vmatprep.subr.mxu0 0.0
        %2620 = vmatpush2.xpose.msra.mxu0 0.0
        %2621 = vmatprep.subr.mxu0 0.0
        %2622 = vmatpush2.xpose.msra.mxu0 0.0
        %2623 = vmatprep.subr.mxu0 0.0
        %2624 = vmatpush2.xpose.msra.mxu0 0.0
        %2625 = vmatprep.subr.mxu0 0.0
        %2626 = vmatpush2.xpose.msra.mxu0 0.0
        %2627 = vmatprep.mubr.f32.mxu0 0.0
        %2628 = vmatmul.mubr.f32.gmra.mxu0 %v2559
        %v2629 = vpop.f32.mrf.mxu0
        %v2630 = vadd.f32 0.0, %v2629
        %v2631 = vpop.f32.mrf.mxu0
        %2632 = vdwg.mxu0
        %2634 = vrot.lane.b32.xlu0 %v1516, 124
        %v2635 = vpop.permute.xlu0 %2634
        %v2636 = vsel %vm1942, %v1516, 0
        %v2638 = vsel %vm1942, %v2635, 0
        %2640 = vmatprep.subr.mxu0 0.0
        %2641 = vmatpush1.xpose.msra.mxu0 0.0
        %2642 = vmatprep.subr.mxu0 0.0
        %2643 = vmatpush1.xpose.msra.mxu0 0.0
        %2644 = vmatprep.subr.mxu0 0.0
        %2645 = vmatpush1.xpose.msra.mxu0 0.0
        %2646 = vmatprep.subr.mxu0 0.0
        %2647 = vmatpush1.xpose.msra.mxu0 0.0
        %2648 = vmatprep.subr.mxu0 0.0
        %2649 = vmatpush1.xpose.msra.mxu0 0.0
        %2650 = vmatprep.subr.mxu0 0.0
        %2651 = vmatpush1.xpose.msra.mxu0 0.0
        %2652 = vmatprep.subr.mxu0 0.0
        %2653 = vmatpush1.xpose.msra.mxu0 0.0
        %2654 = vmatprep.subr.mxu0 0.0
        %2655 = vmatpush1.xpose.msra.mxu0 0.0
        %2656 = vmatprep.subr.mxu0 0.0
        %2657 = vmatpush1.xpose.msra.mxu0 0.0
        %2658 = vmatprep.subr.mxu0 0.0
        %2659 = vmatpush1.xpose.msra.mxu0 0.0
        %2660 = vmatprep.subr.mxu0 0.0
        %2661 = vmatpush1.xpose.msra.mxu0 0.0
        %2662 = vmatprep.subr.mxu0 0.0
        %2663 = vmatpush1.xpose.msra.mxu0 0.0
        %2664 = vmatprep.subr.mxu0 0.0
        %2665 = vmatpush1.xpose.msra.mxu0 0.0
        %2666 = vmatprep.subr.mxu0 0.0
        %2667 = vmatpush1.xpose.msra.mxu0 0.0
        %2668 = vmatprep.subr.mxu0 0.0
        %2669 = vmatpush1.xpose.msra.mxu0 0.0
        %2670 = vmatprep.subr.mxu0 0.0
        %2671 = vmatpush1.xpose.msra.mxu0 %v2638
        %2672 = vmatprep.subr.mxu0 0.0
        %2673 = vmatpush2.xpose.msra.mxu0 0.0
        %2674 = vmatprep.subr.mxu0 0.0
        %2675 = vmatpush2.xpose.msra.mxu0 0.0
        %2676 = vmatprep.subr.mxu0 0.0
        %2677 = vmatpush2.xpose.msra.mxu0 0.0
        %2678 = vmatprep.subr.mxu0 0.0
        %2679 = vmatpush2.xpose.msra.mxu0 0.0
        %2680 = vmatprep.subr.mxu0 0.0
        %2681 = vmatpush2.xpose.msra.mxu0 0.0
        %2682 = vmatprep.subr.mxu0 0.0
        %2683 = vmatpush2.xpose.msra.mxu0 0.0
        %2684 = vmatprep.subr.mxu0 0.0
        %2685 = vmatpush2.xpose.msra.mxu0 0.0
        %2686 = vmatprep.subr.mxu0 0.0
        %2687 = vmatpush2.xpose.msra.mxu0 0.0
        %2688 = vmatprep.subr.mxu0 0.0
        %2689 = vmatpush2.xpose.msra.mxu0 0.0
        %2690 = vmatprep.subr.mxu0 0.0
        %2691 = vmatpush2.xpose.msra.mxu0 0.0
        %2692 = vmatprep.subr.mxu0 0.0
        %2693 = vmatpush2.xpose.msra.mxu0 0.0
        %2694 = vmatprep.subr.mxu0 0.0
        %2695 = vmatpush2.xpose.msra.mxu0 0.0
        %2696 = vmatprep.subr.mxu0 0.0
        %2697 = vmatpush2.xpose.msra.mxu0 0.0
        %2698 = vmatprep.subr.mxu0 0.0
        %2699 = vmatpush2.xpose.msra.mxu0 0.0
        %2700 = vmatprep.subr.mxu0 0.0
        %2701 = vmatpush2.xpose.msra.mxu0 0.0
        %2702 = vmatprep.subr.mxu0 0.0
        %2703 = vmatpush2.xpose.msra.mxu0 0.0
        %2704 = vmatprep.mubr.f32.mxu0 0.0
        %2705 = vmatmul.mubr.f32.gmra.mxu0 %v2636
        %v2706 = vpop.f32.mrf.mxu0
        %v2707 = vadd.f32 0.0, %v2706
        %v2708 = vpop.f32.mrf.mxu0
        %2709 = vdwg.mxu0
        %2711 = vrot.lane.b32.xlu0 %v1586, 124
        %v2712 = vpop.permute.xlu0 %2711
        %v2713 = vsel %vm1942, %v1586, 0
        %v2715 = vsel %vm1942, %v2712, 0
        %2717 = vmatprep.subr.mxu0 0.0
        %2718 = vmatpush1.xpose.msra.mxu0 0.0
        %2719 = vmatprep.subr.mxu0 0.0
        %2720 = vmatpush1.xpose.msra.mxu0 0.0
        %2721 = vmatprep.subr.mxu0 0.0
        %2722 = vmatpush1.xpose.msra.mxu0 0.0
        %2723 = vmatprep.subr.mxu0 0.0
        %2724 = vmatpush1.xpose.msra.mxu0 0.0
        %2725 = vmatprep.subr.mxu0 0.0
        %2726 = vmatpush1.xpose.msra.mxu0 0.0
        %2727 = vmatprep.subr.mxu0 0.0
        %2728 = vmatpush1.xpose.msra.mxu0 0.0
        %2729 = vmatprep.subr.mxu0 0.0
        %2730 = vmatpush1.xpose.msra.mxu0 0.0
        %2731 = vmatprep.subr.mxu0 0.0
        %2732 = vmatpush1.xpose.msra.mxu0 0.0
        %2733 = vmatprep.subr.mxu0 0.0
        %2734 = vmatpush1.xpose.msra.mxu0 0.0
        %2735 = vmatprep.subr.mxu0 0.0
        %2736 = vmatpush1.xpose.msra.mxu0 0.0
        %2737 = vmatprep.subr.mxu0 0.0
        %2738 = vmatpush1.xpose.msra.mxu0 0.0
        %2739 = vmatprep.subr.mxu0 0.0
        %2740 = vmatpush1.xpose.msra.mxu0 0.0
        %2741 = vmatprep.subr.mxu0 0.0
        %2742 = vmatpush1.xpose.msra.mxu0 0.0
        %2743 = vmatprep.subr.mxu0 0.0
        %2744 = vmatpush1.xpose.msra.mxu0 0.0
        %2745 = vmatprep.subr.mxu0 0.0
        %2746 = vmatpush1.xpose.msra.mxu0 0.0
        %2747 = vmatprep.subr.mxu0 0.0
        %2748 = vmatpush1.xpose.msra.mxu0 %v2715
        %2749 = vmatprep.subr.mxu0 0.0
        %2750 = vmatpush2.xpose.msra.mxu0 0.0
        %2751 = vmatprep.subr.mxu0 0.0
        %2752 = vmatpush2.xpose.msra.mxu0 0.0
        %2753 = vmatprep.subr.mxu0 0.0
        %2754 = vmatpush2.xpose.msra.mxu0 0.0
        %2755 = vmatprep.subr.mxu0 0.0
        %2756 = vmatpush2.xpose.msra.mxu0 0.0
        %2757 = vmatprep.subr.mxu0 0.0
        %2758 = vmatpush2.xpose.msra.mxu0 0.0
        %2759 = vmatprep.subr.mxu0 0.0
        %2760 = vmatpush2.xpose.msra.mxu0 0.0
        %2761 = vmatprep.subr.mxu0 0.0
        %2762 = vmatpush2.xpose.msra.mxu0 0.0
        %2763 = vmatprep.subr.mxu0 0.0
        %2764 = vmatpush2.xpose.msra.mxu0 0.0
        %2765 = vmatprep.subr.mxu0 0.0
        %2766 = vmatpush2.xpose.msra.mxu0 0.0
        %2767 = vmatprep.subr.mxu0 0.0
        %2768 = vmatpush2.xpose.msra.mxu0 0.0
        %2769 = vmatprep.subr.mxu0 0.0
        %2770 = vmatpush2.xpose.msra.mxu0 0.0
        %2771 = vmatprep.subr.mxu0 0.0
        %2772 = vmatpush2.xpose.msra.mxu0 0.0
        %2773 = vmatprep.subr.mxu0 0.0
        %2774 = vmatpush2.xpose.msra.mxu0 0.0
        %2775 = vmatprep.subr.mxu0 0.0
        %2776 = vmatpush2.xpose.msra.mxu0 0.0
        %2777 = vmatprep.subr.mxu0 0.0
        %2778 = vmatpush2.xpose.msra.mxu0 0.0
        %2779 = vmatprep.subr.mxu0 0.0
        %2780 = vmatpush2.xpose.msra.mxu0 0.0
        %2781 = vmatprep.mubr.f32.mxu0 0.0
        %2782 = vmatmul.mubr.f32.gmra.mxu0 %v2713
        %v2783 = vpop.f32.mrf.mxu0
        %v2784 = vadd.f32 0.0, %v2783
        %v2785 = vpop.f32.mrf.mxu0
        %2786 = vdwg.mxu0
        %2788 = vrot.lane.b32.xlu0 %v1656, 124
        %v2789 = vpop.permute.xlu0 %2788
        %v2790 = vsel %vm1942, %v1656, 0
        %v2792 = vsel %vm1942, %v2789, 0
        %2794 = vmatprep.subr.mxu0 0.0
        %2795 = vmatpush1.xpose.msra.mxu0 0.0
        %2796 = vmatprep.subr.mxu0 0.0
        %2797 = vmatpush1.xpose.msra.mxu0 0.0
        %2798 = vmatprep.subr.mxu0 0.0
        %2799 = vmatpush1.xpose.msra.mxu0 0.0
        %2800 = vmatprep.subr.mxu0 0.0
        %2801 = vmatpush1.xpose.msra.mxu0 0.0
        %2802 = vmatprep.subr.mxu0 0.0
        %2803 = vmatpush1.xpose.msra.mxu0 0.0
        %2804 = vmatprep.subr.mxu0 0.0
        %2805 = vmatpush1.xpose.msra.mxu0 0.0
        %2806 = vmatprep.subr.mxu0 0.0
        %2807 = vmatpush1.xpose.msra.mxu0 0.0
        %2808 = vmatprep.subr.mxu0 0.0
        %2809 = vmatpush1.xpose.msra.mxu0 0.0
        %2810 = vmatprep.subr.mxu0 0.0
        %2811 = vmatpush1.xpose.msra.mxu0 0.0
        %2812 = vmatprep.subr.mxu0 0.0
        %2813 = vmatpush1.xpose.msra.mxu0 0.0
        %2814 = vmatprep.subr.mxu0 0.0
        %2815 = vmatpush1.xpose.msra.mxu0 0.0
        %2816 = vmatprep.subr.mxu0 0.0
        %2817 = vmatpush1.xpose.msra.mxu0 0.0
        %2818 = vmatprep.subr.mxu0 0.0
        %2819 = vmatpush1.xpose.msra.mxu0 0.0
        %2820 = vmatprep.subr.mxu0 0.0
        %2821 = vmatpush1.xpose.msra.mxu0 0.0
        %2822 = vmatprep.subr.mxu0 0.0
        %2823 = vmatpush1.xpose.msra.mxu0 0.0
        %2824 = vmatprep.subr.mxu0 0.0
        %2825 = vmatpush1.xpose.msra.mxu0 %v2792
        %2826 = vmatprep.subr.mxu0 0.0
        %2827 = vmatpush2.xpose.msra.mxu0 0.0
        %2828 = vmatprep.subr.mxu0 0.0
        %2829 = vmatpush2.xpose.msra.mxu0 0.0
        %2830 = vmatprep.subr.mxu0 0.0
        %2831 = vmatpush2.xpose.msra.mxu0 0.0
        %2832 = vmatprep.subr.mxu0 0.0
        %2833 = vmatpush2.xpose.msra.mxu0 0.0
        %2834 = vmatprep.subr.mxu0 0.0
        %2835 = vmatpush2.xpose.msra.mxu0 0.0
        %2836 = vmatprep.subr.mxu0 0.0
        %2837 = vmatpush2.xpose.msra.mxu0 0.0
        %2838 = vmatprep.subr.mxu0 0.0
        %2839 = vmatpush2.xpose.msra.mxu0 0.0
        %2840 = vmatprep.subr.mxu0 0.0
        %2841 = vmatpush2.xpose.msra.mxu0 0.0
        %2842 = vmatprep.subr.mxu0 0.0
        %2843 = vmatpush2.xpose.msra.mxu0 0.0
        %2844 = vmatprep.subr.mxu0 0.0
        %2845 = vmatpush2.xpose.msra.mxu0 0.0
        %2846 = vmatprep.subr.mxu0 0.0
        %2847 = vmatpush2.xpose.msra.mxu0 0.0
        %2848 = vmatprep.subr.mxu0 0.0
        %2849 = vmatpush2.xpose.msra.mxu0 0.0
        %2850 = vmatprep.subr.mxu0 0.0
        %2851 = vmatpush2.xpose.msra.mxu0 0.0
        %2852 = vmatprep.subr.mxu0 0.0
        %2853 = vmatpush2.xpose.msra.mxu0 0.0
        %2854 = vmatprep.subr.mxu0 0.0
        %2855 = vmatpush2.xpose.msra.mxu0 0.0
        %2856 = vmatprep.subr.mxu0 0.0
        %2857 = vmatpush2.xpose.msra.mxu0 0.0
        %2858 = vmatprep.mubr.f32.mxu0 0.0
        %2859 = vmatmul.mubr.f32.gmra.mxu0 %v2790
        %v2860 = vpop.f32.mrf.mxu0
        %v2861 = vadd.f32 0.0, %v2860
        %v2862 = vpop.f32.mrf.mxu0
        %2863 = vdwg.mxu0
        %2865 = vrot.lane.b32.xlu0 %v1726, 124
        %v2866 = vpop.permute.xlu0 %2865
        %v2867 = vsel %vm1942, %v1726, 0
        %v2869 = vsel %vm1942, %v2866, 0
        %2871 = vmatprep.subr.mxu0 0.0
        %2872 = vmatpush1.xpose.msra.mxu0 0.0
        %2873 = vmatprep.subr.mxu0 0.0
        %2874 = vmatpush1.xpose.msra.mxu0 0.0
        %2875 = vmatprep.subr.mxu0 0.0
        %2876 = vmatpush1.xpose.msra.mxu0 0.0
        %2877 = vmatprep.subr.mxu0 0.0
        %2878 = vmatpush1.xpose.msra.mxu0 0.0
        %2879 = vmatprep.subr.mxu0 0.0
        %2880 = vmatpush1.xpose.msra.mxu0 0.0
        %2881 = vmatprep.subr.mxu0 0.0
        %2882 = vmatpush1.xpose.msra.mxu0 0.0
        %2883 = vmatprep.subr.mxu0 0.0
        %2884 = vmatpush1.xpose.msra.mxu0 0.0
        %2885 = vmatprep.subr.mxu0 0.0
        %2886 = vmatpush1.xpose.msra.mxu0 0.0
        %2887 = vmatprep.subr.mxu0 0.0
        %2888 = vmatpush1.xpose.msra.mxu0 0.0
        %2889 = vmatprep.subr.mxu0 0.0
        %2890 = vmatpush1.xpose.msra.mxu0 0.0
        %2891 = vmatprep.subr.mxu0 0.0
        %2892 = vmatpush1.xpose.msra.mxu0 0.0
        %2893 = vmatprep.subr.mxu0 0.0
        %2894 = vmatpush1.xpose.msra.mxu0 0.0
        %2895 = vmatprep.subr.mxu0 0.0
        %2896 = vmatpush1.xpose.msra.mxu0 0.0
        %2897 = vmatprep.subr.mxu0 0.0
        %2898 = vmatpush1.xpose.msra.mxu0 0.0
        %2899 = vmatprep.subr.mxu0 0.0
        %2900 = vmatpush1.xpose.msra.mxu0 0.0
        %2901 = vmatprep.subr.mxu0 0.0
        %2902 = vmatpush1.xpose.msra.mxu0 %v2869
        %2903 = vmatprep.subr.mxu0 0.0
        %2904 = vmatpush2.xpose.msra.mxu0 0.0
        %2905 = vmatprep.subr.mxu0 0.0
        %2906 = vmatpush2.xpose.msra.mxu0 0.0
        %2907 = vmatprep.subr.mxu0 0.0
        %2908 = vmatpush2.xpose.msra.mxu0 0.0
        %2909 = vmatprep.subr.mxu0 0.0
        %2910 = vmatpush2.xpose.msra.mxu0 0.0
        %2911 = vmatprep.subr.mxu0 0.0
        %2912 = vmatpush2.xpose.msra.mxu0 0.0
        %2913 = vmatprep.subr.mxu0 0.0
        %2914 = vmatpush2.xpose.msra.mxu0 0.0
        %2915 = vmatprep.subr.mxu0 0.0
        %2916 = vmatpush2.xpose.msra.mxu0 0.0
        %2917 = vmatprep.subr.mxu0 0.0
        %2918 = vmatpush2.xpose.msra.mxu0 0.0
        %2919 = vmatprep.subr.mxu0 0.0
        %2920 = vmatpush2.xpose.msra.mxu0 0.0
        %2921 = vmatprep.subr.mxu0 0.0
        %2922 = vmatpush2.xpose.msra.mxu0 0.0
        %2923 = vmatprep.subr.mxu0 0.0
        %2924 = vmatpush2.xpose.msra.mxu0 0.0
        %2925 = vmatprep.subr.mxu0 0.0
        %2926 = vmatpush2.xpose.msra.mxu0 0.0
        %2927 = vmatprep.subr.mxu0 0.0
        %2928 = vmatpush2.xpose.msra.mxu0 0.0
        %2929 = vmatprep.subr.mxu0 0.0
        %2930 = vmatpush2.xpose.msra.mxu0 0.0
        %2931 = vmatprep.subr.mxu0 0.0
        %2932 = vmatpush2.xpose.msra.mxu0 0.0
        %2933 = vmatprep.subr.mxu0 0.0
        %2934 = vmatpush2.xpose.msra.mxu0 0.0
        %2935 = vmatprep.mubr.f32.mxu0 0.0
        %2936 = vmatmul.mubr.f32.gmra.mxu0 %v2867
        %v2937 = vpop.f32.mrf.mxu0
        %v2938 = vadd.f32 0.0, %v2937
        %v2939 = vpop.f32.mrf.mxu0
        %2940 = vdwg.mxu0
        %2942 = vrot.lane.b32.xlu0 %v1796, 124
        %v2943 = vpop.permute.xlu0 %2942
        %v2944 = vsel %vm1942, %v1796, 0
        %v2946 = vsel %vm1942, %v2943, 0
        %2948 = vmatprep.subr.mxu0 0.0
        %2949 = vmatpush1.xpose.msra.mxu0 0.0
        %2950 = vmatprep.subr.mxu0 0.0
        %2951 = vmatpush1.xpose.msra.mxu0 0.0
        %2952 = vmatprep.subr.mxu0 0.0
        %2953 = vmatpush1.xpose.msra.mxu0 0.0
        %2954 = vmatprep.subr.mxu0 0.0
        %2955 = vmatpush1.xpose.msra.mxu0 0.0
        %2956 = vmatprep.subr.mxu0 0.0
        %2957 = vmatpush1.xpose.msra.mxu0 0.0
        %2958 = vmatprep.subr.mxu0 0.0
        %2959 = vmatpush1.xpose.msra.mxu0 0.0
        %2960 = vmatprep.subr.mxu0 0.0
        %2961 = vmatpush1.xpose.msra.mxu0 0.0
        %2962 = vmatprep.subr.mxu0 0.0
        %2963 = vmatpush1.xpose.msra.mxu0 0.0
        %2964 = vmatprep.subr.mxu0 0.0
        %2965 = vmatpush1.xpose.msra.mxu0 0.0
        %2966 = vmatprep.subr.mxu0 0.0
        %2967 = vmatpush1.xpose.msra.mxu0 0.0
        %2968 = vmatprep.subr.mxu0 0.0
        %2969 = vmatpush1.xpose.msra.mxu0 0.0
        %2970 = vmatprep.subr.mxu0 0.0
        %2971 = vmatpush1.xpose.msra.mxu0 0.0
        %2972 = vmatprep.subr.mxu0 0.0
        %2973 = vmatpush1.xpose.msra.mxu0 0.0
        %2974 = vmatprep.subr.mxu0 0.0
        %2975 = vmatpush1.xpose.msra.mxu0 0.0
        %2976 = vmatprep.subr.mxu0 0.0
        %2977 = vmatpush1.xpose.msra.mxu0 0.0
        %2978 = vmatprep.subr.mxu0 0.0
        %2979 = vmatpush1.xpose.msra.mxu0 %v2946
        %2980 = vmatprep.subr.mxu0 0.0
        %2981 = vmatpush2.xpose.msra.mxu0 0.0
        %2982 = vmatprep.subr.mxu0 0.0
        %2983 = vmatpush2.xpose.msra.mxu0 0.0
        %2984 = vmatprep.subr.mxu0 0.0
        %2985 = vmatpush2.xpose.msra.mxu0 0.0
        %2986 = vmatprep.subr.mxu0 0.0
        %2987 = vmatpush2.xpose.msra.mxu0 0.0
        %2988 = vmatprep.subr.mxu0 0.0
        %2989 = vmatpush2.xpose.msra.mxu0 0.0
        %2990 = vmatprep.subr.mxu0 0.0
        %2991 = vmatpush2.xpose.msra.mxu0 0.0
        %2992 = vmatprep.subr.mxu0 0.0
        %2993 = vmatpush2.xpose.msra.mxu0 0.0
        %2994 = vmatprep.subr.mxu0 0.0
        %2995 = vmatpush2.xpose.msra.mxu0 0.0
        %2996 = vmatprep.subr.mxu0 0.0
        %2997 = vmatpush2.xpose.msra.mxu0 0.0
        %2998 = vmatprep.subr.mxu0 0.0
        %2999 = vmatpush2.xpose.msra.mxu0 0.0
        %3000 = vmatprep.subr.mxu0 0.0
        %3001 = vmatpush2.xpose.msra.mxu0 0.0
        %3002 = vmatprep.subr.mxu0 0.0
        %3003 = vmatpush2.xpose.msra.mxu0 0.0
        %3004 = vmatprep.subr.mxu0 0.0
        %3005 = vmatpush2.xpose.msra.mxu0 0.0
        %3006 = vmatprep.subr.mxu0 0.0
        %3007 = vmatpush2.xpose.msra.mxu0 0.0
        %3008 = vmatprep.subr.mxu0 0.0
        %3009 = vmatpush2.xpose.msra.mxu0 0.0
        %3010 = vmatprep.subr.mxu0 0.0
        %3011 = vmatpush2.xpose.msra.mxu0 0.0
        %3012 = vmatprep.mubr.f32.mxu0 0.0
        %3013 = vmatmul.mubr.f32.gmra.mxu0 %v2944
        %v3014 = vpop.f32.mrf.mxu0
        %v3015 = vadd.f32 0.0, %v3014
        %v3016 = vpop.f32.mrf.mxu0
        %3017 = vdwg.mxu0
        %3019 = vrot.lane.b32.xlu0 %v1866, 124
        %v3020 = vpop.permute.xlu0 %3019
        %v3021 = vsel %vm1942, %v1866, 0
        %v3023 = vsel %vm1942, %v3020, 0
        %3025 = vmatprep.subr.mxu0 0.0
        %3026 = vmatpush1.xpose.msra.mxu0 0.0
        %3027 = vmatprep.subr.mxu0 0.0
        %3028 = vmatpush1.xpose.msra.mxu0 0.0
        %3029 = vmatprep.subr.mxu0 0.0
        %3030 = vmatpush1.xpose.msra.mxu0 0.0
        %3031 = vmatprep.subr.mxu0 0.0
        %3032 = vmatpush1.xpose.msra.mxu0 0.0
        %3033 = vmatprep.subr.mxu0 0.0
        %3034 = vmatpush1.xpose.msra.mxu0 0.0
        %3035 = vmatprep.subr.mxu0 0.0
        %3036 = vmatpush1.xpose.msra.mxu0 0.0
        %3037 = vmatprep.subr.mxu0 0.0
        %3038 = vmatpush1.xpose.msra.mxu0 0.0
        %3039 = vmatprep.subr.mxu0 0.0
        %3040 = vmatpush1.xpose.msra.mxu0 0.0
        %3041 = vmatprep.subr.mxu0 0.0
        %3042 = vmatpush1.xpose.msra.mxu0 0.0
        %3043 = vmatprep.subr.mxu0 0.0
        %3044 = vmatpush1.xpose.msra.mxu0 0.0
        %3045 = vmatprep.subr.mxu0 0.0
        %3046 = vmatpush1.xpose.msra.mxu0 0.0
        %3047 = vmatprep.subr.mxu0 0.0
        %3048 = vmatpush1.xpose.msra.mxu0 0.0
        %3049 = vmatprep.subr.mxu0 0.0
        %3050 = vmatpush1.xpose.msra.mxu0 0.0
        %3051 = vmatprep.subr.mxu0 0.0
        %3052 = vmatpush1.xpose.msra.mxu0 0.0
        %3053 = vmatprep.subr.mxu0 0.0
        %3054 = vmatpush1.xpose.msra.mxu0 0.0
        %3055 = vmatprep.subr.mxu0 0.0
        %3056 = vmatpush1.xpose.msra.mxu0 %v3023
        %3057 = vmatprep.subr.mxu0 0.0
        %3058 = vmatpush2.xpose.msra.mxu0 0.0
        %3059 = vmatprep.subr.mxu0 0.0
        %3060 = vmatpush2.xpose.msra.mxu0 0.0
        %3061 = vmatprep.subr.mxu0 0.0
        %3062 = vmatpush2.xpose.msra.mxu0 0.0
        %3063 = vmatprep.subr.mxu0 0.0
        %3064 = vmatpush2.xpose.msra.mxu0 0.0
        %3065 = vmatprep.subr.mxu0 0.0
        %3066 = vmatpush2.xpose.msra.mxu0 0.0
        %3067 = vmatprep.subr.mxu0 0.0
        %3068 = vmatpush2.xpose.msra.mxu0 0.0
        %3069 = vmatprep.subr.mxu0 0.0
        %3070 = vmatpush2.xpose.msra.mxu0 0.0
        %3071 = vmatprep.subr.mxu0 0.0
        %3072 = vmatpush2.xpose.msra.mxu0 0.0
        %3073 = vmatprep.subr.mxu0 0.0
        %3074 = vmatpush2.xpose.msra.mxu0 0.0
        %3075 = vmatprep.subr.mxu0 0.0
        %3076 = vmatpush2.xpose.msra.mxu0 0.0
        %3077 = vmatprep.subr.mxu0 0.0
        %3078 = vmatpush2.xpose.msra.mxu0 0.0
        %3079 = vmatprep.subr.mxu0 0.0
        %3080 = vmatpush2.xpose.msra.mxu0 0.0
        %3081 = vmatprep.subr.mxu0 0.0
        %3082 = vmatpush2.xpose.msra.mxu0 0.0
        %3083 = vmatprep.subr.mxu0 0.0
        %3084 = vmatpush2.xpose.msra.mxu0 0.0
        %3085 = vmatprep.subr.mxu0 0.0
        %3086 = vmatpush2.xpose.msra.mxu0 0.0
        %3087 = vmatprep.subr.mxu0 0.0
        %3088 = vmatpush2.xpose.msra.mxu0 0.0
        %3089 = vmatprep.mubr.f32.mxu0 0.0
        %3090 = vmatmul.mubr.f32.gmra.mxu0 %v3021
        %v3091 = vpop.f32.mrf.mxu0
        %v3092 = vadd.f32 0.0, %v3091
        %v3093 = vpop.f32.mrf.mxu0
        %3094 = vdwg.mxu0
        %3096 = vrot.lane.b32.xlu0 %v1936, 124
        %v3097 = vpop.permute.xlu0 %3096
        %v3098 = vsel %vm1942, %v1936, 0
        %v3100 = vsel %vm1942, %v3097, 0
        %3102 = vmatprep.subr.mxu0 0.0
        %3103 = vmatpush1.xpose.msra.mxu0 0.0
        %3104 = vmatprep.subr.mxu0 0.0
        %3105 = vmatpush1.xpose.msra.mxu0 0.0
        %3106 = vmatprep.subr.mxu0 0.0
        %3107 = vmatpush1.xpose.msra.mxu0 0.0
        %3108 = vmatprep.subr.mxu0 0.0
        %3109 = vmatpush1.xpose.msra.mxu0 0.0
        %3110 = vmatprep.subr.mxu0 0.0
        %3111 = vmatpush1.xpose.msra.mxu0 0.0
        %3112 = vmatprep.subr.mxu0 0.0
        %3113 = vmatpush1.xpose.msra.mxu0 0.0
        %3114 = vmatprep.subr.mxu0 0.0
        %3115 = vmatpush1.xpose.msra.mxu0 0.0
        %3116 = vmatprep.subr.mxu0 0.0
        %3117 = vmatpush1.xpose.msra.mxu0 0.0
        %3118 = vmatprep.subr.mxu0 0.0
        %3119 = vmatpush1.xpose.msra.mxu0 0.0
        %3120 = vmatprep.subr.mxu0 0.0
        %3121 = vmatpush1.xpose.msra.mxu0 0.0
        %3122 = vmatprep.subr.mxu0 0.0
        %3123 = vmatpush1.xpose.msra.mxu0 0.0
        %3124 = vmatprep.subr.mxu0 0.0
        %3125 = vmatpush1.xpose.msra.mxu0 0.0
        %3126 = vmatprep.subr.mxu0 0.0
        %3127 = vmatpush1.xpose.msra.mxu0 0.0
        %3128 = vmatprep.subr.mxu0 0.0
        %3129 = vmatpush1.xpose.msra.mxu0 0.0
        %3130 = vmatprep.subr.mxu0 0.0
        %3131 = vmatpush1.xpose.msra.mxu0 0.0
        %3132 = vmatprep.subr.mxu0 0.0
        %3133 = vmatpush1.xpose.msra.mxu0 %v3100
        %3134 = vmatprep.subr.mxu0 0.0
        %3135 = vmatpush2.xpose.msra.mxu0 0.0
        %3136 = vmatprep.subr.mxu0 0.0
        %3137 = vmatpush2.xpose.msra.mxu0 0.0
        %3138 = vmatprep.subr.mxu0 0.0
        %3139 = vmatpush2.xpose.msra.mxu0 0.0
        %3140 = vmatprep.subr.mxu0 0.0
        %3141 = vmatpush2.xpose.msra.mxu0 0.0
        %3142 = vmatprep.subr.mxu0 0.0
        %3143 = vmatpush2.xpose.msra.mxu0 0.0
        %3144 = vmatprep.subr.mxu0 0.0
        %3145 = vmatpush2.xpose.msra.mxu0 0.0
        %3146 = vmatprep.subr.mxu0 0.0
        %3147 = vmatpush2.xpose.msra.mxu0 0.0
        %3148 = vmatprep.subr.mxu0 0.0
        %3149 = vmatpush2.xpose.msra.mxu0 0.0
        %3150 = vmatprep.subr.mxu0 0.0
        %3151 = vmatpush2.xpose.msra.mxu0 0.0
        %3152 = vmatprep.subr.mxu0 0.0
        %3153 = vmatpush2.xpose.msra.mxu0 0.0
        %3154 = vmatprep.subr.mxu0 0.0
        %3155 = vmatpush2.xpose.msra.mxu0 0.0
        %3156 = vmatprep.subr.mxu0 0.0
        %3157 = vmatpush2.xpose.msra.mxu0 0.0
        %3158 = vmatprep.subr.mxu0 0.0
        %3159 = vmatpush2.xpose.msra.mxu0 0.0
        %3160 = vmatprep.subr.mxu0 0.0
        %3161 = vmatpush2.xpose.msra.mxu0 0.0
        %3162 = vmatprep.subr.mxu0 0.0
        %3163 = vmatpush2.xpose.msra.mxu0 0.0
        %3164 = vmatprep.subr.mxu0 0.0
        %3165 = vmatpush2.xpose.msra.mxu0 0.0
        %3166 = vmatprep.mubr.f32.mxu0 0.0
        %3167 = vmatmul.mubr.f32.gmra.mxu0 %v3098
        %v3168 = vpop.f32.mrf.mxu0
        %v3169 = vadd.f32 0.0, %v3168
        %v3170 = vpop.f32.mrf.mxu0
        %3171 = vdwg.mxu0
        %v3172 = vmul.f32 %v2014, 0.5
        %v3173 = vmul.f32 %v2091, 0.5
        %v3174 = vmul.f32 %v2168, 0.5
        %v3175 = vmul.f32 %v2245, 0.5
        %v3176 = vmul.f32 %v2322, 0.5
        %v3177 = vmul.f32 %v2399, 0.5
        %v3178 = vmul.f32 %v2476, 0.5
        %v3179 = vmul.f32 %v2553, 0.5
        %v3180 = vmul.f32 %v2630, 0.5
        %v3181 = vmul.f32 %v2707, 0.5
        %v3182 = vmul.f32 %v2784, 0.5
        %v3183 = vmul.f32 %v2861, 0.5
        %v3184 = vmul.f32 %v2938, 0.5
        %v3185 = vmul.f32 %v3015, 0.5
        %v3186 = vmul.f32 %v3092, 0.5
        %v3187 = vmul.f32 %v3169, 0.5
        %vm3188 = vcmask 64512
        %v3189 = vsel %vm3188, %v3172, -inf
        %3190 = vmax.xlane.f32.xlu0 %v3189
        %v3191 = vpop.xlane.xlu0 %3190
        %v3192 = vsel %vm3188, %v3173, -inf
        %3193 = vmax.xlane.f32.xlu0 %v3192
        %v3194 = vpop.xlane.xlu0 %3193
        %v3195 = vsel %vm3188, %v3174, -inf
        %3196 = vmax.xlane.f32.xlu0 %v3195
        %v3197 = vpop.xlane.xlu0 %3196
        %v3198 = vsel %vm3188, %v3175, -inf
        %3199 = vmax.xlane.f32.xlu0 %v3198
        %v3200 = vpop.xlane.xlu0 %3199
        %v3201 = vsel %vm3188, %v3176, -inf
        %3202 = vmax.xlane.f32.xlu0 %v3201
        %v3203 = vpop.xlane.xlu0 %3202
        %v3204 = vsel %vm3188, %v3177, -inf
        %3205 = vmax.xlane.f32.xlu0 %v3204
        %v3206 = vpop.xlane.xlu0 %3205
        %v3207 = vsel %vm3188, %v3178, -inf
        %3208 = vmax.xlane.f32.xlu0 %v3207
        %v3209 = vpop.xlane.xlu0 %3208
        %v3210 = vsel %vm3188, %v3179, -inf
        %3211 = vmax.xlane.f32.xlu0 %v3210
        %v3212 = vpop.xlane.xlu0 %3211
        %v3213 = vsel %vm3188, %v3180, -inf
        %3214 = vmax.xlane.f32.xlu0 %v3213
        %v3215 = vpop.xlane.xlu0 %3214
        %v3216 = vsel %vm3188, %v3181, -inf
        %3217 = vmax.xlane.f32.xlu0 %v3216
        %v3218 = vpop.xlane.xlu0 %3217
        %v3219 = vsel %vm3188, %v3182, -inf
        %3220 = vmax.xlane.f32.xlu0 %v3219
        %v3221 = vpop.xlane.xlu0 %3220
        %v3222 = vsel %vm3188, %v3183, -inf
        %3223 = vmax.xlane.f32.xlu0 %v3222
        %v3224 = vpop.xlane.xlu0 %3223
        %v3225 = vsel %vm3188, %v3184, -inf
        %3226 = vmax.xlane.f32.xlu0 %v3225
        %v3227 = vpop.xlane.xlu0 %3226
        %v3228 = vsel %vm3188, %v3185, -inf
        %3229 = vmax.xlane.f32.xlu0 %v3228
        %v3230 = vpop.xlane.xlu0 %3229
        %v3231 = vsel %vm3188, %v3186, -inf
        %3232 = vmax.xlane.f32.xlu0 %v3231
        %v3233 = vpop.xlane.xlu0 %3232
        %v3234 = vsel %vm3188, %v3187, -inf
        %3235 = vmax.xlane.f32.xlu0 %v3234
        %v3236 = vpop.xlane.xlu0 %3235
        %v3237 = vsub.f32 %v3172, %v3191
        %v3238 = vsub.f32 %v3173, %v3194
        %v3239 = vsub.f32 %v3174, %v3197
        %v3240 = vsub.f32 %v3175, %v3200
        %v3241 = vsub.f32 %v3176, %v3203
        %v3242 = vsub.f32 %v3177, %v3206
        %v3243 = vsub.f32 %v3178, %v3209
        %v3244 = vsub.f32 %v3179, %v3212
        %v3245 = vsub.f32 %v3180, %v3215
        %v3246 = vsub.f32 %v3181, %v3218
        %v3247 = vsub.f32 %v3182, %v3221
        %v3248 = vsub.f32 %v3183, %v3224
        %v3249 = vsub.f32 %v3184, %v3227
        %v3250 = vsub.f32 %v3185, %v3230
        %v3251 = vsub.f32 %v3186, %v3233
        %v3252 = vsub.f32 %v3187, %v3236
        %v3253 = vmul.f32 %v3237, 1.442695
        %v3254 = vpow.pop %v3253
        %v3255 = vmul.f32 %v3238, 1.442695
        %v3256 = vpow.pop %v3255
        %v3257 = vmul.f32 %v3239, 1.442695
        %v3258 = vpow.pop %v3257
        %v3259 = vmul.f32 %v3240, 1.442695
        %v3260 = vpow.pop %v3259
        %v3261 = vmul.f32 %v3241, 1.442695
        %v3262 = vpow.pop %v3261
        %v3263 = vmul.f32 %v3242, 1.442695
        %v3264 = vpow.pop %v3263
        %v3265 = vmul.f32 %v3243, 1.442695
        %v3266 = vpow.pop %v3265
        %v3267 = vmul.f32 %v3244, 1.442695
        %v3268 = vpow.pop %v3267
        %v3269 = vmul.f32 %v3245, 1.442695
        %v3270 = vpow.pop %v3269
        %v3271 = vmul.f32 %v3246, 1.442695
        %v3272 = vpow.pop %v3271
        %v3273 = vmul.f32 %v3247, 1.442695
        %v3274 = vpow.pop %v3273
        %v3275 = vmul.f32 %v3248, 1.442695
        %v3276 = vpow.pop %v3275
        %v3277 = vmul.f32 %v3249, 1.442695
        %v3278 = vpow.pop %v3277
        %v3279 = vmul.f32 %v3250, 1.442695
        %v3280 = vpow.pop %v3279
        %v3281 = vmul.f32 %v3251, 1.442695
        %v3282 = vpow.pop %v3281
        %v3283 = vmul.f32 %v3252, 1.442695
        %v3284 = vpow.pop %v3283
        %v3285 = vsel %vm3188, %v3254, 0.0
        %3286 = vadd.xlane.f32.xlu0 %v3285
        %v3287 = vpop.xlane.xlu0 %3286
        %v3288 = vsel %vm3188, %v3256, 0.0
        %3289 = vadd.xlane.f32.xlu0 %v3288
        %v3290 = vpop.xlane.xlu0 %3289
        %v3291 = vsel %vm3188, %v3258, 0.0
        %3292 = vadd.xlane.f32.xlu0 %v3291
        %v3293 = vpop.xlane.xlu0 %3292
        %v3294 = vsel %vm3188, %v3260, 0.0
        %3295 = vadd.xlane.f32.xlu0 %v3294
        %v3296 = vpop.xlane.xlu0 %3295
        %v3297 = vsel %vm3188, %v3262, 0.0
        %3298 = vadd.xlane.f32.xlu0 %v3297
        %v3299 = vpop.xlane.xlu0 %3298
        %v3300 = vsel %vm3188, %v3264, 0.0
        %3301 = vadd.xlane.f32.xlu0 %v3300
        %v3302 = vpop.xlane.xlu0 %3301
        %v3303 = vsel %vm3188, %v3266, 0.0
        %3304 = vadd.xlane.f32.xlu0 %v3303
        %v3305 = vpop.xlane.xlu0 %3304
        %v3306 = vsel %vm3188, %v3268, 0.0
        %3307 = vadd.xlane.f32.xlu0 %v3306
        %v3308 = vpop.xlane.xlu0 %3307
        %v3309 = vsel %vm3188, %v3270, 0.0
        %3310 = vadd.xlane.f32.xlu0 %v3309
        %v3311 = vpop.xlane.xlu0 %3310
        %v3312 = vsel %vm3188, %v3272, 0.0
        %3313 = vadd.xlane.f32.xlu0 %v3312
        %v3314 = vpop.xlane.xlu0 %3313
        %v3315 = vsel %vm3188, %v3274, 0.0
        %3316 = vadd.xlane.f32.xlu0 %v3315
        %v3317 = vpop.xlane.xlu0 %3316
        %v3318 = vsel %vm3188, %v3276, 0.0
        %3319 = vadd.xlane.f32.xlu0 %v3318
        %v3320 = vpop.xlane.xlu0 %3319
        %v3321 = vsel %vm3188, %v3278, 0.0
        %3322 = vadd.xlane.f32.xlu0 %v3321
        %v3323 = vpop.xlane.xlu0 %3322
        %v3324 = vsel %vm3188, %v3280, 0.0
        %3325 = vadd.xlane.f32.xlu0 %v3324
        %v3326 = vpop.xlane.xlu0 %3325
        %v3327 = vsel %vm3188, %v3282, 0.0
        %3328 = vadd.xlane.f32.xlu0 %v3327
        %v3329 = vpop.xlane.xlu0 %3328
        %v3330 = vsel %vm3188, %v3284, 0.0
        %3331 = vadd.xlane.f32.xlu0 %v3330
        %v3332 = vpop.xlane.xlu0 %3331
        %v3333 = vrcp.pop %v3287
        %v3334 = vmul.f32 %v3254, %v3333
        %v3335 = vrcp.pop %v3290
        %v3336 = vmul.f32 %v3256, %v3335
        %v3337 = vrcp.pop %v3293
        %v3338 = vmul.f32 %v3258, %v3337
        %v3339 = vrcp.pop %v3296
        %v3340 = vmul.f32 %v3260, %v3339
        %v3341 = vrcp.pop %v3299
        %v3342 = vmul.f32 %v3262, %v3341
        %v3343 = vrcp.pop %v3302
        %v3344 = vmul.f32 %v3264, %v3343
        %v3345 = vrcp.pop %v3305
        %v3346 = vmul.f32 %v3266, %v3345
        %v3347 = vrcp.pop %v3308
        %v3348 = vmul.f32 %v3268, %v3347
        %v3349 = vrcp.pop %v3311
        %v3350 = vmul.f32 %v3270, %v3349
        %v3351 = vrcp.pop %v3314
        %v3352 = vmul.f32 %v3272, %v3351
        %v3353 = vrcp.pop %v3317
        %v3354 = vmul.f32 %v3274, %v3353
        %v3355 = vrcp.pop %v3320
        %v3356 = vmul.f32 %v3276, %v3355
        %v3357 = vrcp.pop %v3323
        %v3358 = vmul.f32 %v3278, %v3357
        %v3359 = vrcp.pop %v3326
        %v3360 = vmul.f32 %v3280, %v3359
        %v3361 = vrcp.pop %v3329
        %v3362 = vmul.f32 %v3282, %v3361
        %v3363 = vrcp.pop %v3332
        %v3364 = vmul.f32 %v3284, %v3363
        %3365 = vrot.lane.b32.xlu0 %v883, 120
        %v3366 = vpop.permute.xlu0 %3365
        %v3369 = vsel %vm3188, %v3334, 0
        %3371 = vmatprep.subr.mxu0 0.0
        %3372 = vmatpush1.msra.mxu0 0.0
        %3373 = vmatprep.subr.mxu0 0.0
        %3374 = vmatpush1.msra.mxu0 0.0
        %3375 = vmatprep.subr.mxu0 0.0
        %3376 = vmatpush1.msra.mxu0 0.0
        %3377 = vmatprep.subr.mxu0 0.0
        %3378 = vmatpush1.msra.mxu0 0.0
        %3379 = vmatprep.subr.mxu0 0.0
        %3380 = vmatpush1.msra.mxu0 0.0
        %3381 = vmatprep.subr.mxu0 0.0
        %3382 = vmatpush1.msra.mxu0 0.0
        %3383 = vmatprep.subr.mxu0 0.0
        %3384 = vmatpush1.msra.mxu0 0.0
        %3385 = vmatprep.subr.mxu0 0.0
        %3386 = vmatpush1.msra.mxu0 0.0
        %3387 = vmatprep.subr.mxu0 0.0
        %3388 = vmatpush1.msra.mxu0 0.0
        %3389 = vmatprep.subr.mxu0 0.0
        %3390 = vmatpush1.msra.mxu0 0.0
        %3391 = vmatprep.subr.mxu0 0.0
        %3392 = vmatpush1.msra.mxu0 0.0
        %3393 = vmatprep.subr.mxu0 0.0
        %3394 = vmatpush1.msra.mxu0 0.0
        %3395 = vmatprep.subr.mxu0 0.0
        %3396 = vmatpush1.msra.mxu0 0.0
        %3397 = vmatprep.subr.mxu0 0.0
        %3398 = vmatpush1.msra.mxu0 0.0
        %3399 = vmatprep.subr.mxu0 0.0
        %3400 = vmatpush1.msra.mxu0 0.0
        %3401 = vmatprep.subr.mxu0 0.0
        %3402 = vmatpush1.msra.mxu0 %v3366
        %3403 = vmatprep.subr.mxu0 0.0
        %3404 = vmatpush2.msra.mxu0 0.0
        %3405 = vmatprep.subr.mxu0 0.0
        %3406 = vmatpush2.msra.mxu0 0.0
        %3407 = vmatprep.subr.mxu0 0.0
        %3408 = vmatpush2.msra.mxu0 0.0
        %3409 = vmatprep.subr.mxu0 0.0
        %3410 = vmatpush2.msra.mxu0 0.0
        %3411 = vmatprep.subr.mxu0 0.0
        %3412 = vmatpush2.msra.mxu0 0.0
        %3413 = vmatprep.subr.mxu0 0.0
        %3414 = vmatpush2.msra.mxu0 0.0
        %3415 = vmatprep.subr.mxu0 0.0
        %3416 = vmatpush2.msra.mxu0 0.0
        %3417 = vmatprep.subr.mxu0 0.0
        %3418 = vmatpush2.msra.mxu0 0.0
        %3419 = vmatprep.subr.mxu0 0.0
        %3420 = vmatpush2.msra.mxu0 0.0
        %3421 = vmatprep.subr.mxu0 0.0
        %3422 = vmatpush2.msra.mxu0 0.0
        %3423 = vmatprep.subr.mxu0 0.0
        %3424 = vmatpush2.msra.mxu0 0.0
        %3425 = vmatprep.subr.mxu0 0.0
        %3426 = vmatpush2.msra.mxu0 0.0
        %3427 = vmatprep.subr.mxu0 0.0
        %3428 = vmatpush2.msra.mxu0 0.0
        %3429 = vmatprep.subr.mxu0 0.0
        %3430 = vmatpush2.msra.mxu0 0.0
        %3431 = vmatprep.subr.mxu0 0.0
        %3432 = vmatpush2.msra.mxu0 0.0
        %3433 = vmatprep.subr.mxu0 0.0
        %3434 = vmatpush2.msra.mxu0 0.0
        %3435 = vmatprep.mubr.f32.mxu0 0.0
        %3436 = vmatmul.mubr.f32.gmra.mxu0 %v3369
        %v3437 = vpop.f32.mrf.mxu0
        %v3438 = vadd.f32 0.0, %v3437
        %v3439 = vpop.f32.mrf.mxu0
        %3440 = vdwg.mxu0
        %3441 = vrot.lane.b32.xlu0 %v956, 120
        %v3442 = vpop.permute.xlu0 %3441
        %v3445 = vsel %vm3188, %v3336, 0
        %3447 = vmatprep.subr.mxu0 0.0
        %3448 = vmatpush1.msra.mxu0 0.0
        %3449 = vmatprep.subr.mxu0 0.0
        %3450 = vmatpush1.msra.mxu0 0.0
        %3451 = vmatprep.subr.mxu0 0.0
        %3452 = vmatpush1.msra.mxu0 0.0
        %3453 = vmatprep.subr.mxu0 0.0
        %3454 = vmatpush1.msra.mxu0 0.0
        %3455 = vmatprep.subr.mxu0 0.0
        %3456 = vmatpush1.msra.mxu0 0.0
        %3457 = vmatprep.subr.mxu0 0.0
        %3458 = vmatpush1.msra.mxu0 0.0
        %3459 = vmatprep.subr.mxu0 0.0
        %3460 = vmatpush1.msra.mxu0 0.0
        %3461 = vmatprep.subr.mxu0 0.0
        %3462 = vmatpush1.msra.mxu0 0.0
        %3463 = vmatprep.subr.mxu0 0.0
        %3464 = vmatpush1.msra.mxu0 0.0
        %3465 = vmatprep.subr.mxu0 0.0
        %3466 = vmatpush1.msra.mxu0 0.0
        %3467 = vmatprep.subr.mxu0 0.0
        %3468 = vmatpush1.msra.mxu0 0.0
        %3469 = vmatprep.subr.mxu0 0.0
        %3470 = vmatpush1.msra.mxu0 0.0
        %3471 = vmatprep.subr.mxu0 0.0
        %3472 = vmatpush1.msra.mxu0 0.0
        %3473 = vmatprep.subr.mxu0 0.0
        %3474 = vmatpush1.msra.mxu0 0.0
        %3475 = vmatprep.subr.mxu0 0.0
        %3476 = vmatpush1.msra.mxu0 0.0
        %3477 = vmatprep.subr.mxu0 0.0
        %3478 = vmatpush1.msra.mxu0 %v3442
        %3479 = vmatprep.subr.mxu0 0.0
        %3480 = vmatpush2.msra.mxu0 0.0
        %3481 = vmatprep.subr.mxu0 0.0
        %3482 = vmatpush2.msra.mxu0 0.0
        %3483 = vmatprep.subr.mxu0 0.0
        %3484 = vmatpush2.msra.mxu0 0.0
        %3485 = vmatprep.subr.mxu0 0.0
        %3486 = vmatpush2.msra.mxu0 0.0
        %3487 = vmatprep.subr.mxu0 0.0
        %3488 = vmatpush2.msra.mxu0 0.0
        %3489 = vmatprep.subr.mxu0 0.0
        %3490 = vmatpush2.msra.mxu0 0.0
        %3491 = vmatprep.subr.mxu0 0.0
        %3492 = vmatpush2.msra.mxu0 0.0
        %3493 = vmatprep.subr.mxu0 0.0
        %3494 = vmatpush2.msra.mxu0 0.0
        %3495 = vmatprep.subr.mxu0 0.0
        %3496 = vmatpush2.msra.mxu0 0.0
        %3497 = vmatprep.subr.mxu0 0.0
        %3498 = vmatpush2.msra.mxu0 0.0
        %3499 = vmatprep.subr.mxu0 0.0
        %3500 = vmatpush2.msra.mxu0 0.0
        %3501 = vmatprep.subr.mxu0 0.0
        %3502 = vmatpush2.msra.mxu0 0.0
        %3503 = vmatprep.subr.mxu0 0.0
        %3504 = vmatpush2.msra.mxu0 0.0
        %3505 = vmatprep.subr.mxu0 0.0
        %3506 = vmatpush2.msra.mxu0 0.0
        %3507 = vmatprep.subr.mxu0 0.0
        %3508 = vmatpush2.msra.mxu0 0.0
        %3509 = vmatprep.subr.mxu0 0.0
        %3510 = vmatpush2.msra.mxu0 0.0
        %3511 = vmatprep.mubr.f32.mxu0 0.0
        %3512 = vmatmul.mubr.f32.gmra.mxu0 %v3445
        %v3513 = vpop.f32.mrf.mxu0
        %v3514 = vadd.f32 0.0, %v3513
        %v3515 = vpop.f32.mrf.mxu0
        %3516 = vdwg.mxu0
        %3517 = vrot.lane.b32.xlu0 %v1026, 120
        %v3518 = vpop.permute.xlu0 %3517
        %v3521 = vsel %vm3188, %v3338, 0
        %3523 = vmatprep.subr.mxu0 0.0
        %3524 = vmatpush1.msra.mxu0 0.0
        %3525 = vmatprep.subr.mxu0 0.0
        %3526 = vmatpush1.msra.mxu0 0.0
        %3527 = vmatprep.subr.mxu0 0.0
        %3528 = vmatpush1.msra.mxu0 0.0
        %3529 = vmatprep.subr.mxu0 0.0
        %3530 = vmatpush1.msra.mxu0 0.0
        %3531 = vmatprep.subr.mxu0 0.0
        %3532 = vmatpush1.msra.mxu0 0.0
        %3533 = vmatprep.subr.mxu0 0.0
        %3534 = vmatpush1.msra.mxu0 0.0
        %3535 = vmatprep.subr.mxu0 0.0
        %3536 = vmatpush1.msra.mxu0 0.0
        %3537 = vmatprep.subr.mxu0 0.0
        %3538 = vmatpush1.msra.mxu0 0.0
        %3539 = vmatprep.subr.mxu0 0.0
        %3540 = vmatpush1.msra.mxu0 0.0
        %3541 = vmatprep.subr.mxu0 0.0
        %3542 = vmatpush1.msra.mxu0 0.0
        %3543 = vmatprep.subr.mxu0 0.0
        %3544 = vmatpush1.msra.mxu0 0.0
        %3545 = vmatprep.subr.mxu0 0.0
        %3546 = vmatpush1.msra.mxu0 0.0
        %3547 = vmatprep.subr.mxu0 0.0
        %3548 = vmatpush1.msra.mxu0 0.0
        %3549 = vmatprep.subr.mxu0 0.0
        %3550 = vmatpush1.msra.mxu0 0.0
        %3551 = vmatprep.subr.mxu0 0.0
        %3552 = vmatpush1.msra.mxu0 0.0
        %3553 = vmatprep.subr.mxu0 0.0
        %3554 = vmatpush1.msra.mxu0 %v3518
        %3555 = vmatprep.subr.mxu0 0.0
        %3556 = vmatpush2.msra.mxu0 0.0
        %3557 = vmatprep.subr.mxu0 0.0
        %3558 = vmatpush2.msra.mxu0 0.0
        %3559 = vmatprep.subr.mxu0 0.0
        %3560 = vmatpush2.msra.mxu0 0.0
        %3561 = vmatprep.subr.mxu0 0.0
        %3562 = vmatpush2.msra.mxu0 0.0
        %3563 = vmatprep.subr.mxu0 0.0
        %3564 = vmatpush2.msra.mxu0 0.0
        %3565 = vmatprep.subr.mxu0 0.0
        %3566 = vmatpush2.msra.mxu0 0.0
        %3567 = vmatprep.subr.mxu0 0.0
        %3568 = vmatpush2.msra.mxu0 0.0
        %3569 = vmatprep.subr.mxu0 0.0
        %3570 = vmatpush2.msra.mxu0 0.0
        %3571 = vmatprep.subr.mxu0 0.0
        %3572 = vmatpush2.msra.mxu0 0.0
        %3573 = vmatprep.subr.mxu0 0.0
        %3574 = vmatpush2.msra.mxu0 0.0
        %3575 = vmatprep.subr.mxu0 0.0
        %3576 = vmatpush2.msra.mxu0 0.0
        %3577 = vmatprep.subr.mxu0 0.0
        %3578 = vmatpush2.msra.mxu0 0.0
        %3579 = vmatprep.subr.mxu0 0.0
        %3580 = vmatpush2.msra.mxu0 0.0
        %3581 = vmatprep.subr.mxu0 0.0
        %3582 = vmatpush2.msra.mxu0 0.0
        %3583 = vmatprep.subr.mxu0 0.0
        %3584 = vmatpush2.msra.mxu0 0.0
        %3585 = vmatprep.subr.mxu0 0.0
        %3586 = vmatpush2.msra.mxu0 0.0
        %3587 = vmatprep.mubr.f32.mxu0 0.0
        %3588 = vmatmul.mubr.f32.gmra.mxu0 %v3521
        %v3589 = vpop.f32.mrf.mxu0
        %v3590 = vadd.f32 0.0, %v3589
        %v3591 = vpop.f32.mrf.mxu0
        %3592 = vdwg.mxu0
        %3593 = vrot.lane.b32.xlu0 %v1096, 120
        %v3594 = vpop.permute.xlu0 %3593
        %v3597 = vsel %vm3188, %v3340, 0
        %3599 = vmatprep.subr.mxu0 0.0
        %3600 = vmatpush1.msra.mxu0 0.0
        %3601 = vmatprep.subr.mxu0 0.0
        %3602 = vmatpush1.msra.mxu0 0.0
        %3603 = vmatprep.subr.mxu0 0.0
        %3604 = vmatpush1.msra.mxu0 0.0
        %3605 = vmatprep.subr.mxu0 0.0
        %3606 = vmatpush1.msra.mxu0 0.0
        %3607 = vmatprep.subr.mxu0 0.0
        %3608 = vmatpush1.msra.mxu0 0.0
        %3609 = vmatprep.subr.mxu0 0.0
        %3610 = vmatpush1.msra.mxu0 0.0
        %3611 = vmatprep.subr.mxu0 0.0
        %3612 = vmatpush1.msra.mxu0 0.0
        %3613 = vmatprep.subr.mxu0 0.0
        %3614 = vmatpush1.msra.mxu0 0.0
        %3615 = vmatprep.subr.mxu0 0.0
        %3616 = vmatpush1.msra.mxu0 0.0
        %3617 = vmatprep.subr.mxu0 0.0
        %3618 = vmatpush1.msra.mxu0 0.0
        %3619 = vmatprep.subr.mxu0 0.0
        %3620 = vmatpush1.msra.mxu0 0.0
        %3621 = vmatprep.subr.mxu0 0.0
        %3622 = vmatpush1.msra.mxu0 0.0
        %3623 = vmatprep.subr.mxu0 0.0
        %3624 = vmatpush1.msra.mxu0 0.0
        %3625 = vmatprep.subr.mxu0 0.0
        %3626 = vmatpush1.msra.mxu0 0.0
        %3627 = vmatprep.subr.mxu0 0.0
        %3628 = vmatpush1.msra.mxu0 0.0
        %3629 = vmatprep.subr.mxu0 0.0
        %3630 = vmatpush1.msra.mxu0 %v3594
        %3631 = vmatprep.subr.mxu0 0.0
        %3632 = vmatpush2.msra.mxu0 0.0
        %3633 = vmatprep.subr.mxu0 0.0
        %3634 = vmatpush2.msra.mxu0 0.0
        %3635 = vmatprep.subr.mxu0 0.0
        %3636 = vmatpush2.msra.mxu0 0.0
        %3637 = vmatprep.subr.mxu0 0.0
        %3638 = vmatpush2.msra.mxu0 0.0
        %3639 = vmatprep.subr.mxu0 0.0
        %3640 = vmatpush2.msra.mxu0 0.0
        %3641 = vmatprep.subr.mxu0 0.0
        %3642 = vmatpush2.msra.mxu0 0.0
        %3643 = vmatprep.subr.mxu0 0.0
        %3644 = vmatpush2.msra.mxu0 0.0
        %3645 = vmatprep.subr.mxu0 0.0
        %3646 = vmatpush2.msra.mxu0 0.0
        %3647 = vmatprep.subr.mxu0 0.0
        %3648 = vmatpush2.msra.mxu0 0.0
        %3649 = vmatprep.subr.mxu0 0.0
        %3650 = vmatpush2.msra.mxu0 0.0
        %3651 = vmatprep.subr.mxu0 0.0
        %3652 = vmatpush2.msra.mxu0 0.0
        %3653 = vmatprep.subr.mxu0 0.0
        %3654 = vmatpush2.msra.mxu0 0.0
        %3655 = vmatprep.subr.mxu0 0.0
        %3656 = vmatpush2.msra.mxu0 0.0
        %3657 = vmatprep.subr.mxu0 0.0
        %3658 = vmatpush2.msra.mxu0 0.0
        %3659 = vmatprep.subr.mxu0 0.0
        %3660 = vmatpush2.msra.mxu0 0.0
        %3661 = vmatprep.subr.mxu0 0.0
        %3662 = vmatpush2.msra.mxu0 0.0
        %3663 = vmatprep.mubr.f32.mxu0 0.0
        %3664 = vmatmul.mubr.f32.gmra.mxu0 %v3597
        %v3665 = vpop.f32.mrf.mxu0
        %v3666 = vadd.f32 0.0, %v3665
        %v3667 = vpop.f32.mrf.mxu0
        %3668 = vdwg.mxu0
        %3669 = vrot.lane.b32.xlu0 %v1166, 120
        %v3670 = vpop.permute.xlu0 %3669
        %v3673 = vsel %vm3188, %v3342, 0
        %3675 = vmatprep.subr.mxu0 0.0
        %3676 = vmatpush1.msra.mxu0 0.0
        %3677 = vmatprep.subr.mxu0 0.0
        %3678 = vmatpush1.msra.mxu0 0.0
        %3679 = vmatprep.subr.mxu0 0.0
        %3680 = vmatpush1.msra.mxu0 0.0
        %3681 = vmatprep.subr.mxu0 0.0
        %3682 = vmatpush1.msra.mxu0 0.0
        %3683 = vmatprep.subr.mxu0 0.0
        %3684 = vmatpush1.msra.mxu0 0.0
        %3685 = vmatprep.subr.mxu0 0.0
        %3686 = vmatpush1.msra.mxu0 0.0
        %3687 = vmatprep.subr.mxu0 0.0
        %3688 = vmatpush1.msra.mxu0 0.0
        %3689 = vmatprep.subr.mxu0 0.0
        %3690 = vmatpush1.msra.mxu0 0.0
        %3691 = vmatprep.subr.mxu0 0.0
        %3692 = vmatpush1.msra.mxu0 0.0
        %3693 = vmatprep.subr.mxu0 0.0
        %3694 = vmatpush1.msra.mxu0 0.0
        %3695 = vmatprep.subr.mxu0 0.0
        %3696 = vmatpush1.msra.mxu0 0.0
        %3697 = vmatprep.subr.mxu0 0.0
        %3698 = vmatpush1.msra.mxu0 0.0
        %3699 = vmatprep.subr.mxu0 0.0
        %3700 = vmatpush1.msra.mxu0 0.0
        %3701 = vmatprep.subr.mxu0 0.0
        %3702 = vmatpush1.msra.mxu0 0.0
        %3703 = vmatprep.subr.mxu0 0.0
        %3704 = vmatpush1.msra.mxu0 0.0
        %3705 = vmatprep.subr.mxu0 0.0
        %3706 = vmatpush1.msra.mxu0 %v3670
        %3707 = vmatprep.subr.mxu0 0.0
        %3708 = vmatpush2.msra.mxu0 0.0
        %3709 = vmatprep.subr.mxu0 0.0
        %3710 = vmatpush2.msra.mxu0 0.0
        %3711 = vmatprep.subr.mxu0 0.0
        %3712 = vmatpush2.msra.mxu0 0.0
        %3713 = vmatprep.subr.mxu0 0.0
        %3714 = vmatpush2.msra.mxu0 0.0
        %3715 = vmatprep.subr.mxu0 0.0
        %3716 = vmatpush2.msra.mxu0 0.0
        %3717 = vmatprep.subr.mxu0 0.0
        %3718 = vmatpush2.msra.mxu0 0.0
        %3719 = vmatprep.subr.mxu0 0.0
        %3720 = vmatpush2.msra.mxu0 0.0
        %3721 = vmatprep.subr.mxu0 0.0
        %3722 = vmatpush2.msra.mxu0 0.0
        %3723 = vmatprep.subr.mxu0 0.0
        %3724 = vmatpush2.msra.mxu0 0.0
        %3725 = vmatprep.subr.mxu0 0.0
        %3726 = vmatpush2.msra.mxu0 0.0
        %3727 = vmatprep.subr.mxu0 0.0
        %3728 = vmatpush2.msra.mxu0 0.0
        %3729 = vmatprep.subr.mxu0 0.0
        %3730 = vmatpush2.msra.mxu0 0.0
        %3731 = vmatprep.subr.mxu0 0.0
        %3732 = vmatpush2.msra.mxu0 0.0
        %3733 = vmatprep.subr.mxu0 0.0
        %3734 = vmatpush2.msra.mxu0 0.0
        %3735 = vmatprep.subr.mxu0 0.0
        %3736 = vmatpush2.msra.mxu0 0.0
        %3737 = vmatprep.subr.mxu0 0.0
        %3738 = vmatpush2.msra.mxu0 0.0
        %3739 = vmatprep.mubr.f32.mxu0 0.0
        %3740 = vmatmul.mubr.f32.gmra.mxu0 %v3673
        %v3741 = vpop.f32.mrf.mxu0
        %v3742 = vadd.f32 0.0, %v3741
        %v3743 = vpop.f32.mrf.mxu0
        %3744 = vdwg.mxu0
        %3745 = vrot.lane.b32.xlu0 %v1236, 120
        %v3746 = vpop.permute.xlu0 %3745
        %v3749 = vsel %vm3188, %v3344, 0
        %3751 = vmatprep.subr.mxu0 0.0
        %3752 = vmatpush1.msra.mxu0 0.0
        %3753 = vmatprep.subr.mxu0 0.0
        %3754 = vmatpush1.msra.mxu0 0.0
        %3755 = vmatprep.subr.mxu0 0.0
        %3756 = vmatpush1.msra.mxu0 0.0
        %3757 = vmatprep.subr.mxu0 0.0
        %3758 = vmatpush1.msra.mxu0 0.0
        %3759 = vmatprep.subr.mxu0 0.0
        %3760 = vmatpush1.msra.mxu0 0.0
        %3761 = vmatprep.subr.mxu0 0.0
        %3762 = vmatpush1.msra.mxu0 0.0
        %3763 = vmatprep.subr.mxu0 0.0
        %3764 = vmatpush1.msra.mxu0 0.0
        %3765 = vmatprep.subr.mxu0 0.0
        %3766 = vmatpush1.msra.mxu0 0.0
        %3767 = vmatprep.subr.mxu0 0.0
        %3768 = vmatpush1.msra.mxu0 0.0
        %3769 = vmatprep.subr.mxu0 0.0
        %3770 = vmatpush1.msra.mxu0 0.0
        %3771 = vmatprep.subr.mxu0 0.0
        %3772 = vmatpush1.msra.mxu0 0.0
        %3773 = vmatprep.subr.mxu0 0.0
        %3774 = vmatpush1.msra.mxu0 0.0
        %3775 = vmatprep.subr.mxu0 0.0
        %3776 = vmatpush1.msra.mxu0 0.0
        %3777 = vmatprep.subr.mxu0 0.0
        %3778 = vmatpush1.msra.mxu0 0.0
        %3779 = vmatprep.subr.mxu0 0.0
        %3780 = vmatpush1.msra.mxu0 0.0
        %3781 = vmatprep.subr.mxu0 0.0
        %3782 = vmatpush1.msra.mxu0 %v3746
        %3783 = vmatprep.subr.mxu0 0.0
        %3784 = vmatpush2.msra.mxu0 0.0
        %3785 = vmatprep.subr.mxu0 0.0
        %3786 = vmatpush2.msra.mxu0 0.0
        %3787 = vmatprep.subr.mxu0 0.0
        %3788 = vmatpush2.msra.mxu0 0.0
        %3789 = vmatprep.subr.mxu0 0.0
        %3790 = vmatpush2.msra.mxu0 0.0
        %3791 = vmatprep.subr.mxu0 0.0
        %3792 = vmatpush2.msra.mxu0 0.0
        %3793 = vmatprep.subr.mxu0 0.0
        %3794 = vmatpush2.msra.mxu0 0.0
        %3795 = vmatprep.subr.mxu0 0.0
        %3796 = vmatpush2.msra.mxu0 0.0
        %3797 = vmatprep.subr.mxu0 0.0
        %3798 = vmatpush2.msra.mxu0 0.0
        %3799 = vmatprep.subr.mxu0 0.0
        %3800 = vmatpush2.msra.mxu0 0.0
        %3801 = vmatprep.subr.mxu0 0.0
        %3802 = vmatpush2.msra.mxu0 0.0
        %3803 = vmatprep.subr.mxu0 0.0
        %3804 = vmatpush2.msra.mxu0 0.0
        %3805 = vmatprep.subr.mxu0 0.0
        %3806 = vmatpush2.msra.mxu0 0.0
        %3807 = vmatprep.subr.mxu0 0.0
        %3808 = vmatpush2.msra.mxu0 0.0
        %3809 = vmatprep.subr.mxu0 0.0
        %3810 = vmatpush2.msra.mxu0 0.0
        %3811 = vmatprep.subr.mxu0 0.0
        %3812 = vmatpush2.msra.mxu0 0.0
        %3813 = vmatprep.subr.mxu0 0.0
        %3814 = vmatpush2.msra.mxu0 0.0
        %3815 = vmatprep.mubr.f32.mxu0 0.0
        %3816 = vmatmul.mubr.f32.gmra.mxu0 %v3749
        %v3817 = vpop.f32.mrf.mxu0
        %v3818 = vadd.f32 0.0, %v3817
        %v3819 = vpop.f32.mrf.mxu0
        %3820 = vdwg.mxu0
        %3821 = vrot.lane.b32.xlu0 %v1306, 120
        %v3822 = vpop.permute.xlu0 %3821
        %v3825 = vsel %vm3188, %v3346, 0
        %3827 = vmatprep.subr.mxu0 0.0
        %3828 = vmatpush1.msra.mxu0 0.0
        %3829 = vmatprep.subr.mxu0 0.0
        %3830 = vmatpush1.msra.mxu0 0.0
        %3831 = vmatprep.subr.mxu0 0.0
        %3832 = vmatpush1.msra.mxu0 0.0
        %3833 = vmatprep.subr.mxu0 0.0
        %3834 = vmatpush1.msra.mxu0 0.0
        %3835 = vmatprep.subr.mxu0 0.0
        %3836 = vmatpush1.msra.mxu0 0.0
        %3837 = vmatprep.subr.mxu0 0.0
        %3838 = vmatpush1.msra.mxu0 0.0
        %3839 = vmatprep.subr.mxu0 0.0
        %3840 = vmatpush1.msra.mxu0 0.0
        %3841 = vmatprep.subr.mxu0 0.0
        %3842 = vmatpush1.msra.mxu0 0.0
        %3843 = vmatprep.subr.mxu0 0.0
        %3844 = vmatpush1.msra.mxu0 0.0
        %3845 = vmatprep.subr.mxu0 0.0
        %3846 = vmatpush1.msra.mxu0 0.0
        %3847 = vmatprep.subr.mxu0 0.0
        %3848 = vmatpush1.msra.mxu0 0.0
        %3849 = vmatprep.subr.mxu0 0.0
        %3850 = vmatpush1.msra.mxu0 0.0
        %3851 = vmatprep.subr.mxu0 0.0
        %3852 = vmatpush1.msra.mxu0 0.0
        %3853 = vmatprep.subr.mxu0 0.0
        %3854 = vmatpush1.msra.mxu0 0.0
        %3855 = vmatprep.subr.mxu0 0.0
        %3856 = vmatpush1.msra.mxu0 0.0
        %3857 = vmatprep.subr.mxu0 0.0
        %3858 = vmatpush1.msra.mxu0 %v3822
        %3859 = vmatprep.subr.mxu0 0.0
        %3860 = vmatpush2.msra.mxu0 0.0
        %3861 = vmatprep.subr.mxu0 0.0
        %3862 = vmatpush2.msra.mxu0 0.0
        %3863 = vmatprep.subr.mxu0 0.0
        %3864 = vmatpush2.msra.mxu0 0.0
        %3865 = vmatprep.subr.mxu0 0.0
        %3866 = vmatpush2.msra.mxu0 0.0
        %3867 = vmatprep.subr.mxu0 0.0
        %3868 = vmatpush2.msra.mxu0 0.0
        %3869 = vmatprep.subr.mxu0 0.0
        %3870 = vmatpush2.msra.mxu0 0.0
        %3871 = vmatprep.subr.mxu0 0.0
        %3872 = vmatpush2.msra.mxu0 0.0
        %3873 = vmatprep.subr.mxu0 0.0
        %3874 = vmatpush2.msra.mxu0 0.0
        %3875 = vmatprep.subr.mxu0 0.0
        %3876 = vmatpush2.msra.mxu0 0.0
        %3877 = vmatprep.subr.mxu0 0.0
        %3878 = vmatpush2.msra.mxu0 0.0
        %3879 = vmatprep.subr.mxu0 0.0
        %3880 = vmatpush2.msra.mxu0 0.0
        %3881 = vmatprep.subr.mxu0 0.0
        %3882 = vmatpush2.msra.mxu0 0.0
        %3883 = vmatprep.subr.mxu0 0.0
        %3884 = vmatpush2.msra.mxu0 0.0
        %3885 = vmatprep.subr.mxu0 0.0
        %3886 = vmatpush2.msra.mxu0 0.0
        %3887 = vmatprep.subr.mxu0 0.0
        %3888 = vmatpush2.msra.mxu0 0.0
        %3889 = vmatprep.subr.mxu0 0.0
        %3890 = vmatpush2.msra.mxu0 0.0
        %3891 = vmatprep.mubr.f32.mxu0 0.0
        %3892 = vmatmul.mubr.f32.gmra.mxu0 %v3825
        %v3893 = vpop.f32.mrf.mxu0
        %v3894 = vadd.f32 0.0, %v3893
        %v3895 = vpop.f32.mrf.mxu0
        %3896 = vdwg.mxu0
        %3897 = vrot.lane.b32.xlu0 %v1376, 120
        %v3898 = vpop.permute.xlu0 %3897
        %v3901 = vsel %vm3188, %v3348, 0
        %3903 = vmatprep.subr.mxu0 0.0
        %3904 = vmatpush1.msra.mxu0 0.0
        %3905 = vmatprep.subr.mxu0 0.0
        %3906 = vmatpush1.msra.mxu0 0.0
        %3907 = vmatprep.subr.mxu0 0.0
        %3908 = vmatpush1.msra.mxu0 0.0
        %3909 = vmatprep.subr.mxu0 0.0
        %3910 = vmatpush1.msra.mxu0 0.0
        %3911 = vmatprep.subr.mxu0 0.0
        %3912 = vmatpush1.msra.mxu0 0.0
        %3913 = vmatprep.subr.mxu0 0.0
        %3914 = vmatpush1.msra.mxu0 0.0
        %3915 = vmatprep.subr.mxu0 0.0
        %3916 = vmatpush1.msra.mxu0 0.0
        %3917 = vmatprep.subr.mxu0 0.0
        %3918 = vmatpush1.msra.mxu0 0.0
        %3919 = vmatprep.subr.mxu0 0.0
        %3920 = vmatpush1.msra.mxu0 0.0
        %3921 = vmatprep.subr.mxu0 0.0
        %3922 = vmatpush1.msra.mxu0 0.0
        %3923 = vmatprep.subr.mxu0 0.0
        %3924 = vmatpush1.msra.mxu0 0.0
        %3925 = vmatprep.subr.mxu0 0.0
        %3926 = vmatpush1.msra.mxu0 0.0
        %3927 = vmatprep.subr.mxu0 0.0
        %3928 = vmatpush1.msra.mxu0 0.0
        %3929 = vmatprep.subr.mxu0 0.0
        %3930 = vmatpush1.msra.mxu0 0.0
        %3931 = vmatprep.subr.mxu0 0.0
        %3932 = vmatpush1.msra.mxu0 0.0
        %3933 = vmatprep.subr.mxu0 0.0
        %3934 = vmatpush1.msra.mxu0 %v3898
        %3935 = vmatprep.subr.mxu0 0.0
        %3936 = vmatpush2.msra.mxu0 0.0
        %3937 = vmatprep.subr.mxu0 0.0
        %3938 = vmatpush2.msra.mxu0 0.0
        %3939 = vmatprep.subr.mxu0 0.0
        %3940 = vmatpush2.msra.mxu0 0.0
        %3941 = vmatprep.subr.mxu0 0.0
        %3942 = vmatpush2.msra.mxu0 0.0
        %3943 = vmatprep.subr.mxu0 0.0
        %3944 = vmatpush2.msra.mxu0 0.0
        %3945 = vmatprep.subr.mxu0 0.0
        %3946 = vmatpush2.msra.mxu0 0.0
        %3947 = vmatprep.subr.mxu0 0.0
        %3948 = vmatpush2.msra.mxu0 0.0
        %3949 = vmatprep.subr.mxu0 0.0
        %3950 = vmatpush2.msra.mxu0 0.0
        %3951 = vmatprep.subr.mxu0 0.0
        %3952 = vmatpush2.msra.mxu0 0.0
        %3953 = vmatprep.subr.mxu0 0.0
        %3954 = vmatpush2.msra.mxu0 0.0
        %3955 = vmatprep.subr.mxu0 0.0
        %3956 = vmatpush2.msra.mxu0 0.0
        %3957 = vmatprep.subr.mxu0 0.0
        %3958 = vmatpush2.msra.mxu0 0.0
        %3959 = vmatprep.subr.mxu0 0.0
        %3960 = vmatpush2.msra.mxu0 0.0
        %3961 = vmatprep.subr.mxu0 0.0
        %3962 = vmatpush2.msra.mxu0 0.0
        %3963 = vmatprep.subr.mxu0 0.0
        %3964 = vmatpush2.msra.mxu0 0.0
        %3965 = vmatprep.subr.mxu0 0.0
        %3966 = vmatpush2.msra.mxu0 0.0
        %3967 = vmatprep.mubr.f32.mxu0 0.0
        %3968 = vmatmul.mubr.f32.gmra.mxu0 %v3901
        %v3969 = vpop.f32.mrf.mxu0
        %v3970 = vadd.f32 0.0, %v3969
        %v3971 = vpop.f32.mrf.mxu0
        %3972 = vdwg.mxu0
        %3973 = vrot.lane.b32.xlu0 %v1446, 120
        %v3974 = vpop.permute.xlu0 %3973
        %v3977 = vsel %vm3188, %v3350, 0
        %3979 = vmatprep.subr.mxu0 0.0
        %3980 = vmatpush1.msra.mxu0 0.0
        %3981 = vmatprep.subr.mxu0 0.0
        %3982 = vmatpush1.msra.mxu0 0.0
        %3983 = vmatprep.subr.mxu0 0.0
        %3984 = vmatpush1.msra.mxu0 0.0
        %3985 = vmatprep.subr.mxu0 0.0
        %3986 = vmatpush1.msra.mxu0 0.0
        %3987 = vmatprep.subr.mxu0 0.0
        %3988 = vmatpush1.msra.mxu0 0.0
        %3989 = vmatprep.subr.mxu0 0.0
        %3990 = vmatpush1.msra.mxu0 0.0
        %3991 = vmatprep.subr.mxu0 0.0
        %3992 = vmatpush1.msra.mxu0 0.0
        %3993 = vmatprep.subr.mxu0 0.0
        %3994 = vmatpush1.msra.mxu0 0.0
        %3995 = vmatprep.subr.mxu0 0.0
        %3996 = vmatpush1.msra.mxu0 0.0
        %3997 = vmatprep.subr.mxu0 0.0
        %3998 = vmatpush1.msra.mxu0 0.0
        %3999 = vmatprep.subr.mxu0 0.0
        %4000 = vmatpush1.msra.mxu0 0.0
        %4001 = vmatprep.subr.mxu0 0.0
        %4002 = vmatpush1.msra.mxu0 0.0
        %4003 = vmatprep.subr.mxu0 0.0
        %4004 = vmatpush1.msra.mxu0 0.0
        %4005 = vmatprep.subr.mxu0 0.0
        %4006 = vmatpush1.msra.mxu0 0.0
        %4007 = vmatprep.subr.mxu0 0.0
        %4008 = vmatpush1.msra.mxu0 0.0
        %4009 = vmatprep.subr.mxu0 0.0
        %4010 = vmatpush1.msra.mxu0 %v3974
        %4011 = vmatprep.subr.mxu0 0.0
        %4012 = vmatpush2.msra.mxu0 0.0
        %4013 = vmatprep.subr.mxu0 0.0
        %4014 = vmatpush2.msra.mxu0 0.0
        %4015 = vmatprep.subr.mxu0 0.0
        %4016 = vmatpush2.msra.mxu0 0.0
        %4017 = vmatprep.subr.mxu0 0.0
        %4018 = vmatpush2.msra.mxu0 0.0
        %4019 = vmatprep.subr.mxu0 0.0
        %4020 = vmatpush2.msra.mxu0 0.0
        %4021 = vmatprep.subr.mxu0 0.0
        %4022 = vmatpush2.msra.mxu0 0.0
        %4023 = vmatprep.subr.mxu0 0.0
        %4024 = vmatpush2.msra.mxu0 0.0
        %4025 = vmatprep.subr.mxu0 0.0
        %4026 = vmatpush2.msra.mxu0 0.0
        %4027 = vmatprep.subr.mxu0 0.0
        %4028 = vmatpush2.msra.mxu0 0.0
        %4029 = vmatprep.subr.mxu0 0.0
        %4030 = vmatpush2.msra.mxu0 0.0
        %4031 = vmatprep.subr.mxu0 0.0
        %4032 = vmatpush2.msra.mxu0 0.0
        %4033 = vmatprep.subr.mxu0 0.0
        %4034 = vmatpush2.msra.mxu0 0.0
        %4035 = vmatprep.subr.mxu0 0.0
        %4036 = vmatpush2.msra.mxu0 0.0
        %4037 = vmatprep.subr.mxu0 0.0
        %4038 = vmatpush2.msra.mxu0 0.0
        %4039 = vmatprep.subr.mxu0 0.0
        %4040 = vmatpush2.msra.mxu0 0.0
        %4041 = vmatprep.subr.mxu0 0.0
        %4042 = vmatpush2.msra.mxu0 0.0
        %4043 = vmatprep.mubr.f32.mxu0 0.0
        %4044 = vmatmul.mubr.f32.gmra.mxu0 %v3977
        %v4045 = vpop.f32.mrf.mxu0
        %v4046 = vadd.f32 0.0, %v4045
        %v4047 = vpop.f32.mrf.mxu0
        %4048 = vdwg.mxu0
        %4049 = vrot.lane.b32.xlu0 %v1516, 120
        %v4050 = vpop.permute.xlu0 %4049
        %v4053 = vsel %vm3188, %v3352, 0
        %4055 = vmatprep.subr.mxu0 0.0
        %4056 = vmatpush1.msra.mxu0 0.0
        %4057 = vmatprep.subr.mxu0 0.0
        %4058 = vmatpush1.msra.mxu0 0.0
        %4059 = vmatprep.subr.mxu0 0.0
        %4060 = vmatpush1.msra.mxu0 0.0
        %4061 = vmatprep.subr.mxu0 0.0
        %4062 = vmatpush1.msra.mxu0 0.0
        %4063 = vmatprep.subr.mxu0 0.0
        %4064 = vmatpush1.msra.mxu0 0.0
        %4065 = vmatprep.subr.mxu0 0.0
        %4066 = vmatpush1.msra.mxu0 0.0
        %4067 = vmatprep.subr.mxu0 0.0
        %4068 = vmatpush1.msra.mxu0 0.0
        %4069 = vmatprep.subr.mxu0 0.0
        %4070 = vmatpush1.msra.mxu0 0.0
        %4071 = vmatprep.subr.mxu0 0.0
        %4072 = vmatpush1.msra.mxu0 0.0
        %4073 = vmatprep.subr.mxu0 0.0
        %4074 = vmatpush1.msra.mxu0 0.0
        %4075 = vmatprep.subr.mxu0 0.0
        %4076 = vmatpush1.msra.mxu0 0.0
        %4077 = vmatprep.subr.mxu0 0.0
        %4078 = vmatpush1.msra.mxu0 0.0
        %4079 = vmatprep.subr.mxu0 0.0
        %4080 = vmatpush1.msra.mxu0 0.0
        %4081 = vmatprep.subr.mxu0 0.0
        %4082 = vmatpush1.msra.mxu0 0.0
        %4083 = vmatprep.subr.mxu0 0.0
        %4084 = vmatpush1.msra.mxu0 0.0
        %4085 = vmatprep.subr.mxu0 0.0
        %4086 = vmatpush1.msra.mxu0 %v4050
        %4087 = vmatprep.subr.mxu0 0.0
        %4088 = vmatpush2.msra.mxu0 0.0
        %4089 = vmatprep.subr.mxu0 0.0
        %4090 = vmatpush2.msra.mxu0 0.0
        %4091 = vmatprep.subr.mxu0 0.0
        %4092 = vmatpush2.msra.mxu0 0.0
        %4093 = vmatprep.subr.mxu0 0.0
        %4094 = vmatpush2.msra.mxu0 0.0
        %4095 = vmatprep.subr.mxu0 0.0
        %4096 = vmatpush2.msra.mxu0 0.0
        %4097 = vmatprep.subr.mxu0 0.0
        %4098 = vmatpush2.msra.mxu0 0.0
        %4099 = vmatprep.subr.mxu0 0.0
        %4100 = vmatpush2.msra.mxu0 0.0
        %4101 = vmatprep.subr.mxu0 0.0
        %4102 = vmatpush2.msra.mxu0 0.0
        %4103 = vmatprep.subr.mxu0 0.0
        %4104 = vmatpush2.msra.mxu0 0.0
        %4105 = vmatprep.subr.mxu0 0.0
        %4106 = vmatpush2.msra.mxu0 0.0
        %4107 = vmatprep.subr.mxu0 0.0
        %4108 = vmatpush2.msra.mxu0 0.0
        %4109 = vmatprep.subr.mxu0 0.0
        %4110 = vmatpush2.msra.mxu0 0.0
        %4111 = vmatprep.subr.mxu0 0.0
        %4112 = vmatpush2.msra.mxu0 0.0
        %4113 = vmatprep.subr.mxu0 0.0
        %4114 = vmatpush2.msra.mxu0 0.0
        %4115 = vmatprep.subr.mxu0 0.0
        %4116 = vmatpush2.msra.mxu0 0.0
        %4117 = vmatprep.subr.mxu0 0.0
        %4118 = vmatpush2.msra.mxu0 0.0
        %4119 = vmatprep.mubr.f32.mxu0 0.0
        %4120 = vmatmul.mubr.f32.gmra.mxu0 %v4053
        %v4121 = vpop.f32.mrf.mxu0
        %v4122 = vadd.f32 0.0, %v4121
        %v4123 = vpop.f32.mrf.mxu0
        %4124 = vdwg.mxu0
        %4125 = vrot.lane.b32.xlu0 %v1586, 120
        %v4126 = vpop.permute.xlu0 %4125
        %v4129 = vsel %vm3188, %v3354, 0
        %4131 = vmatprep.subr.mxu0 0.0
        %4132 = vmatpush1.msra.mxu0 0.0
        %4133 = vmatprep.subr.mxu0 0.0
        %4134 = vmatpush1.msra.mxu0 0.0
        %4135 = vmatprep.subr.mxu0 0.0
        %4136 = vmatpush1.msra.mxu0 0.0
        %4137 = vmatprep.subr.mxu0 0.0
        %4138 = vmatpush1.msra.mxu0 0.0
        %4139 = vmatprep.subr.mxu0 0.0
        %4140 = vmatpush1.msra.mxu0 0.0
        %4141 = vmatprep.subr.mxu0 0.0
        %4142 = vmatpush1.msra.mxu0 0.0
        %4143 = vmatprep.subr.mxu0 0.0
        %4144 = vmatpush1.msra.mxu0 0.0
        %4145 = vmatprep.subr.mxu0 0.0
        %4146 = vmatpush1.msra.mxu0 0.0
        %4147 = vmatprep.subr.mxu0 0.0
        %4148 = vmatpush1.msra.mxu0 0.0
        %4149 = vmatprep.subr.mxu0 0.0
        %4150 = vmatpush1.msra.mxu0 0.0
        %4151 = vmatprep.subr.mxu0 0.0
        %4152 = vmatpush1.msra.mxu0 0.0
        %4153 = vmatprep.subr.mxu0 0.0
        %4154 = vmatpush1.msra.mxu0 0.0
        %4155 = vmatprep.subr.mxu0 0.0
        %4156 = vmatpush1.msra.mxu0 0.0
        %4157 = vmatprep.subr.mxu0 0.0
        %4158 = vmatpush1.msra.mxu0 0.0
        %4159 = vmatprep.subr.mxu0 0.0
        %4160 = vmatpush1.msra.mxu0 0.0
        %4161 = vmatprep.subr.mxu0 0.0
        %4162 = vmatpush1.msra.mxu0 %v4126
        %4163 = vmatprep.subr.mxu0 0.0
        %4164 = vmatpush2.msra.mxu0 0.0
        %4165 = vmatprep.subr.mxu0 0.0
        %4166 = vmatpush2.msra.mxu0 0.0
        %4167 = vmatprep.subr.mxu0 0.0
        %4168 = vmatpush2.msra.mxu0 0.0
        %4169 = vmatprep.subr.mxu0 0.0
        %4170 = vmatpush2.msra.mxu0 0.0
        %4171 = vmatprep.subr.mxu0 0.0
        %4172 = vmatpush2.msra.mxu0 0.0
        %4173 = vmatprep.subr.mxu0 0.0
        %4174 = vmatpush2.msra.mxu0 0.0
        %4175 = vmatprep.subr.mxu0 0.0
        %4176 = vmatpush2.msra.mxu0 0.0
        %4177 = vmatprep.subr.mxu0 0.0
        %4178 = vmatpush2.msra.mxu0 0.0
        %4179 = vmatprep.subr.mxu0 0.0
        %4180 = vmatpush2.msra.mxu0 0.0
        %4181 = vmatprep.subr.mxu0 0.0
        %4182 = vmatpush2.msra.mxu0 0.0
        %4183 = vmatprep.subr.mxu0 0.0
        %4184 = vmatpush2.msra.mxu0 0.0
        %4185 = vmatprep.subr.mxu0 0.0
        %4186 = vmatpush2.msra.mxu0 0.0
        %4187 = vmatprep.subr.mxu0 0.0
        %4188 = vmatpush2.msra.mxu0 0.0
        %4189 = vmatprep.subr.mxu0 0.0
        %4190 = vmatpush2.msra.mxu0 0.0
        %4191 = vmatprep.subr.mxu0 0.0
        %4192 = vmatpush2.msra.mxu0 0.0
        %4193 = vmatprep.subr.mxu0 0.0
        %4194 = vmatpush2.msra.mxu0 0.0
        %4195 = vmatprep.mubr.f32.mxu0 0.0
        %4196 = vmatmul.mubr.f32.gmra.mxu0 %v4129
        %v4197 = vpop.f32.mrf.mxu0
        %v4198 = vadd.f32 0.0, %v4197
        %v4199 = vpop.f32.mrf.mxu0
        %4200 = vdwg.mxu0
        %4201 = vrot.lane.b32.xlu0 %v1656, 120
        %v4202 = vpop.permute.xlu0 %4201
        %v4205 = vsel %vm3188, %v3356, 0
        %4207 = vmatprep.subr.mxu0 0.0
        %4208 = vmatpush1.msra.mxu0 0.0
        %4209 = vmatprep.subr.mxu0 0.0
        %4210 = vmatpush1.msra.mxu0 0.0
        %4211 = vmatprep.subr.mxu0 0.0
        %4212 = vmatpush1.msra.mxu0 0.0
        %4213 = vmatprep.subr.mxu0 0.0
        %4214 = vmatpush1.msra.mxu0 0.0
        %4215 = vmatprep.subr.mxu0 0.0
        %4216 = vmatpush1.msra.mxu0 0.0
        %4217 = vmatprep.subr.mxu0 0.0
        %4218 = vmatpush1.msra.mxu0 0.0
        %4219 = vmatprep.subr.mxu0 0.0
        %4220 = vmatpush1.msra.mxu0 0.0
        %4221 = vmatprep.subr.mxu0 0.0
        %4222 = vmatpush1.msra.mxu0 0.0
        %4223 = vmatprep.subr.mxu0 0.0
        %4224 = vmatpush1.msra.mxu0 0.0
        %4225 = vmatprep.subr.mxu0 0.0
        %4226 = vmatpush1.msra.mxu0 0.0
        %4227 = vmatprep.subr.mxu0 0.0
        %4228 = vmatpush1.msra.mxu0 0.0
        %4229 = vmatprep.subr.mxu0 0.0
        %4230 = vmatpush1.msra.mxu0 0.0
        %4231 = vmatprep.subr.mxu0 0.0
        %4232 = vmatpush1.msra.mxu0 0.0
        %4233 = vmatprep.subr.mxu0 0.0
        %4234 = vmatpush1.msra.mxu0 0.0
        %4235 = vmatprep.subr.mxu0 0.0
        %4236 = vmatpush1.msra.mxu0 0.0
        %4237 = vmatprep.subr.mxu0 0.0
        %4238 = vmatpush1.msra.mxu0 %v4202
        %4239 = vmatprep.subr.mxu0 0.0
        %4240 = vmatpush2.msra.mxu0 0.0
        %4241 = vmatprep.subr.mxu0 0.0
        %4242 = vmatpush2.msra.mxu0 0.0
        %4243 = vmatprep.subr.mxu0 0.0
        %4244 = vmatpush2.msra.mxu0 0.0
        %4245 = vmatprep.subr.mxu0 0.0
        %4246 = vmatpush2.msra.mxu0 0.0
        %4247 = vmatprep.subr.mxu0 0.0
        %4248 = vmatpush2.msra.mxu0 0.0
        %4249 = vmatprep.subr.mxu0 0.0
        %4250 = vmatpush2.msra.mxu0 0.0
        %4251 = vmatprep.subr.mxu0 0.0
        %4252 = vmatpush2.msra.mxu0 0.0
        %4253 = vmatprep.subr.mxu0 0.0
        %4254 = vmatpush2.msra.mxu0 0.0
        %4255 = vmatprep.subr.mxu0 0.0
        %4256 = vmatpush2.msra.mxu0 0.0
        %4257 = vmatprep.subr.mxu0 0.0
        %4258 = vmatpush2.msra.mxu0 0.0
        %4259 = vmatprep.subr.mxu0 0.0
        %4260 = vmatpush2.msra.mxu0 0.0
        %4261 = vmatprep.subr.mxu0 0.0
        %4262 = vmatpush2.msra.mxu0 0.0
        %4263 = vmatprep.subr.mxu0 0.0
        %4264 = vmatpush2.msra.mxu0 0.0
        %4265 = vmatprep.subr.mxu0 0.0
        %4266 = vmatpush2.msra.mxu0 0.0
        %4267 = vmatprep.subr.mxu0 0.0
        %4268 = vmatpush2.msra.mxu0 0.0
        %4269 = vmatprep.subr.mxu0 0.0
        %4270 = vmatpush2.msra.mxu0 0.0
        %4271 = vmatprep.mubr.f32.mxu0 0.0
        %4272 = vmatmul.mubr.f32.gmra.mxu0 %v4205
        %v4273 = vpop.f32.mrf.mxu0
        %v4274 = vadd.f32 0.0, %v4273
        %v4275 = vpop.f32.mrf.mxu0
        %4276 = vdwg.mxu0
        %4277 = vrot.lane.b32.xlu0 %v1726, 120
        %v4278 = vpop.permute.xlu0 %4277
        %v4281 = vsel %vm3188, %v3358, 0
        %4283 = vmatprep.subr.mxu0 0.0
        %4284 = vmatpush1.msra.mxu0 0.0
        %4285 = vmatprep.subr.mxu0 0.0
        %4286 = vmatpush1.msra.mxu0 0.0
        %4287 = vmatprep.subr.mxu0 0.0
        %4288 = vmatpush1.msra.mxu0 0.0
        %4289 = vmatprep.subr.mxu0 0.0
        %4290 = vmatpush1.msra.mxu0 0.0
        %4291 = vmatprep.subr.mxu0 0.0
        %4292 = vmatpush1.msra.mxu0 0.0
        %4293 = vmatprep.subr.mxu0 0.0
        %4294 = vmatpush1.msra.mxu0 0.0
        %4295 = vmatprep.subr.mxu0 0.0
        %4296 = vmatpush1.msra.mxu0 0.0
        %4297 = vmatprep.subr.mxu0 0.0
        %4298 = vmatpush1.msra.mxu0 0.0
        %4299 = vmatprep.subr.mxu0 0.0
        %4300 = vmatpush1.msra.mxu0 0.0
        %4301 = vmatprep.subr.mxu0 0.0
        %4302 = vmatpush1.msra.mxu0 0.0
        %4303 = vmatprep.subr.mxu0 0.0
        %4304 = vmatpush1.msra.mxu0 0.0
        %4305 = vmatprep.subr.mxu0 0.0
        %4306 = vmatpush1.msra.mxu0 0.0
        %4307 = vmatprep.subr.mxu0 0.0
        %4308 = vmatpush1.msra.mxu0 0.0
        %4309 = vmatprep.subr.mxu0 0.0
        %4310 = vmatpush1.msra.mxu0 0.0
        %4311 = vmatprep.subr.mxu0 0.0
        %4312 = vmatpush1.msra.mxu0 0.0
        %4313 = vmatprep.subr.mxu0 0.0
        %4314 = vmatpush1.msra.mxu0 %v4278
        %4315 = vmatprep.subr.mxu0 0.0
        %4316 = vmatpush2.msra.mxu0 0.0
        %4317 = vmatprep.subr.mxu0 0.0
        %4318 = vmatpush2.msra.mxu0 0.0
        %4319 = vmatprep.subr.mxu0 0.0
        %4320 = vmatpush2.msra.mxu0 0.0
        %4321 = vmatprep.subr.mxu0 0.0
        %4322 = vmatpush2.msra.mxu0 0.0
        %4323 = vmatprep.subr.mxu0 0.0
        %4324 = vmatpush2.msra.mxu0 0.0
        %4325 = vmatprep.subr.mxu0 0.0
        %4326 = vmatpush2.msra.mxu0 0.0
        %4327 = vmatprep.subr.mxu0 0.0
        %4328 = vmatpush2.msra.mxu0 0.0
        %4329 = vmatprep.subr.mxu0 0.0
        %4330 = vmatpush2.msra.mxu0 0.0
        %4331 = vmatprep.subr.mxu0 0.0
        %4332 = vmatpush2.msra.mxu0 0.0
        %4333 = vmatprep.subr.mxu0 0.0
        %4334 = vmatpush2.msra.mxu0 0.0
        %4335 = vmatprep.subr.mxu0 0.0
        %4336 = vmatpush2.msra.mxu0 0.0
        %4337 = vmatprep.subr.mxu0 0.0
        %4338 = vmatpush2.msra.mxu0 0.0
        %4339 = vmatprep.subr.mxu0 0.0
        %4340 = vmatpush2.msra.mxu0 0.0
        %4341 = vmatprep.subr.mxu0 0.0
        %4342 = vmatpush2.msra.mxu0 0.0
        %4343 = vmatprep.subr.mxu0 0.0
        %4344 = vmatpush2.msra.mxu0 0.0
        %4345 = vmatprep.subr.mxu0 0.0
        %4346 = vmatpush2.msra.mxu0 0.0
        %4347 = vmatprep.mubr.f32.mxu0 0.0
        %4348 = vmatmul.mubr.f32.gmra.mxu0 %v4281
        %v4349 = vpop.f32.mrf.mxu0
        %v4350 = vadd.f32 0.0, %v4349
        %v4351 = vpop.f32.mrf.mxu0
        %4352 = vdwg.mxu0
        %4353 = vrot.lane.b32.xlu0 %v1796, 120
        %v4354 = vpop.permute.xlu0 %4353
        %v4357 = vsel %vm3188, %v3360, 0
        %4359 = vmatprep.subr.mxu0 0.0
        %4360 = vmatpush1.msra.mxu0 0.0
        %4361 = vmatprep.subr.mxu0 0.0
        %4362 = vmatpush1.msra.mxu0 0.0
        %4363 = vmatprep.subr.mxu0 0.0
        %4364 = vmatpush1.msra.mxu0 0.0
        %4365 = vmatprep.subr.mxu0 0.0
        %4366 = vmatpush1.msra.mxu0 0.0
        %4367 = vmatprep.subr.mxu0 0.0
        %4368 = vmatpush1.msra.mxu0 0.0
        %4369 = vmatprep.subr.mxu0 0.0
        %4370 = vmatpush1.msra.mxu0 0.0
        %4371 = vmatprep.subr.mxu0 0.0
        %4372 = vmatpush1.msra.mxu0 0.0
        %4373 = vmatprep.subr.mxu0 0.0
        %4374 = vmatpush1.msra.mxu0 0.0
        %4375 = vmatprep.subr.mxu0 0.0
        %4376 = vmatpush1.msra.mxu0 0.0
        %4377 = vmatprep.subr.mxu0 0.0
        %4378 = vmatpush1.msra.mxu0 0.0
        %4379 = vmatprep.subr.mxu0 0.0
        %4380 = vmatpush1.msra.mxu0 0.0
        %4381 = vmatprep.subr.mxu0 0.0
        %4382 = vmatpush1.msra.mxu0 0.0
        %4383 = vmatprep.subr.mxu0 0.0
        %4384 = vmatpush1.msra.mxu0 0.0
        %4385 = vmatprep.subr.mxu0 0.0
        %4386 = vmatpush1.msra.mxu0 0.0
        %4387 = vmatprep.subr.mxu0 0.0
        %4388 = vmatpush1.msra.mxu0 0.0
        %4389 = vmatprep.subr.mxu0 0.0
        %4390 = vmatpush1.msra.mxu0 %v4354
        %4391 = vmatprep.subr.mxu0 0.0
        %4392 = vmatpush2.msra.mxu0 0.0
        %4393 = vmatprep.subr.mxu0 0.0
        %4394 = vmatpush2.msra.mxu0 0.0
        %4395 = vmatprep.subr.mxu0 0.0
        %4396 = vmatpush2.msra.mxu0 0.0
        %4397 = vmatprep.subr.mxu0 0.0
        %4398 = vmatpush2.msra.mxu0 0.0
        %4399 = vmatprep.subr.mxu0 0.0
        %4400 = vmatpush2.msra.mxu0 0.0
        %4401 = vmatprep.subr.mxu0 0.0
        %4402 = vmatpush2.msra.mxu0 0.0
        %4403 = vmatprep.subr.mxu0 0.0
        %4404 = vmatpush2.msra.mxu0 0.0
        %4405 = vmatprep.subr.mxu0 0.0
        %4406 = vmatpush2.msra.mxu0 0.0
        %4407 = vmatprep.subr.mxu0 0.0
        %4408 = vmatpush2.msra.mxu0 0.0
        %4409 = vmatprep.subr.mxu0 0.0
        %4410 = vmatpush2.msra.mxu0 0.0
        %4411 = vmatprep.subr.mxu0 0.0
        %4412 = vmatpush2.msra.mxu0 0.0
        %4413 = vmatprep.subr.mxu0 0.0
        %4414 = vmatpush2.msra.mxu0 0.0
        %4415 = vmatprep.subr.mxu0 0.0
        %4416 = vmatpush2.msra.mxu0 0.0
        %4417 = vmatprep.subr.mxu0 0.0
        %4418 = vmatpush2.msra.mxu0 0.0
        %4419 = vmatprep.subr.mxu0 0.0
        %4420 = vmatpush2.msra.mxu0 0.0
        %4421 = vmatprep.subr.mxu0 0.0
        %4422 = vmatpush2.msra.mxu0 0.0
        %4423 = vmatprep.mubr.f32.mxu0 0.0
        %4424 = vmatmul.mubr.f32.gmra.mxu0 %v4357
        %v4425 = vpop.f32.mrf.mxu0
        %v4426 = vadd.f32 0.0, %v4425
        %v4427 = vpop.f32.mrf.mxu0
        %4428 = vdwg.mxu0
        %4429 = vrot.lane.b32.xlu0 %v1866, 120
        %v4430 = vpop.permute.xlu0 %4429
        %v4433 = vsel %vm3188, %v3362, 0
        %4435 = vmatprep.subr.mxu0 0.0
        %4436 = vmatpush1.msra.mxu0 0.0
        %4437 = vmatprep.subr.mxu0 0.0
        %4438 = vmatpush1.msra.mxu0 0.0
        %4439 = vmatprep.subr.mxu0 0.0
        %4440 = vmatpush1.msra.mxu0 0.0
        %4441 = vmatprep.subr.mxu0 0.0
        %4442 = vmatpush1.msra.mxu0 0.0
        %4443 = vmatprep.subr.mxu0 0.0
        %4444 = vmatpush1.msra.mxu0 0.0
        %4445 = vmatprep.subr.mxu0 0.0
        %4446 = vmatpush1.msra.mxu0 0.0
        %4447 = vmatprep.subr.mxu0 0.0
        %4448 = vmatpush1.msra.mxu0 0.0
        %4449 = vmatprep.subr.mxu0 0.0
        %4450 = vmatpush1.msra.mxu0 0.0
        %4451 = vmatprep.subr.mxu0 0.0
        %4452 = vmatpush1.msra.mxu0 0.0
        %4453 = vmatprep.subr.mxu0 0.0
        %4454 = vmatpush1.msra.mxu0 0.0
        %4455 = vmatprep.subr.mxu0 0.0
        %4456 = vmatpush1.msra.mxu0 0.0
        %4457 = vmatprep.subr.mxu0 0.0
        %4458 = vmatpush1.msra.mxu0 0.0
        %4459 = vmatprep.subr.mxu0 0.0
        %4460 = vmatpush1.msra.mxu0 0.0
        %4461 = vmatprep.subr.mxu0 0.0
        %4462 = vmatpush1.msra.mxu0 0.0
        %4463 = vmatprep.subr.mxu0 0.0
        %4464 = vmatpush1.msra.mxu0 0.0
        %4465 = vmatprep.subr.mxu0 0.0
        %4466 = vmatpush1.msra.mxu0 %v4430
        %4467 = vmatprep.subr.mxu0 0.0
        %4468 = vmatpush2.msra.mxu0 0.0
        %4469 = vmatprep.subr.mxu0 0.0
        %4470 = vmatpush2.msra.mxu0 0.0
        %4471 = vmatprep.subr.mxu0 0.0
        %4472 = vmatpush2.msra.mxu0 0.0
        %4473 = vmatprep.subr.mxu0 0.0
        %4474 = vmatpush2.msra.mxu0 0.0
        %4475 = vmatprep.subr.mxu0 0.0
        %4476 = vmatpush2.msra.mxu0 0.0
        %4477 = vmatprep.subr.mxu0 0.0
        %4478 = vmatpush2.msra.mxu0 0.0
        %4479 = vmatprep.subr.mxu0 0.0
        %4480 = vmatpush2.msra.mxu0 0.0
        %4481 = vmatprep.subr.mxu0 0.0
        %4482 = vmatpush2.msra.mxu0 0.0
        %4483 = vmatprep.subr.mxu0 0.0
        %4484 = vmatpush2.msra.mxu0 0.0
        %4485 = vmatprep.subr.mxu0 0.0
        %4486 = vmatpush2.msra.mxu0 0.0
        %4487 = vmatprep.subr.mxu0 0.0
        %4488 = vmatpush2.msra.mxu0 0.0
        %4489 = vmatprep.subr.mxu0 0.0
        %4490 = vmatpush2.msra.mxu0 0.0
        %4491 = vmatprep.subr.mxu0 0.0
        %4492 = vmatpush2.msra.mxu0 0.0
        %4493 = vmatprep.subr.mxu0 0.0
        %4494 = vmatpush2.msra.mxu0 0.0
        %4495 = vmatprep.subr.mxu0 0.0
        %4496 = vmatpush2.msra.mxu0 0.0
        %4497 = vmatprep.subr.mxu0 0.0
        %4498 = vmatpush2.msra.mxu0 0.0
        %4499 = vmatprep.mubr.f32.mxu0 0.0
        %4500 = vmatmul.mubr.f32.gmra.mxu0 %v4433
        %v4501 = vpop.f32.mrf.mxu0
        %v4502 = vadd.f32 0.0, %v4501
        %v4503 = vpop.f32.mrf.mxu0
        %4504 = vdwg.mxu0
        %4505 = vrot.lane.b32.xlu0 %v1936, 120
        %v4506 = vpop.permute.xlu0 %4505
        %v4509 = vsel %vm3188, %v3364, 0
        %4511 = vmatprep.subr.mxu0 0.0
        %4512 = vmatpush1.msra.mxu0 0.0
        %4513 = vmatprep.subr.mxu0 0.0
        %4514 = vmatpush1.msra.mxu0 0.0
        %4515 = vmatprep.subr.mxu0 0.0
        %4516 = vmatpush1.msra.mxu0 0.0
        %4517 = vmatprep.subr.mxu0 0.0
        %4518 = vmatpush1.msra.mxu0 0.0
        %4519 = vmatprep.subr.mxu0 0.0
        %4520 = vmatpush1.msra.mxu0 0.0
        %4521 = vmatprep.subr.mxu0 0.0
        %4522 = vmatpush1.msra.mxu0 0.0
        %4523 = vmatprep.subr.mxu0 0.0
        %4524 = vmatpush1.msra.mxu0 0.0
        %4525 = vmatprep.subr.mxu0 0.0
        %4526 = vmatpush1.msra.mxu0 0.0
        %4527 = vmatprep.subr.mxu0 0.0
        %4528 = vmatpush1.msra.mxu0 0.0
        %4529 = vmatprep.subr.mxu0 0.0
        %4530 = vmatpush1.msra.mxu0 0.0
        %4531 = vmatprep.subr.mxu0 0.0
        %4532 = vmatpush1.msra.mxu0 0.0
        %4533 = vmatprep.subr.mxu0 0.0
        %4534 = vmatpush1.msra.mxu0 0.0
        %4535 = vmatprep.subr.mxu0 0.0
        %4536 = vmatpush1.msra.mxu0 0.0
        %4537 = vmatprep.subr.mxu0 0.0
        %4538 = vmatpush1.msra.mxu0 0.0
        %4539 = vmatprep.subr.mxu0 0.0
        %4540 = vmatpush1.msra.mxu0 0.0
        %4541 = vmatprep.subr.mxu0 0.0
        %4542 = vmatpush1.msra.mxu0 %v4506
        %4543 = vmatprep.subr.mxu0 0.0
        %4544 = vmatpush2.msra.mxu0 0.0
        %4545 = vmatprep.subr.mxu0 0.0
        %4546 = vmatpush2.msra.mxu0 0.0
        %4547 = vmatprep.subr.mxu0 0.0
        %4548 = vmatpush2.msra.mxu0 0.0
        %4549 = vmatprep.subr.mxu0 0.0
        %4550 = vmatpush2.msra.mxu0 0.0
        %4551 = vmatprep.subr.mxu0 0.0
        %4552 = vmatpush2.msra.mxu0 0.0
        %4553 = vmatprep.subr.mxu0 0.0
        %4554 = vmatpush2.msra.mxu0 0.0
        %4555 = vmatprep.subr.mxu0 0.0
        %4556 = vmatpush2.msra.mxu0 0.0
        %4557 = vmatprep.subr.mxu0 0.0
        %4558 = vmatpush2.msra.mxu0 0.0
        %4559 = vmatprep.subr.mxu0 0.0
        %4560 = vmatpush2.msra.mxu0 0.0
        %4561 = vmatprep.subr.mxu0 0.0
        %4562 = vmatpush2.msra.mxu0 0.0
        %4563 = vmatprep.subr.mxu0 0.0
        %4564 = vmatpush2.msra.mxu0 0.0
        %4565 = vmatprep.subr.mxu0 0.0
        %4566 = vmatpush2.msra.mxu0 0.0
        %4567 = vmatprep.subr.mxu0 0.0
        %4568 = vmatpush2.msra.mxu0 0.0
        %4569 = vmatprep.subr.mxu0 0.0
        %4570 = vmatpush2.msra.mxu0 0.0
        %4571 = vmatprep.subr.mxu0 0.0
        %4572 = vmatpush2.msra.mxu0 0.0
        %4573 = vmatprep.subr.mxu0 0.0
        %4574 = vmatpush2.msra.mxu0 0.0
        %4575 = vmatprep.mubr.f32.mxu0 0.0
        %4576 = vmatmul.mubr.f32.gmra.mxu0 %v4509
        %v4577 = vpop.f32.mrf.mxu0
        %v4578 = vadd.f32 0.0, %v4577
        %v4579 = vpop.f32.mrf.mxu0
        %4580 = vdwg.mxu0
        %v4581 = vld [vmem:[%s597] sm:$0xf]
        %v4582 = vld [vmem:[%s597 + $0x4] sm:$0xf]
        %v4583 = vld [vmem:[%s597 + $0x8] sm:$0xf]
        %v4584 = vld [vmem:[%s597 + $0xc] sm:$0xf]
        %v4585 = vld [vmem:[%s597 + $0x10] sm:$0xf]
        %v4586 = vld [vmem:[%s597 + $0x14] sm:$0xf]
        %v4587 = vld [vmem:[%s597 + $0x18] sm:$0xf]
        %v4588 = vld [vmem:[%s597 + $0x1c] sm:$0xf]
        %v4589 = vld [vmem:[%s597 + $0x20] sm:$0xf]
        %v4590 = vld [vmem:[%s597 + $0x24] sm:$0xf]
        %v4591 = vld [vmem:[%s597 + $0x28] sm:$0xf]
        %v4592 = vld [vmem:[%s597 + $0x2c] sm:$0xf]
        %v4593 = vld [vmem:[%s597 + $0x30] sm:$0xf]
        %v4594 = vld [vmem:[%s597 + $0x34] sm:$0xf]
        %v4595 = vld [vmem:[%s597 + $0x38] sm:$0xf]
        %v4596 = vld [vmem:[%s597 + $0x3c] sm:$0xf]
        %v4598 = vsel %vm1942, %v3438, 0
        %vm4600 = vcmask 1043456
        %v4602 = vsel %vm4600, %v4581, 0
        %4604 = vmatprep.subr.mxu0 0.0
        %4605 = vmatpush1.msra.mxu0 0.0
        %4606 = vmatprep.subr.mxu0 0.0
        %4607 = vmatpush1.msra.mxu0 0.0
        %4608 = vmatprep.subr.mxu0 0.0
        %4609 = vmatpush1.msra.mxu0 0.0
        %4610 = vmatprep.subr.mxu0 0.0
        %4611 = vmatpush1.msra.mxu0 0.0
        %4612 = vmatprep.subr.mxu0 0.0
        %4613 = vmatpush1.msra.mxu0 0.0
        %4614 = vmatprep.subr.mxu0 0.0
        %4615 = vmatpush1.msra.mxu0 0.0
        %4616 = vmatprep.subr.mxu0 0.0
        %4617 = vmatpush1.msra.mxu0 0.0
        %4618 = vmatprep.subr.mxu0 0.0
        %4619 = vmatpush1.msra.mxu0 0.0
        %4620 = vmatprep.subr.mxu0 0.0
        %4621 = vmatpush1.msra.mxu0 0.0
        %4622 = vmatprep.subr.mxu0 0.0
        %4623 = vmatpush1.msra.mxu0 0.0
        %4624 = vmatprep.subr.mxu0 0.0
        %4625 = vmatpush1.msra.mxu0 0.0
        %4626 = vmatprep.subr.mxu0 0.0
        %4627 = vmatpush1.msra.mxu0 0.0
        %4628 = vmatprep.subr.mxu0 0.0
        %4629 = vmatpush1.msra.mxu0 0.0
        %4630 = vmatprep.subr.mxu0 0.0
        %4631 = vmatpush1.msra.mxu0 0.0
        %4632 = vmatprep.subr.mxu0 0.0
        %4633 = vmatpush1.msra.mxu0 0.0
        %4634 = vmatprep.subr.mxu0 0.0
        %4635 = vmatpush1.msra.mxu0 %v4602
        %4636 = vmatprep.subr.mxu0 0.0
        %4637 = vmatpush2.msra.mxu0 0.0
        %4638 = vmatprep.subr.mxu0 0.0
        %4639 = vmatpush2.msra.mxu0 0.0
        %4640 = vmatprep.subr.mxu0 0.0
        %4641 = vmatpush2.msra.mxu0 0.0
        %4642 = vmatprep.subr.mxu0 0.0
        %4643 = vmatpush2.msra.mxu0 0.0
        %4644 = vmatprep.subr.mxu0 0.0
        %4645 = vmatpush2.msra.mxu0 0.0
        %4646 = vmatprep.subr.mxu0 0.0
        %4647 = vmatpush2.msra.mxu0 0.0
        %4648 = vmatprep.subr.mxu0 0.0
        %4649 = vmatpush2.msra.mxu0 0.0
        %4650 = vmatprep.subr.mxu0 0.0
        %4651 = vmatpush2.msra.mxu0 0.0
        %4652 = vmatprep.subr.mxu0 0.0
        %4653 = vmatpush2.msra.mxu0 0.0
        %4654 = vmatprep.subr.mxu0 0.0
        %4655 = vmatpush2.msra.mxu0 0.0
        %4656 = vmatprep.subr.mxu0 0.0
        %4657 = vmatpush2.msra.mxu0 0.0
        %4658 = vmatprep.subr.mxu0 0.0
        %4659 = vmatpush2.msra.mxu0 0.0
        %4660 = vmatprep.subr.mxu0 0.0
        %4661 = vmatpush2.msra.mxu0 0.0
        %4662 = vmatprep.subr.mxu0 0.0
        %4663 = vmatpush2.msra.mxu0 0.0
        %4664 = vmatprep.subr.mxu0 0.0
        %4665 = vmatpush2.msra.mxu0 0.0
        %4666 = vmatprep.subr.mxu0 0.0
        %4667 = vmatpush2.msra.mxu0 0.0
        %4668 = vmatprep.mubr.f32.mxu0 0.0
        %4669 = vmatmul.mubr.f32.gmra.mxu0 %v4598
        %v4670 = vpop.f32.mrf.mxu0
        %v4671 = vadd.f32 0.0, %v4670
        %v4672 = vpop.f32.mrf.mxu0
        %4673 = vdwg.mxu0
        %v4675 = vsel %vm1942, %v3514, 0
        %v4678 = vsel %vm4600, %v4582, 0
        %4680 = vmatprep.subr.mxu0 0.0
        %4681 = vmatpush1.msra.mxu0 0.0
        %4682 = vmatprep.subr.mxu0 0.0
        %4683 = vmatpush1.msra.mxu0 0.0
        %4684 = vmatprep.subr.mxu0 0.0
        %4685 = vmatpush1.msra.mxu0 0.0
        %4686 = vmatprep.subr.mxu0 0.0
        %4687 = vmatpush1.msra.mxu0 0.0
        %4688 = vmatprep.subr.mxu0 0.0
        %4689 = vmatpush1.msra.mxu0 0.0
        %4690 = vmatprep.subr.mxu0 0.0
        %4691 = vmatpush1.msra.mxu0 0.0
        %4692 = vmatprep.subr.mxu0 0.0
        %4693 = vmatpush1.msra.mxu0 0.0
        %4694 = vmatprep.subr.mxu0 0.0
        %4695 = vmatpush1.msra.mxu0 0.0
        %4696 = vmatprep.subr.mxu0 0.0
        %4697 = vmatpush1.msra.mxu0 0.0
        %4698 = vmatprep.subr.mxu0 0.0
        %4699 = vmatpush1.msra.mxu0 0.0
        %4700 = vmatprep.subr.mxu0 0.0
        %4701 = vmatpush1.msra.mxu0 0.0
        %4702 = vmatprep.subr.mxu0 0.0
        %4703 = vmatpush1.msra.mxu0 0.0
        %4704 = vmatprep.subr.mxu0 0.0
        %4705 = vmatpush1.msra.mxu0 0.0
        %4706 = vmatprep.subr.mxu0 0.0
        %4707 = vmatpush1.msra.mxu0 0.0
        %4708 = vmatprep.subr.mxu0 0.0
        %4709 = vmatpush1.msra.mxu0 0.0
        %4710 = vmatprep.subr.mxu0 0.0
        %4711 = vmatpush1.msra.mxu0 %v4678
        %4712 = vmatprep.subr.mxu0 0.0
        %4713 = vmatpush2.msra.mxu0 0.0
        %4714 = vmatprep.subr.mxu0 0.0
        %4715 = vmatpush2.msra.mxu0 0.0
        %4716 = vmatprep.subr.mxu0 0.0
        %4717 = vmatpush2.msra.mxu0 0.0
        %4718 = vmatprep.subr.mxu0 0.0
        %4719 = vmatpush2.msra.mxu0 0.0
        %4720 = vmatprep.subr.mxu0 0.0
        %4721 = vmatpush2.msra.mxu0 0.0
        %4722 = vmatprep.subr.mxu0 0.0
        %4723 = vmatpush2.msra.mxu0 0.0
        %4724 = vmatprep.subr.mxu0 0.0
        %4725 = vmatpush2.msra.mxu0 0.0
        %4726 = vmatprep.subr.mxu0 0.0
        %4727 = vmatpush2.msra.mxu0 0.0
        %4728 = vmatprep.subr.mxu0 0.0
        %4729 = vmatpush2.msra.mxu0 0.0
        %4730 = vmatprep.subr.mxu0 0.0
        %4731 = vmatpush2.msra.mxu0 0.0
        %4732 = vmatprep.subr.mxu0 0.0
        %4733 = vmatpush2.msra.mxu0 0.0
        %4734 = vmatprep.subr.mxu0 0.0
        %4735 = vmatpush2.msra.mxu0 0.0
        %4736 = vmatprep.subr.mxu0 0.0
        %4737 = vmatpush2.msra.mxu0 0.0
        %4738 = vmatprep.subr.mxu0 0.0
        %4739 = vmatpush2.msra.mxu0 0.0
        %4740 = vmatprep.subr.mxu0 0.0
        %4741 = vmatpush2.msra.mxu0 0.0
        %4742 = vmatprep.subr.mxu0 0.0
        %4743 = vmatpush2.msra.mxu0 0.0
        %4744 = vmatprep.mubr.f32.mxu0 0.0
        %4745 = vmatmul.mubr.f32.gmra.mxu0 %v4675
        %v4746 = vpop.f32.mrf.mxu0
        %v4747 = vadd.f32 0.0, %v4746
        %v4748 = vpop.f32.mrf.mxu0
        %4749 = vdwg.mxu0
        %v4751 = vsel %vm1942, %v3590, 0
        %v4754 = vsel %vm4600, %v4583, 0
        %4756 = vmatprep.subr.mxu0 0.0
        %4757 = vmatpush1.msra.mxu0 0.0
        %4758 = vmatprep.subr.mxu0 0.0
        %4759 = vmatpush1.msra.mxu0 0.0
        %4760 = vmatprep.subr.mxu0 0.0
        %4761 = vmatpush1.msra.mxu0 0.0
        %4762 = vmatprep.subr.mxu0 0.0
        %4763 = vmatpush1.msra.mxu0 0.0
        %4764 = vmatprep.subr.mxu0 0.0
        %4765 = vmatpush1.msra.mxu0 0.0
        %4766 = vmatprep.subr.mxu0 0.0
        %4767 = vmatpush1.msra.mxu0 0.0
        %4768 = vmatprep.subr.mxu0 0.0
        %4769 = vmatpush1.msra.mxu0 0.0
        %4770 = vmatprep.subr.mxu0 0.0
        %4771 = vmatpush1.msra.mxu0 0.0
        %4772 = vmatprep.subr.mxu0 0.0
        %4773 = vmatpush1.msra.mxu0 0.0
        %4774 = vmatprep.subr.mxu0 0.0
        %4775 = vmatpush1.msra.mxu0 0.0
        %4776 = vmatprep.subr.mxu0 0.0
        %4777 = vmatpush1.msra.mxu0 0.0
        %4778 = vmatprep.subr.mxu0 0.0
        %4779 = vmatpush1.msra.mxu0 0.0
        %4780 = vmatprep.subr.mxu0 0.0
        %4781 = vmatpush1.msra.mxu0 0.0
        %4782 = vmatprep.subr.mxu0 0.0
        %4783 = vmatpush1.msra.mxu0 0.0
        %4784 = vmatprep.subr.mxu0 0.0
        %4785 = vmatpush1.msra.mxu0 0.0
        %4786 = vmatprep.subr.mxu0 0.0
        %4787 = vmatpush1.msra.mxu0 %v4754
        %4788 = vmatprep.subr.mxu0 0.0
        %4789 = vmatpush2.msra.mxu0 0.0
        %4790 = vmatprep.subr.mxu0 0.0
        %4791 = vmatpush2.msra.mxu0 0.0
        %4792 = vmatprep.subr.mxu0 0.0
        %4793 = vmatpush2.msra.mxu0 0.0
        %4794 = vmatprep.subr.mxu0 0.0
        %4795 = vmatpush2.msra.mxu0 0.0
        %4796 = vmatprep.subr.mxu0 0.0
        %4797 = vmatpush2.msra.mxu0 0.0
        %4798 = vmatprep.subr.mxu0 0.0
        %4799 = vmatpush2.msra.mxu0 0.0
        %4800 = vmatprep.subr.mxu0 0.0
        %4801 = vmatpush2.msra.mxu0 0.0
        %4802 = vmatprep.subr.mxu0 0.0
        %4803 = vmatpush2.msra.mxu0 0.0
        %4804 = vmatprep.subr.mxu0 0.0
        %4805 = vmatpush2.msra.mxu0 0.0
        %4806 = vmatprep.subr.mxu0 0.0
        %4807 = vmatpush2.msra.mxu0 0.0
        %4808 = vmatprep.subr.mxu0 0.0
        %4809 = vmatpush2.msra.mxu0 0.0
        %4810 = vmatprep.subr.mxu0 0.0
        %4811 = vmatpush2.msra.mxu0 0.0
        %4812 = vmatprep.subr.mxu0 0.0
        %4813 = vmatpush2.msra.mxu0 0.0
        %4814 = vmatprep.subr.mxu0 0.0
        %4815 = vmatpush2.msra.mxu0 0.0
        %4816 = vmatprep.subr.mxu0 0.0
        %4817 = vmatpush2.msra.mxu0 0.0
        %4818 = vmatprep.subr.mxu0 0.0
        %4819 = vmatpush2.msra.mxu0 0.0
        %4820 = vmatprep.mubr.f32.mxu0 0.0
        %4821 = vmatmul.mubr.f32.gmra.mxu0 %v4751
        %v4822 = vpop.f32.mrf.mxu0
        %v4823 = vadd.f32 0.0, %v4822
        %v4824 = vpop.f32.mrf.mxu0
        %4825 = vdwg.mxu0
        %v4827 = vsel %vm1942, %v3666, 0
        %v4830 = vsel %vm4600, %v4584, 0
        %4832 = vmatprep.subr.mxu0 0.0
        %4833 = vmatpush1.msra.mxu0 0.0
        %4834 = vmatprep.subr.mxu0 0.0
        %4835 = vmatpush1.msra.mxu0 0.0
        %4836 = vmatprep.subr.mxu0 0.0
        %4837 = vmatpush1.msra.mxu0 0.0
        %4838 = vmatprep.subr.mxu0 0.0
        %4839 = vmatpush1.msra.mxu0 0.0
        %4840 = vmatprep.subr.mxu0 0.0
        %4841 = vmatpush1.msra.mxu0 0.0
        %4842 = vmatprep.subr.mxu0 0.0
        %4843 = vmatpush1.msra.mxu0 0.0
        %4844 = vmatprep.subr.mxu0 0.0
        %4845 = vmatpush1.msra.mxu0 0.0
        %4846 = vmatprep.subr.mxu0 0.0
        %4847 = vmatpush1.msra.mxu0 0.0
        %4848 = vmatprep.subr.mxu0 0.0
        %4849 = vmatpush1.msra.mxu0 0.0
        %4850 = vmatprep.subr.mxu0 0.0
        %4851 = vmatpush1.msra.mxu0 0.0
        %4852 = vmatprep.subr.mxu0 0.0
        %4853 = vmatpush1.msra.mxu0 0.0
        %4854 = vmatprep.subr.mxu0 0.0
        %4855 = vmatpush1.msra.mxu0 0.0
        %4856 = vmatprep.subr.mxu0 0.0
        %4857 = vmatpush1.msra.mxu0 0.0
        %4858 = vmatprep.subr.mxu0 0.0
        %4859 = vmatpush1.msra.mxu0 0.0
        %4860 = vmatprep.subr.mxu0 0.0
        %4861 = vmatpush1.msra.mxu0 0.0
        %4862 = vmatprep.subr.mxu0 0.0
        %4863 = vmatpush1.msra.mxu0 %v4830
        %4864 = vmatprep.subr.mxu0 0.0
        %4865 = vmatpush2.msra.mxu0 0.0
        %4866 = vmatprep.subr.mxu0 0.0
        %4867 = vmatpush2.msra.mxu0 0.0
        %4868 = vmatprep.subr.mxu0 0.0
        %4869 = vmatpush2.msra.mxu0 0.0
        %4870 = vmatprep.subr.mxu0 0.0
        %4871 = vmatpush2.msra.mxu0 0.0
        %4872 = vmatprep.subr.mxu0 0.0
        %4873 = vmatpush2.msra.mxu0 0.0
        %4874 = vmatprep.subr.mxu0 0.0
        %4875 = vmatpush2.msra.mxu0 0.0
        %4876 = vmatprep.subr.mxu0 0.0
        %4877 = vmatpush2.msra.mxu0 0.0
        %4878 = vmatprep.subr.mxu0 0.0
        %4879 = vmatpush2.msra.mxu0 0.0
        %4880 = vmatprep.subr.mxu0 0.0
        %4881 = vmatpush2.msra.mxu0 0.0
        %4882 = vmatprep.subr.mxu0 0.0
        %4883 = vmatpush2.msra.mxu0 0.0
        %4884 = vmatprep.subr.mxu0 0.0
        %4885 = vmatpush2.msra.mxu0 0.0
        %4886 = vmatprep.subr.mxu0 0.0
        %4887 = vmatpush2.msra.mxu0 0.0
        %4888 = vmatprep.subr.mxu0 0.0
        %4889 = vmatpush2.msra.mxu0 0.0
        %4890 = vmatprep.subr.mxu0 0.0
        %4891 = vmatpush2.msra.mxu0 0.0
        %4892 = vmatprep.subr.mxu0 0.0
        %4893 = vmatpush2.msra.mxu0 0.0
        %4894 = vmatprep.subr.mxu0 0.0
        %4895 = vmatpush2.msra.mxu0 0.0
        %4896 = vmatprep.mubr.f32.mxu0 0.0
        %4897 = vmatmul.mubr.f32.gmra.mxu0 %v4827
        %v4898 = vpop.f32.mrf.mxu0
        %v4899 = vadd.f32 0.0, %v4898
        %v4900 = vpop.f32.mrf.mxu0
        %4901 = vdwg.mxu0
        %v4903 = vsel %vm1942, %v3742, 0
        %v4906 = vsel %vm4600, %v4585, 0
        %4908 = vmatprep.subr.mxu0 0.0
        %4909 = vmatpush1.msra.mxu0 0.0
        %4910 = vmatprep.subr.mxu0 0.0
        %4911 = vmatpush1.msra.mxu0 0.0
        %4912 = vmatprep.subr.mxu0 0.0
        %4913 = vmatpush1.msra.mxu0 0.0
        %4914 = vmatprep.subr.mxu0 0.0
        %4915 = vmatpush1.msra.mxu0 0.0
        %4916 = vmatprep.subr.mxu0 0.0
        %4917 = vmatpush1.msra.mxu0 0.0
        %4918 = vmatprep.subr.mxu0 0.0
        %4919 = vmatpush1.msra.mxu0 0.0
        %4920 = vmatprep.subr.mxu0 0.0
        %4921 = vmatpush1.msra.mxu0 0.0
        %4922 = vmatprep.subr.mxu0 0.0
        %4923 = vmatpush1.msra.mxu0 0.0
        %4924 = vmatprep.subr.mxu0 0.0
        %4925 = vmatpush1.msra.mxu0 0.0
        %4926 = vmatprep.subr.mxu0 0.0
        %4927 = vmatpush1.msra.mxu0 0.0
        %4928 = vmatprep.subr.mxu0 0.0
        %4929 = vmatpush1.msra.mxu0 0.0
        %4930 = vmatprep.subr.mxu0 0.0
        %4931 = vmatpush1.msra.mxu0 0.0
        %4932 = vmatprep.subr.mxu0 0.0
        %4933 = vmatpush1.msra.mxu0 0.0
        %4934 = vmatprep.subr.mxu0 0.0
        %4935 = vmatpush1.msra.mxu0 0.0
        %4936 = vmatprep.subr.mxu0 0.0
        %4937 = vmatpush1.msra.mxu0 0.0
        %4938 = vmatprep.subr.mxu0 0.0
        %4939 = vmatpush1.msra.mxu0 %v4906
        %4940 = vmatprep.subr.mxu0 0.0
        %4941 = vmatpush2.msra.mxu0 0.0
        %4942 = vmatprep.subr.mxu0 0.0
        %4943 = vmatpush2.msra.mxu0 0.0
        %4944 = vmatprep.subr.mxu0 0.0
        %4945 = vmatpush2.msra.mxu0 0.0
        %4946 = vmatprep.subr.mxu0 0.0
        %4947 = vmatpush2.msra.mxu0 0.0
        %4948 = vmatprep.subr.mxu0 0.0
        %4949 = vmatpush2.msra.mxu0 0.0
        %4950 = vmatprep.subr.mxu0 0.0
        %4951 = vmatpush2.msra.mxu0 0.0
        %4952 = vmatprep.subr.mxu0 0.0
        %4953 = vmatpush2.msra.mxu0 0.0
        %4954 = vmatprep.subr.mxu0 0.0
        %4955 = vmatpush2.msra.mxu0 0.0
        %4956 = vmatprep.subr.mxu0 0.0
        %4957 = vmatpush2.msra.mxu0 0.0
        %4958 = vmatprep.subr.mxu0 0.0
        %4959 = vmatpush2.msra.mxu0 0.0
        %4960 = vmatprep.subr.mxu0 0.0
        %4961 = vmatpush2.msra.mxu0 0.0
        %4962 = vmatprep.subr.mxu0 0.0
        %4963 = vmatpush2.msra.mxu0 0.0
        %4964 = vmatprep.subr.mxu0 0.0
        %4965 = vmatpush2.msra.mxu0 0.0
        %4966 = vmatprep.subr.mxu0 0.0
        %4967 = vmatpush2.msra.mxu0 0.0
        %4968 = vmatprep.subr.mxu0 0.0
        %4969 = vmatpush2.msra.mxu0 0.0
        %4970 = vmatprep.subr.mxu0 0.0
        %4971 = vmatpush2.msra.mxu0 0.0
        %4972 = vmatprep.mubr.f32.mxu0 0.0
        %4973 = vmatmul.mubr.f32.gmra.mxu0 %v4903
        %v4974 = vpop.f32.mrf.mxu0
        %v4975 = vadd.f32 0.0, %v4974
        %v4976 = vpop.f32.mrf.mxu0
        %4977 = vdwg.mxu0
        %v4979 = vsel %vm1942, %v3818, 0
        %v4982 = vsel %vm4600, %v4586, 0
        %4984 = vmatprep.subr.mxu0 0.0
        %4985 = vmatpush1.msra.mxu0 0.0
        %4986 = vmatprep.subr.mxu0 0.0
        %4987 = vmatpush1.msra.mxu0 0.0
        %4988 = vmatprep.subr.mxu0 0.0
        %4989 = vmatpush1.msra.mxu0 0.0
        %4990 = vmatprep.subr.mxu0 0.0
        %4991 = vmatpush1.msra.mxu0 0.0
        %4992 = vmatprep.subr.mxu0 0.0
        %4993 = vmatpush1.msra.mxu0 0.0
        %4994 = vmatprep.subr.mxu0 0.0
        %4995 = vmatpush1.msra.mxu0 0.0
        %4996 = vmatprep.subr.mxu0 0.0
        %4997 = vmatpush1.msra.mxu0 0.0
        %4998 = vmatprep.subr.mxu0 0.0
        %4999 = vmatpush1.msra.mxu0 0.0
        %5000 = vmatprep.subr.mxu0 0.0
        %5001 = vmatpush1.msra.mxu0 0.0
        %5002 = vmatprep.subr.mxu0 0.0
        %5003 = vmatpush1.msra.mxu0 0.0
        %5004 = vmatprep.subr.mxu0 0.0
        %5005 = vmatpush1.msra.mxu0 0.0
        %5006 = vmatprep.subr.mxu0 0.0
        %5007 = vmatpush1.msra.mxu0 0.0
        %5008 = vmatprep.subr.mxu0 0.0
        %5009 = vmatpush1.msra.mxu0 0.0
        %5010 = vmatprep.subr.mxu0 0.0
        %5011 = vmatpush1.msra.mxu0 0.0
        %5012 = vmatprep.subr.mxu0 0.0
        %5013 = vmatpush1.msra.mxu0 0.0
        %5014 = vmatprep.subr.mxu0 0.0
        %5015 = vmatpush1.msra.mxu0 %v4982
        %5016 = vmatprep.subr.mxu0 0.0
        %5017 = vmatpush2.msra.mxu0 0.0
        %5018 = vmatprep.subr.mxu0 0.0
        %5019 = vmatpush2.msra.mxu0 0.0
        %5020 = vmatprep.subr.mxu0 0.0
        %5021 = vmatpush2.msra.mxu0 0.0
        %5022 = vmatprep.subr.mxu0 0.0
        %5023 = vmatpush2.msra.mxu0 0.0
        %5024 = vmatprep.subr.mxu0 0.0
        %5025 = vmatpush2.msra.mxu0 0.0
        %5026 = vmatprep.subr.mxu0 0.0
        %5027 = vmatpush2.msra.mxu0 0.0
        %5028 = vmatprep.subr.mxu0 0.0
        %5029 = vmatpush2.msra.mxu0 0.0
        %5030 = vmatprep.subr.mxu0 0.0
        %5031 = vmatpush2.msra.mxu0 0.0
        %5032 = vmatprep.subr.mxu0 0.0
        %5033 = vmatpush2.msra.mxu0 0.0
        %5034 = vmatprep.subr.mxu0 0.0
        %5035 = vmatpush2.msra.mxu0 0.0
        %5036 = vmatprep.subr.mxu0 0.0
        %5037 = vmatpush2.msra.mxu0 0.0
        %5038 = vmatprep.subr.mxu0 0.0
        %5039 = vmatpush2.msra.mxu0 0.0
        %5040 = vmatprep.subr.mxu0 0.0
        %5041 = vmatpush2.msra.mxu0 0.0
        %5042 = vmatprep.subr.mxu0 0.0
        %5043 = vmatpush2.msra.mxu0 0.0
        %5044 = vmatprep.subr.mxu0 0.0
        %5045 = vmatpush2.msra.mxu0 0.0
        %5046 = vmatprep.subr.mxu0 0.0
        %5047 = vmatpush2.msra.mxu0 0.0
        %5048 = vmatprep.mubr.f32.mxu0 0.0
        %5049 = vmatmul.mubr.f32.gmra.mxu0 %v4979
        %v5050 = vpop.f32.mrf.mxu0
        %v5051 = vadd.f32 0.0, %v5050
        %v5052 = vpop.f32.mrf.mxu0
        %5053 = vdwg.mxu0
        %v5055 = vsel %vm1942, %v3894, 0
        %v5058 = vsel %vm4600, %v4587, 0
        %5060 = vmatprep.subr.mxu0 0.0
        %5061 = vmatpush1.msra.mxu0 0.0
        %5062 = vmatprep.subr.mxu0 0.0
        %5063 = vmatpush1.msra.mxu0 0.0
        %5064 = vmatprep.subr.mxu0 0.0
        %5065 = vmatpush1.msra.mxu0 0.0
        %5066 = vmatprep.subr.mxu0 0.0
        %5067 = vmatpush1.msra.mxu0 0.0
        %5068 = vmatprep.subr.mxu0 0.0
        %5069 = vmatpush1.msra.mxu0 0.0
        %5070 = vmatprep.subr.mxu0 0.0
        %5071 = vmatpush1.msra.mxu0 0.0
        %5072 = vmatprep.subr.mxu0 0.0
        %5073 = vmatpush1.msra.mxu0 0.0
        %5074 = vmatprep.subr.mxu0 0.0
        %5075 = vmatpush1.msra.mxu0 0.0
        %5076 = vmatprep.subr.mxu0 0.0
        %5077 = vmatpush1.msra.mxu0 0.0
        %5078 = vmatprep.subr.mxu0 0.0
        %5079 = vmatpush1.msra.mxu0 0.0
        %5080 = vmatprep.subr.mxu0 0.0
        %5081 = vmatpush1.msra.mxu0 0.0
        %5082 = vmatprep.subr.mxu0 0.0
        %5083 = vmatpush1.msra.mxu0 0.0
        %5084 = vmatprep.subr.mxu0 0.0
        %5085 = vmatpush1.msra.mxu0 0.0
        %5086 = vmatprep.subr.mxu0 0.0
        %5087 = vmatpush1.msra.mxu0 0.0
        %5088 = vmatprep.subr.mxu0 0.0
        %5089 = vmatpush1.msra.mxu0 0.0
        %5090 = vmatprep.subr.mxu0 0.0
        %5091 = vmatpush1.msra.mxu0 %v5058
        %5092 = vmatprep.subr.mxu0 0.0
        %5093 = vmatpush2.msra.mxu0 0.0
        %5094 = vmatprep.subr.mxu0 0.0
        %5095 = vmatpush2.msra.mxu0 0.0
        %5096 = vmatprep.subr.mxu0 0.0
        %5097 = vmatpush2.msra.mxu0 0.0
        %5098 = vmatprep.subr.mxu0 0.0
        %5099 = vmatpush2.msra.mxu0 0.0
        %5100 = vmatprep.subr.mxu0 0.0
        %5101 = vmatpush2.msra.mxu0 0.0
        %5102 = vmatprep.subr.mxu0 0.0
        %5103 = vmatpush2.msra.mxu0 0.0
        %5104 = vmatprep.subr.mxu0 0.0
        %5105 = vmatpush2.msra.mxu0 0.0
        %5106 = vmatprep.subr.mxu0 0.0
        %5107 = vmatpush2.msra.mxu0 0.0
        %5108 = vmatprep.subr.mxu0 0.0
        %5109 = vmatpush2.msra.mxu0 0.0
        %5110 = vmatprep.subr.mxu0 0.0
        %5111 = vmatpush2.msra.mxu0 0.0
        %5112 = vmatprep.subr.mxu0 0.0
        %5113 = vmatpush2.msra.mxu0 0.0
        %5114 = vmatprep.subr.mxu0 0.0
        %5115 = vmatpush2.msra.mxu0 0.0
        %5116 = vmatprep.subr.mxu0 0.0
        %5117 = vmatpush2.msra.mxu0 0.0
        %5118 = vmatprep.subr.mxu0 0.0
        %5119 = vmatpush2.msra.mxu0 0.0
        %5120 = vmatprep.subr.mxu0 0.0
        %5121 = vmatpush2.msra.mxu0 0.0
        %5122 = vmatprep.subr.mxu0 0.0
        %5123 = vmatpush2.msra.mxu0 0.0
        %5124 = vmatprep.mubr.f32.mxu0 0.0
        %5125 = vmatmul.mubr.f32.gmra.mxu0 %v5055
        %v5126 = vpop.f32.mrf.mxu0
        %v5127 = vadd.f32 0.0, %v5126
        %v5128 = vpop.f32.mrf.mxu0
        %5129 = vdwg.mxu0
        %v5131 = vsel %vm1942, %v3970, 0
        %v5134 = vsel %vm4600, %v4588, 0
        %5136 = vmatprep.subr.mxu0 0.0
        %5137 = vmatpush1.msra.mxu0 0.0
        %5138 = vmatprep.subr.mxu0 0.0
        %5139 = vmatpush1.msra.mxu0 0.0
        %5140 = vmatprep.subr.mxu0 0.0
        %5141 = vmatpush1.msra.mxu0 0.0
        %5142 = vmatprep.subr.mxu0 0.0
        %5143 = vmatpush1.msra.mxu0 0.0
        %5144 = vmatprep.subr.mxu0 0.0
        %5145 = vmatpush1.msra.mxu0 0.0
        %5146 = vmatprep.subr.mxu0 0.0
        %5147 = vmatpush1.msra.mxu0 0.0
        %5148 = vmatprep.subr.mxu0 0.0
        %5149 = vmatpush1.msra.mxu0 0.0
        %5150 = vmatprep.subr.mxu0 0.0
        %5151 = vmatpush1.msra.mxu0 0.0
        %5152 = vmatprep.subr.mxu0 0.0
        %5153 = vmatpush1.msra.mxu0 0.0
        %5154 = vmatprep.subr.mxu0 0.0
        %5155 = vmatpush1.msra.mxu0 0.0
        %5156 = vmatprep.subr.mxu0 0.0
        %5157 = vmatpush1.msra.mxu0 0.0
        %5158 = vmatprep.subr.mxu0 0.0
        %5159 = vmatpush1.msra.mxu0 0.0
        %5160 = vmatprep.subr.mxu0 0.0
        %5161 = vmatpush1.msra.mxu0 0.0
        %5162 = vmatprep.subr.mxu0 0.0
        %5163 = vmatpush1.msra.mxu0 0.0
        %5164 = vmatprep.subr.mxu0 0.0
        %5165 = vmatpush1.msra.mxu0 0.0
        %5166 = vmatprep.subr.mxu0 0.0
        %5167 = vmatpush1.msra.mxu0 %v5134
        %5168 = vmatprep.subr.mxu0 0.0
        %5169 = vmatpush2.msra.mxu0 0.0
        %5170 = vmatprep.subr.mxu0 0.0
        %5171 = vmatpush2.msra.mxu0 0.0
        %5172 = vmatprep.subr.mxu0 0.0
        %5173 = vmatpush2.msra.mxu0 0.0
        %5174 = vmatprep.subr.mxu0 0.0
        %5175 = vmatpush2.msra.mxu0 0.0
        %5176 = vmatprep.subr.mxu0 0.0
        %5177 = vmatpush2.msra.mxu0 0.0
        %5178 = vmatprep.subr.mxu0 0.0
        %5179 = vmatpush2.msra.mxu0 0.0
        %5180 = vmatprep.subr.mxu0 0.0
        %5181 = vmatpush2.msra.mxu0 0.0
        %5182 = vmatprep.subr.mxu0 0.0
        %5183 = vmatpush2.msra.mxu0 0.0
        %5184 = vmatprep.subr.mxu0 0.0
        %5185 = vmatpush2.msra.mxu0 0.0
        %5186 = vmatprep.subr.mxu0 0.0
        %5187 = vmatpush2.msra.mxu0 0.0
        %5188 = vmatprep.subr.mxu0 0.0
        %5189 = vmatpush2.msra.mxu0 0.0
        %5190 = vmatprep.subr.mxu0 0.0
        %5191 = vmatpush2.msra.mxu0 0.0
        %5192 = vmatprep.subr.mxu0 0.0
        %5193 = vmatpush2.msra.mxu0 0.0
        %5194 = vmatprep.subr.mxu0 0.0
        %5195 = vmatpush2.msra.mxu0 0.0
        %5196 = vmatprep.subr.mxu0 0.0
        %5197 = vmatpush2.msra.mxu0 0.0
        %5198 = vmatprep.subr.mxu0 0.0
        %5199 = vmatpush2.msra.mxu0 0.0
        %5200 = vmatprep.mubr.f32.mxu0 0.0
        %5201 = vmatmul.mubr.f32.gmra.mxu0 %v5131
        %v5202 = vpop.f32.mrf.mxu0
        %v5203 = vadd.f32 0.0, %v5202
        %v5204 = vpop.f32.mrf.mxu0
        %5205 = vdwg.mxu0
        %v5207 = vsel %vm1942, %v4046, 0
        %v5210 = vsel %vm4600, %v4589, 0
        %5212 = vmatprep.subr.mxu0 0.0
        %5213 = vmatpush1.msra.mxu0 0.0
        %5214 = vmatprep.subr.mxu0 0.0
        %5215 = vmatpush1.msra.mxu0 0.0
        %5216 = vmatprep.subr.mxu0 0.0
        %5217 = vmatpush1.msra.mxu0 0.0
        %5218 = vmatprep.subr.mxu0 0.0
        %5219 = vmatpush1.msra.mxu0 0.0
        %5220 = vmatprep.subr.mxu0 0.0
        %5221 = vmatpush1.msra.mxu0 0.0
        %5222 = vmatprep.subr.mxu0 0.0
        %5223 = vmatpush1.msra.mxu0 0.0
        %5224 = vmatprep.subr.mxu0 0.0
        %5225 = vmatpush1.msra.mxu0 0.0
        %5226 = vmatprep.subr.mxu0 0.0
        %5227 = vmatpush1.msra.mxu0 0.0
        %5228 = vmatprep.subr.mxu0 0.0
        %5229 = vmatpush1.msra.mxu0 0.0
        %5230 = vmatprep.subr.mxu0 0.0
        %5231 = vmatpush1.msra.mxu0 0.0
        %5232 = vmatprep.subr.mxu0 0.0
        %5233 = vmatpush1.msra.mxu0 0.0
        %5234 = vmatprep.subr.mxu0 0.0
        %5235 = vmatpush1.msra.mxu0 0.0
        %5236 = vmatprep.subr.mxu0 0.0
        %5237 = vmatpush1.msra.mxu0 0.0
        %5238 = vmatprep.subr.mxu0 0.0
        %5239 = vmatpush1.msra.mxu0 0.0
        %5240 = vmatprep.subr.mxu0 0.0
        %5241 = vmatpush1.msra.mxu0 0.0
        %5242 = vmatprep.subr.mxu0 0.0
        %5243 = vmatpush1.msra.mxu0 %v5210
        %5244 = vmatprep.subr.mxu0 0.0
        %5245 = vmatpush2.msra.mxu0 0.0
        %5246 = vmatprep.subr.mxu0 0.0
        %5247 = vmatpush2.msra.mxu0 0.0
        %5248 = vmatprep.subr.mxu0 0.0
        %5249 = vmatpush2.msra.mxu0 0.0
        %5250 = vmatprep.subr.mxu0 0.0
        %5251 = vmatpush2.msra.mxu0 0.0
        %5252 = vmatprep.subr.mxu0 0.0
        %5253 = vmatpush2.msra.mxu0 0.0
        %5254 = vmatprep.subr.mxu0 0.0
        %5255 = vmatpush2.msra.mxu0 0.0
        %5256 = vmatprep.subr.mxu0 0.0
        %5257 = vmatpush2.msra.mxu0 0.0
        %5258 = vmatprep.subr.mxu0 0.0
        %5259 = vmatpush2.msra.mxu0 0.0
        %5260 = vmatprep.subr.mxu0 0.0
        %5261 = vmatpush2.msra.mxu0 0.0
        %5262 = vmatprep.subr.mxu0 0.0
        %5263 = vmatpush2.msra.mxu0 0.0
        %5264 = vmatprep.subr.mxu0 0.0
        %5265 = vmatpush2.msra.mxu0 0.0
        %5266 = vmatprep.subr.mxu0 0.0
        %5267 = vmatpush2.msra.mxu0 0.0
        %5268 = vmatprep.subr.mxu0 0.0
        %5269 = vmatpush2.msra.mxu0 0.0
        %5270 = vmatprep.subr.mxu0 0.0
        %5271 = vmatpush2.msra.mxu0 0.0
        %5272 = vmatprep.subr.mxu0 0.0
        %5273 = vmatpush2.msra.mxu0 0.0
        %5274 = vmatprep.subr.mxu0 0.0
        %5275 = vmatpush2.msra.mxu0 0.0
        %5276 = vmatprep.mubr.f32.mxu0 0.0
        %5277 = vmatmul.mubr.f32.gmra.mxu0 %v5207
        %v5278 = vpop.f32.mrf.mxu0
        %v5279 = vadd.f32 0.0, %v5278
        %v5280 = vpop.f32.mrf.mxu0
        %5281 = vdwg.mxu0
        %v5283 = vsel %vm1942, %v4122, 0
        %v5286 = vsel %vm4600, %v4590, 0
        %5288 = vmatprep.subr.mxu0 0.0
        %5289 = vmatpush1.msra.mxu0 0.0
        %5290 = vmatprep.subr.mxu0 0.0
        %5291 = vmatpush1.msra.mxu0 0.0
        %5292 = vmatprep.subr.mxu0 0.0
        %5293 = vmatpush1.msra.mxu0 0.0
        %5294 = vmatprep.subr.mxu0 0.0
        %5295 = vmatpush1.msra.mxu0 0.0
        %5296 = vmatprep.subr.mxu0 0.0
        %5297 = vmatpush1.msra.mxu0 0.0
        %5298 = vmatprep.subr.mxu0 0.0
        %5299 = vmatpush1.msra.mxu0 0.0
        %5300 = vmatprep.subr.mxu0 0.0
        %5301 = vmatpush1.msra.mxu0 0.0
        %5302 = vmatprep.subr.mxu0 0.0
        %5303 = vmatpush1.msra.mxu0 0.0
        %5304 = vmatprep.subr.mxu0 0.0
        %5305 = vmatpush1.msra.mxu0 0.0
        %5306 = vmatprep.subr.mxu0 0.0
        %5307 = vmatpush1.msra.mxu0 0.0
        %5308 = vmatprep.subr.mxu0 0.0
        %5309 = vmatpush1.msra.mxu0 0.0
        %5310 = vmatprep.subr.mxu0 0.0
        %5311 = vmatpush1.msra.mxu0 0.0
        %5312 = vmatprep.subr.mxu0 0.0
        %5313 = vmatpush1.msra.mxu0 0.0
        %5314 = vmatprep.subr.mxu0 0.0
        %5315 = vmatpush1.msra.mxu0 0.0
        %5316 = vmatprep.subr.mxu0 0.0
        %5317 = vmatpush1.msra.mxu0 0.0
        %5318 = vmatprep.subr.mxu0 0.0
        %5319 = vmatpush1.msra.mxu0 %v5286
        %5320 = vmatprep.subr.mxu0 0.0
        %5321 = vmatpush2.msra.mxu0 0.0
        %5322 = vmatprep.subr.mxu0 0.0
        %5323 = vmatpush2.msra.mxu0 0.0
        %5324 = vmatprep.subr.mxu0 0.0
        %5325 = vmatpush2.msra.mxu0 0.0
        %5326 = vmatprep.subr.mxu0 0.0
        %5327 = vmatpush2.msra.mxu0 0.0
        %5328 = vmatprep.subr.mxu0 0.0
        %5329 = vmatpush2.msra.mxu0 0.0
        %5330 = vmatprep.subr.mxu0 0.0
        %5331 = vmatpush2.msra.mxu0 0.0
        %5332 = vmatprep.subr.mxu0 0.0
        %5333 = vmatpush2.msra.mxu0 0.0
        %5334 = vmatprep.subr.mxu0 0.0
        %5335 = vmatpush2.msra.mxu0 0.0
        %5336 = vmatprep.subr.mxu0 0.0
        %5337 = vmatpush2.msra.mxu0 0.0
        %5338 = vmatprep.subr.mxu0 0.0
        %5339 = vmatpush2.msra.mxu0 0.0
        %5340 = vmatprep.subr.mxu0 0.0
        %5341 = vmatpush2.msra.mxu0 0.0
        %5342 = vmatprep.subr.mxu0 0.0
        %5343 = vmatpush2.msra.mxu0 0.0
        %5344 = vmatprep.subr.mxu0 0.0
        %5345 = vmatpush2.msra.mxu0 0.0
        %5346 = vmatprep.subr.mxu0 0.0
        %5347 = vmatpush2.msra.mxu0 0.0
        %5348 = vmatprep.subr.mxu0 0.0
        %5349 = vmatpush2.msra.mxu0 0.0
        %5350 = vmatprep.subr.mxu0 0.0
        %5351 = vmatpush2.msra.mxu0 0.0
        %5352 = vmatprep.mubr.f32.mxu0 0.0
        %5353 = vmatmul.mubr.f32.gmra.mxu0 %v5283
        %v5354 = vpop.f32.mrf.mxu0
        %v5355 = vadd.f32 0.0, %v5354
        %v5356 = vpop.f32.mrf.mxu0
        %5357 = vdwg.mxu0
        %v5359 = vsel %vm1942, %v4198, 0
        %v5362 = vsel %vm4600, %v4591, 0
        %5364 = vmatprep.subr.mxu0 0.0
        %5365 = vmatpush1.msra.mxu0 0.0
        %5366 = vmatprep.subr.mxu0 0.0
        %5367 = vmatpush1.msra.mxu0 0.0
        %5368 = vmatprep.subr.mxu0 0.0
        %5369 = vmatpush1.msra.mxu0 0.0
        %5370 = vmatprep.subr.mxu0 0.0
        %5371 = vmatpush1.msra.mxu0 0.0
        %5372 = vmatprep.subr.mxu0 0.0
        %5373 = vmatpush1.msra.mxu0 0.0
        %5374 = vmatprep.subr.mxu0 0.0
        %5375 = vmatpush1.msra.mxu0 0.0
        %5376 = vmatprep.subr.mxu0 0.0
        %5377 = vmatpush1.msra.mxu0 0.0
        %5378 = vmatprep.subr.mxu0 0.0
        %5379 = vmatpush1.msra.mxu0 0.0
        %5380 = vmatprep.subr.mxu0 0.0
        %5381 = vmatpush1.msra.mxu0 0.0
        %5382 = vmatprep.subr.mxu0 0.0
        %5383 = vmatpush1.msra.mxu0 0.0
        %5384 = vmatprep.subr.mxu0 0.0
        %5385 = vmatpush1.msra.mxu0 0.0
        %5386 = vmatprep.subr.mxu0 0.0
        %5387 = vmatpush1.msra.mxu0 0.0
        %5388 = vmatprep.subr.mxu0 0.0
        %5389 = vmatpush1.msra.mxu0 0.0
        %5390 = vmatprep.subr.mxu0 0.0
        %5391 = vmatpush1.msra.mxu0 0.0
        %5392 = vmatprep.subr.mxu0 0.0
        %5393 = vmatpush1.msra.mxu0 0.0
        %5394 = vmatprep.subr.mxu0 0.0
        %5395 = vmatpush1.msra.mxu0 %v5362
        %5396 = vmatprep.subr.mxu0 0.0
        %5397 = vmatpush2.msra.mxu0 0.0
        %5398 = vmatprep.subr.mxu0 0.0
        %5399 = vmatpush2.msra.mxu0 0.0
        %5400 = vmatprep.subr.mxu0 0.0
        %5401 = vmatpush2.msra.mxu0 0.0
        %5402 = vmatprep.subr.mxu0 0.0
        %5403 = vmatpush2.msra.mxu0 0.0
        %5404 = vmatprep.subr.mxu0 0.0
        %5405 = vmatpush2.msra.mxu0 0.0
        %5406 = vmatprep.subr.mxu0 0.0
        %5407 = vmatpush2.msra.mxu0 0.0
        %5408 = vmatprep.subr.mxu0 0.0
        %5409 = vmatpush2.msra.mxu0 0.0
        %5410 = vmatprep.subr.mxu0 0.0
        %5411 = vmatpush2.msra.mxu0 0.0
        %5412 = vmatprep.subr.mxu0 0.0
        %5413 = vmatpush2.msra.mxu0 0.0
        %5414 = vmatprep.subr.mxu0 0.0
        %5415 = vmatpush2.msra.mxu0 0.0
        %5416 = vmatprep.subr.mxu0 0.0
        %5417 = vmatpush2.msra.mxu0 0.0
        %5418 = vmatprep.subr.mxu0 0.0
        %5419 = vmatpush2.msra.mxu0 0.0
        %5420 = vmatprep.subr.mxu0 0.0
        %5421 = vmatpush2.msra.mxu0 0.0
        %5422 = vmatprep.subr.mxu0 0.0
        %5423 = vmatpush2.msra.mxu0 0.0
        %5424 = vmatprep.subr.mxu0 0.0
        %5425 = vmatpush2.msra.mxu0 0.0
        %5426 = vmatprep.subr.mxu0 0.0
        %5427 = vmatpush2.msra.mxu0 0.0
        %5428 = vmatprep.mubr.f32.mxu0 0.0
        %5429 = vmatmul.mubr.f32.gmra.mxu0 %v5359
        %v5430 = vpop.f32.mrf.mxu0
        %v5431 = vadd.f32 0.0, %v5430
        %v5432 = vpop.f32.mrf.mxu0
        %5433 = vdwg.mxu0
        %v5435 = vsel %vm1942, %v4274, 0
        %v5438 = vsel %vm4600, %v4592, 0
        %5440 = vmatprep.subr.mxu0 0.0
        %5441 = vmatpush1.msra.mxu0 0.0
        %5442 = vmatprep.subr.mxu0 0.0
        %5443 = vmatpush1.msra.mxu0 0.0
        %5444 = vmatprep.subr.mxu0 0.0
        %5445 = vmatpush1.msra.mxu0 0.0
        %5446 = vmatprep.subr.mxu0 0.0
        %5447 = vmatpush1.msra.mxu0 0.0
        %5448 = vmatprep.subr.mxu0 0.0
        %5449 = vmatpush1.msra.mxu0 0.0
        %5450 = vmatprep.subr.mxu0 0.0
        %5451 = vmatpush1.msra.mxu0 0.0
        %5452 = vmatprep.subr.mxu0 0.0
        %5453 = vmatpush1.msra.mxu0 0.0
        %5454 = vmatprep.subr.mxu0 0.0
        %5455 = vmatpush1.msra.mxu0 0.0
        %5456 = vmatprep.subr.mxu0 0.0
        %5457 = vmatpush1.msra.mxu0 0.0
        %5458 = vmatprep.subr.mxu0 0.0
        %5459 = vmatpush1.msra.mxu0 0.0
        %5460 = vmatprep.subr.mxu0 0.0
        %5461 = vmatpush1.msra.mxu0 0.0
        %5462 = vmatprep.subr.mxu0 0.0
        %5463 = vmatpush1.msra.mxu0 0.0
        %5464 = vmatprep.subr.mxu0 0.0
        %5465 = vmatpush1.msra.mxu0 0.0
        %5466 = vmatprep.subr.mxu0 0.0
        %5467 = vmatpush1.msra.mxu0 0.0
        %5468 = vmatprep.subr.mxu0 0.0
        %5469 = vmatpush1.msra.mxu0 0.0
        %5470 = vmatprep.subr.mxu0 0.0
        %5471 = vmatpush1.msra.mxu0 %v5438
        %5472 = vmatprep.subr.mxu0 0.0
        %5473 = vmatpush2.msra.mxu0 0.0
        %5474 = vmatprep.subr.mxu0 0.0
        %5475 = vmatpush2.msra.mxu0 0.0
        %5476 = vmatprep.subr.mxu0 0.0
        %5477 = vmatpush2.msra.mxu0 0.0
        %5478 = vmatprep.subr.mxu0 0.0
        %5479 = vmatpush2.msra.mxu0 0.0
        %5480 = vmatprep.subr.mxu0 0.0
        %5481 = vmatpush2.msra.mxu0 0.0
        %5482 = vmatprep.subr.mxu0 0.0
        %5483 = vmatpush2.msra.mxu0 0.0
        %5484 = vmatprep.subr.mxu0 0.0
        %5485 = vmatpush2.msra.mxu0 0.0
        %5486 = vmatprep.subr.mxu0 0.0
        %5487 = vmatpush2.msra.mxu0 0.0
        %5488 = vmatprep.subr.mxu0 0.0
        %5489 = vmatpush2.msra.mxu0 0.0
        %5490 = vmatprep.subr.mxu0 0.0
        %5491 = vmatpush2.msra.mxu0 0.0
        %5492 = vmatprep.subr.mxu0 0.0
        %5493 = vmatpush2.msra.mxu0 0.0
        %5494 = vmatprep.subr.mxu0 0.0
        %5495 = vmatpush2.msra.mxu0 0.0
        %5496 = vmatprep.subr.mxu0 0.0
        %5497 = vmatpush2.msra.mxu0 0.0
        %5498 = vmatprep.subr.mxu0 0.0
        %5499 = vmatpush2.msra.mxu0 0.0
        %5500 = vmatprep.subr.mxu0 0.0
        %5501 = vmatpush2.msra.mxu0 0.0
        %5502 = vmatprep.subr.mxu0 0.0
        %5503 = vmatpush2.msra.mxu0 0.0
        %5504 = vmatprep.mubr.f32.mxu0 0.0
        %5505 = vmatmul.mubr.f32.gmra.mxu0 %v5435
        %v5506 = vpop.f32.mrf.mxu0
        %v5507 = vadd.f32 0.0, %v5506
        %v5508 = vpop.f32.mrf.mxu0
        %5509 = vdwg.mxu0
        %v5511 = vsel %vm1942, %v4350, 0
        %v5514 = vsel %vm4600, %v4593, 0
        %5516 = vmatprep.subr.mxu0 0.0
        %5517 = vmatpush1.msra.mxu0 0.0
        %5518 = vmatprep.subr.mxu0 0.0
        %5519 = vmatpush1.msra.mxu0 0.0
        %5520 = vmatprep.subr.mxu0 0.0
        %5521 = vmatpush1.msra.mxu0 0.0
        %5522 = vmatprep.subr.mxu0 0.0
        %5523 = vmatpush1.msra.mxu0 0.0
        %5524 = vmatprep.subr.mxu0 0.0
        %5525 = vmatpush1.msra.mxu0 0.0
        %5526 = vmatprep.subr.mxu0 0.0
        %5527 = vmatpush1.msra.mxu0 0.0
        %5528 = vmatprep.subr.mxu0 0.0
        %5529 = vmatpush1.msra.mxu0 0.0
        %5530 = vmatprep.subr.mxu0 0.0
        %5531 = vmatpush1.msra.mxu0 0.0
        %5532 = vmatprep.subr.mxu0 0.0
        %5533 = vmatpush1.msra.mxu0 0.0
        %5534 = vmatprep.subr.mxu0 0.0
        %5535 = vmatpush1.msra.mxu0 0.0
        %5536 = vmatprep.subr.mxu0 0.0
        %5537 = vmatpush1.msra.mxu0 0.0
        %5538 = vmatprep.subr.mxu0 0.0
        %5539 = vmatpush1.msra.mxu0 0.0
        %5540 = vmatprep.subr.mxu0 0.0
        %5541 = vmatpush1.msra.mxu0 0.0
        %5542 = vmatprep.subr.mxu0 0.0
        %5543 = vmatpush1.msra.mxu0 0.0
        %5544 = vmatprep.subr.mxu0 0.0
        %5545 = vmatpush1.msra.mxu0 0.0
        %5546 = vmatprep.subr.mxu0 0.0
        %5547 = vmatpush1.msra.mxu0 %v5514
        %5548 = vmatprep.subr.mxu0 0.0
        %5549 = vmatpush2.msra.mxu0 0.0
        %5550 = vmatprep.subr.mxu0 0.0
        %5551 = vmatpush2.msra.mxu0 0.0
        %5552 = vmatprep.subr.mxu0 0.0
        %5553 = vmatpush2.msra.mxu0 0.0
        %5554 = vmatprep.subr.mxu0 0.0
        %5555 = vmatpush2.msra.mxu0 0.0
        %5556 = vmatprep.subr.mxu0 0.0
        %5557 = vmatpush2.msra.mxu0 0.0
        %5558 = vmatprep.subr.mxu0 0.0
        %5559 = vmatpush2.msra.mxu0 0.0
        %5560 = vmatprep.subr.mxu0 0.0
        %5561 = vmatpush2.msra.mxu0 0.0
        %5562 = vmatprep.subr.mxu0 0.0
        %5563 = vmatpush2.msra.mxu0 0.0
        %5564 = vmatprep.subr.mxu0 0.0
        %5565 = vmatpush2.msra.mxu0 0.0
        %5566 = vmatprep.subr.mxu0 0.0
        %5567 = vmatpush2.msra.mxu0 0.0
        %5568 = vmatprep.subr.mxu0 0.0
        %5569 = vmatpush2.msra.mxu0 0.0
        %5570 = vmatprep.subr.mxu0 0.0
        %5571 = vmatpush2.msra.mxu0 0.0
        %5572 = vmatprep.subr.mxu0 0.0
        %5573 = vmatpush2.msra.mxu0 0.0
        %5574 = vmatprep.subr.mxu0 0.0
        %5575 = vmatpush2.msra.mxu0 0.0
        %5576 = vmatprep.subr.mxu0 0.0
        %5577 = vmatpush2.msra.mxu0 0.0
        %5578 = vmatprep.subr.mxu0 0.0
        %5579 = vmatpush2.msra.mxu0 0.0
        %5580 = vmatprep.mubr.f32.mxu0 0.0
        %5581 = vmatmul.mubr.f32.gmra.mxu0 %v5511
        %v5582 = vpop.f32.mrf.mxu0
        %v5583 = vadd.f32 0.0, %v5582
        %v5584 = vpop.f32.mrf.mxu0
        %5585 = vdwg.mxu0
        %v5587 = vsel %vm1942, %v4426, 0
        %v5590 = vsel %vm4600, %v4594, 0
        %5592 = vmatprep.subr.mxu0 0.0
        %5593 = vmatpush1.msra.mxu0 0.0
        %5594 = vmatprep.subr.mxu0 0.0
        %5595 = vmatpush1.msra.mxu0 0.0
        %5596 = vmatprep.subr.mxu0 0.0
        %5597 = vmatpush1.msra.mxu0 0.0
        %5598 = vmatprep.subr.mxu0 0.0
        %5599 = vmatpush1.msra.mxu0 0.0
        %5600 = vmatprep.subr.mxu0 0.0
        %5601 = vmatpush1.msra.mxu0 0.0
        %5602 = vmatprep.subr.mxu0 0.0
        %5603 = vmatpush1.msra.mxu0 0.0
        %5604 = vmatprep.subr.mxu0 0.0
        %5605 = vmatpush1.msra.mxu0 0.0
        %5606 = vmatprep.subr.mxu0 0.0
        %5607 = vmatpush1.msra.mxu0 0.0
        %5608 = vmatprep.subr.mxu0 0.0
        %5609 = vmatpush1.msra.mxu0 0.0
        %5610 = vmatprep.subr.mxu0 0.0
        %5611 = vmatpush1.msra.mxu0 0.0
        %5612 = vmatprep.subr.mxu0 0.0
        %5613 = vmatpush1.msra.mxu0 0.0
        %5614 = vmatprep.subr.mxu0 0.0
        %5615 = vmatpush1.msra.mxu0 0.0
        %5616 = vmatprep.subr.mxu0 0.0
        %5617 = vmatpush1.msra.mxu0 0.0
        %5618 = vmatprep.subr.mxu0 0.0
        %5619 = vmatpush1.msra.mxu0 0.0
        %5620 = vmatprep.subr.mxu0 0.0
        %5621 = vmatpush1.msra.mxu0 0.0
        %5622 = vmatprep.subr.mxu0 0.0
        %5623 = vmatpush1.msra.mxu0 %v5590
        %5624 = vmatprep.subr.mxu0 0.0
        %5625 = vmatpush2.msra.mxu0 0.0
        %5626 = vmatprep.subr.mxu0 0.0
        %5627 = vmatpush2.msra.mxu0 0.0
        %5628 = vmatprep.subr.mxu0 0.0
        %5629 = vmatpush2.msra.mxu0 0.0
        %5630 = vmatprep.subr.mxu0 0.0
        %5631 = vmatpush2.msra.mxu0 0.0
        %5632 = vmatprep.subr.mxu0 0.0
        %5633 = vmatpush2.msra.mxu0 0.0
        %5634 = vmatprep.subr.mxu0 0.0
        %5635 = vmatpush2.msra.mxu0 0.0
        %5636 = vmatprep.subr.mxu0 0.0
        %5637 = vmatpush2.msra.mxu0 0.0
        %5638 = vmatprep.subr.mxu0 0.0
        %5639 = vmatpush2.msra.mxu0 0.0
        %5640 = vmatprep.subr.mxu0 0.0
        %5641 = vmatpush2.msra.mxu0 0.0
        %5642 = vmatprep.subr.mxu0 0.0
        %5643 = vmatpush2.msra.mxu0 0.0
        %5644 = vmatprep.subr.mxu0 0.0
        %5645 = vmatpush2.msra.mxu0 0.0
        %5646 = vmatprep.subr.mxu0 0.0
        %5647 = vmatpush2.msra.mxu0 0.0
        %5648 = vmatprep.subr.mxu0 0.0
        %5649 = vmatpush2.msra.mxu0 0.0
        %5650 = vmatprep.subr.mxu0 0.0
        %5651 = vmatpush2.msra.mxu0 0.0
        %5652 = vmatprep.subr.mxu0 0.0
        %5653 = vmatpush2.msra.mxu0 0.0
        %5654 = vmatprep.subr.mxu0 0.0
        %5655 = vmatpush2.msra.mxu0 0.0
        %5656 = vmatprep.mubr.f32.mxu0 0.0
        %5657 = vmatmul.mubr.f32.gmra.mxu0 %v5587
        %v5658 = vpop.f32.mrf.mxu0
        %v5659 = vadd.f32 0.0, %v5658
        %v5660 = vpop.f32.mrf.mxu0
        %5661 = vdwg.mxu0
        %v5663 = vsel %vm1942, %v4502, 0
        %v5666 = vsel %vm4600, %v4595, 0
        %5668 = vmatprep.subr.mxu0 0.0
        %5669 = vmatpush1.msra.mxu0 0.0
        %5670 = vmatprep.subr.mxu0 0.0
        %5671 = vmatpush1.msra.mxu0 0.0
        %5672 = vmatprep.subr.mxu0 0.0
        %5673 = vmatpush1.msra.mxu0 0.0
        %5674 = vmatprep.subr.mxu0 0.0
        %5675 = vmatpush1.msra.mxu0 0.0
        %5676 = vmatprep.subr.mxu0 0.0
        %5677 = vmatpush1.msra.mxu0 0.0
        %5678 = vmatprep.subr.mxu0 0.0
        %5679 = vmatpush1.msra.mxu0 0.0
        %5680 = vmatprep.subr.mxu0 0.0
        %5681 = vmatpush1.msra.mxu0 0.0
        %5682 = vmatprep.subr.mxu0 0.0
        %5683 = vmatpush1.msra.mxu0 0.0
        %5684 = vmatprep.subr.mxu0 0.0
        %5685 = vmatpush1.msra.mxu0 0.0
        %5686 = vmatprep.subr.mxu0 0.0
        %5687 = vmatpush1.msra.mxu0 0.0
        %5688 = vmatprep.subr.mxu0 0.0
        %5689 = vmatpush1.msra.mxu0 0.0
        %5690 = vmatprep.subr.mxu0 0.0
        %5691 = vmatpush1.msra.mxu0 0.0
        %5692 = vmatprep.subr.mxu0 0.0
        %5693 = vmatpush1.msra.mxu0 0.0
        %5694 = vmatprep.subr.mxu0 0.0
        %5695 = vmatpush1.msra.mxu0 0.0
        %5696 = vmatprep.subr.mxu0 0.0
        %5697 = vmatpush1.msra.mxu0 0.0
        %5698 = vmatprep.subr.mxu0 0.0
        %5699 = vmatpush1.msra.mxu0 %v5666
        %5700 = vmatprep.subr.mxu0 0.0
        %5701 = vmatpush2.msra.mxu0 0.0
        %5702 = vmatprep.subr.mxu0 0.0
        %5703 = vmatpush2.msra.mxu0 0.0
        %5704 = vmatprep.subr.mxu0 0.0
        %5705 = vmatpush2.msra.mxu0 0.0
        %5706 = vmatprep.subr.mxu0 0.0
        %5707 = vmatpush2.msra.mxu0 0.0
        %5708 = vmatprep.subr.mxu0 0.0
        %5709 = vmatpush2.msra.mxu0 0.0
        %5710 = vmatprep.subr.mxu0 0.0
        %5711 = vmatpush2.msra.mxu0 0.0
        %5712 = vmatprep.subr.mxu0 0.0
        %5713 = vmatpush2.msra.mxu0 0.0
        %5714 = vmatprep.subr.mxu0 0.0
        %5715 = vmatpush2.msra.mxu0 0.0
        %5716 = vmatprep.subr.mxu0 0.0
        %5717 = vmatpush2.msra.mxu0 0.0
        %5718 = vmatprep.subr.mxu0 0.0
        %5719 = vmatpush2.msra.mxu0 0.0
        %5720 = vmatprep.subr.mxu0 0.0
        %5721 = vmatpush2.msra.mxu0 0.0
        %5722 = vmatprep.subr.mxu0 0.0
        %5723 = vmatpush2.msra.mxu0 0.0
        %5724 = vmatprep.subr.mxu0 0.0
        %5725 = vmatpush2.msra.mxu0 0.0
        %5726 = vmatprep.subr.mxu0 0.0
        %5727 = vmatpush2.msra.mxu0 0.0
        %5728 = vmatprep.subr.mxu0 0.0
        %5729 = vmatpush2.msra.mxu0 0.0
        %5730 = vmatprep.subr.mxu0 0.0
        %5731 = vmatpush2.msra.mxu0 0.0
        %5732 = vmatprep.mubr.f32.mxu0 0.0
        %5733 = vmatmul.mubr.f32.gmra.mxu0 %v5663
        %v5734 = vpop.f32.mrf.mxu0
        %v5735 = vadd.f32 0.0, %v5734
        %v5736 = vpop.f32.mrf.mxu0
        %5737 = vdwg.mxu0
        %v5739 = vsel %vm1942, %v4578, 0
        %v5742 = vsel %vm4600, %v4596, 0
        %5744 = vmatprep.subr.mxu0 0.0
        %5745 = vmatpush1.msra.mxu0 0.0
        %5746 = vmatprep.subr.mxu0 0.0
        %5747 = vmatpush1.msra.mxu0 0.0
        %5748 = vmatprep.subr.mxu0 0.0
        %5749 = vmatpush1.msra.mxu0 0.0
        %5750 = vmatprep.subr.mxu0 0.0
        %5751 = vmatpush1.msra.mxu0 0.0
        %5752 = vmatprep.subr.mxu0 0.0
        %5753 = vmatpush1.msra.mxu0 0.0
        %5754 = vmatprep.subr.mxu0 0.0
        %5755 = vmatpush1.msra.mxu0 0.0
        %5756 = vmatprep.subr.mxu0 0.0
        %5757 = vmatpush1.msra.mxu0 0.0
        %5758 = vmatprep.subr.mxu0 0.0
        %5759 = vmatpush1.msra.mxu0 0.0
        %5760 = vmatprep.subr.mxu0 0.0
        %5761 = vmatpush1.msra.mxu0 0.0
        %5762 = vmatprep.subr.mxu0 0.0
        %5763 = vmatpush1.msra.mxu0 0.0
        %5764 = vmatprep.subr.mxu0 0.0
        %5765 = vmatpush1.msra.mxu0 0.0
        %5766 = vmatprep.subr.mxu0 0.0
        %5767 = vmatpush1.msra.mxu0 0.0
        %5768 = vmatprep.subr.mxu0 0.0
        %5769 = vmatpush1.msra.mxu0 0.0
        %5770 = vmatprep.subr.mxu0 0.0
        %5771 = vmatpush1.msra.mxu0 0.0
        %5772 = vmatprep.subr.mxu0 0.0
        %5773 = vmatpush1.msra.mxu0 0.0
        %5774 = vmatprep.subr.mxu0 0.0
        %5775 = vmatpush1.msra.mxu0 %v5742
        %5776 = vmatprep.subr.mxu0 0.0
        %5777 = vmatpush2.msra.mxu0 0.0
        %5778 = vmatprep.subr.mxu0 0.0
        %5779 = vmatpush2.msra.mxu0 0.0
        %5780 = vmatprep.subr.mxu0 0.0
        %5781 = vmatpush2.msra.mxu0 0.0
        %5782 = vmatprep.subr.mxu0 0.0
        %5783 = vmatpush2.msra.mxu0 0.0
        %5784 = vmatprep.subr.mxu0 0.0
        %5785 = vmatpush2.msra.mxu0 0.0
        %5786 = vmatprep.subr.mxu0 0.0
        %5787 = vmatpush2.msra.mxu0 0.0
        %5788 = vmatprep.subr.mxu0 0.0
        %5789 = vmatpush2.msra.mxu0 0.0
        %5790 = vmatprep.subr.mxu0 0.0
        %5791 = vmatpush2.msra.mxu0 0.0
        %5792 = vmatprep.subr.mxu0 0.0
        %5793 = vmatpush2.msra.mxu0 0.0
        %5794 = vmatprep.subr.mxu0 0.0
        %5795 = vmatpush2.msra.mxu0 0.0
        %5796 = vmatprep.subr.mxu0 0.0
        %5797 = vmatpush2.msra.mxu0 0.0
        %5798 = vmatprep.subr.mxu0 0.0
        %5799 = vmatpush2.msra.mxu0 0.0
        %5800 = vmatprep.subr.mxu0 0.0
        %5801 = vmatpush2.msra.mxu0 0.0
        %5802 = vmatprep.subr.mxu0 0.0
        %5803 = vmatpush2.msra.mxu0 0.0
        %5804 = vmatprep.subr.mxu0 0.0
        %5805 = vmatpush2.msra.mxu0 0.0
        %5806 = vmatprep.subr.mxu0 0.0
        %5807 = vmatpush2.msra.mxu0 0.0
        %5808 = vmatprep.mubr.f32.mxu0 0.0
        %5809 = vmatmul.mubr.f32.gmra.mxu0 %v5739
        %v5810 = vpop.f32.mrf.mxu0
        %v5811 = vadd.f32 0.0, %v5810
        %v5812 = vpop.f32.mrf.mxu0
        %5813 = vdwg.mxu0
        %v5814 = vsel %vm812, %v4671, 0.0
        %v5815 = vsel %vm812, %v4823, 0.0
        %v5816 = vadd.f32 %v5814, %v5815
        %v5817 = vsel %vm812, %v4975, 0.0
        %v5818 = vadd.f32 %v5816, %v5817
        %v5819 = vsel %vm812, %v5127, 0.0
        %v5820 = vadd.f32 %v5818, %v5819
        %v5821 = vsel %vm812, %v5279, 0.0
        %v5822 = vadd.f32 %v5820, %v5821
        %v5823 = vsel %vm812, %v5431, 0.0
        %v5824 = vadd.f32 %v5822, %v5823
        %v5825 = vsel %vm812, %v5583, 0.0
        %v5826 = vadd.f32 %v5824, %v5825
        %v5827 = vsel %vm812, %v5735, 0.0
        %v5828 = vadd.f32 %v5826, %v5827
        %v5829 = vsel %vm812, %v4747, 0.0
        %v5830 = vsel %vm812, %v4899, 0.0
        %v5831 = vadd.f32 %v5829, %v5830
        %v5832 = vsel %vm812, %v5051, 0.0
        %v5833 = vadd.f32 %v5831, %v5832
        %v5834 = vsel %vm812, %v5203, 0.0
        %v5835 = vadd.f32 %v5833, %v5834
        %v5836 = vsel %vm812, %v5355, 0.0
        %v5837 = vadd.f32 %v5835, %v5836
        %v5838 = vsel %vm812, %v5507, 0.0
        %v5839 = vadd.f32 %v5837, %v5838
        %v5840 = vsel %vm812, %v5659, 0.0
        %v5841 = vadd.f32 %v5839, %v5840
        %v5842 = vsel %vm812, %v5811, 0.0
        %v5843 = vadd.f32 %v5841, %v5842
        %v5844 = vld [vmem:[%s600] sm:$0x1]
        %v5846 = vlaneseq
        %v5847 = vshrl.u32 %v5846, 7
        %v5848 = vsub.s32 0, %v5847
        %v5849 = vrot.slane %v5844, %v5848
        %v5851 = vadd.f32 %v5828, %v5849
        %v5852 = vadd.f32 %v5843, %v5849
        %v5853 = vadd.f32 %v634, %v5851
        %v5854 = vadd.f32 %v635, %v5852
        %v5855 = vsel %vm812, %v5853, 0.0
        %5856 = vadd.xlane.f32.xlu0 %v5855
        %v5857 = vpop.xlane.xlu0 %5856
        %v5858 = vsel %vm812, %v5854, 0.0
        %5859 = vadd.xlane.f32.xlu0 %v5858
        %v5860 = vpop.xlane.xlu0 %5859
        %v5861 = vrcp.pop 32.0
        %v5862 = vmul.f32 %v5857, %v5861
        %v5863 = vmul.f32 %v5860, %v5861
        %v5864 = vsub.f32 %v5853, %v5862
        %v5865 = vsub.f32 %v5854, %v5863
        %v5866 = vmul.f32 %v5864, %v5864
        %v5867 = vmul.f32 %v5865, %v5865
        %v5868 = vsel %vm812, %v5866, 0.0
        %5869 = vadd.xlane.f32.xlu0 %v5868
        %v5870 = vpop.xlane.xlu0 %5869
        %v5871 = vsel %vm812, %v5867, 0.0
        %5872 = vadd.xlane.f32.xlu0 %v5871
        %v5873 = vpop.xlane.xlu0 %5872
        %v5874 = vmul.f32 %v5870, %v5861
        %v5875 = vmul.f32 %v5873, %v5861
        %v5876 = vadd.f32 %v5874, 1e-05
        %v5877 = vadd.f32 %v5875, 1e-05
        %v5878 = vrsqrt.pop %v5876
        %v5879 = vrsqrt.pop %v5877
        %v5880 = vmul.f32 %v5864, %v5878
        %v5881 = vmul.f32 %v5865, %v5879
        %v5882 = vld [vmem:[%s603] sm:$0x1]
        %v5884 = vlaneseq
        %v5885 = vshrl.u32 %v5884, 7
        %v5886 = vsub.s32 0, %v5885
        %v5887 = vrot.slane %v5882, %v5886
        %v5889 = vmul.f32 %v5880, %v5887
        %v5890 = vmul.f32 %v5881, %v5887
        %v5891 = vld [vmem:[%s606] sm:$0x1]
        %v5893 = vlaneseq
        %v5894 = vshrl.u32 %v5893, 7
        %v5895 = vsub.s32 0, %v5894
        %v5896 = vrot.slane %v5891, %v5895
        %v5898 = vadd.f32 %v5889, %v5896
        %v5899 = vadd.f32 %v5890, %v5896
        %v5900 = vld [vmem:[%s617] sm:$0xff]
        %v5901 = vld [vmem:[%s617 + $0x8] sm:$0xff]
        %v5902 = vld [vmem:[%s617 + $0x10] sm:$0xff]
        %v5903 = vld [vmem:[%s617 + $0x18] sm:$0xff]
        %v5904 = vld [vmem:[%s617 + $0x20] sm:$0xff]
        %v5905 = vld [vmem:[%s617 + $0x28] sm:$0xff]
        %v5906 = vld [vmem:[%s617 + $0x30] sm:$0xff]
        %v5907 = vld [vmem:[%s617 + $0x38] sm:$0xff]
        %v5908 = vld [vmem:[%s617 + $0x40] sm:$0xff]
        %v5909 = vld [vmem:[%s617 + $0x48] sm:$0xff]
        %v5910 = vld [vmem:[%s617 + $0x50] sm:$0xff]
        %v5911 = vld [vmem:[%s617 + $0x58] sm:$0xff]
        %v5912 = vld [vmem:[%s617 + $0x60] sm:$0xff]
        %v5913 = vld [vmem:[%s617 + $0x68] sm:$0xff]
        %v5914 = vld [vmem:[%s617 + $0x70] sm:$0xff]
        %v5915 = vld [vmem:[%s617 + $0x78] sm:$0xff]
        %v5916 = vld [vmem:[%s617 + $0x80] sm:$0xff]
        %v5917 = vld [vmem:[%s617 + $0x88] sm:$0xff]
        %v5918 = vld [vmem:[%s617 + $0x90] sm:$0xff]
        %v5919 = vld [vmem:[%s617 + $0x98] sm:$0xff]
        %v5920 = vld [vmem:[%s617 + $0xa0] sm:$0xff]
        %v5921 = vld [vmem:[%s617 + $0xa8] sm:$0xff]
        %v5922 = vld [vmem:[%s617 + $0xb0] sm:$0xff]
        %v5923 = vld [vmem:[%s617 + $0xb8] sm:$0xff]
        %v5924 = vld [vmem:[%s617 + $0xc0] sm:$0xff]
        %v5925 = vld [vmem:[%s617 + $0xc8] sm:$0xff]
        %v5926 = vld [vmem:[%s617 + $0xd0] sm:$0xff]
        %v5927 = vld [vmem:[%s617 + $0xd8] sm:$0xff]
        %v5928 = vld [vmem:[%s617 + $0xe0] sm:$0xff]
        %v5929 = vld [vmem:[%s617 + $0xe8] sm:$0xff]
        %v5930 = vld [vmem:[%s617 + $0xf0] sm:$0xff]
        %v5931 = vld [vmem:[%s617 + $0xf8] sm:$0xff]
        %v5932 = vld [vmem:[%s617 + $0x100] sm:$0xff]
        %v5933 = vld [vmem:[%s617 + $0x108] sm:$0xff]
        %v5934 = vld [vmem:[%s617 + $0x110] sm:$0xff]
        %v5935 = vld [vmem:[%s617 + $0x118] sm:$0xff]
        %v5936 = vld [vmem:[%s617 + $0x120] sm:$0xff]
        %v5937 = vld [vmem:[%s617 + $0x128] sm:$0xff]
        %v5938 = vld [vmem:[%s617 + $0x130] sm:$0xff]
        %v5939 = vld [vmem:[%s617 + $0x138] sm:$0xff]
        %v5940 = vld [vmem:[%s617 + $0x140] sm:$0xff]
        %v5941 = vld [vmem:[%s617 + $0x148] sm:$0xff]
        %v5942 = vld [vmem:[%s617 + $0x150] sm:$0xff]
        %v5943 = vld [vmem:[%s617 + $0x158] sm:$0xff]
        %v5944 = vld [vmem:[%s617 + $0x160] sm:$0xff]
        %v5945 = vld [vmem:[%s617 + $0x168] sm:$0xff]
        %v5946 = vld [vmem:[%s617 + $0x170] sm:$0xff]
        %v5947 = vld [vmem:[%s617 + $0x178] sm:$0xff]
        %v5948 = vld [vmem:[%s617 + $0x180] sm:$0xff]
        %v5949 = vld [vmem:[%s617 + $0x188] sm:$0xff]
        %v5950 = vld [vmem:[%s617 + $0x190] sm:$0xff]
        %v5951 = vld [vmem:[%s617 + $0x198] sm:$0xff]
        %v5952 = vld [vmem:[%s617 + $0x1a0] sm:$0xff]
        %v5953 = vld [vmem:[%s617 + $0x1a8] sm:$0xff]
        %v5954 = vld [vmem:[%s617 + $0x1b0] sm:$0xff]
        %v5955 = vld [vmem:[%s617 + $0x1b8] sm:$0xff]
        %v5956 = vld [vmem:[%s617 + $0x1c0] sm:$0xff]
        %v5957 = vld [vmem:[%s617 + $0x1c8] sm:$0xff]
        %v5958 = vld [vmem:[%s617 + $0x1d0] sm:$0xff]
        %v5959 = vld [vmem:[%s617 + $0x1d8] sm:$0xff]
        %v5960 = vld [vmem:[%s617 + $0x1e0] sm:$0xff]
        %v5961 = vld [vmem:[%s617 + $0x1e8] sm:$0xff]
        %v5962 = vld [vmem:[%s617 + $0x1f0] sm:$0xff]
        %v5963 = vld [vmem:[%s617 + $0x1f8] sm:$0xff]
        %v5964 = vld [vmem:[%s621] sm:$0xff]
        %v5965 = vld [vmem:[%s621 + $0x8] sm:$0xff]
        %v5968 = vlaneseq
        %v5969 = vshrl.u32 %v5968, 7
        %v5970 = vsub.s32 0, %v5969
        %v5971 = vrot.slane %v5964, %v5970
        %v5972 = vlaneseq
        %v5973 = vshrl.u32 %v5972, 7
        %v5974 = vsub.s32 1, %v5973
        %v5975 = vrot.slane %v5964, %v5974
        %v5976 = vlaneseq
        %v5977 = vshrl.u32 %v5976, 7
        %v5978 = vsub.s32 2, %v5977
        %v5979 = vrot.slane %v5964, %v5978
        %v5980 = vlaneseq
        %v5981 = vshrl.u32 %v5980, 7
        %v5982 = vsub.s32 3, %v5981
        %v5983 = vrot.slane %v5964, %v5982
        %v5984 = vlaneseq
        %v5985 = vshrl.u32 %v5984, 7
        %v5986 = vsub.s32 4, %v5985
        %v5987 = vrot.slane %v5964, %v5986
        %v5988 = vlaneseq
        %v5989 = vshrl.u32 %v5988, 7
        %v5990 = vsub.s32 5, %v5989
        %v5991 = vrot.slane %v5964, %v5990
        %v5992 = vlaneseq
        %v5993 = vshrl.u32 %v5992, 7
        %v5994 = vsub.s32 6, %v5993
        %v5995 = vrot.slane %v5964, %v5994
        %v5996 = vlaneseq
        %v5997 = vshrl.u32 %v5996, 7
        %v5998 = vsub.s32 7, %v5997
        %v5999 = vrot.slane %v5964, %v5998
        %v6000 = vlaneseq
        %v6001 = vshrl.u32 %v6000, 7
        %v6002 = vsub.s32 0, %v6001
        %v6003 = vrot.slane %v5965, %v6002
        %v6004 = vlaneseq
        %v6005 = vshrl.u32 %v6004, 7
        %v6006 = vsub.s32 1, %v6005
        %v6007 = vrot.slane %v5965, %v6006
        %v6008 = vlaneseq
        %v6009 = vshrl.u32 %v6008, 7
        %v6010 = vsub.s32 2, %v6009
        %v6011 = vrot.slane %v5965, %v6010
        %v6012 = vlaneseq
        %v6013 = vshrl.u32 %v6012, 7
        %v6014 = vsub.s32 3, %v6013
        %v6015 = vrot.slane %v5965, %v6014
        %v6016 = vlaneseq
        %v6017 = vshrl.u32 %v6016, 7
        %v6018 = vsub.s32 4, %v6017
        %v6019 = vrot.slane %v5965, %v6018
        %v6020 = vlaneseq
        %v6021 = vshrl.u32 %v6020, 7
        %v6022 = vsub.s32 5, %v6021
        %v6023 = vrot.slane %v5965, %v6022
        %v6024 = vlaneseq
        %v6025 = vshrl.u32 %v6024, 7
        %v6026 = vsub.s32 6, %v6025
        %v6027 = vrot.slane %v5965, %v6026
        %v6028 = vlaneseq
        %v6029 = vshrl.u32 %v6028, 7
        %v6030 = vsub.s32 7, %v6029
        %v6031 = vrot.slane %v5965, %v6030
        %v6049 = vsel %vm812, %v5898, 0
        %v6052 = vsel %vm812, %v5899, 0
        %6054 = vmatprep.subr.mxu0 0.0
        %6055 = vmatpush1.msra.mxu0 0.0
        %6056 = vmatprep.subr.mxu0 0.0
        %6057 = vmatpush1.msra.mxu0 0.0
        %6058 = vmatprep.subr.mxu0 0.0
        %6059 = vmatpush1.msra.mxu0 0.0
        %6060 = vmatprep.subr.mxu0 0.0
        %6061 = vmatpush1.msra.mxu0 0.0
        %6062 = vmatprep.subr.mxu0 0.0
        %6063 = vmatpush1.msra.mxu0 0.0
        %6064 = vmatprep.subr.mxu0 0.0
        %6065 = vmatpush1.msra.mxu0 0.0
        %6066 = vmatprep.subr.mxu0 0.0
        %6067 = vmatpush1.msra.mxu0 0.0
        %6068 = vmatprep.subr.mxu0 0.0
        %6069 = vmatpush1.msra.mxu0 0.0
        %6070 = vmatprep.subr.mxu0 0.0
        %6071 = vmatpush1.msra.mxu0 0.0
        %6072 = vmatprep.subr.mxu0 0.0
        %6073 = vmatpush1.msra.mxu0 0.0
        %6074 = vmatprep.subr.mxu0 0.0
        %6075 = vmatpush1.msra.mxu0 0.0
        %6076 = vmatprep.subr.mxu0 0.0
        %6077 = vmatpush1.msra.mxu0 0.0
        %6078 = vmatprep.subr.mxu0 %v5949
        %6079 = vmatpush1.msra.mxu0 %v5948
        %6080 = vmatprep.subr.mxu0 %v5933
        %6081 = vmatpush1.msra.mxu0 %v5932
        %6082 = vmatprep.subr.mxu0 %v5917
        %6083 = vmatpush1.msra.mxu0 %v5916
        %6084 = vmatprep.subr.mxu0 %v5901
        %6085 = vmatpush1.msra.mxu0 %v5900
        %6086 = vmatprep.subr.mxu0 0.0
        %6087 = vmatpush2.msra.mxu0 0.0
        %6088 = vmatprep.subr.mxu0 0.0
        %6089 = vmatpush2.msra.mxu0 0.0
        %6090 = vmatprep.subr.mxu0 0.0
        %6091 = vmatpush2.msra.mxu0 0.0
        %6092 = vmatprep.subr.mxu0 0.0
        %6093 = vmatpush2.msra.mxu0 0.0
        %6094 = vmatprep.subr.mxu0 0.0
        %6095 = vmatpush2.msra.mxu0 0.0
        %6096 = vmatprep.subr.mxu0 0.0
        %6097 = vmatpush2.msra.mxu0 0.0
        %6098 = vmatprep.subr.mxu0 0.0
        %6099 = vmatpush2.msra.mxu0 0.0
        %6100 = vmatprep.subr.mxu0 0.0
        %6101 = vmatpush2.msra.mxu0 0.0
        %6102 = vmatprep.subr.mxu0 0.0
        %6103 = vmatpush2.msra.mxu0 0.0
        %6104 = vmatprep.subr.mxu0 0.0
        %6105 = vmatpush2.msra.mxu0 0.0
        %6106 = vmatprep.subr.mxu0 0.0
        %6107 = vmatpush2.msra.mxu0 0.0
        %6108 = vmatprep.subr.mxu0 0.0
        %6109 = vmatpush2.msra.mxu0 0.0
        %6110 = vmatprep.subr.mxu0 0.0
        %6111 = vmatpush2.msra.mxu0 0.0
        %6112 = vmatprep.subr.mxu0 0.0
        %6113 = vmatpush2.msra.mxu0 0.0
        %6114 = vmatprep.subr.mxu0 0.0
        %6115 = vmatpush2.msra.mxu0 0.0
        %6116 = vmatprep.subr.mxu0 0.0
        %6117 = vmatpush2.msra.mxu0 0.0
        %6118 = vmatprep.mubr.f32.mxu0 0.0
        %6119 = vmatmul.mubr.f32.gmra.mxu0 %v6049
        %v6120 = vpop.f32.mrf.mxu0
        %v6121 = vadd.f32 %v5971, %v6120
        %v6122 = vpop.f32.mrf.mxu0
        %v6123 = vadd.f32 %v5975, %v6122
        %6124 = vmatprep.mubr.f32.mxu0 0.0
        %6125 = vmatmul.mubr.f32.gmra.mxu0 %v6052
        %v6126 = vpop.f32.mrf.mxu0
        %v6127 = vadd.f32 %v5971, %v6126
        %v6128 = vpop.f32.mrf.mxu0
        %v6129 = vadd.f32 %v5975, %v6128
        %6130 = vdwg.mxu0
        %6131 = vmatprep.subr.mxu0 0.0
        %6132 = vmatpush1.msra.mxu0 0.0
        %6133 = vmatprep.subr.mxu0 0.0
        %6134 = vmatpush1.msra.mxu0 0.0
        %6135 = vmatprep.subr.mxu0 0.0
        %6136 = vmatpush1.msra.mxu0 0.0
        %6137 = vmatprep.subr.mxu0 0.0
        %6138 = vmatpush1.msra.mxu0 0.0
        %6139 = vmatprep.subr.mxu0 0.0
        %6140 = vmatpush1.msra.mxu0 0.0
        %6141 = vmatprep.subr.mxu0 0.0
        %6142 = vmatpush1.msra.mxu0 0.0
        %6143 = vmatprep.subr.mxu0 0.0
        %6144 = vmatpush1.msra.mxu0 0.0
        %6145 = vmatprep.subr.mxu0 0.0
        %6146 = vmatpush1.msra.mxu0 0.0
        %6147 = vmatprep.subr.mxu0 0.0
        %6148 = vmatpush1.msra.mxu0 0.0
        %6149 = vmatprep.subr.mxu0 0.0
        %6150 = vmatpush1.msra.mxu0 0.0
        %6151 = vmatprep.subr.mxu0 0.0
        %6152 = vmatpush1.msra.mxu0 0.0
        %6153 = vmatprep.subr.mxu0 0.0
        %6154 = vmatpush1.msra.mxu0 0.0
        %6155 = vmatprep.subr.mxu0 %v5951
        %6156 = vmatpush1.msra.mxu0 %v5950
        %6157 = vmatprep.subr.mxu0 %v5935
        %6158 = vmatpush1.msra.mxu0 %v5934
        %6159 = vmatprep.subr.mxu0 %v5919
        %6160 = vmatpush1.msra.mxu0 %v5918
        %6161 = vmatprep.subr.mxu0 %v5903
        %6162 = vmatpush1.msra.mxu0 %v5902
        %6163 = vmatprep.subr.mxu0 0.0
        %6164 = vmatpush2.msra.mxu0 0.0
        %6165 = vmatprep.subr.mxu0 0.0
        %6166 = vmatpush2.msra.mxu0 0.0
        %6167 = vmatprep.subr.mxu0 0.0
        %6168 = vmatpush2.msra.mxu0 0.0
        %6169 = vmatprep.subr.mxu0 0.0
        %6170 = vmatpush2.msra.mxu0 0.0
        %6171 = vmatprep.subr.mxu0 0.0
        %6172 = vmatpush2.msra.mxu0 0.0
        %6173 = vmatprep.subr.mxu0 0.0
        %6174 = vmatpush2.msra.mxu0 0.0
        %6175 = vmatprep.subr.mxu0 0.0
        %6176 = vmatpush2.msra.mxu0 0.0
        %6177 = vmatprep.subr.mxu0 0.0
        %6178 = vmatpush2.msra.mxu0 0.0
        %6179 = vmatprep.subr.mxu0 0.0
        %6180 = vmatpush2.msra.mxu0 0.0
        %6181 = vmatprep.subr.mxu0 0.0
        %6182 = vmatpush2.msra.mxu0 0.0
        %6183 = vmatprep.subr.mxu0 0.0
        %6184 = vmatpush2.msra.mxu0 0.0
        %6185 = vmatprep.subr.mxu0 0.0
        %6186 = vmatpush2.msra.mxu0 0.0
        %6187 = vmatprep.subr.mxu0 0.0
        %6188 = vmatpush2.msra.mxu0 0.0
        %6189 = vmatprep.subr.mxu0 0.0
        %6190 = vmatpush2.msra.mxu0 0.0
        %6191 = vmatprep.subr.mxu0 0.0
        %6192 = vmatpush2.msra.mxu0 0.0
        %6193 = vmatprep.subr.mxu0 0.0
        %6194 = vmatpush2.msra.mxu0 0.0
        %6195 = vmatprep.mubr.f32.mxu0 0.0
        %6196 = vmatmul.mubr.f32.gmra.mxu0 %v6049
        %v6197 = vpop.f32.mrf.mxu0
        %v6198 = vadd.f32 %v5979, %v6197
        %v6199 = vpop.f32.mrf.mxu0
        %v6200 = vadd.f32 %v5983, %v6199
        %6201 = vmatprep.mubr.f32.mxu0 0.0
        %6202 = vmatmul.mubr.f32.gmra.mxu0 %v6052
        %v6203 = vpop.f32.mrf.mxu0
        %v6204 = vadd.f32 %v5979, %v6203
        %v6205 = vpop.f32.mrf.mxu0
        %v6206 = vadd.f32 %v5983, %v6205
        %6207 = vdwg.mxu0
        %6208 = vmatprep.subr.mxu0 0.0
        %6209 = vmatpush1.msra.mxu0 0.0
        %6210 = vmatprep.subr.mxu0 0.0
        %6211 = vmatpush1.msra.mxu0 0.0
        %6212 = vmatprep.subr.mxu0 0.0
        %6213 = vmatpush1.msra.mxu0 0.0
        %6214 = vmatprep.subr.mxu0 0.0
        %6215 = vmatpush1.msra.mxu0 0.0
        %6216 = vmatprep.subr.mxu0 0.0
        %6217 = vmatpush1.msra.mxu0 0.0
        %6218 = vmatprep.subr.mxu0 0.0
        %6219 = vmatpush1.msra.mxu0 0.0
        %6220 = vmatprep.subr.mxu0 0.0
        %6221 = vmatpush1.msra.mxu0 0.0
        %6222 = vmatprep.subr.mxu0 0.0
        %6223 = vmatpush1.msra.mxu0 0.0
        %6224 = vmatprep.subr.mxu0 0.0
        %6225 = vmatpush1.msra.mxu0 0.0
        %6226 = vmatprep.subr.mxu0 0.0
        %6227 = vmatpush1.msra.mxu0 0.0
        %6228 = vmatprep.subr.mxu0 0.0
        %6229 = vmatpush1.msra.mxu0 0.0
        %6230 = vmatprep.subr.mxu0 0.0
        %6231 = vmatpush1.msra.mxu0 0.0
        %6232 = vmatprep.subr.mxu0 %v5953
        %6233 = vmatpush1.msra.mxu0 %v5952
        %6234 = vmatprep.subr.mxu0 %v5937
        %6235 = vmatpush1.msra.mxu0 %v5936
        %6236 = vmatprep.subr.mxu0 %v5921
        %6237 = vmatpush1.msra.mxu0 %v5920
        %6238 = vmatprep.subr.mxu0 %v5905
        %6239 = vmatpush1.msra.mxu0 %v5904
        %6240 = vmatprep.subr.mxu0 0.0
        %6241 = vmatpush2.msra.mxu0 0.0
        %6242 = vmatprep.subr.mxu0 0.0
        %6243 = vmatpush2.msra.mxu0 0.0
        %6244 = vmatprep.subr.mxu0 0.0
        %6245 = vmatpush2.msra.mxu0 0.0
        %6246 = vmatprep.subr.mxu0 0.0
        %6247 = vmatpush2.msra.mxu0 0.0
        %6248 = vmatprep.subr.mxu0 0.0
        %6249 = vmatpush2.msra.mxu0 0.0
        %6250 = vmatprep.subr.mxu0 0.0
        %6251 = vmatpush2.msra.mxu0 0.0
        %6252 = vmatprep.subr.mxu0 0.0
        %6253 = vmatpush2.msra.mxu0 0.0
        %6254 = vmatprep.subr.mxu0 0.0
        %6255 = vmatpush2.msra.mxu0 0.0
        %6256 = vmatprep.subr.mxu0 0.0
        %6257 = vmatpush2.msra.mxu0 0.0
        %6258 = vmatprep.subr.mxu0 0.0
        %6259 = vmatpush2.msra.mxu0 0.0
        %6260 = vmatprep.subr.mxu0 0.0
        %6261 = vmatpush2.msra.mxu0 0.0
        %6262 = vmatprep.subr.mxu0 0.0
        %6263 = vmatpush2.msra.mxu0 0.0
        %6264 = vmatprep.subr.mxu0 0.0
        %6265 = vmatpush2.msra.mxu0 0.0
        %6266 = vmatprep.subr.mxu0 0.0
        %6267 = vmatpush2.msra.mxu0 0.0
        %6268 = vmatprep.subr.mxu0 0.0
        %6269 = vmatpush2.msra.mxu0 0.0
        %6270 = vmatprep.subr.mxu0 0.0
        %6271 = vmatpush2.msra.mxu0 0.0
        %6272 = vmatprep.mubr.f32.mxu0 0.0
        %6273 = vmatmul.mubr.f32.gmra.mxu0 %v6049
        %v6274 = vpop.f32.mrf.mxu0
        %v6275 = vadd.f32 %v5987, %v6274
        %v6276 = vpop.f32.mrf.mxu0
        %v6277 = vadd.f32 %v5991, %v6276
        %6278 = vmatprep.mubr.f32.mxu0 0.0
        %6279 = vmatmul.mubr.f32.gmra.mxu0 %v6052
        %v6280 = vpop.f32.mrf.mxu0
        %v6281 = vadd.f32 %v5987, %v6280
        %v6282 = vpop.f32.mrf.mxu0
        %v6283 = vadd.f32 %v5991, %v6282
        %6284 = vdwg.mxu0
        %6285 = vmatprep.subr.mxu0 0.0
        %6286 = vmatpush1.msra.mxu0 0.0
        %6287 = vmatprep.subr.mxu0 0.0
        %6288 = vmatpush1.msra.mxu0 0.0
        %6289 = vmatprep.subr.mxu0 0.0
        %6290 = vmatpush1.msra.mxu0 0.0
        %6291 = vmatprep.subr.mxu0 0.0
        %6292 = vmatpush1.msra.mxu0 0.0
        %6293 = vmatprep.subr.mxu0 0.0
        %6294 = vmatpush1.msra.mxu0 0.0
        %6295 = vmatprep.subr.mxu0 0.0
        %6296 = vmatpush1.msra.mxu0 0.0
        %6297 = vmatprep.subr.mxu0 0.0
        %6298 = vmatpush1.msra.mxu0 0.0
        %6299 = vmatprep.subr.mxu0 0.0
        %6300 = vmatpush1.msra.mxu0 0.0
        %6301 = vmatprep.subr.mxu0 0.0
        %6302 = vmatpush1.msra.mxu0 0.0
        %6303 = vmatprep.subr.mxu0 0.0
        %6304 = vmatpush1.msra.mxu0 0.0
        %6305 = vmatprep.subr.mxu0 0.0
        %6306 = vmatpush1.msra.mxu0 0.0
        %6307 = vmatprep.subr.mxu0 0.0
        %6308 = vmatpush1.msra.mxu0 0.0
        %6309 = vmatprep.subr.mxu0 %v5955
        %6310 = vmatpush1.msra.mxu0 %v5954
        %6311 = vmatprep.subr.mxu0 %v5939
        %6312 = vmatpush1.msra.mxu0 %v5938
        %6313 = vmatprep.subr.mxu0 %v5923
        %6314 = vmatpush1.msra.mxu0 %v5922
        %6315 = vmatprep.subr.mxu0 %v5907
        %6316 = vmatpush1.msra.mxu0 %v5906
        %6317 = vmatprep.subr.mxu0 0.0
        %6318 = vmatpush2.msra.mxu0 0.0
        %6319 = vmatprep.subr.mxu0 0.0
        %6320 = vmatpush2.msra.mxu0 0.0
        %6321 = vmatprep.subr.mxu0 0.0
        %6322 = vmatpush2.msra.mxu0 0.0
        %6323 = vmatprep.subr.mxu0 0.0
        %6324 = vmatpush2.msra.mxu0 0.0
        %6325 = vmatprep.subr.mxu0 0.0
        %6326 = vmatpush2.msra.mxu0 0.0
        %6327 = vmatprep.subr.mxu0 0.0
        %6328 = vmatpush2.msra.mxu0 0.0
        %6329 = vmatprep.subr.mxu0 0.0
        %6330 = vmatpush2.msra.mxu0 0.0
        %6331 = vmatprep.subr.mxu0 0.0
        %6332 = vmatpush2.msra.mxu0 0.0
        %6333 = vmatprep.subr.mxu0 0.0
        %6334 = vmatpush2.msra.mxu0 0.0
        %6335 = vmatprep.subr.mxu0 0.0
        %6336 = vmatpush2.msra.mxu0 0.0
        %6337 = vmatprep.subr.mxu0 0.0
        %6338 = vmatpush2.msra.mxu0 0.0
        %6339 = vmatprep.subr.mxu0 0.0
        %6340 = vmatpush2.msra.mxu0 0.0
        %6341 = vmatprep.subr.mxu0 0.0
        %6342 = vmatpush2.msra.mxu0 0.0
        %6343 = vmatprep.subr.mxu0 0.0
        %6344 = vmatpush2.msra.mxu0 0.0
        %6345 = vmatprep.subr.mxu0 0.0
        %6346 = vmatpush2.msra.mxu0 0.0
        %6347 = vmatprep.subr.mxu0 0.0
        %6348 = vmatpush2.msra.mxu0 0.0
        %6349 = vmatprep.mubr.f32.mxu0 0.0
        %6350 = vmatmul.mubr.f32.gmra.mxu0 %v6049
        %v6351 = vpop.f32.mrf.mxu0
        %v6352 = vadd.f32 %v5995, %v6351
        %v6353 = vpop.f32.mrf.mxu0
        %v6354 = vadd.f32 %v5999, %v6353
        %6355 = vmatprep.mubr.f32.mxu0 0.0
        %6356 = vmatmul.mubr.f32.gmra.mxu0 %v6052
        %v6357 = vpop.f32.mrf.mxu0
        %v6358 = vadd.f32 %v5995, %v6357
        %v6359 = vpop.f32.mrf.mxu0
        %v6360 = vadd.f32 %v5999, %v6359
        %6361 = vdwg.mxu0
        %6362 = vmatprep.subr.mxu0 0.0
        %6363 = vmatpush1.msra.mxu0 0.0
        %6364 = vmatprep.subr.mxu0 0.0
        %6365 = vmatpush1.msra.mxu0 0.0
        %6366 = vmatprep.subr.mxu0 0.0
        %6367 = vmatpush1.msra.mxu0 0.0
        %6368 = vmatprep.subr.mxu0 0.0
        %6369 = vmatpush1.msra.mxu0 0.0
        %6370 = vmatprep.subr.mxu0 0.0
        %6371 = vmatpush1.msra.mxu0 0.0
        %6372 = vmatprep.subr.mxu0 0.0
        %6373 = vmatpush1.msra.mxu0 0.0
        %6374 = vmatprep.subr.mxu0 0.0
        %6375 = vmatpush1.msra.mxu0 0.0
        %6376 = vmatprep.subr.mxu0 0.0
        %6377 = vmatpush1.msra.mxu0 0.0
        %6378 = vmatprep.subr.mxu0 0.0
        %6379 = vmatpush1.msra.mxu0 0.0
        %6380 = vmatprep.subr.mxu0 0.0
        %6381 = vmatpush1.msra.mxu0 0.0
        %6382 = vmatprep.subr.mxu0 0.0
        %6383 = vmatpush1.msra.mxu0 0.0
        %6384 = vmatprep.subr.mxu0 0.0
        %6385 = vmatpush1.msra.mxu0 0.0
        %6386 = vmatprep.subr.mxu0 %v5957
        %6387 = vmatpush1.msra.mxu0 %v5956
        %6388 = vmatprep.subr.mxu0 %v5941
        %6389 = vmatpush1.msra.mxu0 %v5940
        %6390 = vmatprep.subr.mxu0 %v5925
        %6391 = vmatpush1.msra.mxu0 %v5924
        %6392 = vmatprep.subr.mxu0 %v5909
        %6393 = vmatpush1.msra.mxu0 %v5908
        %6394 = vmatprep.subr.mxu0 0.0
        %6395 = vmatpush2.msra.mxu0 0.0
        %6396 = vmatprep.subr.mxu0 0.0
        %6397 = vmatpush2.msra.mxu0 0.0
        %6398 = vmatprep.subr.mxu0 0.0
        %6399 = vmatpush2.msra.mxu0 0.0
        %6400 = vmatprep.subr.mxu0 0.0
        %6401 = vmatpush2.msra.mxu0 0.0
        %6402 = vmatprep.subr.mxu0 0.0
        %6403 = vmatpush2.msra.mxu0 0.0
        %6404 = vmatprep.subr.mxu0 0.0
        %6405 = vmatpush2.msra.mxu0 0.0
        %6406 = vmatprep.subr.mxu0 0.0
        %6407 = vmatpush2.msra.mxu0 0.0
        %6408 = vmatprep.subr.mxu0 0.0
        %6409 = vmatpush2.msra.mxu0 0.0
        %6410 = vmatprep.subr.mxu0 0.0
        %6411 = vmatpush2.msra.mxu0 0.0
        %6412 = vmatprep.subr.mxu0 0.0
        %6413 = vmatpush2.msra.mxu0 0.0
        %6414 = vmatprep.subr.mxu0 0.0
        %6415 = vmatpush2.msra.mxu0 0.0
        %6416 = vmatprep.subr.mxu0 0.0
        %6417 = vmatpush2.msra.mxu0 0.0
        %6418 = vmatprep.subr.mxu0 0.0
        %6419 = vmatpush2.msra.mxu0 0.0
        %6420 = vmatprep.subr.mxu0 0.0
        %6421 = vmatpush2.msra.mxu0 0.0
        %6422 = vmatprep.subr.mxu0 0.0
        %6423 = vmatpush2.msra.mxu0 0.0
        %6424 = vmatprep.subr.mxu0 0.0
        %6425 = vmatpush2.msra.mxu0 0.0
        %6426 = vmatprep.mubr.f32.mxu0 0.0
        %6427 = vmatmul.mubr.f32.gmra.mxu0 %v6049
        %v6428 = vpop.f32.mrf.mxu0
        %v6429 = vadd.f32 %v6003, %v6428
        %v6430 = vpop.f32.mrf.mxu0
        %v6431 = vadd.f32 %v6007, %v6430
        %6432 = vmatprep.mubr.f32.mxu0 0.0
        %6433 = vmatmul.mubr.f32.gmra.mxu0 %v6052
        %v6434 = vpop.f32.mrf.mxu0
        %v6435 = vadd.f32 %v6003, %v6434
        %v6436 = vpop.f32.mrf.mxu0
        %v6437 = vadd.f32 %v6007, %v6436
        %6438 = vdwg.mxu0
        %6439 = vmatprep.subr.mxu0 0.0
        %6440 = vmatpush1.msra.mxu0 0.0
        %6441 = vmatprep.subr.mxu0 0.0
        %6442 = vmatpush1.msra.mxu0 0.0
        %6443 = vmatprep.subr.mxu0 0.0
        %6444 = vmatpush1.msra.mxu0 0.0
        %6445 = vmatprep.subr.mxu0 0.0
        %6446 = vmatpush1.msra.mxu0 0.0
        %6447 = vmatprep.subr.mxu0 0.0
        %6448 = vmatpush1.msra.mxu0 0.0
        %6449 = vmatprep.subr.mxu0 0.0
        %6450 = vmatpush1.msra.mxu0 0.0
        %6451 = vmatprep.subr.mxu0 0.0
        %6452 = vmatpush1.msra.mxu0 0.0
        %6453 = vmatprep.subr.mxu0 0.0
        %6454 = vmatpush1.msra.mxu0 0.0
        %6455 = vmatprep.subr.mxu0 0.0
        %6456 = vmatpush1.msra.mxu0 0.0
        %6457 = vmatprep.subr.mxu0 0.0
        %6458 = vmatpush1.msra.mxu0 0.0
        %6459 = vmatprep.subr.mxu0 0.0
        %6460 = vmatpush1.msra.mxu0 0.0
        %6461 = vmatprep.subr.mxu0 0.0
        %6462 = vmatpush1.msra.mxu0 0.0
        %6463 = vmatprep.subr.mxu0 %v5959
        %6464 = vmatpush1.msra.mxu0 %v5958
        %6465 = vmatprep.subr.mxu0 %v5943
        %6466 = vmatpush1.msra.mxu0 %v5942
        %6467 = vmatprep.subr.mxu0 %v5927
        %6468 = vmatpush1.msra.mxu0 %v5926
        %6469 = vmatprep.subr.mxu0 %v5911
        %6470 = vmatpush1.msra.mxu0 %v5910
        %6471 = vmatprep.subr.mxu0 0.0
        %6472 = vmatpush2.msra.mxu0 0.0
        %6473 = vmatprep.subr.mxu0 0.0
        %6474 = vmatpush2.msra.mxu0 0.0
        %6475 = vmatprep.subr.mxu0 0.0
        %6476 = vmatpush2.msra.mxu0 0.0
        %6477 = vmatprep.subr.mxu0 0.0
        %6478 = vmatpush2.msra.mxu0 0.0
        %6479 = vmatprep.subr.mxu0 0.0
        %6480 = vmatpush2.msra.mxu0 0.0
        %6481 = vmatprep.subr.mxu0 0.0
        %6482 = vmatpush2.msra.mxu0 0.0
        %6483 = vmatprep.subr.mxu0 0.0
        %6484 = vmatpush2.msra.mxu0 0.0
        %6485 = vmatprep.subr.mxu0 0.0
        %6486 = vmatpush2.msra.mxu0 0.0
        %6487 = vmatprep.subr.mxu0 0.0
        %6488 = vmatpush2.msra.mxu0 0.0
        %6489 = vmatprep.subr.mxu0 0.0
        %6490 = vmatpush2.msra.mxu0 0.0
        %6491 = vmatprep.subr.mxu0 0.0
        %6492 = vmatpush2.msra.mxu0 0.0
        %6493 = vmatprep.subr.mxu0 0.0
        %6494 = vmatpush2.msra.mxu0 0.0
        %6495 = vmatprep.subr.mxu0 0.0
        %6496 = vmatpush2.msra.mxu0 0.0
        %6497 = vmatprep.subr.mxu0 0.0
        %6498 = vmatpush2.msra.mxu0 0.0
        %6499 = vmatprep.subr.mxu0 0.0
        %6500 = vmatpush2.msra.mxu0 0.0
        %6501 = vmatprep.subr.mxu0 0.0
        %6502 = vmatpush2.msra.mxu0 0.0
        %6503 = vmatprep.mubr.f32.mxu0 0.0
        %6504 = vmatmul.mubr.f32.gmra.mxu0 %v6049
        %v6505 = vpop.f32.mrf.mxu0
        %v6506 = vadd.f32 %v6011, %v6505
        %v6507 = vpop.f32.mrf.mxu0
        %v6508 = vadd.f32 %v6015, %v6507
        %6509 = vmatprep.mubr.f32.mxu0 0.0
        %6510 = vmatmul.mubr.f32.gmra.mxu0 %v6052
        %v6511 = vpop.f32.mrf.mxu0
        %v6512 = vadd.f32 %v6011, %v6511
        %v6513 = vpop.f32.mrf.mxu0
        %v6514 = vadd.f32 %v6015, %v6513
        %6515 = vdwg.mxu0
        %6516 = vmatprep.subr.mxu0 0.0
        %6517 = vmatpush1.msra.mxu0 0.0
        %6518 = vmatprep.subr.mxu0 0.0
        %6519 = vmatpush1.msra.mxu0 0.0
        %6520 = vmatprep.subr.mxu0 0.0
        %6521 = vmatpush1.msra.mxu0 0.0
        %6522 = vmatprep.subr.mxu0 0.0
        %6523 = vmatpush1.msra.mxu0 0.0
        %6524 = vmatprep.subr.mxu0 0.0
        %6525 = vmatpush1.msra.mxu0 0.0
        %6526 = vmatprep.subr.mxu0 0.0
        %6527 = vmatpush1.msra.mxu0 0.0
        %6528 = vmatprep.subr.mxu0 0.0
        %6529 = vmatpush1.msra.mxu0 0.0
        %6530 = vmatprep.subr.mxu0 0.0
        %6531 = vmatpush1.msra.mxu0 0.0
        %6532 = vmatprep.subr.mxu0 0.0
        %6533 = vmatpush1.msra.mxu0 0.0
        %6534 = vmatprep.subr.mxu0 0.0
        %6535 = vmatpush1.msra.mxu0 0.0
        %6536 = vmatprep.subr.mxu0 0.0
        %6537 = vmatpush1.msra.mxu0 0.0
        %6538 = vmatprep.subr.mxu0 0.0
        %6539 = vmatpush1.msra.mxu0 0.0
        %6540 = vmatprep.subr.mxu0 %v5961
        %6541 = vmatpush1.msra.mxu0 %v5960
        %6542 = vmatprep.subr.mxu0 %v5945
        %6543 = vmatpush1.msra.mxu0 %v5944
        %6544 = vmatprep.subr.mxu0 %v5929
        %6545 = vmatpush1.msra.mxu0 %v5928
        %6546 = vmatprep.subr.mxu0 %v5913
        %6547 = vmatpush1.msra.mxu0 %v5912
        %6548 = vmatprep.subr.mxu0 0.0
        %6549 = vmatpush2.msra.mxu0 0.0
        %6550 = vmatprep.subr.mxu0 0.0
        %6551 = vmatpush2.msra.mxu0 0.0
        %6552 = vmatprep.subr.mxu0 0.0
        %6553 = vmatpush2.msra.mxu0 0.0
        %6554 = vmatprep.subr.mxu0 0.0
        %6555 = vmatpush2.msra.mxu0 0.0
        %6556 = vmatprep.subr.mxu0 0.0
        %6557 = vmatpush2.msra.mxu0 0.0
        %6558 = vmatprep.subr.mxu0 0.0
        %6559 = vmatpush2.msra.mxu0 0.0
        %6560 = vmatprep.subr.mxu0 0.0
        %6561 = vmatpush2.msra.mxu0 0.0
        %6562 = vmatprep.subr.mxu0 0.0
        %6563 = vmatpush2.msra.mxu0 0.0
        %6564 = vmatprep.subr.mxu0 0.0
        %6565 = vmatpush2.msra.mxu0 0.0
        %6566 = vmatprep.subr.mxu0 0.0
        %6567 = vmatpush2.msra.mxu0 0.0
        %6568 = vmatprep.subr.mxu0 0.0
        %6569 = vmatpush2.msra.mxu0 0.0
        %6570 = vmatprep.subr.mxu0 0.0
        %6571 = vmatpush2.msra.mxu0 0.0
        %6572 = vmatprep.subr.mxu0 0.0
        %6573 = vmatpush2.msra.mxu0 0.0
        %6574 = vmatprep.subr.mxu0 0.0
        %6575 = vmatpush2.msra.mxu0 0.0
        %6576 = vmatprep.subr.mxu0 0.0
        %6577 = vmatpush2.msra.mxu0 0.0
        %6578 = vmatprep.subr.mxu0 0.0
        %6579 = vmatpush2.msra.mxu0 0.0
        %6580 = vmatprep.mubr.f32.mxu0 0.0
        %6581 = vmatmul.mubr.f32.gmra.mxu0 %v6049
        %v6582 = vpop.f32.mrf.mxu0
        %v6583 = vadd.f32 %v6019, %v6582
        %v6584 = vpop.f32.mrf.mxu0
        %v6585 = vadd.f32 %v6023, %v6584
        %6586 = vmatprep.mubr.f32.mxu0 0.0
        %6587 = vmatmul.mubr.f32.gmra.mxu0 %v6052
        %v6588 = vpop.f32.mrf.mxu0
        %v6589 = vadd.f32 %v6019, %v6588
        %v6590 = vpop.f32.mrf.mxu0
        %v6591 = vadd.f32 %v6023, %v6590
        %6592 = vdwg.mxu0
        %6593 = vmatprep.subr.mxu0 0.0
        %6594 = vmatpush1.msra.mxu0 0.0
        %6595 = vmatprep.subr.mxu0 0.0
        %6596 = vmatpush1.msra.mxu0 0.0
        %6597 = vmatprep.subr.mxu0 0.0
        %6598 = vmatpush1.msra.mxu0 0.0
        %6599 = vmatprep.subr.mxu0 0.0
        %6600 = vmatpush1.msra.mxu0 0.0
        %6601 = vmatprep.subr.mxu0 0.0
        %6602 = vmatpush1.msra.mxu0 0.0
        %6603 = vmatprep.subr.mxu0 0.0
        %6604 = vmatpush1.msra.mxu0 0.0
        %6605 = vmatprep.subr.mxu0 0.0
        %6606 = vmatpush1.msra.mxu0 0.0
        %6607 = vmatprep.subr.mxu0 0.0
        %6608 = vmatpush1.msra.mxu0 0.0
        %6609 = vmatprep.subr.mxu0 0.0
        %6610 = vmatpush1.msra.mxu0 0.0
        %6611 = vmatprep.subr.mxu0 0.0
        %6612 = vmatpush1.msra.mxu0 0.0
        %6613 = vmatprep.subr.mxu0 0.0
        %6614 = vmatpush1.msra.mxu0 0.0
        %6615 = vmatprep.subr.mxu0 0.0
        %6616 = vmatpush1.msra.mxu0 0.0
        %6617 = vmatprep.subr.mxu0 %v5963
        %6618 = vmatpush1.msra.mxu0 %v5962
        %6619 = vmatprep.subr.mxu0 %v5947
        %6620 = vmatpush1.msra.mxu0 %v5946
        %6621 = vmatprep.subr.mxu0 %v5931
        %6622 = vmatpush1.msra.mxu0 %v5930
        %6623 = vmatprep.subr.mxu0 %v5915
        %6624 = vmatpush1.msra.mxu0 %v5914
        %6625 = vmatprep.subr.mxu0 0.0
        %6626 = vmatpush2.msra.mxu0 0.0
        %6627 = vmatprep.subr.mxu0 0.0
        %6628 = vmatpush2.msra.mxu0 0.0
        %6629 = vmatprep.subr.mxu0 0.0
        %6630 = vmatpush2.msra.mxu0 0.0
        %6631 = vmatprep.subr.mxu0 0.0
        %6632 = vmatpush2.msra.mxu0 0.0
        %6633 = vmatprep.subr.mxu0 0.0
        %6634 = vmatpush2.msra.mxu0 0.0
        %6635 = vmatprep.subr.mxu0 0.0
        %6636 = vmatpush2.msra.mxu0 0.0
        %6637 = vmatprep.subr.mxu0 0.0
        %6638 = vmatpush2.msra.mxu0 0.0
        %6639 = vmatprep.subr.mxu0 0.0
        %6640 = vmatpush2.msra.mxu0 0.0
        %6641 = vmatprep.subr.mxu0 0.0
        %6642 = vmatpush2.msra.mxu0 0.0
        %6643 = vmatprep.subr.mxu0 0.0
        %6644 = vmatpush2.msra.mxu0 0.0
        %6645 = vmatprep.subr.mxu0 0.0
        %6646 = vmatpush2.msra.mxu0 0.0
        %6647 = vmatprep.subr.mxu0 0.0
        %6648 = vmatpush2.msra.mxu0 0.0
        %6649 = vmatprep.subr.mxu0 0.0
        %6650 = vmatpush2.msra.mxu0 0.0
        %6651 = vmatprep.subr.mxu0 0.0
        %6652 = vmatpush2.msra.mxu0 0.0
        %6653 = vmatprep.subr.mxu0 0.0
        %6654 = vmatpush2.msra.mxu0 0.0
        %6655 = vmatprep.subr.mxu0 0.0
        %6656 = vmatpush2.msra.mxu0 0.0
        %6657 = vmatprep.mubr.f32.mxu0 0.0
        %6658 = vmatmul.mubr.f32.gmra.mxu0 %v6049
        %v6659 = vpop.f32.mrf.mxu0
        %v6660 = vadd.f32 %v6027, %v6659
        %v6661 = vpop.f32.mrf.mxu0
        %v6662 = vadd.f32 %v6031, %v6661
        %6663 = vmatprep.mubr.f32.mxu0 0.0
        %6664 = vmatmul.mubr.f32.gmra.mxu0 %v6052
        %v6665 = vpop.f32.mrf.mxu0
        %v6666 = vadd.f32 %v6027, %v6665
        %v6667 = vpop.f32.mrf.mxu0
        %v6668 = vadd.f32 %v6031, %v6667
        %6669 = vdwg.mxu0
        %v6670 = vmax.f32 %v6121, 0.0
        %v6671 = vmax.f32 %v6123, 0.0
        %v6672 = vmax.f32 %v6198, 0.0
        %v6673 = vmax.f32 %v6200, 0.0
        %v6674 = vmax.f32 %v6275, 0.0
        %v6675 = vmax.f32 %v6277, 0.0
        %v6676 = vmax.f32 %v6352, 0.0
        %v6677 = vmax.f32 %v6354, 0.0
        %v6678 = vmax.f32 %v6429, 0.0
        %v6679 = vmax.f32 %v6431, 0.0
        %v6680 = vmax.f32 %v6506, 0.0
        %v6681 = vmax.f32 %v6508, 0.0
        %v6682 = vmax.f32 %v6583, 0.0
        %v6683 = vmax.f32 %v6585, 0.0
        %v6684 = vmax.f32 %v6660, 0.0
        %v6685 = vmax.f32 %v6662, 0.0
        %v6686 = vmax.f32 %v6127, 0.0
        %v6687 = vmax.f32 %v6129, 0.0
        %v6688 = vmax.f32 %v6204, 0.0
        %v6689 = vmax.f32 %v6206, 0.0
        %v6690 = vmax.f32 %v6281, 0.0
        %v6691 = vmax.f32 %v6283, 0.0
        %v6692 = vmax.f32 %v6358, 0.0
        %v6693 = vmax.f32 %v6360, 0.0
        %v6694 = vmax.f32 %v6435, 0.0
        %v6695 = vmax.f32 %v6437, 0.0
        %v6696 = vmax.f32 %v6512, 0.0
        %v6697 = vmax.f32 %v6514, 0.0
        %v6698 = vmax.f32 %v6589, 0.0
        %v6699 = vmax.f32 %v6591, 0.0
        %v6700 = vmax.f32 %v6666, 0.0
        %v6701 = vmax.f32 %v6668, 0.0
        %v6702 = vld [vmem:[%s505] sm:$0xff]
        %v6703 = vld [vmem:[%s505 + $0x8] sm:$0xff]
        %v6704 = vld [vmem:[%s505 + $0x10] sm:$0xff]
        %v6705 = vld [vmem:[%s505 + $0x18] sm:$0xff]
        %v6706 = vld [vmem:[%s505 + $0x20] sm:$0xff]
        %v6707 = vld [vmem:[%s505 + $0x28] sm:$0xff]
        %v6708 = vld [vmem:[%s505 + $0x30] sm:$0xff]
        %v6709 = vld [vmem:[%s505 + $0x38] sm:$0xff]
        %v6710 = vld [vmem:[%s505 + $0x40] sm:$0xff]
        %v6711 = vld [vmem:[%s505 + $0x48] sm:$0xff]
        %v6712 = vld [vmem:[%s505 + $0x50] sm:$0xff]
        %v6713 = vld [vmem:[%s505 + $0x58] sm:$0xff]
        %v6714 = vld [vmem:[%s505 + $0x60] sm:$0xff]
        %v6715 = vld [vmem:[%s505 + $0x68] sm:$0xff]
        %v6716 = vld [vmem:[%s505 + $0x70] sm:$0xff]
        %v6717 = vld [vmem:[%s505 + $0x78] sm:$0xff]
        %v6718 = vld [vmem:[%s505 + $0x80] sm:$0xff]
        %v6719 = vld [vmem:[%s505 + $0x88] sm:$0xff]
        %v6720 = vld [vmem:[%s505 + $0x90] sm:$0xff]
        %v6721 = vld [vmem:[%s505 + $0x98] sm:$0xff]
        %v6722 = vld [vmem:[%s505 + $0xa0] sm:$0xff]
        %v6723 = vld [vmem:[%s505 + $0xa8] sm:$0xff]
        %v6724 = vld [vmem:[%s505 + $0xb0] sm:$0xff]
        %v6725 = vld [vmem:[%s505 + $0xb8] sm:$0xff]
        %v6726 = vld [vmem:[%s505 + $0xc0] sm:$0xff]
        %v6727 = vld [vmem:[%s505 + $0xc8] sm:$0xff]
        %v6728 = vld [vmem:[%s505 + $0xd0] sm:$0xff]
        %v6729 = vld [vmem:[%s505 + $0xd8] sm:$0xff]
        %v6730 = vld [vmem:[%s505 + $0xe0] sm:$0xff]
        %v6731 = vld [vmem:[%s505 + $0xe8] sm:$0xff]
        %v6732 = vld [vmem:[%s505 + $0xf0] sm:$0xff]
        %v6733 = vld [vmem:[%s505 + $0xf8] sm:$0xff]
        %v6734 = vld [vmem:[%s505 + $0x100] sm:$0xff]
        %v6735 = vld [vmem:[%s505 + $0x108] sm:$0xff]
        %v6736 = vld [vmem:[%s505 + $0x110] sm:$0xff]
        %v6737 = vld [vmem:[%s505 + $0x118] sm:$0xff]
        %v6738 = vld [vmem:[%s505 + $0x120] sm:$0xff]
        %v6739 = vld [vmem:[%s505 + $0x128] sm:$0xff]
        %v6740 = vld [vmem:[%s505 + $0x130] sm:$0xff]
        %v6741 = vld [vmem:[%s505 + $0x138] sm:$0xff]
        %v6742 = vld [vmem:[%s505 + $0x140] sm:$0xff]
        %v6743 = vld [vmem:[%s505 + $0x148] sm:$0xff]
        %v6744 = vld [vmem:[%s505 + $0x150] sm:$0xff]
        %v6745 = vld [vmem:[%s505 + $0x158] sm:$0xff]
        %v6746 = vld [vmem:[%s505 + $0x160] sm:$0xff]
        %v6747 = vld [vmem:[%s505 + $0x168] sm:$0xff]
        %v6748 = vld [vmem:[%s505 + $0x170] sm:$0xff]
        %v6749 = vld [vmem:[%s505 + $0x178] sm:$0xff]
        %v6750 = vld [vmem:[%s505 + $0x180] sm:$0xff]
        %v6751 = vld [vmem:[%s505 + $0x188] sm:$0xff]
        %v6752 = vld [vmem:[%s505 + $0x190] sm:$0xff]
        %v6753 = vld [vmem:[%s505 + $0x198] sm:$0xff]
        %v6754 = vld [vmem:[%s505 + $0x1a0] sm:$0xff]
        %v6755 = vld [vmem:[%s505 + $0x1a8] sm:$0xff]
        %v6756 = vld [vmem:[%s505 + $0x1b0] sm:$0xff]
        %v6757 = vld [vmem:[%s505 + $0x1b8] sm:$0xff]
        %v6758 = vld [vmem:[%s505 + $0x1c0] sm:$0xff]
        %v6759 = vld [vmem:[%s505 + $0x1c8] sm:$0xff]
        %v6760 = vld [vmem:[%s505 + $0x1d0] sm:$0xff]
        %v6761 = vld [vmem:[%s505 + $0x1d8] sm:$0xff]
        %v6762 = vld [vmem:[%s505 + $0x1e0] sm:$0xff]
        %v6763 = vld [vmem:[%s505 + $0x1e8] sm:$0xff]
        %v6764 = vld [vmem:[%s505 + $0x1f0] sm:$0xff]
        %v6765 = vld [vmem:[%s505 + $0x1f8] sm:$0xff]
        %v6766 = vld [vmem:[%s624] sm:$0x1]
        %v6768 = vlaneseq
        %v6769 = vshrl.u32 %v6768, 7
        %v6770 = vsub.s32 0, %v6769
        %v6771 = vrot.slane %v6766, %v6770
        %6773 = vmatprep.subr.mxu0 0.0
        %6774 = vmatpush1.xpose.msra.mxu0 0.0
        %6775 = vmatprep.subr.mxu0 0.0
        %6776 = vmatpush1.xpose.msra.mxu0 0.0
        %6777 = vmatprep.subr.mxu0 0.0
        %6778 = vmatpush1.xpose.msra.mxu0 0.0
        %6779 = vmatprep.subr.mxu0 0.0
        %6780 = vmatpush1.xpose.msra.mxu0 0.0
        %6781 = vmatprep.subr.mxu0 0.0
        %6782 = vmatpush1.xpose.msra.mxu0 0.0
        %6783 = vmatprep.subr.mxu0 0.0
        %6784 = vmatpush1.xpose.msra.mxu0 0.0
        %6785 = vmatprep.subr.mxu0 0.0
        %6786 = vmatpush1.xpose.msra.mxu0 0.0
        %6787 = vmatprep.subr.mxu0 0.0
        %6788 = vmatpush1.xpose.msra.mxu0 0.0
        %6789 = vmatprep.subr.mxu0 0.0
        %6790 = vmatpush1.xpose.msra.mxu0 0.0
        %6791 = vmatprep.subr.mxu0 0.0
        %6792 = vmatpush1.xpose.msra.mxu0 0.0
        %6793 = vmatprep.subr.mxu0 0.0
        %6794 = vmatpush1.xpose.msra.mxu0 0.0
        %6795 = vmatprep.subr.mxu0 0.0
        %6796 = vmatpush1.xpose.msra.mxu0 0.0
        %6797 = vmatprep.subr.mxu0 %v6751
        %6798 = vmatpush1.xpose.msra.mxu0 %v6750
        %6799 = vmatprep.subr.mxu0 %v6735
        %6800 = vmatpush1.xpose.msra.mxu0 %v6734
        %6801 = vmatprep.subr.mxu0 %v6719
        %6802 = vmatpush1.xpose.msra.mxu0 %v6718
        %6803 = vmatprep.subr.mxu0 %v6703
        %6804 = vmatpush1.xpose.msra.mxu0 %v6702
        %6805 = vmatprep.subr.mxu0 0.0
        %6806 = vmatpush2.xpose.msra.mxu0 0.0
        %6807 = vmatprep.subr.mxu0 0.0
        %6808 = vmatpush2.xpose.msra.mxu0 0.0
        %6809 = vmatprep.subr.mxu0 0.0
        %6810 = vmatpush2.xpose.msra.mxu0 0.0
        %6811 = vmatprep.subr.mxu0 0.0
        %6812 = vmatpush2.xpose.msra.mxu0 0.0
        %6813 = vmatprep.subr.mxu0 0.0
        %6814 = vmatpush2.xpose.msra.mxu0 0.0
        %6815 = vmatprep.subr.mxu0 0.0
        %6816 = vmatpush2.xpose.msra.mxu0 0.0
        %6817 = vmatprep.subr.mxu0 0.0
        %6818 = vmatpush2.xpose.msra.mxu0 0.0
        %6819 = vmatprep.subr.mxu0 0.0
        %6820 = vmatpush2.xpose.msra.mxu0 0.0
        %6821 = vmatprep.subr.mxu0 0.0
        %6822 = vmatpush2.xpose.msra.mxu0 0.0
        %6823 = vmatprep.subr.mxu0 0.0
        %6824 = vmatpush2.xpose.msra.mxu0 0.0
        %6825 = vmatprep.subr.mxu0 0.0
        %6826 = vmatpush2.xpose.msra.mxu0 0.0
        %6827 = vmatprep.subr.mxu0 0.0
        %6828 = vmatpush2.xpose.msra.mxu0 0.0
        %6829 = vmatprep.subr.mxu0 0.0
        %6830 = vmatpush2.xpose.msra.mxu0 0.0
        %6831 = vmatprep.subr.mxu0 0.0
        %6832 = vmatpush2.xpose.msra.mxu0 0.0
        %6833 = vmatprep.subr.mxu0 0.0
        %6834 = vmatpush2.xpose.msra.mxu0 0.0
        %6835 = vmatprep.subr.mxu0 0.0
        %6836 = vmatpush2.xpose.msra.mxu0 0.0
        %6837 = vmatprep.mubr.f32.mxu0 %v6671
        %6838 = vmatmul.mubr.f32.gmra.mxu0 %v6670
        %v6839 = vpop.f32.mrf.mxu0
        %v6840 = vadd.f32 %v6771, %v6839
        %v6841 = vpop.f32.mrf.mxu0
        %6842 = vmatprep.mubr.f32.mxu0 %v6687
        %6843 = vmatmul.mubr.f32.gmra.mxu0 %v6686
        %v6844 = vpop.f32.mrf.mxu0
        %v6845 = vadd.f32 %v6771, %v6844
        %v6846 = vpop.f32.mrf.mxu0
        %6847 = vdwg.mxu0
        %6848 = vmatprep.subr.mxu0 0.0
        %6849 = vmatpush1.xpose.msra.mxu0 0.0
        %6850 = vmatprep.subr.mxu0 0.0
        %6851 = vmatpush1.xpose.msra.mxu0 0.0
        %6852 = vmatprep.subr.mxu0 0.0
        %6853 = vmatpush1.xpose.msra.mxu0 0.0
        %6854 = vmatprep.subr.mxu0 0.0
        %6855 = vmatpush1.xpose.msra.mxu0 0.0
        %6856 = vmatprep.subr.mxu0 0.0
        %6857 = vmatpush1.xpose.msra.mxu0 0.0
        %6858 = vmatprep.subr.mxu0 0.0
        %6859 = vmatpush1.xpose.msra.mxu0 0.0
        %6860 = vmatprep.subr.mxu0 0.0
        %6861 = vmatpush1.xpose.msra.mxu0 0.0
        %6862 = vmatprep.subr.mxu0 0.0
        %6863 = vmatpush1.xpose.msra.mxu0 0.0
        %6864 = vmatprep.subr.mxu0 0.0
        %6865 = vmatpush1.xpose.msra.mxu0 0.0
        %6866 = vmatprep.subr.mxu0 0.0
        %6867 = vmatpush1.xpose.msra.mxu0 0.0
        %6868 = vmatprep.subr.mxu0 0.0
        %6869 = vmatpush1.xpose.msra.mxu0 0.0
        %6870 = vmatprep.subr.mxu0 0.0
        %6871 = vmatpush1.xpose.msra.mxu0 0.0
        %6872 = vmatprep.subr.mxu0 %v6753
        %6873 = vmatpush1.xpose.msra.mxu0 %v6752
        %6874 = vmatprep.subr.mxu0 %v6737
        %6875 = vmatpush1.xpose.msra.mxu0 %v6736
        %6876 = vmatprep.subr.mxu0 %v6721
        %6877 = vmatpush1.xpose.msra.mxu0 %v6720
        %6878 = vmatprep.subr.mxu0 %v6705
        %6879 = vmatpush1.xpose.msra.mxu0 %v6704
        %6880 = vmatprep.subr.mxu0 0.0
        %6881 = vmatpush2.xpose.msra.mxu0 0.0
        %6882 = vmatprep.subr.mxu0 0.0
        %6883 = vmatpush2.xpose.msra.mxu0 0.0
        %6884 = vmatprep.subr.mxu0 0.0
        %6885 = vmatpush2.xpose.msra.mxu0 0.0
        %6886 = vmatprep.subr.mxu0 0.0
        %6887 = vmatpush2.xpose.msra.mxu0 0.0
        %6888 = vmatprep.subr.mxu0 0.0
        %6889 = vmatpush2.xpose.msra.mxu0 0.0
        %6890 = vmatprep.subr.mxu0 0.0
        %6891 = vmatpush2.xpose.msra.mxu0 0.0
        %6892 = vmatprep.subr.mxu0 0.0
        %6893 = vmatpush2.xpose.msra.mxu0 0.0
        %6894 = vmatprep.subr.mxu0 0.0
        %6895 = vmatpush2.xpose.msra.mxu0 0.0
        %6896 = vmatprep.subr.mxu0 0.0
        %6897 = vmatpush2.xpose.msra.mxu0 0.0
        %6898 = vmatprep.subr.mxu0 0.0
        %6899 = vmatpush2.xpose.msra.mxu0 0.0
        %6900 = vmatprep.subr.mxu0 0.0
        %6901 = vmatpush2.xpose.msra.mxu0 0.0
        %6902 = vmatprep.subr.mxu0 0.0
        %6903 = vmatpush2.xpose.msra.mxu0 0.0
        %6904 = vmatprep.subr.mxu0 0.0
        %6905 = vmatpush2.xpose.msra.mxu0 0.0
        %6906 = vmatprep.subr.mxu0 0.0
        %6907 = vmatpush2.xpose.msra.mxu0 0.0
        %6908 = vmatprep.subr.mxu0 0.0
        %6909 = vmatpush2.xpose.msra.mxu0 0.0
        %6910 = vmatprep.subr.mxu0 0.0
        %6911 = vmatpush2.xpose.msra.mxu0 0.0
        %6912 = vmatprep.mubr.f32.mxu0 %v6673
        %6913 = vmatmul.mubr.f32.gmra.mxu0 %v6672
        %v6914 = vpop.f32.mrf.mxu0
        %v6915 = vadd.f32 %v6840, %v6914
        %v6916 = vpop.f32.mrf.mxu0
        %6917 = vmatprep.mubr.f32.mxu0 %v6689
        %6918 = vmatmul.mubr.f32.gmra.mxu0 %v6688
        %v6919 = vpop.f32.mrf.mxu0
        %v6920 = vadd.f32 %v6845, %v6919
        %v6921 = vpop.f32.mrf.mxu0
        %6922 = vdwg.mxu0
        %6923 = vmatprep.subr.mxu0 0.0
        %6924 = vmatpush1.xpose.msra.mxu0 0.0
        %6925 = vmatprep.subr.mxu0 0.0
        %6926 = vmatpush1.xpose.msra.mxu0 0.0
        %6927 = vmatprep.subr.mxu0 0.0
        %6928 = vmatpush1.xpose.msra.mxu0 0.0
        %6929 = vmatprep.subr.mxu0 0.0
        %6930 = vmatpush1.xpose.msra.mxu0 0.0
        %6931 = vmatprep.subr.mxu0 0.0
        %6932 = vmatpush1.xpose.msra.mxu0 0.0
        %6933 = vmatprep.subr.mxu0 0.0
        %6934 = vmatpush1.xpose.msra.mxu0 0.0
        %6935 = vmatprep.subr.mxu0 0.0
        %6936 = vmatpush1.xpose.msra.mxu0 0.0
        %6937 = vmatprep.subr.mxu0 0.0
        %6938 = vmatpush1.xpose.msra.mxu0 0.0
        %6939 = vmatprep.subr.mxu0 0.0
        %6940 = vmatpush1.xpose.msra.mxu0 0.0
        %6941 = vmatprep.subr.mxu0 0.0
        %6942 = vmatpush1.xpose.msra.mxu0 0.0
        %6943 = vmatprep.subr.mxu0 0.0
        %6944 = vmatpush1.xpose.msra.mxu0 0.0
        %6945 = vmatprep.subr.mxu0 0.0
        %6946 = vmatpush1.xpose.msra.mxu0 0.0
        %6947 = vmatprep.subr.mxu0 %v6755
        %6948 = vmatpush1.xpose.msra.mxu0 %v6754
        %6949 = vmatprep.subr.mxu0 %v6739
        %6950 = vmatpush1.xpose.msra.mxu0 %v6738
        %6951 = vmatprep.subr.mxu0 %v6723
        %6952 = vmatpush1.xpose.msra.mxu0 %v6722
        %6953 = vmatprep.subr.mxu0 %v6707
        %6954 = vmatpush1.xpose.msra.mxu0 %v6706
        %6955 = vmatprep.subr.mxu0 0.0
        %6956 = vmatpush2.xpose.msra.mxu0 0.0
        %6957 = vmatprep.subr.mxu0 0.0
        %6958 = vmatpush2.xpose.msra.mxu0 0.0
        %6959 = vmatprep.subr.mxu0 0.0
        %6960 = vmatpush2.xpose.msra.mxu0 0.0
        %6961 = vmatprep.subr.mxu0 0.0
        %6962 = vmatpush2.xpose.msra.mxu0 0.0
        %6963 = vmatprep.subr.mxu0 0.0
        %6964 = vmatpush2.xpose.msra.mxu0 0.0
        %6965 = vmatprep.subr.mxu0 0.0
        %6966 = vmatpush2.xpose.msra.mxu0 0.0
        %6967 = vmatprep.subr.mxu0 0.0
        %6968 = vmatpush2.xpose.msra.mxu0 0.0
        %6969 = vmatprep.subr.mxu0 0.0
        %6970 = vmatpush2.xpose.msra.mxu0 0.0
        %6971 = vmatprep.subr.mxu0 0.0
        %6972 = vmatpush2.xpose.msra.mxu0 0.0
        %6973 = vmatprep.subr.mxu0 0.0
        %6974 = vmatpush2.xpose.msra.mxu0 0.0
        %6975 = vmatprep.subr.mxu0 0.0
        %6976 = vmatpush2.xpose.msra.mxu0 0.0
        %6977 = vmatprep.subr.mxu0 0.0
        %6978 = vmatpush2.xpose.msra.mxu0 0.0
        %6979 = vmatprep.subr.mxu0 0.0
        %6980 = vmatpush2.xpose.msra.mxu0 0.0
        %6981 = vmatprep.subr.mxu0 0.0
        %6982 = vmatpush2.xpose.msra.mxu0 0.0
        %6983 = vmatprep.subr.mxu0 0.0
        %6984 = vmatpush2.xpose.msra.mxu0 0.0
        %6985 = vmatprep.subr.mxu0 0.0
        %6986 = vmatpush2.xpose.msra.mxu0 0.0
        %6987 = vmatprep.mubr.f32.mxu0 %v6675
        %6988 = vmatmul.mubr.f32.gmra.mxu0 %v6674
        %v6989 = vpop.f32.mrf.mxu0
        %v6990 = vadd.f32 %v6915, %v6989
        %v6991 = vpop.f32.mrf.mxu0
        %6992 = vmatprep.mubr.f32.mxu0 %v6691
        %6993 = vmatmul.mubr.f32.gmra.mxu0 %v6690
        %v6994 = vpop.f32.mrf.mxu0
        %v6995 = vadd.f32 %v6920, %v6994
        %v6996 = vpop.f32.mrf.mxu0
        %6997 = vdwg.mxu0
        %6998 = vmatprep.subr.mxu0 0.0
        %6999 = vmatpush1.xpose.msra.mxu0 0.0
        %7000 = vmatprep.subr.mxu0 0.0
        %7001 = vmatpush1.xpose.msra.mxu0 0.0
        %7002 = vmatprep.subr.mxu0 0.0
        %7003 = vmatpush1.xpose.msra.mxu0 0.0
        %7004 = vmatprep.subr.mxu0 0.0
        %7005 = vmatpush1.xpose.msra.mxu0 0.0
        %7006 = vmatprep.subr.mxu0 0.0
        %7007 = vmatpush1.xpose.msra.mxu0 0.0
        %7008 = vmatprep.subr.mxu0 0.0
        %7009 = vmatpush1.xpose.msra.mxu0 0.0
        %7010 = vmatprep.subr.mxu0 0.0
        %7011 = vmatpush1.xpose.msra.mxu0 0.0
        %7012 = vmatprep.subr.mxu0 0.0
        %7013 = vmatpush1.xpose.msra.mxu0 0.0
        %7014 = vmatprep.subr.mxu0 0.0
        %7015 = vmatpush1.xpose.msra.mxu0 0.0
        %7016 = vmatprep.subr.mxu0 0.0
        %7017 = vmatpush1.xpose.msra.mxu0 0.0
        %7018 = vmatprep.subr.mxu0 0.0
        %7019 = vmatpush1.xpose.msra.mxu0 0.0
        %7020 = vmatprep.subr.mxu0 0.0
        %7021 = vmatpush1.xpose.msra.mxu0 0.0
        %7022 = vmatprep.subr.mxu0 %v6757
        %7023 = vmatpush1.xpose.msra.mxu0 %v6756
        %7024 = vmatprep.subr.mxu0 %v6741
        %7025 = vmatpush1.xpose.msra.mxu0 %v6740
        %7026 = vmatprep.subr.mxu0 %v6725
        %7027 = vmatpush1.xpose.msra.mxu0 %v6724
        %7028 = vmatprep.subr.mxu0 %v6709
        %7029 = vmatpush1.xpose.msra.mxu0 %v6708
        %7030 = vmatprep.subr.mxu0 0.0
        %7031 = vmatpush2.xpose.msra.mxu0 0.0
        %7032 = vmatprep.subr.mxu0 0.0
        %7033 = vmatpush2.xpose.msra.mxu0 0.0
        %7034 = vmatprep.subr.mxu0 0.0
        %7035 = vmatpush2.xpose.msra.mxu0 0.0
        %7036 = vmatprep.subr.mxu0 0.0
        %7037 = vmatpush2.xpose.msra.mxu0 0.0
        %7038 = vmatprep.subr.mxu0 0.0
        %7039 = vmatpush2.xpose.msra.mxu0 0.0
        %7040 = vmatprep.subr.mxu0 0.0
        %7041 = vmatpush2.xpose.msra.mxu0 0.0
        %7042 = vmatprep.subr.mxu0 0.0
        %7043 = vmatpush2.xpose.msra.mxu0 0.0
        %7044 = vmatprep.subr.mxu0 0.0
        %7045 = vmatpush2.xpose.msra.mxu0 0.0
        %7046 = vmatprep.subr.mxu0 0.0
        %7047 = vmatpush2.xpose.msra.mxu0 0.0
        %7048 = vmatprep.subr.mxu0 0.0
        %7049 = vmatpush2.xpose.msra.mxu0 0.0
        %7050 = vmatprep.subr.mxu0 0.0
        %7051 = vmatpush2.xpose.msra.mxu0 0.0
        %7052 = vmatprep.subr.mxu0 0.0
        %7053 = vmatpush2.xpose.msra.mxu0 0.0
        %7054 = vmatprep.subr.mxu0 0.0
        %7055 = vmatpush2.xpose.msra.mxu0 0.0
        %7056 = vmatprep.subr.mxu0 0.0
        %7057 = vmatpush2.xpose.msra.mxu0 0.0
        %7058 = vmatprep.subr.mxu0 0.0
        %7059 = vmatpush2.xpose.msra.mxu0 0.0
        %7060 = vmatprep.subr.mxu0 0.0
        %7061 = vmatpush2.xpose.msra.mxu0 0.0
        %7062 = vmatprep.mubr.f32.mxu0 %v6677
        %7063 = vmatmul.mubr.f32.gmra.mxu0 %v6676
        %v7064 = vpop.f32.mrf.mxu0
        %v7065 = vadd.f32 %v6990, %v7064
        %v7066 = vpop.f32.mrf.mxu0
        %7067 = vmatprep.mubr.f32.mxu0 %v6693
        %7068 = vmatmul.mubr.f32.gmra.mxu0 %v6692
        %v7069 = vpop.f32.mrf.mxu0
        %v7070 = vadd.f32 %v6995, %v7069
        %v7071 = vpop.f32.mrf.mxu0
        %7072 = vdwg.mxu0
        %7073 = vmatprep.subr.mxu0 0.0
        %7074 = vmatpush1.xpose.msra.mxu0 0.0
        %7075 = vmatprep.subr.mxu0 0.0
        %7076 = vmatpush1.xpose.msra.mxu0 0.0
        %7077 = vmatprep.subr.mxu0 0.0
        %7078 = vmatpush1.xpose.msra.mxu0 0.0
        %7079 = vmatprep.subr.mxu0 0.0
        %7080 = vmatpush1.xpose.msra.mxu0 0.0
        %7081 = vmatprep.subr.mxu0 0.0
        %7082 = vmatpush1.xpose.msra.mxu0 0.0
        %7083 = vmatprep.subr.mxu0 0.0
        %7084 = vmatpush1.xpose.msra.mxu0 0.0
        %7085 = vmatprep.subr.mxu0 0.0
        %7086 = vmatpush1.xpose.msra.mxu0 0.0
        %7087 = vmatprep.subr.mxu0 0.0
        %7088 = vmatpush1.xpose.msra.mxu0 0.0
        %7089 = vmatprep.subr.mxu0 0.0
        %7090 = vmatpush1.xpose.msra.mxu0 0.0
        %7091 = vmatprep.subr.mxu0 0.0
        %7092 = vmatpush1.xpose.msra.mxu0 0.0
        %7093 = vmatprep.subr.mxu0 0.0
        %7094 = vmatpush1.xpose.msra.mxu0 0.0
        %7095 = vmatprep.subr.mxu0 0.0
        %7096 = vmatpush1.xpose.msra.mxu0 0.0
        %7097 = vmatprep.subr.mxu0 %v6759
        %7098 = vmatpush1.xpose.msra.mxu0 %v6758
        %7099 = vmatprep.subr.mxu0 %v6743
        %7100 = vmatpush1.xpose.msra.mxu0 %v6742
        %7101 = vmatprep.subr.mxu0 %v6727
        %7102 = vmatpush1.xpose.msra.mxu0 %v6726
        %7103 = vmatprep.subr.mxu0 %v6711
        %7104 = vmatpush1.xpose.msra.mxu0 %v6710
        %7105 = vmatprep.subr.mxu0 0.0
        %7106 = vmatpush2.xpose.msra.mxu0 0.0
        %7107 = vmatprep.subr.mxu0 0.0
        %7108 = vmatpush2.xpose.msra.mxu0 0.0
        %7109 = vmatprep.subr.mxu0 0.0
        %7110 = vmatpush2.xpose.msra.mxu0 0.0
        %7111 = vmatprep.subr.mxu0 0.0
        %7112 = vmatpush2.xpose.msra.mxu0 0.0
        %7113 = vmatprep.subr.mxu0 0.0
        %7114 = vmatpush2.xpose.msra.mxu0 0.0
        %7115 = vmatprep.subr.mxu0 0.0
        %7116 = vmatpush2.xpose.msra.mxu0 0.0
        %7117 = vmatprep.subr.mxu0 0.0
        %7118 = vmatpush2.xpose.msra.mxu0 0.0
        %7119 = vmatprep.subr.mxu0 0.0
        %7120 = vmatpush2.xpose.msra.mxu0 0.0
        %7121 = vmatprep.subr.mxu0 0.0
        %7122 = vmatpush2.xpose.msra.mxu0 0.0
        %7123 = vmatprep.subr.mxu0 0.0
        %7124 = vmatpush2.xpose.msra.mxu0 0.0
        %7125 = vmatprep.subr.mxu0 0.0
        %7126 = vmatpush2.xpose.msra.mxu0 0.0
        %7127 = vmatprep.subr.mxu0 0.0
        %7128 = vmatpush2.xpose.msra.mxu0 0.0
        %7129 = vmatprep.subr.mxu0 0.0
        %7130 = vmatpush2.xpose.msra.mxu0 0.0
        %7131 = vmatprep.subr.mxu0 0.0
        %7132 = vmatpush2.xpose.msra.mxu0 0.0
        %7133 = vmatprep.subr.mxu0 0.0
        %7134 = vmatpush2.xpose.msra.mxu0 0.0
        %7135 = vmatprep.subr.mxu0 0.0
        %7136 = vmatpush2.xpose.msra.mxu0 0.0
        %7137 = vmatprep.mubr.f32.mxu0 %v6679
        %7138 = vmatmul.mubr.f32.gmra.mxu0 %v6678
        %v7139 = vpop.f32.mrf.mxu0
        %v7140 = vadd.f32 %v7065, %v7139
        %v7141 = vpop.f32.mrf.mxu0
        %7142 = vmatprep.mubr.f32.mxu0 %v6695
        %7143 = vmatmul.mubr.f32.gmra.mxu0 %v6694
        %v7144 = vpop.f32.mrf.mxu0
        %v7145 = vadd.f32 %v7070, %v7144
        %v7146 = vpop.f32.mrf.mxu0
        %7147 = vdwg.mxu0
        %7148 = vmatprep.subr.mxu0 0.0
        %7149 = vmatpush1.xpose.msra.mxu0 0.0
        %7150 = vmatprep.subr.mxu0 0.0
        %7151 = vmatpush1.xpose.msra.mxu0 0.0
        %7152 = vmatprep.subr.mxu0 0.0
        %7153 = vmatpush1.xpose.msra.mxu0 0.0
        %7154 = vmatprep.subr.mxu0 0.0
        %7155 = vmatpush1.xpose.msra.mxu0 0.0
        %7156 = vmatprep.subr.mxu0 0.0
        %7157 = vmatpush1.xpose.msra.mxu0 0.0
        %7158 = vmatprep.subr.mxu0 0.0
        %7159 = vmatpush1.xpose.msra.mxu0 0.0
        %7160 = vmatprep.subr.mxu0 0.0
        %7161 = vmatpush1.xpose.msra.mxu0 0.0
        %7162 = vmatprep.subr.mxu0 0.0
        %7163 = vmatpush1.xpose.msra.mxu0 0.0
        %7164 = vmatprep.subr.mxu0 0.0
        %7165 = vmatpush1.xpose.msra.mxu0 0.0
        %7166 = vmatprep.subr.mxu0 0.0
        %7167 = vmatpush1.xpose.msra.mxu0 0.0
        %7168 = vmatprep.subr.mxu0 0.0
        %7169 = vmatpush1.xpose.msra.mxu0 0.0
        %7170 = vmatprep.subr.mxu0 0.0
        %7171 = vmatpush1.xpose.msra.mxu0 0.0
        %7172 = vmatprep.subr.mxu0 %v6761
        %7173 = vmatpush1.xpose.msra.mxu0 %v6760
        %7174 = vmatprep.subr.mxu0 %v6745
        %7175 = vmatpush1.xpose.msra.mxu0 %v6744
        %7176 = vmatprep.subr.mxu0 %v6729
        %7177 = vmatpush1.xpose.msra.mxu0 %v6728
        %7178 = vmatprep.subr.mxu0 %v6713
        %7179 = vmatpush1.xpose.msra.mxu0 %v6712
        %7180 = vmatprep.subr.mxu0 0.0
        %7181 = vmatpush2.xpose.msra.mxu0 0.0
        %7182 = vmatprep.subr.mxu0 0.0
        %7183 = vmatpush2.xpose.msra.mxu0 0.0
        %7184 = vmatprep.subr.mxu0 0.0
        %7185 = vmatpush2.xpose.msra.mxu0 0.0
        %7186 = vmatprep.subr.mxu0 0.0
        %7187 = vmatpush2.xpose.msra.mxu0 0.0
        %7188 = vmatprep.subr.mxu0 0.0
        %7189 = vmatpush2.xpose.msra.mxu0 0.0
        %7190 = vmatprep.subr.mxu0 0.0
        %7191 = vmatpush2.xpose.msra.mxu0 0.0
        %7192 = vmatprep.subr.mxu0 0.0
        %7193 = vmatpush2.xpose.msra.mxu0 0.0
        %7194 = vmatprep.subr.mxu0 0.0
        %7195 = vmatpush2.xpose.msra.mxu0 0.0
        %7196 = vmatprep.subr.mxu0 0.0
        %7197 = vmatpush2.xpose.msra.mxu0 0.0
        %7198 = vmatprep.subr.mxu0 0.0
        %7199 = vmatpush2.xpose.msra.mxu0 0.0
        %7200 = vmatprep.subr.mxu0 0.0
        %7201 = vmatpush2.xpose.msra.mxu0 0.0
        %7202 = vmatprep.subr.mxu0 0.0
        %7203 = vmatpush2.xpose.msra.mxu0 0.0
        %7204 = vmatprep.subr.mxu0 0.0
        %7205 = vmatpush2.xpose.msra.mxu0 0.0
        %7206 = vmatprep.subr.mxu0 0.0
        %7207 = vmatpush2.xpose.msra.mxu0 0.0
        %7208 = vmatprep.subr.mxu0 0.0
        %7209 = vmatpush2.xpose.msra.mxu0 0.0
        %7210 = vmatprep.subr.mxu0 0.0
        %7211 = vmatpush2.xpose.msra.mxu0 0.0
        %7212 = vmatprep.mubr.f32.mxu0 %v6681
        %7213 = vmatmul.mubr.f32.gmra.mxu0 %v6680
        %v7214 = vpop.f32.mrf.mxu0
        %v7215 = vadd.f32 %v7140, %v7214
        %v7216 = vpop.f32.mrf.mxu0
        %7217 = vmatprep.mubr.f32.mxu0 %v6697
        %7218 = vmatmul.mubr.f32.gmra.mxu0 %v6696
        %v7219 = vpop.f32.mrf.mxu0
        %v7220 = vadd.f32 %v7145, %v7219
        %v7221 = vpop.f32.mrf.mxu0
        %7222 = vdwg.mxu0
        %7223 = vmatprep.subr.mxu0 0.0
        %7224 = vmatpush1.xpose.msra.mxu0 0.0
        %7225 = vmatprep.subr.mxu0 0.0
        %7226 = vmatpush1.xpose.msra.mxu0 0.0
        %7227 = vmatprep.subr.mxu0 0.0
        %7228 = vmatpush1.xpose.msra.mxu0 0.0
        %7229 = vmatprep.subr.mxu0 0.0
        %7230 = vmatpush1.xpose.msra.mxu0 0.0
        %7231 = vmatprep.subr.mxu0 0.0
        %7232 = vmatpush1.xpose.msra.mxu0 0.0
        %7233 = vmatprep.subr.mxu0 0.0
        %7234 = vmatpush1.xpose.msra.mxu0 0.0
        %7235 = vmatprep.subr.mxu0 0.0
        %7236 = vmatpush1.xpose.msra.mxu0 0.0
        %7237 = vmatprep.subr.mxu0 0.0
        %7238 = vmatpush1.xpose.msra.mxu0 0.0
        %7239 = vmatprep.subr.mxu0 0.0
        %7240 = vmatpush1.xpose.msra.mxu0 0.0
        %7241 = vmatprep.subr.mxu0 0.0
        %7242 = vmatpush1.xpose.msra.mxu0 0.0
        %7243 = vmatprep.subr.mxu0 0.0
        %7244 = vmatpush1.xpose.msra.mxu0 0.0
        %7245 = vmatprep.subr.mxu0 0.0
        %7246 = vmatpush1.xpose.msra.mxu0 0.0
        %7247 = vmatprep.subr.mxu0 %v6763
        %7248 = vmatpush1.xpose.msra.mxu0 %v6762
        %7249 = vmatprep.subr.mxu0 %v6747
        %7250 = vmatpush1.xpose.msra.mxu0 %v6746
        %7251 = vmatprep.subr.mxu0 %v6731
        %7252 = vmatpush1.xpose.msra.mxu0 %v6730
        %7253 = vmatprep.subr.mxu0 %v6715
        %7254 = vmatpush1.xpose.msra.mxu0 %v6714
        %7255 = vmatprep.subr.mxu0 0.0
        %7256 = vmatpush2.xpose.msra.mxu0 0.0
        %7257 = vmatprep.subr.mxu0 0.0
        %7258 = vmatpush2.xpose.msra.mxu0 0.0
        %7259 = vmatprep.subr.mxu0 0.0
        %7260 = vmatpush2.xpose.msra.mxu0 0.0
        %7261 = vmatprep.subr.mxu0 0.0
        %7262 = vmatpush2.xpose.msra.mxu0 0.0
        %7263 = vmatprep.subr.mxu0 0.0
        %7264 = vmatpush2.xpose.msra.mxu0 0.0
        %7265 = vmatprep.subr.mxu0 0.0
        %7266 = vmatpush2.xpose.msra.mxu0 0.0
        %7267 = vmatprep.subr.mxu0 0.0
        %7268 = vmatpush2.xpose.msra.mxu0 0.0
        %7269 = vmatprep.subr.mxu0 0.0
        %7270 = vmatpush2.xpose.msra.mxu0 0.0
        %7271 = vmatprep.subr.mxu0 0.0
        %7272 = vmatpush2.xpose.msra.mxu0 0.0
        %7273 = vmatprep.subr.mxu0 0.0
        %7274 = vmatpush2.xpose.msra.mxu0 0.0
        %7275 = vmatprep.subr.mxu0 0.0
        %7276 = vmatpush2.xpose.msra.mxu0 0.0
        %7277 = vmatprep.subr.mxu0 0.0
        %7278 = vmatpush2.xpose.msra.mxu0 0.0
        %7279 = vmatprep.subr.mxu0 0.0
        %7280 = vmatpush2.xpose.msra.mxu0 0.0
        %7281 = vmatprep.subr.mxu0 0.0
        %7282 = vmatpush2.xpose.msra.mxu0 0.0
        %7283 = vmatprep.subr.mxu0 0.0
        %7284 = vmatpush2.xpose.msra.mxu0 0.0
        %7285 = vmatprep.subr.mxu0 0.0
        %7286 = vmatpush2.xpose.msra.mxu0 0.0
        %7287 = vmatprep.mubr.f32.mxu0 %v6683
        %7288 = vmatmul.mubr.f32.gmra.mxu0 %v6682
        %v7289 = vpop.f32.mrf.mxu0
        %v7290 = vadd.f32 %v7215, %v7289
        %v7291 = vpop.f32.mrf.mxu0
        %7292 = vmatprep.mubr.f32.mxu0 %v6699
        %7293 = vmatmul.mubr.f32.gmra.mxu0 %v6698
        %v7294 = vpop.f32.mrf.mxu0
        %v7295 = vadd.f32 %v7220, %v7294
        %v7296 = vpop.f32.mrf.mxu0
        %7297 = vdwg.mxu0
        %7298 = vmatprep.subr.mxu0 0.0
        %7299 = vmatpush1.xpose.msra.mxu0 0.0
        %7300 = vmatprep.subr.mxu0 0.0
        %7301 = vmatpush1.xpose.msra.mxu0 0.0
        %7302 = vmatprep.subr.mxu0 0.0
        %7303 = vmatpush1.xpose.msra.mxu0 0.0
        %7304 = vmatprep.subr.mxu0 0.0
        %7305 = vmatpush1.xpose.msra.mxu0 0.0
        %7306 = vmatprep.subr.mxu0 0.0
        %7307 = vmatpush1.xpose.msra.mxu0 0.0
        %7308 = vmatprep.subr.mxu0 0.0
        %7309 = vmatpush1.xpose.msra.mxu0 0.0
        %7310 = vmatprep.subr.mxu0 0.0
        %7311 = vmatpush1.xpose.msra.mxu0 0.0
        %7312 = vmatprep.subr.mxu0 0.0
        %7313 = vmatpush1.xpose.msra.mxu0 0.0
        %7314 = vmatprep.subr.mxu0 0.0
        %7315 = vmatpush1.xpose.msra.mxu0 0.0
        %7316 = vmatprep.subr.mxu0 0.0
        %7317 = vmatpush1.xpose.msra.mxu0 0.0
        %7318 = vmatprep.subr.mxu0 0.0
        %7319 = vmatpush1.xpose.msra.mxu0 0.0
        %7320 = vmatprep.subr.mxu0 0.0
        %7321 = vmatpush1.xpose.msra.mxu0 0.0
        %7322 = vmatprep.subr.mxu0 %v6765
        %7323 = vmatpush1.xpose.msra.mxu0 %v6764
        %7324 = vmatprep.subr.mxu0 %v6749
        %7325 = vmatpush1.xpose.msra.mxu0 %v6748
        %7326 = vmatprep.subr.mxu0 %v6733
        %7327 = vmatpush1.xpose.msra.mxu0 %v6732
        %7328 = vmatprep.subr.mxu0 %v6717
        %7329 = vmatpush1.xpose.msra.mxu0 %v6716
        %7330 = vmatprep.subr.mxu0 0.0
        %7331 = vmatpush2.xpose.msra.mxu0 0.0
        %7332 = vmatprep.subr.mxu0 0.0
        %7333 = vmatpush2.xpose.msra.mxu0 0.0
        %7334 = vmatprep.subr.mxu0 0.0
        %7335 = vmatpush2.xpose.msra.mxu0 0.0
        %7336 = vmatprep.subr.mxu0 0.0
        %7337 = vmatpush2.xpose.msra.mxu0 0.0
        %7338 = vmatprep.subr.mxu0 0.0
        %7339 = vmatpush2.xpose.msra.mxu0 0.0
        %7340 = vmatprep.subr.mxu0 0.0
        %7341 = vmatpush2.xpose.msra.mxu0 0.0
        %7342 = vmatprep.subr.mxu0 0.0
        %7343 = vmatpush2.xpose.msra.mxu0 0.0
        %7344 = vmatprep.subr.mxu0 0.0
        %7345 = vmatpush2.xpose.msra.mxu0 0.0
        %7346 = vmatprep.subr.mxu0 0.0
        %7347 = vmatpush2.xpose.msra.mxu0 0.0
        %7348 = vmatprep.subr.mxu0 0.0
        %7349 = vmatpush2.xpose.msra.mxu0 0.0
        %7350 = vmatprep.subr.mxu0 0.0
        %7351 = vmatpush2.xpose.msra.mxu0 0.0
        %7352 = vmatprep.subr.mxu0 0.0
        %7353 = vmatpush2.xpose.msra.mxu0 0.0
        %7354 = vmatprep.subr.mxu0 0.0
        %7355 = vmatpush2.xpose.msra.mxu0 0.0
        %7356 = vmatprep.subr.mxu0 0.0
        %7357 = vmatpush2.xpose.msra.mxu0 0.0
        %7358 = vmatprep.subr.mxu0 0.0
        %7359 = vmatpush2.xpose.msra.mxu0 0.0
        %7360 = vmatprep.subr.mxu0 0.0
        %7361 = vmatpush2.xpose.msra.mxu0 0.0
        %7362 = vmatprep.mubr.f32.mxu0 %v6685
        %7363 = vmatmul.mubr.f32.gmra.mxu0 %v6684
        %v7364 = vpop.f32.mrf.mxu0
        %v7365 = vadd.f32 %v7290, %v7364
        %v7366 = vpop.f32.mrf.mxu0
        %7367 = vmatprep.mubr.f32.mxu0 %v6701
        %7368 = vmatmul.mubr.f32.gmra.mxu0 %v6700
        %v7369 = vpop.f32.mrf.mxu0
        %v7370 = vadd.f32 %v7295, %v7369
        %v7371 = vpop.f32.mrf.mxu0
        %7372 = vdwg.mxu0
        %v7373 = vadd.f32 %v5898, %v7365
        %v7374 = vadd.f32 %v5899, %v7370
        %v7375 = vsel %vm812, %v7373, 0.0
        %7376 = vadd.xlane.f32.xlu0 %v7375
        %v7377 = vpop.xlane.xlu0 %7376
        %v7378 = vsel %vm812, %v7374, 0.0
        %7379 = vadd.xlane.f32.xlu0 %v7378
        %v7380 = vpop.xlane.xlu0 %7379
        %v7381 = vmul.f32 %v7377, %v5861
        %v7382 = vmul.f32 %v7380, %v5861
        %v7383 = vsub.f32 %v7373, %v7381
        %v7384 = vsub.f32 %v7374, %v7382
        %v7385 = vmul.f32 %v7383, %v7383
        %v7386 = vmul.f32 %v7384, %v7384
        %v7387 = vsel %vm812, %v7385, 0.0
        %7388 = vadd.xlane.f32.xlu0 %v7387
        %v7389 = vpop.xlane.xlu0 %7388
        %v7390 = vsel %vm812, %v7386, 0.0
        %7391 = vadd.xlane.f32.xlu0 %v7390
        %v7392 = vpop.xlane.xlu0 %7391
        %v7393 = vmul.f32 %v7389, %v5861
        %v7394 = vmul.f32 %v7392, %v5861
        %v7395 = vadd.f32 %v7393, 1e-05
        %v7396 = vadd.f32 %v7394, 1e-05
        %v7397 = vrsqrt.pop %v7395
        %v7398 = vrsqrt.pop %v7396
        %v7399 = vmul.f32 %v7383, %v7397
        %v7400 = vmul.f32 %v7384, %v7398
        %v7401 = vld [vmem:[%s609] sm:$0x1]
        %v7403 = vlaneseq
        %v7404 = vshrl.u32 %v7403, 7
        %v7405 = vsub.s32 0, %v7404
        %v7406 = vrot.slane %v7401, %v7405
        %v7408 = vmul.f32 %v7399, %v7406
        %v7409 = vmul.f32 %v7400, %v7406
        %v7410 = vld [vmem:[%s612] sm:$0x1]
        %v7412 = vlaneseq
        %v7413 = vshrl.u32 %v7412, 7
        %v7414 = vsub.s32 0, %v7413
        %v7415 = vrot.slane %v7410, %v7414
        %v7417 = vadd.f32 %v7408, %v7415
        %v7418 = vadd.f32 %v7409, %v7415
        %7419 = vst.msk [vmem:[#allocation5] sm:$0xff] %vm812, %v7417
        %7420 = vst.msk [vmem:[#allocation5 + $0x8] sm:$0xff] %vm812, %v7418
        // Predicated region
        $region81: #{tpu_custom_call.1} parent=71 // pred_check
          %p7421 = pneg %p374
        $region82: #{tpu_custom_call.1} parent=71 // pred_check_branch
          %7423 = sbr.rel (%p7421) target = $region84
        $region83: #{tpu_custom_call.1} parent=71 // pred_region
          %s7425 = ssub.s32 256, 256
          %7426 = vsyncadd [#allocation4], %s7425
          %s7427 = sshll.u32 [#allocation5], 4
          %s7428 = int_to_ptr.vmem [resolvable:$true] %s7427
          %7433 = dma.vmem_to_hbm [thread:$0]  %s7428, 256, %s13, [#allocation4], 128, 128, 8
        $region84: #{tpu_custom_call.1} parent=71 // pred_fallthru
          _
        // Predicated region
        $region85: #{tpu_custom_call.1} parent=71 // pred_check
          %p7434 = pneg %p374
        $region86: #{tpu_custom_call.1} parent=71 // pred_check_branch
          %7436 = sbr.rel (%p7434) target = $region88
        $region87: #{tpu_custom_call.1} parent=71 // pred_region
          %7437 = dma.done [#allocation4], 256
        $region88: #{tpu_custom_call.1} parent=71 // pred_fallthru
          _
      $region72: #{tpu_custom_call.1} parent=5 // pred_fallthru
        _
      %p7438 = scmp.le.s32.totalorder 2, %s23
      // Predicated region
      $region89: #{tpu_custom_call.1} parent=5 // pred_check
        %p7439 = pneg %p7438
      $region90: #{tpu_custom_call.1} parent=5 // pred_check_branch
        %7441 = sbr.rel (%p7439) target = $region92
      $region91: #{tpu_custom_call.1} parent=5 // pred_region
        %s7442 = ssub.s32 %s23, 2
      $region92: #{tpu_custom_call.1} parent=5 // pred_fallthru
        _
    $region6: #{tpu_custom_call.1} parent=1 // loop_footer
      %s27 = sadd.s32 1, %s23
    $region7: #{tpu_custom_call.1} parent=1 // loop_footer_branch
      %22 = sbr.rel target = $region3
    $region8: #{tpu_custom_call.1} parent=1 // loop_exit
      _
    %7443 = vsyncpa [#allocation3], 1
    %s7444 = scalar_lea.sflag [#allocation3], 1
    %7445 = vsyncpa %s7444, 1
    %7446 = vsyncpa [#allocation4], 1
    %s7447 = scalar_lea.sflag [#allocation4], 1
    %7448 = vsyncpa %s7447, 1

</llo_original>
